<compile_context>
chip_gen: v6e
topology: v6e:2x2x1
jax: 0.10.0
libtpu: 0.0.40
codegen_flags: <defaults>
</compile_context>

<pallas_src>
import jax
import jax.numpy as jnp
from jax.experimental import pallas as pl
from jax.experimental.pallas import tpu as pltpu

HIDDEN = 20
INPUT = 40
CLASSES = 4
LAYERS = 3

H_PAD = 128                 # one full lane-width per gate / per hidden state
GATES_PAD = 4 * H_PAD       # padded gate axis
_DEFAULT_BLOCK_B_CAP = 256  # rows per batch block (tunable via block_b=)


def _mm(a, b):
    """MXU matmul with f32 accumulation; operand dtype follows the weight."""
    return jnp.dot(a.astype(b.dtype), b, preferred_element_type=jnp.float32)


def _lstm_fc_kernel(x_ref,
                    w_ih0_ref, w_hh0_ref, b0_ref,
                    w_ih1_ref, w_hh1_ref, b1_ref,
                    w_ih2_ref, w_hh2_ref, b2_ref,
                    w_fc_ref, b_fc_ref,
                    out_ref):
    """Stacked LSTM (wavefront schedule) + final Linear for one batch block.

    x_ref is time-major (T, Bb, INPUT).  Weights arrive pre-transposed and
    gate-padded: w_ih0 (IN, 512), w_ih1/2 & w_hh* (128, 512), biases (1, 512)
    (= b_ih + b_hh), w_fc (128, C).  Padded lanes are zero so the recurrence
    keeps them at exactly zero.
    """
    T = x_ref.shape[0]
    Bb = x_ref.shape[1]

    # Hoisted: every weight is read from VMEM exactly once.
    W_ih = [w_ih0_ref[...], w_ih1_ref[...], w_ih2_ref[...]]
    W_hh = [w_hh0_ref[...], w_hh1_ref[...], w_hh2_ref[...]]
    Bias = [b0_ref[...], b1_ref[...], b2_ref[...]]
    w_fc = w_fc_ref[...]
    b_fc = b_fc_ref[...]

    # Layer-0 input projections: T independent dots, entirely OFF the recurrent
    # chain (depend only on x).  Leading-axis indexing of x_ref[...] is free.
    x_f = x_ref[...].astype(jnp.float32)                    # (T, Bb, IN)
    g_in0 = [_mm(x_f[t], W_ih[0]) + Bias[0] for t in range(T)]   # T x (Bb, 512)

    h = [jnp.zeros((Bb, H_PAD), jnp.float32) for _ in range(LAYERS)]
    c = [jnp.zeros((Bb, H_PAD), jnp.float32) for _ in range(LAYERS)]

    # Wavefront over (layer, time): layer l at time t = s - l depends only on
    # values produced at step s-1, so each step's (up to 3) cells are mutually
    # independent and the serial chain is T + LAYERS - 1 rounds instead of T*L.
    for s in range(T + LAYERS - 1):
        h_prev = list(h)
        for l in range(LAYERS):
            t = s - l
            if not (0 <= t < T):
                continue
            if l == 0:
                gates = g_in0[t] + _mm(h_prev[0], W_hh[0])
            else:
                gates = (_mm(h_prev[l - 1], W_ih[l])
                         + _mm(h_prev[l], W_hh[l])
                         + Bias[l])
            # 128-aligned gate slices -> free vreg selects (no lane rotates).
            i_g = jax.nn.sigmoid(gates[:, 0 * H_PAD:1 * H_PAD])
            f_g = jax.nn.sigmoid(gates[:, 1 * H_PAD:2 * H_PAD])
            g_g = jnp.tanh(gates[:, 2 * H_PAD:3 * H_PAD])
            o_g = jax.nn.sigmoid(gates[:, 3 * H_PAD:4 * H_PAD])
            c[l] = f_g * c[l] + i_g * g_g
            h[l] = o_g * jnp.tanh(c[l])

        # TODO(synk): nn.LSTM dropout(p=0.2) between layers is train-only and
        # stochastic; inference (eval) semantics — no dropout — are implemented.

    # fc(out[:, -1, :]) == fc(h of last layer after the last time step).
    out = _mm(h[-1], w_fc) + b_fc
    out_ref[...] = out.astype(out_ref.dtype)


# ----------------------------------------------------------------------------
# Wrapper / parameter preparation
# ----------------------------------------------------------------------------

def _pad_gate_cols(w_t):
    """(in_dim, 4H) -> (in_dim, 4*128): each gate in its own 128-lane slot."""
    in_dim = w_t.shape[0]
    out = jnp.zeros((in_dim, GATES_PAD), w_t.dtype)
    for g in range(4):
        out = out.at[:, g * H_PAD:g * H_PAD + HIDDEN].set(
            w_t[:, g * HIDDEN:(g + 1) * HIDDEN])
    return out


def _pad_rows(w, rows):
    out = jnp.zeros((rows, w.shape[1]), w.dtype)
    return out.at[:w.shape[0], :].set(w)


def prepare_params(params, dtype=jnp.float32):
    """One-time weight prep: transpose, fuse biases, gate-pad to 128 lanes.

    Pass dtype=jnp.bfloat16 on v6e/v7x to feed bf16 operands to the MXU
    (accumulation stays f32 inside the kernel).
    """
    prep = []
    for l in range(LAYERS):
        w_ih_t = jnp.transpose(params[f"w_ih_{l}"])                 # (in_dim, 4H)
        w_hh_t = jnp.transpose(params[f"w_hh_{l}"])                 # (H, 4H)
        b = (params[f"b_ih_{l}"] + params[f"b_hh_{l}"]).reshape(1, -1)  # (1, 4H)

        w_ih_p = _pad_gate_cols(w_ih_t)                             # (in_dim, 512)
        if l > 0:
            w_ih_p = _pad_rows(w_ih_p, H_PAD)                       # (128, 512)
        w_hh_p = _pad_rows(_pad_gate_cols(w_hh_t), H_PAD)           # (128, 512)
        b_p = _pad_gate_cols(b)                                     # (1, 512)
        prep += [w_ih_p.astype(dtype), w_hh_p.astype(dtype),
                 b_p.astype(jnp.float32)]

    w_fc_p = _pad_rows(jnp.transpose(params["w_fc"]), H_PAD)        # (128, C)
    b_fc = params["b_fc"].reshape(1, -1)                            # (1, C)
    prep += [w_fc_p.astype(dtype), b_fc.astype(jnp.float32)]
    return tuple(prep)


def _pick_block_b(B, cap=_DEFAULT_BLOCK_B_CAP):
    """Batch block: divides B, <= cap, multiple of 8 (or == B), and when the
    batch splits cleanly prefer >= 2 grid steps so both v7x TCs get work."""
    if B <= cap:
        if B % 16 == 0:
            return B // 2          # two grid steps -> megacore sharding on v7x
        return B                   # tiny / odd batches: single block
    for cand in range(cap - cap % 8, 7, -8):
        if B % cand == 0:
            return cand
    for cand in range(cap, 0, -1):  # fallback (rare): any divisor
        if B % cand == 0:
            return cand
    return B


def rnn_forward(x, prepared_params, *, block_b=None):
    """Forward pass. `prepared_params` comes from prepare_params (called once)."""
    B, T, in_dim = x.shape
    assert in_dim == INPUT, (in_dim, INPUT)

    if block_b is None:
        block_b = _pick_block_b(B)
    assert B % block_b == 0, (B, block_b)
    grid = (B // block_b,)

    # Time-major so in-kernel per-step indexing is a free leading-axis index.
    x_tm = jnp.transpose(x, (1, 0, 2))                              # (T, B, IN)

    x_spec = pl.BlockSpec((T, block_b, INPUT), lambda i: (0, i, 0))
    weight_specs = [pl.BlockSpec(memory_space=pltpu.MemorySpace.VMEM)
                    ] * len(prepared_params)
    out_spec = pl.BlockSpec((block_b, CLASSES), lambda i: (i, 0))

    return pl.pallas_call(
        _lstm_fc_kernel,
        out_shape=jax.ShapeDtypeStruct((B, CLASSES), jnp.float32),
        grid=grid,
        in_specs=[x_spec] + weight_specs,
        out_specs=out_spec,
        compiler_params=pltpu.CompilerParams(
            dimension_semantics=("parallel",),
            vmem_limit_bytes=32 * 1024 * 1024),
    )(x_tm, *prepared_params)


# ----------------------------------------------------------------------------
# Init + pure-JAX reference + self-test
# ----------------------------------------------------------------------------

def init_params(key):
    """Deterministic init mirroring PyTorch's U(-1/sqrt(H), 1/sqrt(H))."""
    bound = 1.0 / float(HIDDEN) ** 0.5
    keys = jax.random.split(key, 4 * LAYERS + 2)
    params = {}
    idx = 0
    for l in range(LAYERS):
        in_dim = INPUT if l == 0 else HIDDEN
        params[f"w_ih_{l}"] = jax.random.uniform(
            keys[idx], (4 * HIDDEN, in_dim), jnp.float32, -bound, bound); idx += 1
        params[f"w_hh_{l}"] = jax.random.uniform(
            keys[idx], (4 * HIDDEN, HIDDEN), jnp.float32, -bound, bound); idx += 1
        params[f"b_ih_{l}"] = jax.random.uniform(
            keys[idx], (4 * HIDDEN,), jnp.float32, -bound, bound); idx += 1
        params[f"b_hh_{l}"] = jax.random.uniform(
            keys[idx], (4 * HIDDEN,), jnp.float32, -bound, bound); idx += 1
    params["w_fc"] = jax.random.uniform(
        keys[idx], (CLASSES, HIDDEN), jnp.float32, -bound, bound); idx += 1
    params["b_fc"] = jax.random.uniform(
        keys[idx], (CLASSES,), jnp.float32, -bound, bound)
    return params


def _reference(x, params):
    """Pure-JAX reference (PyTorch nn.LSTM + Linear inference semantics)."""
    B, T, _ = x.shape
    H = HIDDEN
    seq = x.astype(jnp.float32)
    for l in range(LAYERS):
        w_ih = params[f"w_ih_{l}"]
        w_hh = params[f"w_hh_{l}"]
        b = params[f"b_ih_{l}"] + params[f"b_hh_{l}"]
        h = jnp.zeros((B, H), jnp.float32)
        c = jnp.zeros((B, H), jnp.float32)
        outs = []
        for t in range(T):
            g = seq[:, t, :] @ w_ih.T + h @ w_hh.T + b
            i_g = jax.nn.sigmoid(g[:, 0 * H:1 * H])
            f_g = jax.nn.sigmoid(g[:, 1 * H:2 * H])
            g_g = jnp.tanh(g[:, 2 * H:3 * H])
            o_g = jax.nn.sigmoid(g[:, 3 * H:4 * H])
            c = f_g * c + i_g * g_g
            h = o_g * jnp.tanh(c)
            outs.append(h)
        seq = jnp.stack(outs, axis=1)
    return seq[:, -1, :] @ params["w_fc"].T + params["b_fc"]


if __name__ == "__main__":
    key = jax.random.PRNGKey(0)
    k_x, k_p = jax.random.split(key)

    batch, seq = 2, 8
    x = jax.random.normal(k_x, (batch, seq, INPUT), dtype=jnp.float32)
    params = init_params(k_p)
    prepared = prepare_params(params)          # one-time weight prep

    out = rnn_forward(x, prepared)
    jax.block_until_ready(out)
    assert out.shape == (batch, CLASSES), out.shape

    ref = _reference(x, params)
    assert jnp.allclose(out, ref, rtol=1e-4, atol=1e-4), (
        "kernel/reference mismatch", jnp.max(jnp.abs(out - ref)))

    print("KERNEL_OK")
</pallas_src>

<mosaic_0001>
module attributes {stable_mosaic.version = 11 : i64} {
  func.func @_lstm_fc_kernel(%arg0: i32, %arg1: memref<8x2x40xf32, #tpu.memory_space<vmem>>, %arg2: memref<40x512xf32, #tpu.memory_space<vmem>>, %arg3: memref<128x512xf32, #tpu.memory_space<vmem>>, %arg4: memref<1x512xf32, #tpu.memory_space<vmem>>, %arg5: memref<128x512xf32, #tpu.memory_space<vmem>>, %arg6: memref<128x512xf32, #tpu.memory_space<vmem>>, %arg7: memref<1x512xf32, #tpu.memory_space<vmem>>, %arg8: memref<128x512xf32, #tpu.memory_space<vmem>>, %arg9: memref<128x512xf32, #tpu.memory_space<vmem>>, %arg10: memref<1x512xf32, #tpu.memory_space<vmem>>, %arg11: memref<128x4xf32, #tpu.memory_space<vmem>>, %arg12: memref<1x4xf32, #tpu.memory_space<vmem>>, %arg13: memref<2x4xf32, #tpu.memory_space<vmem>>) attributes {dimension_semantics = [#tpu.dimension_semantics<parallel>], iteration_bounds = array<i64: 1>, scalar_prefetch = 0 : i64, scratch_operands = 0 : i64, tpu.core_type = #tpu.core_type<tc>, window_params = [{transform_indices = @transform_0, window_bounds = array<i64: 8, 2, 40>}, {pipeline_mode = #tpu.pipeline_mode<synchronous>, transform_indices = @transform_1, window_bounds = array<i64: 40, 512>}, {pipeline_mode = #tpu.pipeline_mode<synchronous>, transform_indices = @transform_2, window_bounds = array<i64: 128, 512>}, {pipeline_mode = #tpu.pipeline_mode<synchronous>, transform_indices = @transform_3, window_bounds = array<i64: 1, 512>}, {pipeline_mode = #tpu.pipeline_mode<synchronous>, transform_indices = @transform_4, window_bounds = array<i64: 128, 512>}, {pipeline_mode = #tpu.pipeline_mode<synchronous>, transform_indices = @transform_5, window_bounds = array<i64: 128, 512>}, {pipeline_mode = #tpu.pipeline_mode<synchronous>, transform_indices = @transform_6, window_bounds = array<i64: 1, 512>}, {pipeline_mode = #tpu.pipeline_mode<synchronous>, transform_indices = @transform_7, window_bounds = array<i64: 128, 512>}, {pipeline_mode = #tpu.pipeline_mode<synchronous>, transform_indices = @transform_8, window_bounds = array<i64: 128, 512>}, {pipeline_mode = #tpu.pipeline_mode<synchronous>, transform_indices = @transform_9, window_bounds = array<i64: 1, 512>}, {pipeline_mode = #tpu.pipeline_mode<synchronous>, transform_indices = @transform_10, window_bounds = array<i64: 128, 4>}, {pipeline_mode = #tpu.pipeline_mode<synchronous>, transform_indices = @transform_11, window_bounds = array<i64: 1, 4>}, {transform_indices = @transform_12, window_bounds = array<i64: 2, 4>}]} {
    %c0 = arith.constant 0 : index
    %c0_0 = arith.constant 0 : index
    %0 = vector.load %arg2[%c0, %c0_0] : memref<40x512xf32, #tpu.memory_space<vmem>>, vector<40x512xf32>
    %c0_1 = arith.constant 0 : index
    %c0_2 = arith.constant 0 : index
    %1 = vector.load %arg5[%c0_1, %c0_2] : memref<128x512xf32, #tpu.memory_space<vmem>>, vector<128x512xf32>
    %c0_3 = arith.constant 0 : index
    %c0_4 = arith.constant 0 : index
    %2 = vector.load %arg8[%c0_3, %c0_4] : memref<128x512xf32, #tpu.memory_space<vmem>>, vector<128x512xf32>
    %c0_5 = arith.constant 0 : index
    %c0_6 = arith.constant 0 : index
    %3 = vector.load %arg3[%c0_5, %c0_6] : memref<128x512xf32, #tpu.memory_space<vmem>>, vector<128x512xf32>
    %c0_7 = arith.constant 0 : index
    %c0_8 = arith.constant 0 : index
    %4 = vector.load %arg6[%c0_7, %c0_8] : memref<128x512xf32, #tpu.memory_space<vmem>>, vector<128x512xf32>
    %c0_9 = arith.constant 0 : index
    %c0_10 = arith.constant 0 : index
    %5 = vector.load %arg9[%c0_9, %c0_10] : memref<128x512xf32, #tpu.memory_space<vmem>>, vector<128x512xf32>
    %c0_11 = arith.constant 0 : index
    %c0_12 = arith.constant 0 : index
    %6 = vector.load %arg4[%c0_11, %c0_12] : memref<1x512xf32, #tpu.memory_space<vmem>>, vector<1x512xf32>
    %c0_13 = arith.constant 0 : index
    %c0_14 = arith.constant 0 : index
    %7 = vector.load %arg7[%c0_13, %c0_14] : memref<1x512xf32, #tpu.memory_space<vmem>>, vector<1x512xf32>
    %c0_15 = arith.constant 0 : index
    %c0_16 = arith.constant 0 : index
    %8 = vector.load %arg10[%c0_15, %c0_16] : memref<1x512xf32, #tpu.memory_space<vmem>>, vector<1x512xf32>
    %c0_17 = arith.constant 0 : index
    %c0_18 = arith.constant 0 : index
    %9 = vector.load %arg11[%c0_17, %c0_18] : memref<128x4xf32, #tpu.memory_space<vmem>>, vector<128x4xf32>
    %c0_19 = arith.constant 0 : index
    %c0_20 = arith.constant 0 : index
    %10 = vector.load %arg12[%c0_19, %c0_20] : memref<1x4xf32, #tpu.memory_space<vmem>>, vector<1x4xf32>
    %c0_21 = arith.constant 0 : index
    %c0_22 = arith.constant 0 : index
    %c0_23 = arith.constant 0 : index
    %11 = vector.load %arg1[%c0_21, %c0_22, %c0_23] : memref<8x2x40xf32, #tpu.memory_space<vmem>>, vector<8x2x40xf32>
    %12 = vector.extract_strided_slice %11 {offsets = [0, 0, 0], sizes = [1, 2, 40], strides = [1, 1, 1]} : vector<8x2x40xf32> to vector<1x2x40xf32>
    %13 = vector.shape_cast %12 : vector<1x2x40xf32> to vector<2x40xf32>
    %cst = arith.constant dense<0.000000e+00> : vector<2x512xf32>
    %14 = tpu.matmul %13, %0, %cst {dimension_numbers = #tpu.dot_dimension_numbers<[1], [0], [0], [1], [0, 0, 1, 1], [], []>} : vector<2x40xf32>, vector<40x512xf32>, vector<2x512xf32> -> vector<2x512xf32>
    %15 = vector.broadcast %6 : vector<1x512xf32> to vector<2x512xf32>
    %16 = arith.addf %14, %15 : vector<2x512xf32>
    %17 = vector.extract_strided_slice %11 {offsets = [1, 0, 0], sizes = [1, 2, 40], strides = [1, 1, 1]} : vector<8x2x40xf32> to vector<1x2x40xf32>
    %18 = vector.shape_cast %17 : vector<1x2x40xf32> to vector<2x40xf32>
    %cst_24 = arith.constant dense<0.000000e+00> : vector<2x512xf32>
    %19 = tpu.matmul %18, %0, %cst_24 {dimension_numbers = #tpu.dot_dimension_numbers<[1], [0], [0], [1], [0, 0, 1, 1], [], []>} : vector<2x40xf32>, vector<40x512xf32>, vector<2x512xf32> -> vector<2x512xf32>
    %20 = vector.broadcast %6 : vector<1x512xf32> to vector<2x512xf32>
    %21 = arith.addf %19, %20 : vector<2x512xf32>
    %22 = vector.extract_strided_slice %11 {offsets = [2, 0, 0], sizes = [1, 2, 40], strides = [1, 1, 1]} : vector<8x2x40xf32> to vector<1x2x40xf32>
    %23 = vector.shape_cast %22 : vector<1x2x40xf32> to vector<2x40xf32>
    %cst_25 = arith.constant dense<0.000000e+00> : vector<2x512xf32>
    %24 = tpu.matmul %23, %0, %cst_25 {dimension_numbers = #tpu.dot_dimension_numbers<[1], [0], [0], [1], [0, 0, 1, 1], [], []>} : vector<2x40xf32>, vector<40x512xf32>, vector<2x512xf32> -> vector<2x512xf32>
    %25 = vector.broadcast %6 : vector<1x512xf32> to vector<2x512xf32>
    %26 = arith.addf %24, %25 : vector<2x512xf32>
    %27 = vector.extract_strided_slice %11 {offsets = [3, 0, 0], sizes = [1, 2, 40], strides = [1, 1, 1]} : vector<8x2x40xf32> to vector<1x2x40xf32>
    %28 = vector.shape_cast %27 : vector<1x2x40xf32> to vector<2x40xf32>
    %cst_26 = arith.constant dense<0.000000e+00> : vector<2x512xf32>
    %29 = tpu.matmul %28, %0, %cst_26 {dimension_numbers = #tpu.dot_dimension_numbers<[1], [0], [0], [1], [0, 0, 1, 1], [], []>} : vector<2x40xf32>, vector<40x512xf32>, vector<2x512xf32> -> vector<2x512xf32>
    %30 = vector.broadcast %6 : vector<1x512xf32> to vector<2x512xf32>
    %31 = arith.addf %29, %30 : vector<2x512xf32>
    %32 = vector.extract_strided_slice %11 {offsets = [4, 0, 0], sizes = [1, 2, 40], strides = [1, 1, 1]} : vector<8x2x40xf32> to vector<1x2x40xf32>
    %33 = vector.shape_cast %32 : vector<1x2x40xf32> to vector<2x40xf32>
    %cst_27 = arith.constant dense<0.000000e+00> : vector<2x512xf32>
    %34 = tpu.matmul %33, %0, %cst_27 {dimension_numbers = #tpu.dot_dimension_numbers<[1], [0], [0], [1], [0, 0, 1, 1], [], []>} : vector<2x40xf32>, vector<40x512xf32>, vector<2x512xf32> -> vector<2x512xf32>
    %35 = vector.broadcast %6 : vector<1x512xf32> to vector<2x512xf32>
    %36 = arith.addf %34, %35 : vector<2x512xf32>
    %37 = vector.extract_strided_slice %11 {offsets = [5, 0, 0], sizes = [1, 2, 40], strides = [1, 1, 1]} : vector<8x2x40xf32> to vector<1x2x40xf32>
    %38 = vector.shape_cast %37 : vector<1x2x40xf32> to vector<2x40xf32>
    %cst_28 = arith.constant dense<0.000000e+00> : vector<2x512xf32>
    %39 = tpu.matmul %38, %0, %cst_28 {dimension_numbers = #tpu.dot_dimension_numbers<[1], [0], [0], [1], [0, 0, 1, 1], [], []>} : vector<2x40xf32>, vector<40x512xf32>, vector<2x512xf32> -> vector<2x512xf32>
    %40 = vector.broadcast %6 : vector<1x512xf32> to vector<2x512xf32>
    %41 = arith.addf %39, %40 : vector<2x512xf32>
    %42 = vector.extract_strided_slice %11 {offsets = [6, 0, 0], sizes = [1, 2, 40], strides = [1, 1, 1]} : vector<8x2x40xf32> to vector<1x2x40xf32>
    %43 = vector.shape_cast %42 : vector<1x2x40xf32> to vector<2x40xf32>
    %cst_29 = arith.constant dense<0.000000e+00> : vector<2x512xf32>
    %44 = tpu.matmul %43, %0, %cst_29 {dimension_numbers = #tpu.dot_dimension_numbers<[1], [0], [0], [1], [0, 0, 1, 1], [], []>} : vector<2x40xf32>, vector<40x512xf32>, vector<2x512xf32> -> vector<2x512xf32>
    %45 = vector.broadcast %6 : vector<1x512xf32> to vector<2x512xf32>
    %46 = arith.addf %44, %45 : vector<2x512xf32>
    %47 = vector.extract_strided_slice %11 {offsets = [7, 0, 0], sizes = [1, 2, 40], strides = [1, 1, 1]} : vector<8x2x40xf32> to vector<1x2x40xf32>
    %48 = vector.shape_cast %47 : vector<1x2x40xf32> to vector<2x40xf32>
    %cst_30 = arith.constant dense<0.000000e+00> : vector<2x512xf32>
    %49 = tpu.matmul %48, %0, %cst_30 {dimension_numbers = #tpu.dot_dimension_numbers<[1], [0], [0], [1], [0, 0, 1, 1], [], []>} : vector<2x40xf32>, vector<40x512xf32>, vector<2x512xf32> -> vector<2x512xf32>
    %50 = vector.broadcast %6 : vector<1x512xf32> to vector<2x512xf32>
    %51 = arith.addf %49, %50 : vector<2x512xf32>
    %cst_31 = arith.constant 0.000000e+00 : f32
    %52 = vector.broadcast %cst_31 : f32 to vector<2x128xf32>
    %cst_32 = arith.constant 0.000000e+00 : f32
    %53 = vector.broadcast %cst_32 : f32 to vector<2x128xf32>
    %cst_33 = arith.constant 0.000000e+00 : f32
    %54 = vector.broadcast %cst_33 : f32 to vector<2x128xf32>
    %cst_34 = arith.constant 0.000000e+00 : f32
    %55 = vector.broadcast %cst_34 : f32 to vector<2x128xf32>
    %cst_35 = arith.constant 0.000000e+00 : f32
    %56 = vector.broadcast %cst_35 : f32 to vector<2x128xf32>
    %cst_36 = arith.constant 0.000000e+00 : f32
    %57 = vector.broadcast %cst_36 : f32 to vector<2x128xf32>
    %cst_37 = arith.constant dense<0.000000e+00> : vector<2x512xf32>
    %58 = tpu.matmul %52, %3, %cst_37 {dimension_numbers = #tpu.dot_dimension_numbers<[1], [0], [0], [1], [0, 0, 1, 1], [], []>} : vector<2x128xf32>, vector<128x512xf32>, vector<2x512xf32> -> vector<2x512xf32>
    %59 = arith.addf %16, %58 : vector<2x512xf32>
    %60 = vector.extract_strided_slice %59 {offsets = [0, 0], sizes = [2, 128], strides = [1, 1]} : vector<2x512xf32> to vector<2x128xf32>
    %61 = arith.negf %60 : vector<2x128xf32>
    %62 = math.exp %61 : vector<2x128xf32>
    %cst_38 = arith.constant 1.000000e+00 : f32
    %63 = vector.broadcast %cst_38 : f32 to vector<2x128xf32>
    %64 = arith.addf %63, %62 : vector<2x128xf32>
    %65 = arith.divf %63, %64 : vector<2x128xf32>
    %66 = vector.extract_strided_slice %59 {offsets = [0, 128], sizes = [2, 128], strides = [1, 1]} : vector<2x512xf32> to vector<2x128xf32>
    %67 = arith.negf %66 : vector<2x128xf32>
    %68 = math.exp %67 : vector<2x128xf32>
    %cst_39 = arith.constant 1.000000e+00 : f32
    %69 = vector.broadcast %cst_39 : f32 to vector<2x128xf32>
    %70 = arith.addf %69, %68 : vector<2x128xf32>
    %71 = arith.divf %69, %70 : vector<2x128xf32>
    %72 = vector.extract_strided_slice %59 {offsets = [0, 256], sizes = [2, 128], strides = [1, 1]} : vector<2x512xf32> to vector<2x128xf32>
    %73 = math.tanh %72 : vector<2x128xf32>
    %74 = vector.extract_strided_slice %59 {offsets = [0, 384], sizes = [2, 128], strides = [1, 1]} : vector<2x512xf32> to vector<2x128xf32>
    %75 = arith.negf %74 : vector<2x128xf32>
    %76 = math.exp %75 : vector<2x128xf32>
    %cst_40 = arith.constant 1.000000e+00 : f32
    %77 = vector.broadcast %cst_40 : f32 to vector<2x128xf32>
    %78 = arith.addf %77, %76 : vector<2x128xf32>
    %79 = arith.divf %77, %78 : vector<2x128xf32>
    %80 = arith.mulf %71, %55 : vector<2x128xf32>
    %81 = arith.mulf %65, %73 : vector<2x128xf32>
    %82 = arith.addf %80, %81 : vector<2x128xf32>
    %83 = math.tanh %82 : vector<2x128xf32>
    %84 = arith.mulf %79, %83 : vector<2x128xf32>
    %cst_41 = arith.constant dense<0.000000e+00> : vector<2x512xf32>
    %85 = tpu.matmul %84, %3, %cst_41 {dimension_numbers = #tpu.dot_dimension_numbers<[1], [0], [0], [1], [0, 0, 1, 1], [], []>} : vector<2x128xf32>, vector<128x512xf32>, vector<2x512xf32> -> vector<2x512xf32>
    %86 = arith.addf %21, %85 : vector<2x512xf32>
    %87 = vector.extract_strided_slice %86 {offsets = [0, 0], sizes = [2, 128], strides = [1, 1]} : vector<2x512xf32> to vector<2x128xf32>
    %88 = arith.negf %87 : vector<2x128xf32>
    %89 = math.exp %88 : vector<2x128xf32>
    %cst_42 = arith.constant 1.000000e+00 : f32
    %90 = vector.broadcast %cst_42 : f32 to vector<2x128xf32>
    %91 = arith.addf %90, %89 : vector<2x128xf32>
    %92 = arith.divf %90, %91 : vector<2x128xf32>
    %93 = vector.extract_strided_slice %86 {offsets = [0, 128], sizes = [2, 128], strides = [1, 1]} : vector<2x512xf32> to vector<2x128xf32>
    %94 = arith.negf %93 : vector<2x128xf32>
    %95 = math.exp %94 : vector<2x128xf32>
    %cst_43 = arith.constant 1.000000e+00 : f32
    %96 = vector.broadcast %cst_43 : f32 to vector<2x128xf32>
    %97 = arith.addf %96, %95 : vector<2x128xf32>
    %98 = arith.divf %96, %97 : vector<2x128xf32>
    %99 = vector.extract_strided_slice %86 {offsets = [0, 256], sizes = [2, 128], strides = [1, 1]} : vector<2x512xf32> to vector<2x128xf32>
    %100 = math.tanh %99 : vector<2x128xf32>
    %101 = vector.extract_strided_slice %86 {offsets = [0, 384], sizes = [2, 128], strides = [1, 1]} : vector<2x512xf32> to vector<2x128xf32>
    %102 = arith.negf %101 : vector<2x128xf32>
    %103 = math.exp %102 : vector<2x128xf32>
    %cst_44 = arith.constant 1.000000e+00 : f32
    %104 = vector.broadcast %cst_44 : f32 to vector<2x128xf32>
    %105 = arith.addf %104, %103 : vector<2x128xf32>
    %106 = arith.divf %104, %105 : vector<2x128xf32>
    %107 = arith.mulf %98, %82 : vector<2x128xf32>
    %108 = arith.mulf %92, %100 : vector<2x128xf32>
    %109 = arith.addf %107, %108 : vector<2x128xf32>
    %110 = math.tanh %109 : vector<2x128xf32>
    %111 = arith.mulf %106, %110 : vector<2x128xf32>
    %cst_45 = arith.constant dense<0.000000e+00> : vector<2x512xf32>
    %112 = tpu.matmul %84, %1, %cst_45 {dimension_numbers = #tpu.dot_dimension_numbers<[1], [0], [0], [1], [0, 0, 1, 1], [], []>} : vector<2x128xf32>, vector<128x512xf32>, vector<2x512xf32> -> vector<2x512xf32>
    %cst_46 = arith.constant dense<0.000000e+00> : vector<2x512xf32>
    %113 = tpu.matmul %53, %4, %cst_46 {dimension_numbers = #tpu.dot_dimension_numbers<[1], [0], [0], [1], [0, 0, 1, 1], [], []>} : vector<2x128xf32>, vector<128x512xf32>, vector<2x512xf32> -> vector<2x512xf32>
    %114 = arith.addf %112, %113 : vector<2x512xf32>
    %115 = vector.broadcast %7 : vector<1x512xf32> to vector<2x512xf32>
    %116 = arith.addf %114, %115 : vector<2x512xf32>
    %117 = vector.extract_strided_slice %116 {offsets = [0, 0], sizes = [2, 128], strides = [1, 1]} : vector<2x512xf32> to vector<2x128xf32>
    %118 = arith.negf %117 : vector<2x128xf32>
    %119 = math.exp %118 : vector<2x128xf32>
    %cst_47 = arith.constant 1.000000e+00 : f32
    %120 = vector.broadcast %cst_47 : f32 to vector<2x128xf32>
    %121 = arith.addf %120, %119 : vector<2x128xf32>
    %122 = arith.divf %120, %121 : vector<2x128xf32>
    %123 = vector.extract_strided_slice %116 {offsets = [0, 128], sizes = [2, 128], strides = [1, 1]} : vector<2x512xf32> to vector<2x128xf32>
    %124 = arith.negf %123 : vector<2x128xf32>
    %125 = math.exp %124 : vector<2x128xf32>
    %cst_48 = arith.constant 1.000000e+00 : f32
    %126 = vector.broadcast %cst_48 : f32 to vector<2x128xf32>
    %127 = arith.addf %126, %125 : vector<2x128xf32>
    %128 = arith.divf %126, %127 : vector<2x128xf32>
    %129 = vector.extract_strided_slice %116 {offsets = [0, 256], sizes = [2, 128], strides = [1, 1]} : vector<2x512xf32> to vector<2x128xf32>
    %130 = math.tanh %129 : vector<2x128xf32>
    %131 = vector.extract_strided_slice %116 {offsets = [0, 384], sizes = [2, 128], strides = [1, 1]} : vector<2x512xf32> to vector<2x128xf32>
    %132 = arith.negf %131 : vector<2x128xf32>
    %133 = math.exp %132 : vector<2x128xf32>
    %cst_49 = arith.constant 1.000000e+00 : f32
    %134 = vector.broadcast %cst_49 : f32 to vector<2x128xf32>
    %135 = arith.addf %134, %133 : vector<2x128xf32>
    %136 = arith.divf %134, %135 : vector<2x128xf32>
    %137 = arith.mulf %128, %56 : vector<2x128xf32>
    %138 = arith.mulf %122, %130 : vector<2x128xf32>
    %139 = arith.addf %137, %138 : vector<2x128xf32>
    %140 = math.tanh %139 : vector<2x128xf32>
    %141 = arith.mulf %136, %140 : vector<2x128xf32>
    %cst_50 = arith.constant dense<0.000000e+00> : vector<2x512xf32>
    %142 = tpu.matmul %111, %3, %cst_50 {dimension_numbers = #tpu.dot_dimension_numbers<[1], [0], [0], [1], [0, 0, 1, 1], [], []>} : vector<2x128xf32>, vector<128x512xf32>, vector<2x512xf32> -> vector<2x512xf32>
    %143 = arith.addf %26, %142 : vector<2x512xf32>
    %144 = vector.extract_strided_slice %143 {offsets = [0, 0], sizes = [2, 128], strides = [1, 1]} : vector<2x512xf32> to vector<2x128xf32>
    %145 = arith.negf %144 : vector<2x128xf32>
    %146 = math.exp %145 : vector<2x128xf32>
    %cst_51 = arith.constant 1.000000e+00 : f32
    %147 = vector.broadcast %cst_51 : f32 to vector<2x128xf32>
    %148 = arith.addf %147, %146 : vector<2x128xf32>
    %149 = arith.divf %147, %148 : vector<2x128xf32>
    %150 = vector.extract_strided_slice %143 {offsets = [0, 128], sizes = [2, 128], strides = [1, 1]} : vector<2x512xf32> to vector<2x128xf32>
    %151 = arith.negf %150 : vector<2x128xf32>
    %152 = math.exp %151 : vector<2x128xf32>
    %cst_52 = arith.constant 1.000000e+00 : f32
    %153 = vector.broadcast %cst_52 : f32 to vector<2x128xf32>
    %154 = arith.addf %153, %152 : vector<2x128xf32>
    %155 = arith.divf %153, %154 : vector<2x128xf32>
    %156 = vector.extract_strided_slice %143 {offsets = [0, 256], sizes = [2, 128], strides = [1, 1]} : vector<2x512xf32> to vector<2x128xf32>
    %157 = math.tanh %156 : vector<2x128xf32>
    %158 = vector.extract_strided_slice %143 {offsets = [0, 384], sizes = [2, 128], strides = [1, 1]} : vector<2x512xf32> to vector<2x128xf32>
    %159 = arith.negf %158 : vector<2x128xf32>
    %160 = math.exp %159 : vector<2x128xf32>
    %cst_53 = arith.constant 1.000000e+00 : f32
    %161 = vector.broadcast %cst_53 : f32 to vector<2x128xf32>
    %162 = arith.addf %161, %160 : vector<2x128xf32>
    %163 = arith.divf %161, %162 : vector<2x128xf32>
    %164 = arith.mulf %155, %109 : vector<2x128xf32>
    %165 = arith.mulf %149, %157 : vector<2x128xf32>
    %166 = arith.addf %164, %165 : vector<2x128xf32>
    %167 = math.tanh %166 : vector<2x128xf32>
    %168 = arith.mulf %163, %167 : vector<2x128xf32>
    %cst_54 = arith.constant dense<0.000000e+00> : vector<2x512xf32>
    %169 = tpu.matmul %111, %1, %cst_54 {dimension_numbers = #tpu.dot_dimension_numbers<[1], [0], [0], [1], [0, 0, 1, 1], [], []>} : vector<2x128xf32>, vector<128x512xf32>, vector<2x512xf32> -> vector<2x512xf32>
    %cst_55 = arith.constant dense<0.000000e+00> : vector<2x512xf32>
    %170 = tpu.matmul %141, %4, %cst_55 {dimension_numbers = #tpu.dot_dimension_numbers<[1], [0], [0], [1], [0, 0, 1, 1], [], []>} : vector<2x128xf32>, vector<128x512xf32>, vector<2x512xf32> -> vector<2x512xf32>
    %171 = arith.addf %169, %170 : vector<2x512xf32>
    %172 = vector.broadcast %7 : vector<1x512xf32> to vector<2x512xf32>
    %173 = arith.addf %171, %172 : vector<2x512xf32>
    %174 = vector.extract_strided_slice %173 {offsets = [0, 0], sizes = [2, 128], strides = [1, 1]} : vector<2x512xf32> to vector<2x128xf32>
    %175 = arith.negf %174 : vector<2x128xf32>
    %176 = math.exp %175 : vector<2x128xf32>
    %cst_56 = arith.constant 1.000000e+00 : f32
    %177 = vector.broadcast %cst_56 : f32 to vector<2x128xf32>
    %178 = arith.addf %177, %176 : vector<2x128xf32>
    %179 = arith.divf %177, %178 : vector<2x128xf32>
    %180 = vector.extract_strided_slice %173 {offsets = [0, 128], sizes = [2, 128], strides = [1, 1]} : vector<2x512xf32> to vector<2x128xf32>
    %181 = arith.negf %180 : vector<2x128xf32>
    %182 = math.exp %181 : vector<2x128xf32>
    %cst_57 = arith.constant 1.000000e+00 : f32
    %183 = vector.broadcast %cst_57 : f32 to vector<2x128xf32>
    %184 = arith.addf %183, %182 : vector<2x128xf32>
    %185 = arith.divf %183, %184 : vector<2x128xf32>
    %186 = vector.extract_strided_slice %173 {offsets = [0, 256], sizes = [2, 128], strides = [1, 1]} : vector<2x512xf32> to vector<2x128xf32>
    %187 = math.tanh %186 : vector<2x128xf32>
    %188 = vector.extract_strided_slice %173 {offsets = [0, 384], sizes = [2, 128], strides = [1, 1]} : vector<2x512xf32> to vector<2x128xf32>
    %189 = arith.negf %188 : vector<2x128xf32>
    %190 = math.exp %189 : vector<2x128xf32>
    %cst_58 = arith.constant 1.000000e+00 : f32
    %191 = vector.broadcast %cst_58 : f32 to vector<2x128xf32>
    %192 = arith.addf %191, %190 : vector<2x128xf32>
    %193 = arith.divf %191, %192 : vector<2x128xf32>
    %194 = arith.mulf %185, %139 : vector<2x128xf32>
    %195 = arith.mulf %179, %187 : vector<2x128xf32>
    %196 = arith.addf %194, %195 : vector<2x128xf32>
    %197 = math.tanh %196 : vector<2x128xf32>
    %198 = arith.mulf %193, %197 : vector<2x128xf32>
    %cst_59 = arith.constant dense<0.000000e+00> : vector<2x512xf32>
    %199 = tpu.matmul %141, %2, %cst_59 {dimension_numbers = #tpu.dot_dimension_numbers<[1], [0], [0], [1], [0, 0, 1, 1], [], []>} : vector<2x128xf32>, vector<128x512xf32>, vector<2x512xf32> -> vector<2x512xf32>
    %cst_60 = arith.constant dense<0.000000e+00> : vector<2x512xf32>
    %200 = tpu.matmul %54, %5, %cst_60 {dimension_numbers = #tpu.dot_dimension_numbers<[1], [0], [0], [1], [0, 0, 1, 1], [], []>} : vector<2x128xf32>, vector<128x512xf32>, vector<2x512xf32> -> vector<2x512xf32>
    %201 = arith.addf %199, %200 : vector<2x512xf32>
    %202 = vector.broadcast %8 : vector<1x512xf32> to vector<2x512xf32>
    %203 = arith.addf %201, %202 : vector<2x512xf32>
    %204 = vector.extract_strided_slice %203 {offsets = [0, 0], sizes = [2, 128], strides = [1, 1]} : vector<2x512xf32> to vector<2x128xf32>
    %205 = arith.negf %204 : vector<2x128xf32>
    %206 = math.exp %205 : vector<2x128xf32>
    %cst_61 = arith.constant 1.000000e+00 : f32
    %207 = vector.broadcast %cst_61 : f32 to vector<2x128xf32>
    %208 = arith.addf %207, %206 : vector<2x128xf32>
    %209 = arith.divf %207, %208 : vector<2x128xf32>
    %210 = vector.extract_strided_slice %203 {offsets = [0, 128], sizes = [2, 128], strides = [1, 1]} : vector<2x512xf32> to vector<2x128xf32>
    %211 = arith.negf %210 : vector<2x128xf32>
    %212 = math.exp %211 : vector<2x128xf32>
    %cst_62 = arith.constant 1.000000e+00 : f32
    %213 = vector.broadcast %cst_62 : f32 to vector<2x128xf32>
    %214 = arith.addf %213, %212 : vector<2x128xf32>
    %215 = arith.divf %213, %214 : vector<2x128xf32>
    %216 = vector.extract_strided_slice %203 {offsets = [0, 256], sizes = [2, 128], strides = [1, 1]} : vector<2x512xf32> to vector<2x128xf32>
    %217 = math.tanh %216 : vector<2x128xf32>
    %218 = vector.extract_strided_slice %203 {offsets = [0, 384], sizes = [2, 128], strides = [1, 1]} : vector<2x512xf32> to vector<2x128xf32>
    %219 = arith.negf %218 : vector<2x128xf32>
    %220 = math.exp %219 : vector<2x128xf32>
    %cst_63 = arith.constant 1.000000e+00 : f32
    %221 = vector.broadcast %cst_63 : f32 to vector<2x128xf32>
    %222 = arith.addf %221, %220 : vector<2x128xf32>
    %223 = arith.divf %221, %222 : vector<2x128xf32>
    %224 = arith.mulf %215, %57 : vector<2x128xf32>
    %225 = arith.mulf %209, %217 : vector<2x128xf32>
    %226 = arith.addf %224, %225 : vector<2x128xf32>
    %227 = math.tanh %226 : vector<2x128xf32>
    %228 = arith.mulf %223, %227 : vector<2x128xf32>
    %cst_64 = arith.constant dense<0.000000e+00> : vector<2x512xf32>
    %229 = tpu.matmul %168, %3, %cst_64 {dimension_numbers = #tpu.dot_dimension_numbers<[1], [0], [0], [1], [0, 0, 1, 1], [], []>} : vector<2x128xf32>, vector<128x512xf32>, vector<2x512xf32> -> vector<2x512xf32>
    %230 = arith.addf %31, %229 : vector<2x512xf32>
    %231 = vector.extract_strided_slice %230 {offsets = [0, 0], sizes = [2, 128], strides = [1, 1]} : vector<2x512xf32> to vector<2x128xf32>
    %232 = arith.negf %231 : vector<2x128xf32>
    %233 = math.exp %232 : vector<2x128xf32>
    %cst_65 = arith.constant 1.000000e+00 : f32
    %234 = vector.broadcast %cst_65 : f32 to vector<2x128xf32>
    %235 = arith.addf %234, %233 : vector<2x128xf32>
    %236 = arith.divf %234, %235 : vector<2x128xf32>
    %237 = vector.extract_strided_slice %230 {offsets = [0, 128], sizes = [2, 128], strides = [1, 1]} : vector<2x512xf32> to vector<2x128xf32>
    %238 = arith.negf %237 : vector<2x128xf32>
    %239 = math.exp %238 : vector<2x128xf32>
    %cst_66 = arith.constant 1.000000e+00 : f32
    %240 = vector.broadcast %cst_66 : f32 to vector<2x128xf32>
    %241 = arith.addf %240, %239 : vector<2x128xf32>
    %242 = arith.divf %240, %241 : vector<2x128xf32>
    %243 = vector.extract_strided_slice %230 {offsets = [0, 256], sizes = [2, 128], strides = [1, 1]} : vector<2x512xf32> to vector<2x128xf32>
    %244 = math.tanh %243 : vector<2x128xf32>
    %245 = vector.extract_strided_slice %230 {offsets = [0, 384], sizes = [2, 128], strides = [1, 1]} : vector<2x512xf32> to vector<2x128xf32>
    %246 = arith.negf %245 : vector<2x128xf32>
    %247 = math.exp %246 : vector<2x128xf32>
    %cst_67 = arith.constant 1.000000e+00 : f32
    %248 = vector.broadcast %cst_67 : f32 to vector<2x128xf32>
    %249 = arith.addf %248, %247 : vector<2x128xf32>
    %250 = arith.divf %248, %249 : vector<2x128xf32>
    %251 = arith.mulf %242, %166 : vector<2x128xf32>
    %252 = arith.mulf %236, %244 : vector<2x128xf32>
    %253 = arith.addf %251, %252 : vector<2x128xf32>
    %254 = math.tanh %253 : vector<2x128xf32>
    %255 = arith.mulf %250, %254 : vector<2x128xf32>
    %cst_68 = arith.constant dense<0.000000e+00> : vector<2x512xf32>
    %256 = tpu.matmul %168, %1, %cst_68 {dimension_numbers = #tpu.dot_dimension_numbers<[1], [0], [0], [1], [0, 0, 1, 1], [], []>} : vector<2x128xf32>, vector<128x512xf32>, vector<2x512xf32> -> vector<2x512xf32>
    %cst_69 = arith.constant dense<0.000000e+00> : vector<2x512xf32>
    %257 = tpu.matmul %198, %4, %cst_69 {dimension_numbers = #tpu.dot_dimension_numbers<[1], [0], [0], [1], [0, 0, 1, 1], [], []>} : vector<2x128xf32>, vector<128x512xf32>, vector<2x512xf32> -> vector<2x512xf32>
    %258 = arith.addf %256, %257 : vector<2x512xf32>
    %259 = vector.broadcast %7 : vector<1x512xf32> to vector<2x512xf32>
    %260 = arith.addf %258, %259 : vector<2x512xf32>
    %261 = vector.extract_strided_slice %260 {offsets = [0, 0], sizes = [2, 128], strides = [1, 1]} : vector<2x512xf32> to vector<2x128xf32>
    %262 = arith.negf %261 : vector<2x128xf32>
    %263 = math.exp %262 : vector<2x128xf32>
    %cst_70 = arith.constant 1.000000e+00 : f32
    %264 = vector.broadcast %cst_70 : f32 to vector<2x128xf32>
    %265 = arith.addf %264, %263 : vector<2x128xf32>
    %266 = arith.divf %264, %265 : vector<2x128xf32>
    %267 = vector.extract_strided_slice %260 {offsets = [0, 128], sizes = [2, 128], strides = [1, 1]} : vector<2x512xf32> to vector<2x128xf32>
    %268 = arith.negf %267 : vector<2x128xf32>
    %269 = math.exp %268 : vector<2x128xf32>
    %cst_71 = arith.constant 1.000000e+00 : f32
    %270 = vector.broadcast %cst_71 : f32 to vector<2x128xf32>
    %271 = arith.addf %270, %269 : vector<2x128xf32>
    %272 = arith.divf %270, %271 : vector<2x128xf32>
    %273 = vector.extract_strided_slice %260 {offsets = [0, 256], sizes = [2, 128], strides = [1, 1]} : vector<2x512xf32> to vector<2x128xf32>
    %274 = math.tanh %273 : vector<2x128xf32>
    %275 = vector.extract_strided_slice %260 {offsets = [0, 384], sizes = [2, 128], strides = [1, 1]} : vector<2x512xf32> to vector<2x128xf32>
    %276 = arith.negf %275 : vector<2x128xf32>
    %277 = math.exp %276 : vector<2x128xf32>
    %cst_72 = arith.constant 1.000000e+00 : f32
    %278 = vector.broadcast %cst_72 : f32 to vector<2x128xf32>
    %279 = arith.addf %278, %277 : vector<2x128xf32>
    %280 = arith.divf %278, %279 : vector<2x128xf32>
    %281 = arith.mulf %272, %196 : vector<2x128xf32>
    %282 = arith.mulf %266, %274 : vector<2x128xf32>
    %283 = arith.addf %281, %282 : vector<2x128xf32>
    %284 = math.tanh %283 : vector<2x128xf32>
    %285 = arith.mulf %280, %284 : vector<2x128xf32>
    %cst_73 = arith.constant dense<0.000000e+00> : vector<2x512xf32>
    %286 = tpu.matmul %198, %2, %cst_73 {dimension_numbers = #tpu.dot_dimension_numbers<[1], [0], [0], [1], [0, 0, 1, 1], [], []>} : vector<2x128xf32>, vector<128x512xf32>, vector<2x512xf32> -> vector<2x512xf32>
    %cst_74 = arith.constant dense<0.000000e+00> : vector<2x512xf32>
    %287 = tpu.matmul %228, %5, %cst_74 {dimension_numbers = #tpu.dot_dimension_numbers<[1], [0], [0], [1], [0, 0, 1, 1], [], []>} : vector<2x128xf32>, vector<128x512xf32>, vector<2x512xf32> -> vector<2x512xf32>
    %288 = arith.addf %286, %287 : vector<2x512xf32>
    %289 = vector.broadcast %8 : vector<1x512xf32> to vector<2x512xf32>
    %290 = arith.addf %288, %289 : vector<2x512xf32>
    %291 = vector.extract_strided_slice %290 {offsets = [0, 0], sizes = [2, 128], strides = [1, 1]} : vector<2x512xf32> to vector<2x128xf32>
    %292 = arith.negf %291 : vector<2x128xf32>
    %293 = math.exp %292 : vector<2x128xf32>
    %cst_75 = arith.constant 1.000000e+00 : f32
    %294 = vector.broadcast %cst_75 : f32 to vector<2x128xf32>
    %295 = arith.addf %294, %293 : vector<2x128xf32>
    %296 = arith.divf %294, %295 : vector<2x128xf32>
    %297 = vector.extract_strided_slice %290 {offsets = [0, 128], sizes = [2, 128], strides = [1, 1]} : vector<2x512xf32> to vector<2x128xf32>
    %298 = arith.negf %297 : vector<2x128xf32>
    %299 = math.exp %298 : vector<2x128xf32>
    %cst_76 = arith.constant 1.000000e+00 : f32
    %300 = vector.broadcast %cst_76 : f32 to vector<2x128xf32>
    %301 = arith.addf %300, %299 : vector<2x128xf32>
    %302 = arith.divf %300, %301 : vector<2x128xf32>
    %303 = vector.extract_strided_slice %290 {offsets = [0, 256], sizes = [2, 128], strides = [1, 1]} : vector<2x512xf32> to vector<2x128xf32>
    %304 = math.tanh %303 : vector<2x128xf32>
    %305 = vector.extract_strided_slice %290 {offsets = [0, 384], sizes = [2, 128], strides = [1, 1]} : vector<2x512xf32> to vector<2x128xf32>
    %306 = arith.negf %305 : vector<2x128xf32>
    %307 = math.exp %306 : vector<2x128xf32>
    %cst_77 = arith.constant 1.000000e+00 : f32
    %308 = vector.broadcast %cst_77 : f32 to vector<2x128xf32>
    %309 = arith.addf %308, %307 : vector<2x128xf32>
    %310 = arith.divf %308, %309 : vector<2x128xf32>
    %311 = arith.mulf %302, %226 : vector<2x128xf32>
    %312 = arith.mulf %296, %304 : vector<2x128xf32>
    %313 = arith.addf %311, %312 : vector<2x128xf32>
    %314 = math.tanh %313 : vector<2x128xf32>
    %315 = arith.mulf %310, %314 : vector<2x128xf32>
    %cst_78 = arith.constant dense<0.000000e+00> : vector<2x512xf32>
    %316 = tpu.matmul %255, %3, %cst_78 {dimension_numbers = #tpu.dot_dimension_numbers<[1], [0], [0], [1], [0, 0, 1, 1], [], []>} : vector<2x128xf32>, vector<128x512xf32>, vector<2x512xf32> -> vector<2x512xf32>
    %317 = arith.addf %36, %316 : vector<2x512xf32>
    %318 = vector.extract_strided_slice %317 {offsets = [0, 0], sizes = [2, 128], strides = [1, 1]} : vector<2x512xf32> to vector<2x128xf32>
    %319 = arith.negf %318 : vector<2x128xf32>
    %320 = math.exp %319 : vector<2x128xf32>
    %cst_79 = arith.constant 1.000000e+00 : f32
    %321 = vector.broadcast %cst_79 : f32 to vector<2x128xf32>
    %322 = arith.addf %321, %320 : vector<2x128xf32>
    %323 = arith.divf %321, %322 : vector<2x128xf32>
    %324 = vector.extract_strided_slice %317 {offsets = [0, 128], sizes = [2, 128], strides = [1, 1]} : vector<2x512xf32> to vector<2x128xf32>
    %325 = arith.negf %324 : vector<2x128xf32>
    %326 = math.exp %325 : vector<2x128xf32>
    %cst_80 = arith.constant 1.000000e+00 : f32
    %327 = vector.broadcast %cst_80 : f32 to vector<2x128xf32>
    %328 = arith.addf %327, %326 : vector<2x128xf32>
    %329 = arith.divf %327, %328 : vector<2x128xf32>
    %330 = vector.extract_strided_slice %317 {offsets = [0, 256], sizes = [2, 128], strides = [1, 1]} : vector<2x512xf32> to vector<2x128xf32>
    %331 = math.tanh %330 : vector<2x128xf32>
    %332 = vector.extract_strided_slice %317 {offsets = [0, 384], sizes = [2, 128], strides = [1, 1]} : vector<2x512xf32> to vector<2x128xf32>
    %333 = arith.negf %332 : vector<2x128xf32>
    %334 = math.exp %333 : vector<2x128xf32>
    %cst_81 = arith.constant 1.000000e+00 : f32
    %335 = vector.broadcast %cst_81 : f32 to vector<2x128xf32>
    %336 = arith.addf %335, %334 : vector<2x128xf32>
    %337 = arith.divf %335, %336 : vector<2x128xf32>
    %338 = arith.mulf %329, %253 : vector<2x128xf32>
    %339 = arith.mulf %323, %331 : vector<2x128xf32>
    %340 = arith.addf %338, %339 : vector<2x128xf32>
    %341 = math.tanh %340 : vector<2x128xf32>
    %342 = arith.mulf %337, %341 : vector<2x128xf32>
    %cst_82 = arith.constant dense<0.000000e+00> : vector<2x512xf32>
    %343 = tpu.matmul %255, %1, %cst_82 {dimension_numbers = #tpu.dot_dimension_numbers<[1], [0], [0], [1], [0, 0, 1, 1], [], []>} : vector<2x128xf32>, vector<128x512xf32>, vector<2x512xf32> -> vector<2x512xf32>
    %cst_83 = arith.constant dense<0.000000e+00> : vector<2x512xf32>
    %344 = tpu.matmul %285, %4, %cst_83 {dimension_numbers = #tpu.dot_dimension_numbers<[1], [0], [0], [1], [0, 0, 1, 1], [], []>} : vector<2x128xf32>, vector<128x512xf32>, vector<2x512xf32> -> vector<2x512xf32>
    %345 = arith.addf %343, %344 : vector<2x512xf32>
    %346 = vector.broadcast %7 : vector<1x512xf32> to vector<2x512xf32>
    %347 = arith.addf %345, %346 : vector<2x512xf32>
    %348 = vector.extract_strided_slice %347 {offsets = [0, 0], sizes = [2, 128], strides = [1, 1]} : vector<2x512xf32> to vector<2x128xf32>
    %349 = arith.negf %348 : vector<2x128xf32>
    %350 = math.exp %349 : vector<2x128xf32>
    %cst_84 = arith.constant 1.000000e+00 : f32
    %351 = vector.broadcast %cst_84 : f32 to vector<2x128xf32>
    %352 = arith.addf %351, %350 : vector<2x128xf32>
    %353 = arith.divf %351, %352 : vector<2x128xf32>
    %354 = vector.extract_strided_slice %347 {offsets = [0, 128], sizes = [2, 128], strides = [1, 1]} : vector<2x512xf32> to vector<2x128xf32>
    %355 = arith.negf %354 : vector<2x128xf32>
    %356 = math.exp %355 : vector<2x128xf32>
    %cst_85 = arith.constant 1.000000e+00 : f32
    %357 = vector.broadcast %cst_85 : f32 to vector<2x128xf32>
    %358 = arith.addf %357, %356 : vector<2x128xf32>
    %359 = arith.divf %357, %358 : vector<2x128xf32>
    %360 = vector.extract_strided_slice %347 {offsets = [0, 256], sizes = [2, 128], strides = [1, 1]} : vector<2x512xf32> to vector<2x128xf32>
    %361 = math.tanh %360 : vector<2x128xf32>
    %362 = vector.extract_strided_slice %347 {offsets = [0, 384], sizes = [2, 128], strides = [1, 1]} : vector<2x512xf32> to vector<2x128xf32>
    %363 = arith.negf %362 : vector<2x128xf32>
    %364 = math.exp %363 : vector<2x128xf32>
    %cst_86 = arith.constant 1.000000e+00 : f32
    %365 = vector.broadcast %cst_86 : f32 to vector<2x128xf32>
    %366 = arith.addf %365, %364 : vector<2x128xf32>
    %367 = arith.divf %365, %366 : vector<2x128xf32>
    %368 = arith.mulf %359, %283 : vector<2x128xf32>
    %369 = arith.mulf %353, %361 : vector<2x128xf32>
    %370 = arith.addf %368, %369 : vector<2x128xf32>
    %371 = math.tanh %370 : vector<2x128xf32>
    %372 = arith.mulf %367, %371 : vector<2x128xf32>
    %cst_87 = arith.constant dense<0.000000e+00> : vector<2x512xf32>
    %373 = tpu.matmul %285, %2, %cst_87 {dimension_numbers = #tpu.dot_dimension_numbers<[1], [0], [0], [1], [0, 0, 1, 1], [], []>} : vector<2x128xf32>, vector<128x512xf32>, vector<2x512xf32> -> vector<2x512xf32>
    %cst_88 = arith.constant dense<0.000000e+00> : vector<2x512xf32>
    %374 = tpu.matmul %315, %5, %cst_88 {dimension_numbers = #tpu.dot_dimension_numbers<[1], [0], [0], [1], [0, 0, 1, 1], [], []>} : vector<2x128xf32>, vector<128x512xf32>, vector<2x512xf32> -> vector<2x512xf32>
    %375 = arith.addf %373, %374 : vector<2x512xf32>
    %376 = vector.broadcast %8 : vector<1x512xf32> to vector<2x512xf32>
    %377 = arith.addf %375, %376 : vector<2x512xf32>
    %378 = vector.extract_strided_slice %377 {offsets = [0, 0], sizes = [2, 128], strides = [1, 1]} : vector<2x512xf32> to vector<2x128xf32>
    %379 = arith.negf %378 : vector<2x128xf32>
    %380 = math.exp %379 : vector<2x128xf32>
    %cst_89 = arith.constant 1.000000e+00 : f32
    %381 = vector.broadcast %cst_89 : f32 to vector<2x128xf32>
    %382 = arith.addf %381, %380 : vector<2x128xf32>
    %383 = arith.divf %381, %382 : vector<2x128xf32>
    %384 = vector.extract_strided_slice %377 {offsets = [0, 128], sizes = [2, 128], strides = [1, 1]} : vector<2x512xf32> to vector<2x128xf32>
    %385 = arith.negf %384 : vector<2x128xf32>
    %386 = math.exp %385 : vector<2x128xf32>
    %cst_90 = arith.constant 1.000000e+00 : f32
    %387 = vector.broadcast %cst_90 : f32 to vector<2x128xf32>
    %388 = arith.addf %387, %386 : vector<2x128xf32>
    %389 = arith.divf %387, %388 : vector<2x128xf32>
    %390 = vector.extract_strided_slice %377 {offsets = [0, 256], sizes = [2, 128], strides = [1, 1]} : vector<2x512xf32> to vector<2x128xf32>
    %391 = math.tanh %390 : vector<2x128xf32>
    %392 = vector.extract_strided_slice %377 {offsets = [0, 384], sizes = [2, 128], strides = [1, 1]} : vector<2x512xf32> to vector<2x128xf32>
    %393 = arith.negf %392 : vector<2x128xf32>
    %394 = math.exp %393 : vector<2x128xf32>
    %cst_91 = arith.constant 1.000000e+00 : f32
    %395 = vector.broadcast %cst_91 : f32 to vector<2x128xf32>
    %396 = arith.addf %395, %394 : vector<2x128xf32>
    %397 = arith.divf %395, %396 : vector<2x128xf32>
    %398 = arith.mulf %389, %313 : vector<2x128xf32>
    %399 = arith.mulf %383, %391 : vector<2x128xf32>
    %400 = arith.addf %398, %399 : vector<2x128xf32>
    %401 = math.tanh %400 : vector<2x128xf32>
    %402 = arith.mulf %397, %401 : vector<2x128xf32>
    %cst_92 = arith.constant dense<0.000000e+00> : vector<2x512xf32>
    %403 = tpu.matmul %342, %3, %cst_92 {dimension_numbers = #tpu.dot_dimension_numbers<[1], [0], [0], [1], [0, 0, 1, 1], [], []>} : vector<2x128xf32>, vector<128x512xf32>, vector<2x512xf32> -> vector<2x512xf32>
    %404 = arith.addf %41, %403 : vector<2x512xf32>
    %405 = vector.extract_strided_slice %404 {offsets = [0, 0], sizes = [2, 128], strides = [1, 1]} : vector<2x512xf32> to vector<2x128xf32>
    %406 = arith.negf %405 : vector<2x128xf32>
    %407 = math.exp %406 : vector<2x128xf32>
    %cst_93 = arith.constant 1.000000e+00 : f32
    %408 = vector.broadcast %cst_93 : f32 to vector<2x128xf32>
    %409 = arith.addf %408, %407 : vector<2x128xf32>
    %410 = arith.divf %408, %409 : vector<2x128xf32>
    %411 = vector.extract_strided_slice %404 {offsets = [0, 128], sizes = [2, 128], strides = [1, 1]} : vector<2x512xf32> to vector<2x128xf32>
    %412 = arith.negf %411 : vector<2x128xf32>
    %413 = math.exp %412 : vector<2x128xf32>
    %cst_94 = arith.constant 1.000000e+00 : f32
    %414 = vector.broadcast %cst_94 : f32 to vector<2x128xf32>
    %415 = arith.addf %414, %413 : vector<2x128xf32>
    %416 = arith.divf %414, %415 : vector<2x128xf32>
    %417 = vector.extract_strided_slice %404 {offsets = [0, 256], sizes = [2, 128], strides = [1, 1]} : vector<2x512xf32> to vector<2x128xf32>
    %418 = math.tanh %417 : vector<2x128xf32>
    %419 = vector.extract_strided_slice %404 {offsets = [0, 384], sizes = [2, 128], strides = [1, 1]} : vector<2x512xf32> to vector<2x128xf32>
    %420 = arith.negf %419 : vector<2x128xf32>
    %421 = math.exp %420 : vector<2x128xf32>
    %cst_95 = arith.constant 1.000000e+00 : f32
    %422 = vector.broadcast %cst_95 : f32 to vector<2x128xf32>
    %423 = arith.addf %422, %421 : vector<2x128xf32>
    %424 = arith.divf %422, %423 : vector<2x128xf32>
    %425 = arith.mulf %416, %340 : vector<2x128xf32>
    %426 = arith.mulf %410, %418 : vector<2x128xf32>
    %427 = arith.addf %425, %426 : vector<2x128xf32>
    %428 = math.tanh %427 : vector<2x128xf32>
    %429 = arith.mulf %424, %428 : vector<2x128xf32>
    %cst_96 = arith.constant dense<0.000000e+00> : vector<2x512xf32>
    %430 = tpu.matmul %342, %1, %cst_96 {dimension_numbers = #tpu.dot_dimension_numbers<[1], [0], [0], [1], [0, 0, 1, 1], [], []>} : vector<2x128xf32>, vector<128x512xf32>, vector<2x512xf32> -> vector<2x512xf32>
    %cst_97 = arith.constant dense<0.000000e+00> : vector<2x512xf32>
    %431 = tpu.matmul %372, %4, %cst_97 {dimension_numbers = #tpu.dot_dimension_numbers<[1], [0], [0], [1], [0, 0, 1, 1], [], []>} : vector<2x128xf32>, vector<128x512xf32>, vector<2x512xf32> -> vector<2x512xf32>
    %432 = arith.addf %430, %431 : vector<2x512xf32>
    %433 = vector.broadcast %7 : vector<1x512xf32> to vector<2x512xf32>
    %434 = arith.addf %432, %433 : vector<2x512xf32>
    %435 = vector.extract_strided_slice %434 {offsets = [0, 0], sizes = [2, 128], strides = [1, 1]} : vector<2x512xf32> to vector<2x128xf32>
    %436 = arith.negf %435 : vector<2x128xf32>
    %437 = math.exp %436 : vector<2x128xf32>
    %cst_98 = arith.constant 1.000000e+00 : f32
    %438 = vector.broadcast %cst_98 : f32 to vector<2x128xf32>
    %439 = arith.addf %438, %437 : vector<2x128xf32>
    %440 = arith.divf %438, %439 : vector<2x128xf32>
    %441 = vector.extract_strided_slice %434 {offsets = [0, 128], sizes = [2, 128], strides = [1, 1]} : vector<2x512xf32> to vector<2x128xf32>
    %442 = arith.negf %441 : vector<2x128xf32>
    %443 = math.exp %442 : vector<2x128xf32>
    %cst_99 = arith.constant 1.000000e+00 : f32
    %444 = vector.broadcast %cst_99 : f32 to vector<2x128xf32>
    %445 = arith.addf %444, %443 : vector<2x128xf32>
    %446 = arith.divf %444, %445 : vector<2x128xf32>
    %447 = vector.extract_strided_slice %434 {offsets = [0, 256], sizes = [2, 128], strides = [1, 1]} : vector<2x512xf32> to vector<2x128xf32>
    %448 = math.tanh %447 : vector<2x128xf32>
    %449 = vector.extract_strided_slice %434 {offsets = [0, 384], sizes = [2, 128], strides = [1, 1]} : vector<2x512xf32> to vector<2x128xf32>
    %450 = arith.negf %449 : vector<2x128xf32>
    %451 = math.exp %450 : vector<2x128xf32>
    %cst_100 = arith.constant 1.000000e+00 : f32
    %452 = vector.broadcast %cst_100 : f32 to vector<2x128xf32>
    %453 = arith.addf %452, %451 : vector<2x128xf32>
    %454 = arith.divf %452, %453 : vector<2x128xf32>
    %455 = arith.mulf %446, %370 : vector<2x128xf32>
    %456 = arith.mulf %440, %448 : vector<2x128xf32>
    %457 = arith.addf %455, %456 : vector<2x128xf32>
    %458 = math.tanh %457 : vector<2x128xf32>
    %459 = arith.mulf %454, %458 : vector<2x128xf32>
    %cst_101 = arith.constant dense<0.000000e+00> : vector<2x512xf32>
    %460 = tpu.matmul %372, %2, %cst_101 {dimension_numbers = #tpu.dot_dimension_numbers<[1], [0], [0], [1], [0, 0, 1, 1], [], []>} : vector<2x128xf32>, vector<128x512xf32>, vector<2x512xf32> -> vector<2x512xf32>
    %cst_102 = arith.constant dense<0.000000e+00> : vector<2x512xf32>
    %461 = tpu.matmul %402, %5, %cst_102 {dimension_numbers = #tpu.dot_dimension_numbers<[1], [0], [0], [1], [0, 0, 1, 1], [], []>} : vector<2x128xf32>, vector<128x512xf32>, vector<2x512xf32> -> vector<2x512xf32>
    %462 = arith.addf %460, %461 : vector<2x512xf32>
    %463 = vector.broadcast %8 : vector<1x512xf32> to vector<2x512xf32>
    %464 = arith.addf %462, %463 : vector<2x512xf32>
    %465 = vector.extract_strided_slice %464 {offsets = [0, 0], sizes = [2, 128], strides = [1, 1]} : vector<2x512xf32> to vector<2x128xf32>
    %466 = arith.negf %465 : vector<2x128xf32>
    %467 = math.exp %466 : vector<2x128xf32>
    %cst_103 = arith.constant 1.000000e+00 : f32
    %468 = vector.broadcast %cst_103 : f32 to vector<2x128xf32>
    %469 = arith.addf %468, %467 : vector<2x128xf32>
    %470 = arith.divf %468, %469 : vector<2x128xf32>
    %471 = vector.extract_strided_slice %464 {offsets = [0, 128], sizes = [2, 128], strides = [1, 1]} : vector<2x512xf32> to vector<2x128xf32>
    %472 = arith.negf %471 : vector<2x128xf32>
    %473 = math.exp %472 : vector<2x128xf32>
    %cst_104 = arith.constant 1.000000e+00 : f32
    %474 = vector.broadcast %cst_104 : f32 to vector<2x128xf32>
    %475 = arith.addf %474, %473 : vector<2x128xf32>
    %476 = arith.divf %474, %475 : vector<2x128xf32>
    %477 = vector.extract_strided_slice %464 {offsets = [0, 256], sizes = [2, 128], strides = [1, 1]} : vector<2x512xf32> to vector<2x128xf32>
    %478 = math.tanh %477 : vector<2x128xf32>
    %479 = vector.extract_strided_slice %464 {offsets = [0, 384], sizes = [2, 128], strides = [1, 1]} : vector<2x512xf32> to vector<2x128xf32>
    %480 = arith.negf %479 : vector<2x128xf32>
    %481 = math.exp %480 : vector<2x128xf32>
    %cst_105 = arith.constant 1.000000e+00 : f32
    %482 = vector.broadcast %cst_105 : f32 to vector<2x128xf32>
    %483 = arith.addf %482, %481 : vector<2x128xf32>
    %484 = arith.divf %482, %483 : vector<2x128xf32>
    %485 = arith.mulf %476, %400 : vector<2x128xf32>
    %486 = arith.mulf %470, %478 : vector<2x128xf32>
    %487 = arith.addf %485, %486 : vector<2x128xf32>
    %488 = math.tanh %487 : vector<2x128xf32>
    %489 = arith.mulf %484, %488 : vector<2x128xf32>
    %cst_106 = arith.constant dense<0.000000e+00> : vector<2x512xf32>
    %490 = tpu.matmul %429, %3, %cst_106 {dimension_numbers = #tpu.dot_dimension_numbers<[1], [0], [0], [1], [0, 0, 1, 1], [], []>} : vector<2x128xf32>, vector<128x512xf32>, vector<2x512xf32> -> vector<2x512xf32>
    %491 = arith.addf %46, %490 : vector<2x512xf32>
    %492 = vector.extract_strided_slice %491 {offsets = [0, 0], sizes = [2, 128], strides = [1, 1]} : vector<2x512xf32> to vector<2x128xf32>
    %493 = arith.negf %492 : vector<2x128xf32>
    %494 = math.exp %493 : vector<2x128xf32>
    %cst_107 = arith.constant 1.000000e+00 : f32
    %495 = vector.broadcast %cst_107 : f32 to vector<2x128xf32>
    %496 = arith.addf %495, %494 : vector<2x128xf32>
    %497 = arith.divf %495, %496 : vector<2x128xf32>
    %498 = vector.extract_strided_slice %491 {offsets = [0, 128], sizes = [2, 128], strides = [1, 1]} : vector<2x512xf32> to vector<2x128xf32>
    %499 = arith.negf %498 : vector<2x128xf32>
    %500 = math.exp %499 : vector<2x128xf32>
    %cst_108 = arith.constant 1.000000e+00 : f32
    %501 = vector.broadcast %cst_108 : f32 to vector<2x128xf32>
    %502 = arith.addf %501, %500 : vector<2x128xf32>
    %503 = arith.divf %501, %502 : vector<2x128xf32>
    %504 = vector.extract_strided_slice %491 {offsets = [0, 256], sizes = [2, 128], strides = [1, 1]} : vector<2x512xf32> to vector<2x128xf32>
    %505 = math.tanh %504 : vector<2x128xf32>
    %506 = vector.extract_strided_slice %491 {offsets = [0, 384], sizes = [2, 128], strides = [1, 1]} : vector<2x512xf32> to vector<2x128xf32>
    %507 = arith.negf %506 : vector<2x128xf32>
    %508 = math.exp %507 : vector<2x128xf32>
    %cst_109 = arith.constant 1.000000e+00 : f32
    %509 = vector.broadcast %cst_109 : f32 to vector<2x128xf32>
    %510 = arith.addf %509, %508 : vector<2x128xf32>
    %511 = arith.divf %509, %510 : vector<2x128xf32>
    %512 = arith.mulf %503, %427 : vector<2x128xf32>
    %513 = arith.mulf %497, %505 : vector<2x128xf32>
    %514 = arith.addf %512, %513 : vector<2x128xf32>
    %515 = math.tanh %514 : vector<2x128xf32>
    %516 = arith.mulf %511, %515 : vector<2x128xf32>
    %cst_110 = arith.constant dense<0.000000e+00> : vector<2x512xf32>
    %517 = tpu.matmul %429, %1, %cst_110 {dimension_numbers = #tpu.dot_dimension_numbers<[1], [0], [0], [1], [0, 0, 1, 1], [], []>} : vector<2x128xf32>, vector<128x512xf32>, vector<2x512xf32> -> vector<2x512xf32>
    %cst_111 = arith.constant dense<0.000000e+00> : vector<2x512xf32>
    %518 = tpu.matmul %459, %4, %cst_111 {dimension_numbers = #tpu.dot_dimension_numbers<[1], [0], [0], [1], [0, 0, 1, 1], [], []>} : vector<2x128xf32>, vector<128x512xf32>, vector<2x512xf32> -> vector<2x512xf32>
    %519 = arith.addf %517, %518 : vector<2x512xf32>
    %520 = vector.broadcast %7 : vector<1x512xf32> to vector<2x512xf32>
    %521 = arith.addf %519, %520 : vector<2x512xf32>
    %522 = vector.extract_strided_slice %521 {offsets = [0, 0], sizes = [2, 128], strides = [1, 1]} : vector<2x512xf32> to vector<2x128xf32>
    %523 = arith.negf %522 : vector<2x128xf32>
    %524 = math.exp %523 : vector<2x128xf32>
    %cst_112 = arith.constant 1.000000e+00 : f32
    %525 = vector.broadcast %cst_112 : f32 to vector<2x128xf32>
    %526 = arith.addf %525, %524 : vector<2x128xf32>
    %527 = arith.divf %525, %526 : vector<2x128xf32>
    %528 = vector.extract_strided_slice %521 {offsets = [0, 128], sizes = [2, 128], strides = [1, 1]} : vector<2x512xf32> to vector<2x128xf32>
    %529 = arith.negf %528 : vector<2x128xf32>
    %530 = math.exp %529 : vector<2x128xf32>
    %cst_113 = arith.constant 1.000000e+00 : f32
    %531 = vector.broadcast %cst_113 : f32 to vector<2x128xf32>
    %532 = arith.addf %531, %530 : vector<2x128xf32>
    %533 = arith.divf %531, %532 : vector<2x128xf32>
    %534 = vector.extract_strided_slice %521 {offsets = [0, 256], sizes = [2, 128], strides = [1, 1]} : vector<2x512xf32> to vector<2x128xf32>
    %535 = math.tanh %534 : vector<2x128xf32>
    %536 = vector.extract_strided_slice %521 {offsets = [0, 384], sizes = [2, 128], strides = [1, 1]} : vector<2x512xf32> to vector<2x128xf32>
    %537 = arith.negf %536 : vector<2x128xf32>
    %538 = math.exp %537 : vector<2x128xf32>
    %cst_114 = arith.constant 1.000000e+00 : f32
    %539 = vector.broadcast %cst_114 : f32 to vector<2x128xf32>
    %540 = arith.addf %539, %538 : vector<2x128xf32>
    %541 = arith.divf %539, %540 : vector<2x128xf32>
    %542 = arith.mulf %533, %457 : vector<2x128xf32>
    %543 = arith.mulf %527, %535 : vector<2x128xf32>
    %544 = arith.addf %542, %543 : vector<2x128xf32>
    %545 = math.tanh %544 : vector<2x128xf32>
    %546 = arith.mulf %541, %545 : vector<2x128xf32>
    %cst_115 = arith.constant dense<0.000000e+00> : vector<2x512xf32>
    %547 = tpu.matmul %459, %2, %cst_115 {dimension_numbers = #tpu.dot_dimension_numbers<[1], [0], [0], [1], [0, 0, 1, 1], [], []>} : vector<2x128xf32>, vector<128x512xf32>, vector<2x512xf32> -> vector<2x512xf32>
    %cst_116 = arith.constant dense<0.000000e+00> : vector<2x512xf32>
    %548 = tpu.matmul %489, %5, %cst_116 {dimension_numbers = #tpu.dot_dimension_numbers<[1], [0], [0], [1], [0, 0, 1, 1], [], []>} : vector<2x128xf32>, vector<128x512xf32>, vector<2x512xf32> -> vector<2x512xf32>
    %549 = arith.addf %547, %548 : vector<2x512xf32>
    %550 = vector.broadcast %8 : vector<1x512xf32> to vector<2x512xf32>
    %551 = arith.addf %549, %550 : vector<2x512xf32>
    %552 = vector.extract_strided_slice %551 {offsets = [0, 0], sizes = [2, 128], strides = [1, 1]} : vector<2x512xf32> to vector<2x128xf32>
    %553 = arith.negf %552 : vector<2x128xf32>
    %554 = math.exp %553 : vector<2x128xf32>
    %cst_117 = arith.constant 1.000000e+00 : f32
    %555 = vector.broadcast %cst_117 : f32 to vector<2x128xf32>
    %556 = arith.addf %555, %554 : vector<2x128xf32>
    %557 = arith.divf %555, %556 : vector<2x128xf32>
    %558 = vector.extract_strided_slice %551 {offsets = [0, 128], sizes = [2, 128], strides = [1, 1]} : vector<2x512xf32> to vector<2x128xf32>
    %559 = arith.negf %558 : vector<2x128xf32>
    %560 = math.exp %559 : vector<2x128xf32>
    %cst_118 = arith.constant 1.000000e+00 : f32
    %561 = vector.broadcast %cst_118 : f32 to vector<2x128xf32>
    %562 = arith.addf %561, %560 : vector<2x128xf32>
    %563 = arith.divf %561, %562 : vector<2x128xf32>
    %564 = vector.extract_strided_slice %551 {offsets = [0, 256], sizes = [2, 128], strides = [1, 1]} : vector<2x512xf32> to vector<2x128xf32>
    %565 = math.tanh %564 : vector<2x128xf32>
    %566 = vector.extract_strided_slice %551 {offsets = [0, 384], sizes = [2, 128], strides = [1, 1]} : vector<2x512xf32> to vector<2x128xf32>
    %567 = arith.negf %566 : vector<2x128xf32>
    %568 = math.exp %567 : vector<2x128xf32>
    %cst_119 = arith.constant 1.000000e+00 : f32
    %569 = vector.broadcast %cst_119 : f32 to vector<2x128xf32>
    %570 = arith.addf %569, %568 : vector<2x128xf32>
    %571 = arith.divf %569, %570 : vector<2x128xf32>
    %572 = arith.mulf %563, %487 : vector<2x128xf32>
    %573 = arith.mulf %557, %565 : vector<2x128xf32>
    %574 = arith.addf %572, %573 : vector<2x128xf32>
    %575 = math.tanh %574 : vector<2x128xf32>
    %576 = arith.mulf %571, %575 : vector<2x128xf32>
    %cst_120 = arith.constant dense<0.000000e+00> : vector<2x512xf32>
    %577 = tpu.matmul %516, %3, %cst_120 {dimension_numbers = #tpu.dot_dimension_numbers<[1], [0], [0], [1], [0, 0, 1, 1], [], []>} : vector<2x128xf32>, vector<128x512xf32>, vector<2x512xf32> -> vector<2x512xf32>
    %578 = arith.addf %51, %577 : vector<2x512xf32>
    %579 = vector.extract_strided_slice %578 {offsets = [0, 0], sizes = [2, 128], strides = [1, 1]} : vector<2x512xf32> to vector<2x128xf32>
    %580 = arith.negf %579 : vector<2x128xf32>
    %581 = math.exp %580 : vector<2x128xf32>
    %cst_121 = arith.constant 1.000000e+00 : f32
    %582 = vector.broadcast %cst_121 : f32 to vector<2x128xf32>
    %583 = arith.addf %582, %581 : vector<2x128xf32>
    %584 = arith.divf %582, %583 : vector<2x128xf32>
    %585 = vector.extract_strided_slice %578 {offsets = [0, 128], sizes = [2, 128], strides = [1, 1]} : vector<2x512xf32> to vector<2x128xf32>
    %586 = arith.negf %585 : vector<2x128xf32>
    %587 = math.exp %586 : vector<2x128xf32>
    %cst_122 = arith.constant 1.000000e+00 : f32
    %588 = vector.broadcast %cst_122 : f32 to vector<2x128xf32>
    %589 = arith.addf %588, %587 : vector<2x128xf32>
    %590 = arith.divf %588, %589 : vector<2x128xf32>
    %591 = vector.extract_strided_slice %578 {offsets = [0, 256], sizes = [2, 128], strides = [1, 1]} : vector<2x512xf32> to vector<2x128xf32>
    %592 = math.tanh %591 : vector<2x128xf32>
    %593 = vector.extract_strided_slice %578 {offsets = [0, 384], sizes = [2, 128], strides = [1, 1]} : vector<2x512xf32> to vector<2x128xf32>
    %594 = arith.negf %593 : vector<2x128xf32>
    %595 = math.exp %594 : vector<2x128xf32>
    %cst_123 = arith.constant 1.000000e+00 : f32
    %596 = vector.broadcast %cst_123 : f32 to vector<2x128xf32>
    %597 = arith.addf %596, %595 : vector<2x128xf32>
    %598 = arith.divf %596, %597 : vector<2x128xf32>
    %599 = arith.mulf %590, %514 : vector<2x128xf32>
    %600 = arith.mulf %584, %592 : vector<2x128xf32>
    %601 = arith.addf %599, %600 : vector<2x128xf32>
    %602 = math.tanh %601 : vector<2x128xf32>
    %603 = arith.mulf %598, %602 : vector<2x128xf32>
    %cst_124 = arith.constant dense<0.000000e+00> : vector<2x512xf32>
    %604 = tpu.matmul %516, %1, %cst_124 {dimension_numbers = #tpu.dot_dimension_numbers<[1], [0], [0], [1], [0, 0, 1, 1], [], []>} : vector<2x128xf32>, vector<128x512xf32>, vector<2x512xf32> -> vector<2x512xf32>
    %cst_125 = arith.constant dense<0.000000e+00> : vector<2x512xf32>
    %605 = tpu.matmul %546, %4, %cst_125 {dimension_numbers = #tpu.dot_dimension_numbers<[1], [0], [0], [1], [0, 0, 1, 1], [], []>} : vector<2x128xf32>, vector<128x512xf32>, vector<2x512xf32> -> vector<2x512xf32>
    %606 = arith.addf %604, %605 : vector<2x512xf32>
    %607 = vector.broadcast %7 : vector<1x512xf32> to vector<2x512xf32>
    %608 = arith.addf %606, %607 : vector<2x512xf32>
    %609 = vector.extract_strided_slice %608 {offsets = [0, 0], sizes = [2, 128], strides = [1, 1]} : vector<2x512xf32> to vector<2x128xf32>
    %610 = arith.negf %609 : vector<2x128xf32>
    %611 = math.exp %610 : vector<2x128xf32>
    %cst_126 = arith.constant 1.000000e+00 : f32
    %612 = vector.broadcast %cst_126 : f32 to vector<2x128xf32>
    %613 = arith.addf %612, %611 : vector<2x128xf32>
    %614 = arith.divf %612, %613 : vector<2x128xf32>
    %615 = vector.extract_strided_slice %608 {offsets = [0, 128], sizes = [2, 128], strides = [1, 1]} : vector<2x512xf32> to vector<2x128xf32>
    %616 = arith.negf %615 : vector<2x128xf32>
    %617 = math.exp %616 : vector<2x128xf32>
    %cst_127 = arith.constant 1.000000e+00 : f32
    %618 = vector.broadcast %cst_127 : f32 to vector<2x128xf32>
    %619 = arith.addf %618, %617 : vector<2x128xf32>
    %620 = arith.divf %618, %619 : vector<2x128xf32>
    %621 = vector.extract_strided_slice %608 {offsets = [0, 256], sizes = [2, 128], strides = [1, 1]} : vector<2x512xf32> to vector<2x128xf32>
    %622 = math.tanh %621 : vector<2x128xf32>
    %623 = vector.extract_strided_slice %608 {offsets = [0, 384], sizes = [2, 128], strides = [1, 1]} : vector<2x512xf32> to vector<2x128xf32>
    %624 = arith.negf %623 : vector<2x128xf32>
    %625 = math.exp %624 : vector<2x128xf32>
    %cst_128 = arith.constant 1.000000e+00 : f32
    %626 = vector.broadcast %cst_128 : f32 to vector<2x128xf32>
    %627 = arith.addf %626, %625 : vector<2x128xf32>
    %628 = arith.divf %626, %627 : vector<2x128xf32>
    %629 = arith.mulf %620, %544 : vector<2x128xf32>
    %630 = arith.mulf %614, %622 : vector<2x128xf32>
    %631 = arith.addf %629, %630 : vector<2x128xf32>
    %632 = math.tanh %631 : vector<2x128xf32>
    %633 = arith.mulf %628, %632 : vector<2x128xf32>
    %cst_129 = arith.constant dense<0.000000e+00> : vector<2x512xf32>
    %634 = tpu.matmul %546, %2, %cst_129 {dimension_numbers = #tpu.dot_dimension_numbers<[1], [0], [0], [1], [0, 0, 1, 1], [], []>} : vector<2x128xf32>, vector<128x512xf32>, vector<2x512xf32> -> vector<2x512xf32>
    %cst_130 = arith.constant dense<0.000000e+00> : vector<2x512xf32>
    %635 = tpu.matmul %576, %5, %cst_130 {dimension_numbers = #tpu.dot_dimension_numbers<[1], [0], [0], [1], [0, 0, 1, 1], [], []>} : vector<2x128xf32>, vector<128x512xf32>, vector<2x512xf32> -> vector<2x512xf32>
    %636 = arith.addf %634, %635 : vector<2x512xf32>
    %637 = vector.broadcast %8 : vector<1x512xf32> to vector<2x512xf32>
    %638 = arith.addf %636, %637 : vector<2x512xf32>
    %639 = vector.extract_strided_slice %638 {offsets = [0, 0], sizes = [2, 128], strides = [1, 1]} : vector<2x512xf32> to vector<2x128xf32>
    %640 = arith.negf %639 : vector<2x128xf32>
    %641 = math.exp %640 : vector<2x128xf32>
    %cst_131 = arith.constant 1.000000e+00 : f32
    %642 = vector.broadcast %cst_131 : f32 to vector<2x128xf32>
    %643 = arith.addf %642, %641 : vector<2x128xf32>
    %644 = arith.divf %642, %643 : vector<2x128xf32>
    %645 = vector.extract_strided_slice %638 {offsets = [0, 128], sizes = [2, 128], strides = [1, 1]} : vector<2x512xf32> to vector<2x128xf32>
    %646 = arith.negf %645 : vector<2x128xf32>
    %647 = math.exp %646 : vector<2x128xf32>
    %cst_132 = arith.constant 1.000000e+00 : f32
    %648 = vector.broadcast %cst_132 : f32 to vector<2x128xf32>
    %649 = arith.addf %648, %647 : vector<2x128xf32>
    %650 = arith.divf %648, %649 : vector<2x128xf32>
    %651 = vector.extract_strided_slice %638 {offsets = [0, 256], sizes = [2, 128], strides = [1, 1]} : vector<2x512xf32> to vector<2x128xf32>
    %652 = math.tanh %651 : vector<2x128xf32>
    %653 = vector.extract_strided_slice %638 {offsets = [0, 384], sizes = [2, 128], strides = [1, 1]} : vector<2x512xf32> to vector<2x128xf32>
    %654 = arith.negf %653 : vector<2x128xf32>
    %655 = math.exp %654 : vector<2x128xf32>
    %cst_133 = arith.constant 1.000000e+00 : f32
    %656 = vector.broadcast %cst_133 : f32 to vector<2x128xf32>
    %657 = arith.addf %656, %655 : vector<2x128xf32>
    %658 = arith.divf %656, %657 : vector<2x128xf32>
    %659 = arith.mulf %650, %574 : vector<2x128xf32>
    %660 = arith.mulf %644, %652 : vector<2x128xf32>
    %661 = arith.addf %659, %660 : vector<2x128xf32>
    %662 = math.tanh %661 : vector<2x128xf32>
    %663 = arith.mulf %658, %662 : vector<2x128xf32>
    %cst_134 = arith.constant dense<0.000000e+00> : vector<2x512xf32>
    %664 = tpu.matmul %603, %1, %cst_134 {dimension_numbers = #tpu.dot_dimension_numbers<[1], [0], [0], [1], [0, 0, 1, 1], [], []>} : vector<2x128xf32>, vector<128x512xf32>, vector<2x512xf32> -> vector<2x512xf32>
    %cst_135 = arith.constant dense<0.000000e+00> : vector<2x512xf32>
    %665 = tpu.matmul %633, %4, %cst_135 {dimension_numbers = #tpu.dot_dimension_numbers<[1], [0], [0], [1], [0, 0, 1, 1], [], []>} : vector<2x128xf32>, vector<128x512xf32>, vector<2x512xf32> -> vector<2x512xf32>
    %666 = arith.addf %664, %665 : vector<2x512xf32>
    %667 = vector.broadcast %7 : vector<1x512xf32> to vector<2x512xf32>
    %668 = arith.addf %666, %667 : vector<2x512xf32>
    %669 = vector.extract_strided_slice %668 {offsets = [0, 0], sizes = [2, 128], strides = [1, 1]} : vector<2x512xf32> to vector<2x128xf32>
    %670 = arith.negf %669 : vector<2x128xf32>
    %671 = math.exp %670 : vector<2x128xf32>
    %cst_136 = arith.constant 1.000000e+00 : f32
    %672 = vector.broadcast %cst_136 : f32 to vector<2x128xf32>
    %673 = arith.addf %672, %671 : vector<2x128xf32>
    %674 = arith.divf %672, %673 : vector<2x128xf32>
    %675 = vector.extract_strided_slice %668 {offsets = [0, 128], sizes = [2, 128], strides = [1, 1]} : vector<2x512xf32> to vector<2x128xf32>
    %676 = arith.negf %675 : vector<2x128xf32>
    %677 = math.exp %676 : vector<2x128xf32>
    %cst_137 = arith.constant 1.000000e+00 : f32
    %678 = vector.broadcast %cst_137 : f32 to vector<2x128xf32>
    %679 = arith.addf %678, %677 : vector<2x128xf32>
    %680 = arith.divf %678, %679 : vector<2x128xf32>
    %681 = vector.extract_strided_slice %668 {offsets = [0, 256], sizes = [2, 128], strides = [1, 1]} : vector<2x512xf32> to vector<2x128xf32>
    %682 = math.tanh %681 : vector<2x128xf32>
    %683 = vector.extract_strided_slice %668 {offsets = [0, 384], sizes = [2, 128], strides = [1, 1]} : vector<2x512xf32> to vector<2x128xf32>
    %684 = arith.negf %683 : vector<2x128xf32>
    %685 = math.exp %684 : vector<2x128xf32>
    %cst_138 = arith.constant 1.000000e+00 : f32
    %686 = vector.broadcast %cst_138 : f32 to vector<2x128xf32>
    %687 = arith.addf %686, %685 : vector<2x128xf32>
    %688 = arith.divf %686, %687 : vector<2x128xf32>
    %689 = arith.mulf %680, %631 : vector<2x128xf32>
    %690 = arith.mulf %674, %682 : vector<2x128xf32>
    %691 = arith.addf %689, %690 : vector<2x128xf32>
    %692 = math.tanh %691 : vector<2x128xf32>
    %693 = arith.mulf %688, %692 : vector<2x128xf32>
    %cst_139 = arith.constant dense<0.000000e+00> : vector<2x512xf32>
    %694 = tpu.matmul %633, %2, %cst_139 {dimension_numbers = #tpu.dot_dimension_numbers<[1], [0], [0], [1], [0, 0, 1, 1], [], []>} : vector<2x128xf32>, vector<128x512xf32>, vector<2x512xf32> -> vector<2x512xf32>
    %cst_140 = arith.constant dense<0.000000e+00> : vector<2x512xf32>
    %695 = tpu.matmul %663, %5, %cst_140 {dimension_numbers = #tpu.dot_dimension_numbers<[1], [0], [0], [1], [0, 0, 1, 1], [], []>} : vector<2x128xf32>, vector<128x512xf32>, vector<2x512xf32> -> vector<2x512xf32>
    %696 = arith.addf %694, %695 : vector<2x512xf32>
    %697 = vector.broadcast %8 : vector<1x512xf32> to vector<2x512xf32>
    %698 = arith.addf %696, %697 : vector<2x512xf32>
    %699 = vector.extract_strided_slice %698 {offsets = [0, 0], sizes = [2, 128], strides = [1, 1]} : vector<2x512xf32> to vector<2x128xf32>
    %700 = arith.negf %699 : vector<2x128xf32>
    %701 = math.exp %700 : vector<2x128xf32>
    %cst_141 = arith.constant 1.000000e+00 : f32
    %702 = vector.broadcast %cst_141 : f32 to vector<2x128xf32>
    %703 = arith.addf %702, %701 : vector<2x128xf32>
    %704 = arith.divf %702, %703 : vector<2x128xf32>
    %705 = vector.extract_strided_slice %698 {offsets = [0, 128], sizes = [2, 128], strides = [1, 1]} : vector<2x512xf32> to vector<2x128xf32>
    %706 = arith.negf %705 : vector<2x128xf32>
    %707 = math.exp %706 : vector<2x128xf32>
    %cst_142 = arith.constant 1.000000e+00 : f32
    %708 = vector.broadcast %cst_142 : f32 to vector<2x128xf32>
    %709 = arith.addf %708, %707 : vector<2x128xf32>
    %710 = arith.divf %708, %709 : vector<2x128xf32>
    %711 = vector.extract_strided_slice %698 {offsets = [0, 256], sizes = [2, 128], strides = [1, 1]} : vector<2x512xf32> to vector<2x128xf32>
    %712 = math.tanh %711 : vector<2x128xf32>
    %713 = vector.extract_strided_slice %698 {offsets = [0, 384], sizes = [2, 128], strides = [1, 1]} : vector<2x512xf32> to vector<2x128xf32>
    %714 = arith.negf %713 : vector<2x128xf32>
    %715 = math.exp %714 : vector<2x128xf32>
    %cst_143 = arith.constant 1.000000e+00 : f32
    %716 = vector.broadcast %cst_143 : f32 to vector<2x128xf32>
    %717 = arith.addf %716, %715 : vector<2x128xf32>
    %718 = arith.divf %716, %717 : vector<2x128xf32>
    %719 = arith.mulf %710, %661 : vector<2x128xf32>
    %720 = arith.mulf %704, %712 : vector<2x128xf32>
    %721 = arith.addf %719, %720 : vector<2x128xf32>
    %722 = math.tanh %721 : vector<2x128xf32>
    %723 = arith.mulf %718, %722 : vector<2x128xf32>
    %cst_144 = arith.constant dense<0.000000e+00> : vector<2x512xf32>
    %724 = tpu.matmul %693, %2, %cst_144 {dimension_numbers = #tpu.dot_dimension_numbers<[1], [0], [0], [1], [0, 0, 1, 1], [], []>} : vector<2x128xf32>, vector<128x512xf32>, vector<2x512xf32> -> vector<2x512xf32>
    %cst_145 = arith.constant dense<0.000000e+00> : vector<2x512xf32>
    %725 = tpu.matmul %723, %5, %cst_145 {dimension_numbers = #tpu.dot_dimension_numbers<[1], [0], [0], [1], [0, 0, 1, 1], [], []>} : vector<2x128xf32>, vector<128x512xf32>, vector<2x512xf32> -> vector<2x512xf32>
    %726 = arith.addf %724, %725 : vector<2x512xf32>
    %727 = vector.broadcast %8 : vector<1x512xf32> to vector<2x512xf32>
    %728 = arith.addf %726, %727 : vector<2x512xf32>
    %729 = vector.extract_strided_slice %728 {offsets = [0, 0], sizes = [2, 128], strides = [1, 1]} : vector<2x512xf32> to vector<2x128xf32>
    %730 = arith.negf %729 : vector<2x128xf32>
    %731 = math.exp %730 : vector<2x128xf32>
    %cst_146 = arith.constant 1.000000e+00 : f32
    %732 = vector.broadcast %cst_146 : f32 to vector<2x128xf32>
    %733 = arith.addf %732, %731 : vector<2x128xf32>
    %734 = arith.divf %732, %733 : vector<2x128xf32>
    %735 = vector.extract_strided_slice %728 {offsets = [0, 128], sizes = [2, 128], strides = [1, 1]} : vector<2x512xf32> to vector<2x128xf32>
    %736 = arith.negf %735 : vector<2x128xf32>
    %737 = math.exp %736 : vector<2x128xf32>
    %cst_147 = arith.constant 1.000000e+00 : f32
    %738 = vector.broadcast %cst_147 : f32 to vector<2x128xf32>
    %739 = arith.addf %738, %737 : vector<2x128xf32>
    %740 = arith.divf %738, %739 : vector<2x128xf32>
    %741 = vector.extract_strided_slice %728 {offsets = [0, 256], sizes = [2, 128], strides = [1, 1]} : vector<2x512xf32> to vector<2x128xf32>
    %742 = math.tanh %741 : vector<2x128xf32>
    %743 = vector.extract_strided_slice %728 {offsets = [0, 384], sizes = [2, 128], strides = [1, 1]} : vector<2x512xf32> to vector<2x128xf32>
    %744 = arith.negf %743 : vector<2x128xf32>
    %745 = math.exp %744 : vector<2x128xf32>
    %cst_148 = arith.constant 1.000000e+00 : f32
    %746 = vector.broadcast %cst_148 : f32 to vector<2x128xf32>
    %747 = arith.addf %746, %745 : vector<2x128xf32>
    %748 = arith.divf %746, %747 : vector<2x128xf32>
    %749 = arith.mulf %740, %721 : vector<2x128xf32>
    %750 = arith.mulf %734, %742 : vector<2x128xf32>
    %751 = arith.addf %749, %750 : vector<2x128xf32>
    %752 = math.tanh %751 : vector<2x128xf32>
    %753 = arith.mulf %748, %752 : vector<2x128xf32>
    %cst_149 = arith.constant dense<0.000000e+00> : vector<2x4xf32>
    %754 = tpu.matmul %753, %9, %cst_149 {dimension_numbers = #tpu.dot_dimension_numbers<[1], [0], [0], [1], [0, 0, 1, 1], [], []>} : vector<2x128xf32>, vector<128x4xf32>, vector<2x4xf32> -> vector<2x4xf32>
    %755 = vector.broadcast %10 : vector<1x4xf32> to vector<2x4xf32>
    %756 = arith.addf %754, %755 : vector<2x4xf32>
    %c0_150 = arith.constant 0 : index
    %c0_151 = arith.constant 0 : index
    %757 = vector.load %arg13[%c0_150, %c0_151] : memref<2x4xf32, #tpu.memory_space<vmem>>, vector<2x4xf32>
    tpu.vector_store %arg13[%c0_150, %c0_151], %756 {strides = array<i32>} : memref<2x4xf32, #tpu.memory_space<vmem>>, vector<2x4xf32>,
    return
  }
  func.func @transform_0(%arg0: i32) -> (i32, i32, i32) {
    %c0_i32 = arith.constant 0 : i32
    %c0_i32_0 = arith.constant 0 : i32
    %c0_i32_1 = arith.constant 0 : i32
    return %c0_i32, %arg0, %c0_i32_0 : i32, i32, i32
  }
  func.func @transform_1(%arg0: i32) -> (i32, i32) {
    %c0_i32 = arith.constant 0 : i32
    %c0_i32_0 = arith.constant 0 : i32
    %c0_i32_1 = arith.constant 0 : i32
    return %c0_i32, %c0_i32_0 : i32, i32
  }
  func.func @transform_2(%arg0: i32) -> (i32, i32) {
    %c0_i32 = arith.constant 0 : i32
    %c0_i32_0 = arith.constant 0 : i32
    %c0_i32_1 = arith.constant 0 : i32
    return %c0_i32, %c0_i32_0 : i32, i32
  }
  func.func @transform_3(%arg0: i32) -> (i32, i32) {
    %c0_i32 = arith.constant 0 : i32
    %c0_i32_0 = arith.constant 0 : i32
    %c0_i32_1 = arith.constant 0 : i32
    return %c0_i32, %c0_i32_0 : i32, i32
  }
  func.func @transform_4(%arg0: i32) -> (i32, i32) {
    %c0_i32 = arith.constant 0 : i32
    %c0_i32_0 = arith.constant 0 : i32
    %c0_i32_1 = arith.constant 0 : i32
    return %c0_i32, %c0_i32_0 : i32, i32
  }
  func.func @transform_5(%arg0: i32) -> (i32, i32) {
    %c0_i32 = arith.constant 0 : i32
    %c0_i32_0 = arith.constant 0 : i32
    %c0_i32_1 = arith.constant 0 : i32
    return %c0_i32, %c0_i32_0 : i32, i32
  }
  func.func @transform_6(%arg0: i32) -> (i32, i32) {
    %c0_i32 = arith.constant 0 : i32
    %c0_i32_0 = arith.constant 0 : i32
    %c0_i32_1 = arith.constant 0 : i32
    return %c0_i32, %c0_i32_0 : i32, i32
  }
  func.func @transform_7(%arg0: i32) -> (i32, i32) {
    %c0_i32 = arith.constant 0 : i32
    %c0_i32_0 = arith.constant 0 : i32
    %c0_i32_1 = arith.constant 0 : i32
    return %c0_i32, %c0_i32_0 : i32, i32
  }
  func.func @transform_8(%arg0: i32) -> (i32, i32) {
    %c0_i32 = arith.constant 0 : i32
    %c0_i32_0 = arith.constant 0 : i32
    %c0_i32_1 = arith.constant 0 : i32
    return %c0_i32, %c0_i32_0 : i32, i32
  }
  func.func @transform_9(%arg0: i32) -> (i32, i32) {
    %c0_i32 = arith.constant 0 : i32
    %c0_i32_0 = arith.constant 0 : i32
    %c0_i32_1 = arith.constant 0 : i32
    return %c0_i32, %c0_i32_0 : i32, i32
  }
  func.func @transform_10(%arg0: i32) -> (i32, i32) {
    %c0_i32 = arith.constant 0 : i32
    %c0_i32_0 = arith.constant 0 : i32
    %c0_i32_1 = arith.constant 0 : i32
    return %c0_i32, %c0_i32_0 : i32, i32
  }
  func.func @transform_11(%arg0: i32) -> (i32, i32) {
    %c0_i32 = arith.constant 0 : i32
    %c0_i32_0 = arith.constant 0 : i32
    %c0_i32_1 = arith.constant 0 : i32
    return %c0_i32, %c0_i32_0 : i32, i32
  }
  func.func @transform_12(%arg0: i32) -> (i32, i32) {
    %c0_i32 = arith.constant 0 : i32
    %c0_i32_0 = arith.constant 0 : i32
    return %arg0, %c0_i32 : i32, i32
  }
}

</mosaic_0001>

<llo_original>
// kernel: tpu_custom_call.1
$region0: #{tpu_custom_call.1}
  #allocation0 [shape = 'u32[]', space=smem, size = 0x4, offset = 0x4, fixed_abs, tag = 'smem constant byte address 0x4 - core index']
  #allocation1 [shape = 'u32[144,128]{1,0:T(1,128)}', space=vmem, size = 0x12000, scoped, tag = 'internal scratch']
  %s0 = inlined_call_operand.vmem [shape: f32[8,2,40], index: 0, kind: input, shape index: {}]
  %s1 = inlined_call_operand.hbm [shape: f32[40,512], index: 1, kind: input, shape index: {}]
  %s2 = inlined_call_operand.hbm [shape: f32[128,512], index: 2, kind: input, shape index: {}]
  %s3 = inlined_call_operand.vmem [shape: f32[1,512], index: 3, kind: input, shape index: {}]
  %s4 = inlined_call_operand.hbm [shape: f32[128,512], index: 4, kind: input, shape index: {}]
  %s5 = inlined_call_operand.hbm [shape: f32[128,512], index: 5, kind: input, shape index: {}]
  %s6 = inlined_call_operand.vmem [shape: f32[1,512], index: 6, kind: input, shape index: {}]
  %s7 = inlined_call_operand.hbm [shape: f32[128,512], index: 7, kind: input, shape index: {}]
  %s8 = inlined_call_operand.hbm [shape: f32[128,512], index: 8, kind: input, shape index: {}]
  %s9 = inlined_call_operand.vmem [shape: f32[1,512], index: 9, kind: input, shape index: {}]
  %s10 = inlined_call_operand.vmem [shape: f32[128,4], index: 10, kind: input, shape index: {}]
  %s11 = inlined_call_operand.vmem [shape: f32[1,4], index: 11, kind: input, shape index: {}]
  %s12 = inlined_call_operand.hbm [shape: f32[2,4], index: 12, kind: output, shape index: {}]
  %s13 = sld [smem:[#allocation0]]
  $region82: #{tpu_custom_call.1} parent=0
    _
  %s15 = ssub.s32 1, %s13
  %s16 = scalar_select 0, %s15, %s13
  $region1: #{tpu_custom_call.1} parent=0
    #allocation2 [shape = 'u8[81920]{0}', space=vmem, size = 0x14000, scoped, tag = 'input window, operand 1, single buffered']
    #allocation3 [shape = 's32[1]{0}', space=sflag, size = 0x4, scoped, tag = 'scoped memory for tpu_custom_call.1']
    #allocation4 [shape = 's32[1]{0}', space=sflag, size = 0x4, scoped, tag = 'scoped memory for tpu_custom_call.1']
    #allocation5 [shape = 'u8[262144]{0}', space=vmem, size = 0x40000, scoped, tag = 'input window, operand 2, single buffered']
    #allocation6 [shape = 's32[1]{0}', space=sflag, size = 0x4, scoped, tag = 'scoped memory for tpu_custom_call.1']
    #allocation7 [shape = 'u8[262144]{0}', space=vmem, size = 0x40000, scoped, tag = 'input window, operand 4, single buffered']
    #allocation8 [shape = 'u8[262144]{0}', space=vmem, size = 0x40000, scoped, tag = 'input window, operand 5, single buffered']
    #allocation9 [shape = 's32[1]{0}', space=sflag, size = 0x4, scoped, tag = 'scoped memory for tpu_custom_call.1']
    #allocation10 [shape = 'u8[262144]{0}', space=vmem, size = 0x40000, scoped, tag = 'input window, operand 7, single buffered']
    #allocation11 [shape = 'u8[262144]{0}', space=vmem, size = 0x40000, scoped, tag = 'input window, operand 8, single buffered']
    #allocation12 [shape = 's32[1]{0}', space=sflag, size = 0x4, scoped, tag = 'scoped memory for tpu_custom_call.1']
    #allocation13 [shape = 'u8[1024]{0}', space=vmem, size = 0x400, scoped, tag = 'output window, operand 0, single buffered']
    %17 = vsyncpa [#allocation3], 0
    %18 = vsyncpa [#allocation6], 0
    %19 = vsyncpa [#allocation9], 0
    %20 = vsyncpa [#allocation12], 0
    %21 = vsyncpa [#allocation4], 0
    // Predicated region
    $region2: #{tpu_custom_call.1} parent=1 // pred_check
      _
    $region3: #{tpu_custom_call.1} parent=1 // pred_check_branch
      %23 = sbr.rel (0) target = $region5
    $region4: #{tpu_custom_call.1} parent=1 // pred_region
      _
    $region5: #{tpu_custom_call.1} parent=1 // pred_fallthru
      _
    // Predicated region
    $region6: #{tpu_custom_call.1} parent=1 // pred_check
      _
    $region7: #{tpu_custom_call.1} parent=1 // pred_check_branch
      %25 = sbr.rel (0) target = $region9
    $region8: #{tpu_custom_call.1} parent=1 // pred_region
      %s27 = ssub.s32 2560, 2560
      %28 = vsyncadd [#allocation3], %s27
      %s29 = sshll.u32 [#allocation2], 4
      %s30 = int_to_ptr.vmem [resolvable:$true] %s29
      %35 = dma.hbm_to_vmem [thread:$0]  %s1, 2560, %s30, [#allocation3], 512, 512, 32
    $region9: #{tpu_custom_call.1} parent=1 // pred_fallthru
      _
    // Predicated region
    $region10: #{tpu_custom_call.1} parent=1 // pred_check
      _
    $region11: #{tpu_custom_call.1} parent=1 // pred_check_branch
      %37 = sbr.rel (0) target = $region13
    $region12: #{tpu_custom_call.1} parent=1 // pred_region
      %s39 = ssub.s32 8192, 8192
      %40 = vsyncadd [#allocation6], %s39
      %s41 = sshll.u32 [#allocation5], 4
      %s42 = int_to_ptr.vmem [resolvable:$true] %s41
      %47 = dma.hbm_to_vmem [thread:$0]  %s2, 8192, %s42, [#allocation6], 512, 512, 32
    $region13: #{tpu_custom_call.1} parent=1 // pred_fallthru
      _
    // Predicated region
    $region14: #{tpu_custom_call.1} parent=1 // pred_check
      _
    $region15: #{tpu_custom_call.1} parent=1 // pred_check_branch
      %49 = sbr.rel (0) target = $region17
    $region16: #{tpu_custom_call.1} parent=1 // pred_region
      _
    $region17: #{tpu_custom_call.1} parent=1 // pred_fallthru
      _
    // Predicated region
    $region18: #{tpu_custom_call.1} parent=1 // pred_check
      _
    $region19: #{tpu_custom_call.1} parent=1 // pred_check_branch
      %51 = sbr.rel (0) target = $region21
    $region20: #{tpu_custom_call.1} parent=1 // pred_region
      %s53 = ssub.s32 8192, 8192
      %54 = vsyncadd [#allocation6], %s53
      %s55 = sshll.u32 [#allocation7], 4
      %s56 = int_to_ptr.vmem [resolvable:$true] %s55
      %61 = dma.hbm_to_vmem [thread:$0]  %s4, 8192, %s56, [#allocation6], 512, 512, 32
    $region21: #{tpu_custom_call.1} parent=1 // pred_fallthru
      _
    // Predicated region
    $region22: #{tpu_custom_call.1} parent=1 // pred_check
      _
    $region23: #{tpu_custom_call.1} parent=1 // pred_check_branch
      %63 = sbr.rel (0) target = $region25
    $region24: #{tpu_custom_call.1} parent=1 // pred_region
      %s65 = ssub.s32 8192, 8192
      %66 = vsyncadd [#allocation9], %s65
      %s67 = sshll.u32 [#allocation8], 4
      %s68 = int_to_ptr.vmem [resolvable:$true] %s67
      %73 = dma.hbm_to_vmem [thread:$0]  %s5, 8192, %s68, [#allocation9], 512, 512, 32
    $region25: #{tpu_custom_call.1} parent=1 // pred_fallthru
      _
    // Predicated region
    $region26: #{tpu_custom_call.1} parent=1 // pred_check
      _
    $region27: #{tpu_custom_call.1} parent=1 // pred_check_branch
      %75 = sbr.rel (0) target = $region29
    $region28: #{tpu_custom_call.1} parent=1 // pred_region
      _
    $region29: #{tpu_custom_call.1} parent=1 // pred_fallthru
      _
    // Predicated region
    $region30: #{tpu_custom_call.1} parent=1 // pred_check
      _
    $region31: #{tpu_custom_call.1} parent=1 // pred_check_branch
      %77 = sbr.rel (0) target = $region33
    $region32: #{tpu_custom_call.1} parent=1 // pred_region
      %s79 = ssub.s32 8192, 8192
      %80 = vsyncadd [#allocation9], %s79
      %s81 = sshll.u32 [#allocation10], 4
      %s82 = int_to_ptr.vmem [resolvable:$true] %s81
      %87 = dma.hbm_to_vmem [thread:$0]  %s7, 8192, %s82, [#allocation9], 512, 512, 32
    $region33: #{tpu_custom_call.1} parent=1 // pred_fallthru
      _
    // Predicated region
    $region34: #{tpu_custom_call.1} parent=1 // pred_check
      _
    $region35: #{tpu_custom_call.1} parent=1 // pred_check_branch
      %89 = sbr.rel (0) target = $region37
    $region36: #{tpu_custom_call.1} parent=1 // pred_region
      %s91 = ssub.s32 8192, 8192
      %92 = vsyncadd [#allocation12], %s91
      %s93 = sshll.u32 [#allocation11], 4
      %s94 = int_to_ptr.vmem [resolvable:$true] %s93
      %99 = dma.hbm_to_vmem [thread:$0]  %s8, 8192, %s94, [#allocation12], 512, 512, 32
    $region37: #{tpu_custom_call.1} parent=1 // pred_fallthru
      _
    // Predicated region
    $region38: #{tpu_custom_call.1} parent=1 // pred_check
      _
    $region39: #{tpu_custom_call.1} parent=1 // pred_check_branch
      %101 = sbr.rel (0) target = $region41
    $region40: #{tpu_custom_call.1} parent=1 // pred_region
      _
    $region41: #{tpu_custom_call.1} parent=1 // pred_fallthru
      _
    // Predicated region
    $region42: #{tpu_custom_call.1} parent=1 // pred_check
      _
    $region43: #{tpu_custom_call.1} parent=1 // pred_check_branch
      %103 = sbr.rel (0) target = $region45
    $region44: #{tpu_custom_call.1} parent=1 // pred_region
      _
    $region45: #{tpu_custom_call.1} parent=1 // pred_fallthru
      _
    // Predicated region
    $region46: #{tpu_custom_call.1} parent=1 // pred_check
      _
    $region47: #{tpu_custom_call.1} parent=1 // pred_check_branch
      %105 = sbr.rel (0) target = $region49
    $region48: #{tpu_custom_call.1} parent=1 // pred_region
      _
    $region49: #{tpu_custom_call.1} parent=1 // pred_fallthru
      _
    // Predicated region
    $region50: #{tpu_custom_call.1} parent=1 // pred_check
      _
    $region51: #{tpu_custom_call.1} parent=1 // pred_check_branch
      %107 = sbr.rel (0) target = $region53
    $region52: #{tpu_custom_call.1} parent=1 // pred_region
      %108 = dma.done [#allocation3], 2560
    $region53: #{tpu_custom_call.1} parent=1 // pred_fallthru
      _
    // Predicated region
    $region54: #{tpu_custom_call.1} parent=1 // pred_check
      _
    $region55: #{tpu_custom_call.1} parent=1 // pred_check_branch
      %110 = sbr.rel (0) target = $region57
    $region56: #{tpu_custom_call.1} parent=1 // pred_region
      %111 = dma.done [#allocation6], 8192
    $region57: #{tpu_custom_call.1} parent=1 // pred_fallthru
      _
    // Predicated region
    $region58: #{tpu_custom_call.1} parent=1 // pred_check
      _
    $region59: #{tpu_custom_call.1} parent=1 // pred_check_branch
      %113 = sbr.rel (0) target = $region61
    $region60: #{tpu_custom_call.1} parent=1 // pred_region
      %114 = dma.done [#allocation6], 8192
    $region61: #{tpu_custom_call.1} parent=1 // pred_fallthru
      _
    // Predicated region
    $region62: #{tpu_custom_call.1} parent=1 // pred_check
      _
    $region63: #{tpu_custom_call.1} parent=1 // pred_check_branch
      %116 = sbr.rel (0) target = $region65
    $region64: #{tpu_custom_call.1} parent=1 // pred_region
      %117 = dma.done [#allocation9], 8192
    $region65: #{tpu_custom_call.1} parent=1 // pred_fallthru
      _
    // Predicated region
    $region66: #{tpu_custom_call.1} parent=1 // pred_check
      _
    $region67: #{tpu_custom_call.1} parent=1 // pred_check_branch
      %119 = sbr.rel (0) target = $region69
    $region68: #{tpu_custom_call.1} parent=1 // pred_region
      %120 = dma.done [#allocation9], 8192
    $region69: #{tpu_custom_call.1} parent=1 // pred_fallthru
      _
    // Predicated region
    $region70: #{tpu_custom_call.1} parent=1 // pred_check
      _
    $region71: #{tpu_custom_call.1} parent=1 // pred_check_branch
      %122 = sbr.rel (0) target = $region73
    $region72: #{tpu_custom_call.1} parent=1 // pred_region
      %123 = dma.done [#allocation12], 8192
    $region73: #{tpu_custom_call.1} parent=1 // pred_fallthru
      _
    %v124 = vld [vmem:[#allocation2] sm:$0xff]
    %v125 = vld [vmem:[#allocation2 + $0x8] sm:$0xff]
    %v126 = vld [vmem:[#allocation2 + $0x10] sm:$0xff]
    %v127 = vld [vmem:[#allocation2 + $0x18] sm:$0xff]
    %v128 = vld [vmem:[#allocation2 + $0x20] sm:$0xff]
    %v129 = vld [vmem:[#allocation2 + $0x28] sm:$0xff]
    %v130 = vld [vmem:[#allocation2 + $0x30] sm:$0xff]
    %v131 = vld [vmem:[#allocation2 + $0x38] sm:$0xff]
    %v132 = vld [vmem:[#allocation2 + $0x40] sm:$0xff]
    %v133 = vld [vmem:[#allocation2 + $0x48] sm:$0xff]
    %v134 = vld [vmem:[#allocation2 + $0x50] sm:$0xff]
    %v135 = vld [vmem:[#allocation2 + $0x58] sm:$0xff]
    %v136 = vld [vmem:[#allocation2 + $0x60] sm:$0xff]
    %v137 = vld [vmem:[#allocation2 + $0x68] sm:$0xff]
    %v138 = vld [vmem:[#allocation2 + $0x70] sm:$0xff]
    %v139 = vld [vmem:[#allocation2 + $0x78] sm:$0xff]
    %v140 = vld [vmem:[#allocation2 + $0x80] sm:$0xff]
    %v141 = vld [vmem:[#allocation2 + $0x88] sm:$0xff]
    %v142 = vld [vmem:[#allocation2 + $0x90] sm:$0xff]
    %v143 = vld [vmem:[#allocation2 + $0x98] sm:$0xff]
    %v144 = vld [vmem:[#allocation7] sm:$0xff]
    %v145 = vld [vmem:[#allocation7 + $0x8] sm:$0xff]
    %v146 = vld [vmem:[#allocation7 + $0x10] sm:$0xff]
    %v147 = vld [vmem:[#allocation7 + $0x18] sm:$0xff]
    %v148 = vld [vmem:[#allocation7 + $0x20] sm:$0xff]
    %v149 = vld [vmem:[#allocation7 + $0x28] sm:$0xff]
    %v150 = vld [vmem:[#allocation7 + $0x30] sm:$0xff]
    %v151 = vld [vmem:[#allocation7 + $0x38] sm:$0xff]
    %v152 = vld [vmem:[#allocation7 + $0x40] sm:$0xff]
    %v153 = vld [vmem:[#allocation7 + $0x48] sm:$0xff]
    %v154 = vld [vmem:[#allocation7 + $0x50] sm:$0xff]
    %v155 = vld [vmem:[#allocation7 + $0x58] sm:$0xff]
    %v156 = vld [vmem:[#allocation7 + $0x60] sm:$0xff]
    %v157 = vld [vmem:[#allocation7 + $0x68] sm:$0xff]
    %v158 = vld [vmem:[#allocation7 + $0x70] sm:$0xff]
    %v159 = vld [vmem:[#allocation7 + $0x78] sm:$0xff]
    %v160 = vld [vmem:[#allocation7 + $0x80] sm:$0xff]
    %v161 = vld [vmem:[#allocation7 + $0x88] sm:$0xff]
    %v162 = vld [vmem:[#allocation7 + $0x90] sm:$0xff]
    %v163 = vld [vmem:[#allocation7 + $0x98] sm:$0xff]
    %v164 = vld [vmem:[#allocation7 + $0xa0] sm:$0xff]
    %v165 = vld [vmem:[#allocation7 + $0xa8] sm:$0xff]
    %v166 = vld [vmem:[#allocation7 + $0xb0] sm:$0xff]
    %v167 = vld [vmem:[#allocation7 + $0xb8] sm:$0xff]
    %v168 = vld [vmem:[#allocation7 + $0xc0] sm:$0xff]
    %v169 = vld [vmem:[#allocation7 + $0xc8] sm:$0xff]
    %v170 = vld [vmem:[#allocation7 + $0xd0] sm:$0xff]
    %v171 = vld [vmem:[#allocation7 + $0xd8] sm:$0xff]
    %v172 = vld [vmem:[#allocation7 + $0xe0] sm:$0xff]
    %v173 = vld [vmem:[#allocation7 + $0xe8] sm:$0xff]
    %v174 = vld [vmem:[#allocation7 + $0xf0] sm:$0xff]
    %v175 = vld [vmem:[#allocation7 + $0xf8] sm:$0xff]
    %v176 = vld [vmem:[#allocation7 + $0x100] sm:$0xff]
    %v177 = vld [vmem:[#allocation7 + $0x108] sm:$0xff]
    %v178 = vld [vmem:[#allocation7 + $0x110] sm:$0xff]
    %v179 = vld [vmem:[#allocation7 + $0x118] sm:$0xff]
    %v180 = vld [vmem:[#allocation7 + $0x120] sm:$0xff]
    %v181 = vld [vmem:[#allocation7 + $0x128] sm:$0xff]
    %v182 = vld [vmem:[#allocation7 + $0x130] sm:$0xff]
    %v183 = vld [vmem:[#allocation7 + $0x138] sm:$0xff]
    %v184 = vld [vmem:[#allocation7 + $0x140] sm:$0xff]
    %v185 = vld [vmem:[#allocation7 + $0x148] sm:$0xff]
    %v186 = vld [vmem:[#allocation7 + $0x150] sm:$0xff]
    %v187 = vld [vmem:[#allocation7 + $0x158] sm:$0xff]
    %v188 = vld [vmem:[#allocation7 + $0x160] sm:$0xff]
    %v189 = vld [vmem:[#allocation7 + $0x168] sm:$0xff]
    %v190 = vld [vmem:[#allocation7 + $0x170] sm:$0xff]
    %v191 = vld [vmem:[#allocation7 + $0x178] sm:$0xff]
    %v192 = vld [vmem:[#allocation7 + $0x180] sm:$0xff]
    %v193 = vld [vmem:[#allocation7 + $0x188] sm:$0xff]
    %v194 = vld [vmem:[#allocation7 + $0x190] sm:$0xff]
    %v195 = vld [vmem:[#allocation7 + $0x198] sm:$0xff]
    %v196 = vld [vmem:[#allocation7 + $0x1a0] sm:$0xff]
    %v197 = vld [vmem:[#allocation7 + $0x1a8] sm:$0xff]
    %v198 = vld [vmem:[#allocation7 + $0x1b0] sm:$0xff]
    %v199 = vld [vmem:[#allocation7 + $0x1b8] sm:$0xff]
    %v200 = vld [vmem:[#allocation7 + $0x1c0] sm:$0xff]
    %v201 = vld [vmem:[#allocation7 + $0x1c8] sm:$0xff]
    %v202 = vld [vmem:[#allocation7 + $0x1d0] sm:$0xff]
    %v203 = vld [vmem:[#allocation7 + $0x1d8] sm:$0xff]
    %v204 = vld [vmem:[#allocation7 + $0x1e0] sm:$0xff]
    %v205 = vld [vmem:[#allocation7 + $0x1e8] sm:$0xff]
    %v206 = vld [vmem:[#allocation7 + $0x1f0] sm:$0xff]
    %v207 = vld [vmem:[#allocation7 + $0x1f8] sm:$0xff]
    %v208 = vld [vmem:[#allocation10] sm:$0xff]
    %v209 = vld [vmem:[#allocation10 + $0x8] sm:$0xff]
    %v210 = vld [vmem:[#allocation10 + $0x10] sm:$0xff]
    %v211 = vld [vmem:[#allocation10 + $0x18] sm:$0xff]
    %v212 = vld [vmem:[#allocation10 + $0x20] sm:$0xff]
    %v213 = vld [vmem:[#allocation10 + $0x28] sm:$0xff]
    %v214 = vld [vmem:[#allocation10 + $0x30] sm:$0xff]
    %v215 = vld [vmem:[#allocation10 + $0x38] sm:$0xff]
    %v216 = vld [vmem:[#allocation10 + $0x40] sm:$0xff]
    %v217 = vld [vmem:[#allocation10 + $0x48] sm:$0xff]
    %v218 = vld [vmem:[#allocation10 + $0x50] sm:$0xff]
    %v219 = vld [vmem:[#allocation10 + $0x58] sm:$0xff]
    %v220 = vld [vmem:[#allocation10 + $0x60] sm:$0xff]
    %v221 = vld [vmem:[#allocation10 + $0x68] sm:$0xff]
    %v222 = vld [vmem:[#allocation10 + $0x70] sm:$0xff]
    %v223 = vld [vmem:[#allocation10 + $0x78] sm:$0xff]
    %v224 = vld [vmem:[#allocation10 + $0x80] sm:$0xff]
    %v225 = vld [vmem:[#allocation10 + $0x88] sm:$0xff]
    %v226 = vld [vmem:[#allocation10 + $0x90] sm:$0xff]
    %v227 = vld [vmem:[#allocation10 + $0x98] sm:$0xff]
    %v228 = vld [vmem:[#allocation10 + $0xa0] sm:$0xff]
    %v229 = vld [vmem:[#allocation10 + $0xa8] sm:$0xff]
    %v230 = vld [vmem:[#allocation10 + $0xb0] sm:$0xff]
    %v231 = vld [vmem:[#allocation10 + $0xb8] sm:$0xff]
    %v232 = vld [vmem:[#allocation10 + $0xc0] sm:$0xff]
    %v233 = vld [vmem:[#allocation10 + $0xc8] sm:$0xff]
    %v234 = vld [vmem:[#allocation10 + $0xd0] sm:$0xff]
    %v235 = vld [vmem:[#allocation10 + $0xd8] sm:$0xff]
    %v236 = vld [vmem:[#allocation10 + $0xe0] sm:$0xff]
    %v237 = vld [vmem:[#allocation10 + $0xe8] sm:$0xff]
    %v238 = vld [vmem:[#allocation10 + $0xf0] sm:$0xff]
    %v239 = vld [vmem:[#allocation10 + $0xf8] sm:$0xff]
    %v240 = vld [vmem:[#allocation10 + $0x100] sm:$0xff]
    %v241 = vld [vmem:[#allocation10 + $0x108] sm:$0xff]
    %v242 = vld [vmem:[#allocation10 + $0x110] sm:$0xff]
    %v243 = vld [vmem:[#allocation10 + $0x118] sm:$0xff]
    %v244 = vld [vmem:[#allocation10 + $0x120] sm:$0xff]
    %v245 = vld [vmem:[#allocation10 + $0x128] sm:$0xff]
    %v246 = vld [vmem:[#allocation10 + $0x130] sm:$0xff]
    %v247 = vld [vmem:[#allocation10 + $0x138] sm:$0xff]
    %v248 = vld [vmem:[#allocation10 + $0x140] sm:$0xff]
    %v249 = vld [vmem:[#allocation10 + $0x148] sm:$0xff]
    %v250 = vld [vmem:[#allocation10 + $0x150] sm:$0xff]
    %v251 = vld [vmem:[#allocation10 + $0x158] sm:$0xff]
    %v252 = vld [vmem:[#allocation10 + $0x160] sm:$0xff]
    %v253 = vld [vmem:[#allocation10 + $0x168] sm:$0xff]
    %v254 = vld [vmem:[#allocation10 + $0x170] sm:$0xff]
    %v255 = vld [vmem:[#allocation10 + $0x178] sm:$0xff]
    %v256 = vld [vmem:[#allocation10 + $0x180] sm:$0xff]
    %v257 = vld [vmem:[#allocation10 + $0x188] sm:$0xff]
    %v258 = vld [vmem:[#allocation10 + $0x190] sm:$0xff]
    %v259 = vld [vmem:[#allocation10 + $0x198] sm:$0xff]
    %v260 = vld [vmem:[#allocation10 + $0x1a0] sm:$0xff]
    %v261 = vld [vmem:[#allocation10 + $0x1a8] sm:$0xff]
    %v262 = vld [vmem:[#allocation10 + $0x1b0] sm:$0xff]
    %v263 = vld [vmem:[#allocation10 + $0x1b8] sm:$0xff]
    %v264 = vld [vmem:[#allocation10 + $0x1c0] sm:$0xff]
    %v265 = vld [vmem:[#allocation10 + $0x1c8] sm:$0xff]
    %v266 = vld [vmem:[#allocation10 + $0x1d0] sm:$0xff]
    %v267 = vld [vmem:[#allocation10 + $0x1d8] sm:$0xff]
    %v268 = vld [vmem:[#allocation10 + $0x1e0] sm:$0xff]
    %v269 = vld [vmem:[#allocation10 + $0x1e8] sm:$0xff]
    %v270 = vld [vmem:[#allocation10 + $0x1f0] sm:$0xff]
    %v271 = vld [vmem:[#allocation10 + $0x1f8] sm:$0xff]
    %v272 = vld [vmem:[#allocation5] sm:$0xff]
    %v273 = vld [vmem:[#allocation5 + $0x8] sm:$0xff]
    %v274 = vld [vmem:[#allocation5 + $0x10] sm:$0xff]
    %v275 = vld [vmem:[#allocation5 + $0x18] sm:$0xff]
    %v276 = vld [vmem:[#allocation5 + $0x20] sm:$0xff]
    %v277 = vld [vmem:[#allocation5 + $0x28] sm:$0xff]
    %v278 = vld [vmem:[#allocation5 + $0x30] sm:$0xff]
    %v279 = vld [vmem:[#allocation5 + $0x38] sm:$0xff]
    %v280 = vld [vmem:[#allocation5 + $0x40] sm:$0xff]
    %v281 = vld [vmem:[#allocation5 + $0x48] sm:$0xff]
    %v282 = vld [vmem:[#allocation5 + $0x50] sm:$0xff]
    %v283 = vld [vmem:[#allocation5 + $0x58] sm:$0xff]
    %v284 = vld [vmem:[#allocation5 + $0x60] sm:$0xff]
    %v285 = vld [vmem:[#allocation5 + $0x68] sm:$0xff]
    %v286 = vld [vmem:[#allocation5 + $0x70] sm:$0xff]
    %v287 = vld [vmem:[#allocation5 + $0x78] sm:$0xff]
    %v288 = vld [vmem:[#allocation5 + $0x80] sm:$0xff]
    %v289 = vld [vmem:[#allocation5 + $0x88] sm:$0xff]
    %v290 = vld [vmem:[#allocation5 + $0x90] sm:$0xff]
    %v291 = vld [vmem:[#allocation5 + $0x98] sm:$0xff]
    %v292 = vld [vmem:[#allocation5 + $0xa0] sm:$0xff]
    %v293 = vld [vmem:[#allocation5 + $0xa8] sm:$0xff]
    %v294 = vld [vmem:[#allocation5 + $0xb0] sm:$0xff]
    %v295 = vld [vmem:[#allocation5 + $0xb8] sm:$0xff]
    %v296 = vld [vmem:[#allocation5 + $0xc0] sm:$0xff]
    %v297 = vld [vmem:[#allocation5 + $0xc8] sm:$0xff]
    %v298 = vld [vmem:[#allocation5 + $0xd0] sm:$0xff]
    %v299 = vld [vmem:[#allocation5 + $0xd8] sm:$0xff]
    %v300 = vld [vmem:[#allocation5 + $0xe0] sm:$0xff]
    %v301 = vld [vmem:[#allocation5 + $0xe8] sm:$0xff]
    %v302 = vld [vmem:[#allocation5 + $0xf0] sm:$0xff]
    %v303 = vld [vmem:[#allocation5 + $0xf8] sm:$0xff]
    %v304 = vld [vmem:[#allocation5 + $0x100] sm:$0xff]
    %v305 = vld [vmem:[#allocation5 + $0x108] sm:$0xff]
    %v306 = vld [vmem:[#allocation5 + $0x110] sm:$0xff]
    %v307 = vld [vmem:[#allocation5 + $0x118] sm:$0xff]
    %v308 = vld [vmem:[#allocation5 + $0x120] sm:$0xff]
    %v309 = vld [vmem:[#allocation5 + $0x128] sm:$0xff]
    %v310 = vld [vmem:[#allocation5 + $0x130] sm:$0xff]
    %v311 = vld [vmem:[#allocation5 + $0x138] sm:$0xff]
    %v312 = vld [vmem:[#allocation5 + $0x140] sm:$0xff]
    %v313 = vld [vmem:[#allocation5 + $0x148] sm:$0xff]
    %v314 = vld [vmem:[#allocation5 + $0x150] sm:$0xff]
    %v315 = vld [vmem:[#allocation5 + $0x158] sm:$0xff]
    %v316 = vld [vmem:[#allocation5 + $0x160] sm:$0xff]
    %v317 = vld [vmem:[#allocation5 + $0x168] sm:$0xff]
    %v318 = vld [vmem:[#allocation5 + $0x170] sm:$0xff]
    %v319 = vld [vmem:[#allocation5 + $0x178] sm:$0xff]
    %v320 = vld [vmem:[#allocation5 + $0x180] sm:$0xff]
    %v321 = vld [vmem:[#allocation5 + $0x188] sm:$0xff]
    %v322 = vld [vmem:[#allocation5 + $0x190] sm:$0xff]
    %v323 = vld [vmem:[#allocation5 + $0x198] sm:$0xff]
    %v324 = vld [vmem:[#allocation5 + $0x1a0] sm:$0xff]
    %v325 = vld [vmem:[#allocation5 + $0x1a8] sm:$0xff]
    %v326 = vld [vmem:[#allocation5 + $0x1b0] sm:$0xff]
    %v327 = vld [vmem:[#allocation5 + $0x1b8] sm:$0xff]
    %v328 = vld [vmem:[#allocation5 + $0x1c0] sm:$0xff]
    %v329 = vld [vmem:[#allocation5 + $0x1c8] sm:$0xff]
    %v330 = vld [vmem:[#allocation5 + $0x1d0] sm:$0xff]
    %v331 = vld [vmem:[#allocation5 + $0x1d8] sm:$0xff]
    %v332 = vld [vmem:[#allocation5 + $0x1e0] sm:$0xff]
    %v333 = vld [vmem:[#allocation5 + $0x1e8] sm:$0xff]
    %v334 = vld [vmem:[#allocation5 + $0x1f0] sm:$0xff]
    %v335 = vld [vmem:[#allocation5 + $0x1f8] sm:$0xff]
    %v336 = vld [vmem:[#allocation8] sm:$0xff]
    %v337 = vld [vmem:[#allocation8 + $0x8] sm:$0xff]
    %v338 = vld [vmem:[#allocation8 + $0x10] sm:$0xff]
    %v339 = vld [vmem:[#allocation8 + $0x18] sm:$0xff]
    %v340 = vld [vmem:[#allocation8 + $0x20] sm:$0xff]
    %v341 = vld [vmem:[#allocation8 + $0x28] sm:$0xff]
    %v342 = vld [vmem:[#allocation8 + $0x30] sm:$0xff]
    %v343 = vld [vmem:[#allocation8 + $0x38] sm:$0xff]
    %v344 = vld [vmem:[#allocation8 + $0x40] sm:$0xff]
    %v345 = vld [vmem:[#allocation8 + $0x48] sm:$0xff]
    %v346 = vld [vmem:[#allocation8 + $0x50] sm:$0xff]
    %v347 = vld [vmem:[#allocation8 + $0x58] sm:$0xff]
    %v348 = vld [vmem:[#allocation8 + $0x60] sm:$0xff]
    %v349 = vld [vmem:[#allocation8 + $0x68] sm:$0xff]
    %v350 = vld [vmem:[#allocation8 + $0x70] sm:$0xff]
    %v351 = vld [vmem:[#allocation8 + $0x78] sm:$0xff]
    %v352 = vld [vmem:[#allocation8 + $0x80] sm:$0xff]
    %v353 = vld [vmem:[#allocation8 + $0x88] sm:$0xff]
    %v354 = vld [vmem:[#allocation8 + $0x90] sm:$0xff]
    %v355 = vld [vmem:[#allocation8 + $0x98] sm:$0xff]
    %v356 = vld [vmem:[#allocation8 + $0xa0] sm:$0xff]
    %v357 = vld [vmem:[#allocation8 + $0xa8] sm:$0xff]
    %v358 = vld [vmem:[#allocation8 + $0xb0] sm:$0xff]
    %v359 = vld [vmem:[#allocation8 + $0xb8] sm:$0xff]
    %v360 = vld [vmem:[#allocation8 + $0xc0] sm:$0xff]
    %v361 = vld [vmem:[#allocation8 + $0xc8] sm:$0xff]
    %v362 = vld [vmem:[#allocation8 + $0xd0] sm:$0xff]
    %v363 = vld [vmem:[#allocation8 + $0xd8] sm:$0xff]
    %v364 = vld [vmem:[#allocation8 + $0xe0] sm:$0xff]
    %v365 = vld [vmem:[#allocation8 + $0xe8] sm:$0xff]
    %v366 = vld [vmem:[#allocation8 + $0xf0] sm:$0xff]
    %v367 = vld [vmem:[#allocation8 + $0xf8] sm:$0xff]
    %v368 = vld [vmem:[#allocation8 + $0x100] sm:$0xff]
    %v369 = vld [vmem:[#allocation8 + $0x108] sm:$0xff]
    %v370 = vld [vmem:[#allocation8 + $0x110] sm:$0xff]
    %v371 = vld [vmem:[#allocation8 + $0x118] sm:$0xff]
    %v372 = vld [vmem:[#allocation8 + $0x120] sm:$0xff]
    %v373 = vld [vmem:[#allocation8 + $0x128] sm:$0xff]
    %v374 = vld [vmem:[#allocation8 + $0x130] sm:$0xff]
    %v375 = vld [vmem:[#allocation8 + $0x138] sm:$0xff]
    %v376 = vld [vmem:[#allocation8 + $0x140] sm:$0xff]
    %v377 = vld [vmem:[#allocation8 + $0x148] sm:$0xff]
    %v378 = vld [vmem:[#allocation8 + $0x150] sm:$0xff]
    %v379 = vld [vmem:[#allocation8 + $0x158] sm:$0xff]
    %v380 = vld [vmem:[#allocation8 + $0x160] sm:$0xff]
    %v381 = vld [vmem:[#allocation8 + $0x168] sm:$0xff]
    %v382 = vld [vmem:[#allocation8 + $0x170] sm:$0xff]
    %v383 = vld [vmem:[#allocation8 + $0x178] sm:$0xff]
    %v384 = vld [vmem:[#allocation8 + $0x180] sm:$0xff]
    %v385 = vld [vmem:[#allocation8 + $0x188] sm:$0xff]
    %v386 = vld [vmem:[#allocation8 + $0x190] sm:$0xff]
    %v387 = vld [vmem:[#allocation8 + $0x198] sm:$0xff]
    %v388 = vld [vmem:[#allocation8 + $0x1a0] sm:$0xff]
    %v389 = vld [vmem:[#allocation8 + $0x1a8] sm:$0xff]
    %v390 = vld [vmem:[#allocation8 + $0x1b0] sm:$0xff]
    %v391 = vld [vmem:[#allocation8 + $0x1b8] sm:$0xff]
    %v392 = vld [vmem:[#allocation8 + $0x1c0] sm:$0xff]
    %v393 = vld [vmem:[#allocation8 + $0x1c8] sm:$0xff]
    %v394 = vld [vmem:[#allocation8 + $0x1d0] sm:$0xff]
    %v395 = vld [vmem:[#allocation8 + $0x1d8] sm:$0xff]
    %v396 = vld [vmem:[#allocation8 + $0x1e0] sm:$0xff]
    %v397 = vld [vmem:[#allocation8 + $0x1e8] sm:$0xff]
    %v398 = vld [vmem:[#allocation8 + $0x1f0] sm:$0xff]
    %v399 = vld [vmem:[#allocation8 + $0x1f8] sm:$0xff]
    %v400 = vld [vmem:[#allocation11] sm:$0xff]
    %v401 = vld [vmem:[#allocation11 + $0x8] sm:$0xff]
    %v402 = vld [vmem:[#allocation11 + $0x10] sm:$0xff]
    %v403 = vld [vmem:[#allocation11 + $0x18] sm:$0xff]
    %v404 = vld [vmem:[#allocation11 + $0x20] sm:$0xff]
    %v405 = vld [vmem:[#allocation11 + $0x28] sm:$0xff]
    %v406 = vld [vmem:[#allocation11 + $0x30] sm:$0xff]
    %v407 = vld [vmem:[#allocation11 + $0x38] sm:$0xff]
    %v408 = vld [vmem:[#allocation11 + $0x40] sm:$0xff]
    %v409 = vld [vmem:[#allocation11 + $0x48] sm:$0xff]
    %v410 = vld [vmem:[#allocation11 + $0x50] sm:$0xff]
    %v411 = vld [vmem:[#allocation11 + $0x58] sm:$0xff]
    %v412 = vld [vmem:[#allocation11 + $0x60] sm:$0xff]
    %v413 = vld [vmem:[#allocation11 + $0x68] sm:$0xff]
    %v414 = vld [vmem:[#allocation11 + $0x70] sm:$0xff]
    %v415 = vld [vmem:[#allocation11 + $0x78] sm:$0xff]
    %v416 = vld [vmem:[#allocation11 + $0x80] sm:$0xff]
    %v417 = vld [vmem:[#allocation11 + $0x88] sm:$0xff]
    %v418 = vld [vmem:[#allocation11 + $0x90] sm:$0xff]
    %v419 = vld [vmem:[#allocation11 + $0x98] sm:$0xff]
    %v420 = vld [vmem:[#allocation11 + $0xa0] sm:$0xff]
    %v421 = vld [vmem:[#allocation11 + $0xa8] sm:$0xff]
    %v422 = vld [vmem:[#allocation11 + $0xb0] sm:$0xff]
    %v423 = vld [vmem:[#allocation11 + $0xb8] sm:$0xff]
    %v424 = vld [vmem:[#allocation11 + $0xc0] sm:$0xff]
    %v425 = vld [vmem:[#allocation11 + $0xc8] sm:$0xff]
    %v426 = vld [vmem:[#allocation11 + $0xd0] sm:$0xff]
    %v427 = vld [vmem:[#allocation11 + $0xd8] sm:$0xff]
    %v428 = vld [vmem:[#allocation11 + $0xe0] sm:$0xff]
    %v429 = vld [vmem:[#allocation11 + $0xe8] sm:$0xff]
    %v430 = vld [vmem:[#allocation11 + $0xf0] sm:$0xff]
    %v431 = vld [vmem:[#allocation11 + $0xf8] sm:$0xff]
    %v432 = vld [vmem:[#allocation11 + $0x100] sm:$0xff]
    %v433 = vld [vmem:[#allocation11 + $0x108] sm:$0xff]
    %v434 = vld [vmem:[#allocation11 + $0x110] sm:$0xff]
    %v435 = vld [vmem:[#allocation11 + $0x118] sm:$0xff]
    %v436 = vld [vmem:[#allocation11 + $0x120] sm:$0xff]
    %v437 = vld [vmem:[#allocation11 + $0x128] sm:$0xff]
    %v438 = vld [vmem:[#allocation11 + $0x130] sm:$0xff]
    %v439 = vld [vmem:[#allocation11 + $0x138] sm:$0xff]
    %v440 = vld [vmem:[#allocation11 + $0x140] sm:$0xff]
    %v441 = vld [vmem:[#allocation11 + $0x148] sm:$0xff]
    %v442 = vld [vmem:[#allocation11 + $0x150] sm:$0xff]
    %v443 = vld [vmem:[#allocation11 + $0x158] sm:$0xff]
    %v444 = vld [vmem:[#allocation11 + $0x160] sm:$0xff]
    %v445 = vld [vmem:[#allocation11 + $0x168] sm:$0xff]
    %v446 = vld [vmem:[#allocation11 + $0x170] sm:$0xff]
    %v447 = vld [vmem:[#allocation11 + $0x178] sm:$0xff]
    %v448 = vld [vmem:[#allocation11 + $0x180] sm:$0xff]
    %v449 = vld [vmem:[#allocation11 + $0x188] sm:$0xff]
    %v450 = vld [vmem:[#allocation11 + $0x190] sm:$0xff]
    %v451 = vld [vmem:[#allocation11 + $0x198] sm:$0xff]
    %v452 = vld [vmem:[#allocation11 + $0x1a0] sm:$0xff]
    %v453 = vld [vmem:[#allocation11 + $0x1a8] sm:$0xff]
    %v454 = vld [vmem:[#allocation11 + $0x1b0] sm:$0xff]
    %v455 = vld [vmem:[#allocation11 + $0x1b8] sm:$0xff]
    %v456 = vld [vmem:[#allocation11 + $0x1c0] sm:$0xff]
    %v457 = vld [vmem:[#allocation11 + $0x1c8] sm:$0xff]
    %v458 = vld [vmem:[#allocation11 + $0x1d0] sm:$0xff]
    %v459 = vld [vmem:[#allocation11 + $0x1d8] sm:$0xff]
    %v460 = vld [vmem:[#allocation11 + $0x1e0] sm:$0xff]
    %v461 = vld [vmem:[#allocation11 + $0x1e8] sm:$0xff]
    %v462 = vld [vmem:[#allocation11 + $0x1f0] sm:$0xff]
    %v463 = vld [vmem:[#allocation11 + $0x1f8] sm:$0xff]
    %v464 = vld [vmem:[%s3] sm:$0xf]
    %v465 = vld [vmem:[%s6] sm:$0xf]
    %v466 = vld [vmem:[%s9] sm:$0xf]
    %v467 = vld [vmem:[%s10] sm:$0xff]
    %v468 = vld [vmem:[%s10 + $0x8] sm:$0xff]
    %v469 = vld [vmem:[%s10 + $0x10] sm:$0xff]
    %v470 = vld [vmem:[%s10 + $0x18] sm:$0xff]
    %v471 = vld [vmem:[%s10 + $0x20] sm:$0xff]
    %v472 = vld [vmem:[%s10 + $0x28] sm:$0xff]
    %v473 = vld [vmem:[%s10 + $0x30] sm:$0xff]
    %v474 = vld [vmem:[%s10 + $0x38] sm:$0xff]
    %v475 = vld [vmem:[%s10 + $0x40] sm:$0xff]
    %v476 = vld [vmem:[%s10 + $0x48] sm:$0xff]
    %v477 = vld [vmem:[%s10 + $0x50] sm:$0xff]
    %v478 = vld [vmem:[%s10 + $0x58] sm:$0xff]
    %v479 = vld [vmem:[%s10 + $0x60] sm:$0xff]
    %v480 = vld [vmem:[%s10 + $0x68] sm:$0xff]
    %v481 = vld [vmem:[%s10 + $0x70] sm:$0xff]
    %v482 = vld [vmem:[%s10 + $0x78] sm:$0xff]
    %v483 = vld [vmem:[%s11] sm:$0x1]
    %v484 = vld [vmem:[%s0] sm:$0x3]
    %v485 = vld [vmem:[%s0 + $0x2] sm:$0x3]
    %v486 = vld [vmem:[%s0 + $0x4] sm:$0x3]
    %v487 = vld [vmem:[%s0 + $0x6] sm:$0x3]
    %v488 = vld [vmem:[%s0 + $0x8] sm:$0x3]
    %v489 = vld [vmem:[%s0 + $0xa] sm:$0x3]
    %v490 = vld [vmem:[%s0 + $0xc] sm:$0x3]
    %v491 = vld [vmem:[%s0 + $0xe] sm:$0x3]
    %v493 = vlaneseq
    %v494 = vshrl.u32 %v493, 7
    %v495 = vsub.s32 0, %v494
    %v496 = vrot.slane %v464, %v495
    %v497 = vlaneseq
    %v498 = vshrl.u32 %v497, 7
    %v499 = vsub.s32 1, %v498
    %v500 = vrot.slane %v464, %v499
    %v501 = vlaneseq
    %v502 = vshrl.u32 %v501, 7
    %v503 = vsub.s32 2, %v502
    %v504 = vrot.slane %v464, %v503
    %v505 = vlaneseq
    %v506 = vshrl.u32 %v505, 7
    %v507 = vsub.s32 3, %v506
    %v508 = vrot.slane %v464, %v507
    %vm513 = vcmask 326656
    %v515 = vsel %vm513, %v484, 0
    %517 = vmatprep.subr.mxu0 0.0
    %518 = vmatpush1.msra.mxu0 0.0
    %519 = vmatprep.subr.mxu0 0.0
    %520 = vmatpush1.msra.mxu0 0.0
    %521 = vmatprep.subr.mxu0 0.0
    %522 = vmatpush1.msra.mxu0 0.0
    %523 = vmatprep.subr.mxu0 0.0
    %524 = vmatpush1.msra.mxu0 0.0
    %525 = vmatprep.subr.mxu0 0.0
    %526 = vmatpush1.msra.mxu0 0.0
    %527 = vmatprep.subr.mxu0 0.0
    %528 = vmatpush1.msra.mxu0 0.0
    %529 = vmatprep.subr.mxu0 0.0
    %530 = vmatpush1.msra.mxu0 0.0
    %531 = vmatprep.subr.mxu0 0.0
    %532 = vmatpush1.msra.mxu0 0.0
    %533 = vmatprep.subr.mxu0 0.0
    %534 = vmatpush1.msra.mxu0 0.0
    %535 = vmatprep.subr.mxu0 0.0
    %536 = vmatpush1.msra.mxu0 0.0
    %537 = vmatprep.subr.mxu0 0.0
    %538 = vmatpush1.msra.mxu0 0.0
    %539 = vmatprep.subr.mxu0 %v141
    %540 = vmatpush1.msra.mxu0 %v140
    %541 = vmatprep.subr.mxu0 %v137
    %542 = vmatpush1.msra.mxu0 %v136
    %543 = vmatprep.subr.mxu0 %v133
    %544 = vmatpush1.msra.mxu0 %v132
    %545 = vmatprep.subr.mxu0 %v129
    %546 = vmatpush1.msra.mxu0 %v128
    %547 = vmatprep.subr.mxu0 %v125
    %548 = vmatpush1.msra.mxu0 %v124
    %549 = vmatprep.subr.mxu0 0.0
    %550 = vmatpush2.msra.mxu0 0.0
    %551 = vmatprep.subr.mxu0 0.0
    %552 = vmatpush2.msra.mxu0 0.0
    %553 = vmatprep.subr.mxu0 0.0
    %554 = vmatpush2.msra.mxu0 0.0
    %555 = vmatprep.subr.mxu0 0.0
    %556 = vmatpush2.msra.mxu0 0.0
    %557 = vmatprep.subr.mxu0 0.0
    %558 = vmatpush2.msra.mxu0 0.0
    %559 = vmatprep.subr.mxu0 0.0
    %560 = vmatpush2.msra.mxu0 0.0
    %561 = vmatprep.subr.mxu0 0.0
    %562 = vmatpush2.msra.mxu0 0.0
    %563 = vmatprep.subr.mxu0 0.0
    %564 = vmatpush2.msra.mxu0 0.0
    %565 = vmatprep.subr.mxu0 0.0
    %566 = vmatpush2.msra.mxu0 0.0
    %567 = vmatprep.subr.mxu0 0.0
    %568 = vmatpush2.msra.mxu0 0.0
    %569 = vmatprep.subr.mxu0 0.0
    %570 = vmatpush2.msra.mxu0 0.0
    %571 = vmatprep.subr.mxu0 0.0
    %572 = vmatpush2.msra.mxu0 0.0
    %573 = vmatprep.subr.mxu0 0.0
    %574 = vmatpush2.msra.mxu0 0.0
    %575 = vmatprep.subr.mxu0 0.0
    %576 = vmatpush2.msra.mxu0 0.0
    %577 = vmatprep.subr.mxu0 0.0
    %578 = vmatpush2.msra.mxu0 0.0
    %579 = vmatprep.subr.mxu0 0.0
    %580 = vmatpush2.msra.mxu0 0.0
    %581 = vmatprep.mubr.f32.mxu0 0.0
    %582 = vmatmul.mubr.f32.gmra.mxu0 %v515
    %v583 = vpop.f32.mrf.mxu0
    %v584 = vadd.f32 %v496, %v583
    %v585 = vpop.f32.mrf.mxu0
    %v586 = vadd.f32 %v500, %v585
    %587 = vdwg.mxu0
    %588 = vmatprep.subr.mxu0 0.0
    %589 = vmatpush1.msra.mxu0 0.0
    %590 = vmatprep.subr.mxu0 0.0
    %591 = vmatpush1.msra.mxu0 0.0
    %592 = vmatprep.subr.mxu0 0.0
    %593 = vmatpush1.msra.mxu0 0.0
    %594 = vmatprep.subr.mxu0 0.0
    %595 = vmatpush1.msra.mxu0 0.0
    %596 = vmatprep.subr.mxu0 0.0
    %597 = vmatpush1.msra.mxu0 0.0
    %598 = vmatprep.subr.mxu0 0.0
    %599 = vmatpush1.msra.mxu0 0.0
    %600 = vmatprep.subr.mxu0 0.0
    %601 = vmatpush1.msra.mxu0 0.0
    %602 = vmatprep.subr.mxu0 0.0
    %603 = vmatpush1.msra.mxu0 0.0
    %604 = vmatprep.subr.mxu0 0.0
    %605 = vmatpush1.msra.mxu0 0.0
    %606 = vmatprep.subr.mxu0 0.0
    %607 = vmatpush1.msra.mxu0 0.0
    %608 = vmatprep.subr.mxu0 0.0
    %609 = vmatpush1.msra.mxu0 0.0
    %610 = vmatprep.subr.mxu0 %v143
    %611 = vmatpush1.msra.mxu0 %v142
    %612 = vmatprep.subr.mxu0 %v139
    %613 = vmatpush1.msra.mxu0 %v138
    %614 = vmatprep.subr.mxu0 %v135
    %615 = vmatpush1.msra.mxu0 %v134
    %616 = vmatprep.subr.mxu0 %v131
    %617 = vmatpush1.msra.mxu0 %v130
    %618 = vmatprep.subr.mxu0 %v127
    %619 = vmatpush1.msra.mxu0 %v126
    %620 = vmatprep.subr.mxu0 0.0
    %621 = vmatpush2.msra.mxu0 0.0
    %622 = vmatprep.subr.mxu0 0.0
    %623 = vmatpush2.msra.mxu0 0.0
    %624 = vmatprep.subr.mxu0 0.0
    %625 = vmatpush2.msra.mxu0 0.0
    %626 = vmatprep.subr.mxu0 0.0
    %627 = vmatpush2.msra.mxu0 0.0
    %628 = vmatprep.subr.mxu0 0.0
    %629 = vmatpush2.msra.mxu0 0.0
    %630 = vmatprep.subr.mxu0 0.0
    %631 = vmatpush2.msra.mxu0 0.0
    %632 = vmatprep.subr.mxu0 0.0
    %633 = vmatpush2.msra.mxu0 0.0
    %634 = vmatprep.subr.mxu0 0.0
    %635 = vmatpush2.msra.mxu0 0.0
    %636 = vmatprep.subr.mxu0 0.0
    %637 = vmatpush2.msra.mxu0 0.0
    %638 = vmatprep.subr.mxu0 0.0
    %639 = vmatpush2.msra.mxu0 0.0
    %640 = vmatprep.subr.mxu0 0.0
    %641 = vmatpush2.msra.mxu0 0.0
    %642 = vmatprep.subr.mxu0 0.0
    %643 = vmatpush2.msra.mxu0 0.0
    %644 = vmatprep.subr.mxu0 0.0
    %645 = vmatpush2.msra.mxu0 0.0
    %646 = vmatprep.subr.mxu0 0.0
    %647 = vmatpush2.msra.mxu0 0.0
    %648 = vmatprep.subr.mxu0 0.0
    %649 = vmatpush2.msra.mxu0 0.0
    %650 = vmatprep.subr.mxu0 0.0
    %651 = vmatpush2.msra.mxu0 0.0
    %652 = vmatprep.mubr.f32.mxu0 0.0
    %653 = vmatmul.mubr.f32.gmra.mxu0 %v515
    %v654 = vpop.f32.mrf.mxu0
    %v655 = vadd.f32 %v504, %v654
    %v656 = vpop.f32.mrf.mxu0
    %v657 = vadd.f32 %v508, %v656
    %658 = vdwg.mxu0
    %v660 = vsel %vm513, %v485, 0
    %662 = vmatprep.subr.mxu0 0.0
    %663 = vmatpush1.msra.mxu0 0.0
    %664 = vmatprep.subr.mxu0 0.0
    %665 = vmatpush1.msra.mxu0 0.0
    %666 = vmatprep.subr.mxu0 0.0
    %667 = vmatpush1.msra.mxu0 0.0
    %668 = vmatprep.subr.mxu0 0.0
    %669 = vmatpush1.msra.mxu0 0.0
    %670 = vmatprep.subr.mxu0 0.0
    %671 = vmatpush1.msra.mxu0 0.0
    %672 = vmatprep.subr.mxu0 0.0
    %673 = vmatpush1.msra.mxu0 0.0
    %674 = vmatprep.subr.mxu0 0.0
    %675 = vmatpush1.msra.mxu0 0.0
    %676 = vmatprep.subr.mxu0 0.0
    %677 = vmatpush1.msra.mxu0 0.0
    %678 = vmatprep.subr.mxu0 0.0
    %679 = vmatpush1.msra.mxu0 0.0
    %680 = vmatprep.subr.mxu0 0.0
    %681 = vmatpush1.msra.mxu0 0.0
    %682 = vmatprep.subr.mxu0 0.0
    %683 = vmatpush1.msra.mxu0 0.0
    %684 = vmatprep.subr.mxu0 %v141
    %685 = vmatpush1.msra.mxu0 %v140
    %686 = vmatprep.subr.mxu0 %v137
    %687 = vmatpush1.msra.mxu0 %v136
    %688 = vmatprep.subr.mxu0 %v133
    %689 = vmatpush1.msra.mxu0 %v132
    %690 = vmatprep.subr.mxu0 %v129
    %691 = vmatpush1.msra.mxu0 %v128
    %692 = vmatprep.subr.mxu0 %v125
    %693 = vmatpush1.msra.mxu0 %v124
    %694 = vmatprep.subr.mxu0 0.0
    %695 = vmatpush2.msra.mxu0 0.0
    %696 = vmatprep.subr.mxu0 0.0
    %697 = vmatpush2.msra.mxu0 0.0
    %698 = vmatprep.subr.mxu0 0.0
    %699 = vmatpush2.msra.mxu0 0.0
    %700 = vmatprep.subr.mxu0 0.0
    %701 = vmatpush2.msra.mxu0 0.0
    %702 = vmatprep.subr.mxu0 0.0
    %703 = vmatpush2.msra.mxu0 0.0
    %704 = vmatprep.subr.mxu0 0.0
    %705 = vmatpush2.msra.mxu0 0.0
    %706 = vmatprep.subr.mxu0 0.0
    %707 = vmatpush2.msra.mxu0 0.0
    %708 = vmatprep.subr.mxu0 0.0
    %709 = vmatpush2.msra.mxu0 0.0
    %710 = vmatprep.subr.mxu0 0.0
    %711 = vmatpush2.msra.mxu0 0.0
    %712 = vmatprep.subr.mxu0 0.0
    %713 = vmatpush2.msra.mxu0 0.0
    %714 = vmatprep.subr.mxu0 0.0
    %715 = vmatpush2.msra.mxu0 0.0
    %716 = vmatprep.subr.mxu0 0.0
    %717 = vmatpush2.msra.mxu0 0.0
    %718 = vmatprep.subr.mxu0 0.0
    %719 = vmatpush2.msra.mxu0 0.0
    %720 = vmatprep.subr.mxu0 0.0
    %721 = vmatpush2.msra.mxu0 0.0
    %722 = vmatprep.subr.mxu0 0.0
    %723 = vmatpush2.msra.mxu0 0.0
    %724 = vmatprep.subr.mxu0 0.0
    %725 = vmatpush2.msra.mxu0 0.0
    %726 = vmatprep.mubr.f32.mxu0 0.0
    %727 = vmatmul.mubr.f32.gmra.mxu0 %v660
    %v728 = vpop.f32.mrf.mxu0
    %v729 = vadd.f32 %v496, %v728
    %v730 = vpop.f32.mrf.mxu0
    %v731 = vadd.f32 %v500, %v730
    %732 = vdwg.mxu0
    %733 = vmatprep.subr.mxu0 0.0
    %734 = vmatpush1.msra.mxu0 0.0
    %735 = vmatprep.subr.mxu0 0.0
    %736 = vmatpush1.msra.mxu0 0.0
    %737 = vmatprep.subr.mxu0 0.0
    %738 = vmatpush1.msra.mxu0 0.0
    %739 = vmatprep.subr.mxu0 0.0
    %740 = vmatpush1.msra.mxu0 0.0
    %741 = vmatprep.subr.mxu0 0.0
    %742 = vmatpush1.msra.mxu0 0.0
    %743 = vmatprep.subr.mxu0 0.0
    %744 = vmatpush1.msra.mxu0 0.0
    %745 = vmatprep.subr.mxu0 0.0
    %746 = vmatpush1.msra.mxu0 0.0
    %747 = vmatprep.subr.mxu0 0.0
    %748 = vmatpush1.msra.mxu0 0.0
    %749 = vmatprep.subr.mxu0 0.0
    %750 = vmatpush1.msra.mxu0 0.0
    %751 = vmatprep.subr.mxu0 0.0
    %752 = vmatpush1.msra.mxu0 0.0
    %753 = vmatprep.subr.mxu0 0.0
    %754 = vmatpush1.msra.mxu0 0.0
    %755 = vmatprep.subr.mxu0 %v143
    %756 = vmatpush1.msra.mxu0 %v142
    %757 = vmatprep.subr.mxu0 %v139
    %758 = vmatpush1.msra.mxu0 %v138
    %759 = vmatprep.subr.mxu0 %v135
    %760 = vmatpush1.msra.mxu0 %v134
    %761 = vmatprep.subr.mxu0 %v131
    %762 = vmatpush1.msra.mxu0 %v130
    %763 = vmatprep.subr.mxu0 %v127
    %764 = vmatpush1.msra.mxu0 %v126
    %765 = vmatprep.subr.mxu0 0.0
    %766 = vmatpush2.msra.mxu0 0.0
    %767 = vmatprep.subr.mxu0 0.0
    %768 = vmatpush2.msra.mxu0 0.0
    %769 = vmatprep.subr.mxu0 0.0
    %770 = vmatpush2.msra.mxu0 0.0
    %771 = vmatprep.subr.mxu0 0.0
    %772 = vmatpush2.msra.mxu0 0.0
    %773 = vmatprep.subr.mxu0 0.0
    %774 = vmatpush2.msra.mxu0 0.0
    %775 = vmatprep.subr.mxu0 0.0
    %776 = vmatpush2.msra.mxu0 0.0
    %777 = vmatprep.subr.mxu0 0.0
    %778 = vmatpush2.msra.mxu0 0.0
    %779 = vmatprep.subr.mxu0 0.0
    %780 = vmatpush2.msra.mxu0 0.0
    %781 = vmatprep.subr.mxu0 0.0
    %782 = vmatpush2.msra.mxu0 0.0
    %783 = vmatprep.subr.mxu0 0.0
    %784 = vmatpush2.msra.mxu0 0.0
    %785 = vmatprep.subr.mxu0 0.0
    %786 = vmatpush2.msra.mxu0 0.0
    %787 = vmatprep.subr.mxu0 0.0
    %788 = vmatpush2.msra.mxu0 0.0
    %789 = vmatprep.subr.mxu0 0.0
    %790 = vmatpush2.msra.mxu0 0.0
    %791 = vmatprep.subr.mxu0 0.0
    %792 = vmatpush2.msra.mxu0 0.0
    %793 = vmatprep.subr.mxu0 0.0
    %794 = vmatpush2.msra.mxu0 0.0
    %795 = vmatprep.subr.mxu0 0.0
    %796 = vmatpush2.msra.mxu0 0.0
    %797 = vmatprep.mubr.f32.mxu0 0.0
    %798 = vmatmul.mubr.f32.gmra.mxu0 %v660
    %v799 = vpop.f32.mrf.mxu0
    %v800 = vadd.f32 %v504, %v799
    %v801 = vpop.f32.mrf.mxu0
    %v802 = vadd.f32 %v508, %v801
    %803 = vdwg.mxu0
    %v805 = vsel %vm513, %v486, 0
    %807 = vmatprep.subr.mxu0 0.0
    %808 = vmatpush1.msra.mxu0 0.0
    %809 = vmatprep.subr.mxu0 0.0
    %810 = vmatpush1.msra.mxu0 0.0
    %811 = vmatprep.subr.mxu0 0.0
    %812 = vmatpush1.msra.mxu0 0.0
    %813 = vmatprep.subr.mxu0 0.0
    %814 = vmatpush1.msra.mxu0 0.0
    %815 = vmatprep.subr.mxu0 0.0
    %816 = vmatpush1.msra.mxu0 0.0
    %817 = vmatprep.subr.mxu0 0.0
    %818 = vmatpush1.msra.mxu0 0.0
    %819 = vmatprep.subr.mxu0 0.0
    %820 = vmatpush1.msra.mxu0 0.0
    %821 = vmatprep.subr.mxu0 0.0
    %822 = vmatpush1.msra.mxu0 0.0
    %823 = vmatprep.subr.mxu0 0.0
    %824 = vmatpush1.msra.mxu0 0.0
    %825 = vmatprep.subr.mxu0 0.0
    %826 = vmatpush1.msra.mxu0 0.0
    %827 = vmatprep.subr.mxu0 0.0
    %828 = vmatpush1.msra.mxu0 0.0
    %829 = vmatprep.subr.mxu0 %v141
    %830 = vmatpush1.msra.mxu0 %v140
    %831 = vmatprep.subr.mxu0 %v137
    %832 = vmatpush1.msra.mxu0 %v136
    %833 = vmatprep.subr.mxu0 %v133
    %834 = vmatpush1.msra.mxu0 %v132
    %835 = vmatprep.subr.mxu0 %v129
    %836 = vmatpush1.msra.mxu0 %v128
    %837 = vmatprep.subr.mxu0 %v125
    %838 = vmatpush1.msra.mxu0 %v124
    %839 = vmatprep.subr.mxu0 0.0
    %840 = vmatpush2.msra.mxu0 0.0
    %841 = vmatprep.subr.mxu0 0.0
    %842 = vmatpush2.msra.mxu0 0.0
    %843 = vmatprep.subr.mxu0 0.0
    %844 = vmatpush2.msra.mxu0 0.0
    %845 = vmatprep.subr.mxu0 0.0
    %846 = vmatpush2.msra.mxu0 0.0
    %847 = vmatprep.subr.mxu0 0.0
    %848 = vmatpush2.msra.mxu0 0.0
    %849 = vmatprep.subr.mxu0 0.0
    %850 = vmatpush2.msra.mxu0 0.0
    %851 = vmatprep.subr.mxu0 0.0
    %852 = vmatpush2.msra.mxu0 0.0
    %853 = vmatprep.subr.mxu0 0.0
    %854 = vmatpush2.msra.mxu0 0.0
    %855 = vmatprep.subr.mxu0 0.0
    %856 = vmatpush2.msra.mxu0 0.0
    %857 = vmatprep.subr.mxu0 0.0
    %858 = vmatpush2.msra.mxu0 0.0
    %859 = vmatprep.subr.mxu0 0.0
    %860 = vmatpush2.msra.mxu0 0.0
    %861 = vmatprep.subr.mxu0 0.0
    %862 = vmatpush2.msra.mxu0 0.0
    %863 = vmatprep.subr.mxu0 0.0
    %864 = vmatpush2.msra.mxu0 0.0
    %865 = vmatprep.subr.mxu0 0.0
    %866 = vmatpush2.msra.mxu0 0.0
    %867 = vmatprep.subr.mxu0 0.0
    %868 = vmatpush2.msra.mxu0 0.0
    %869 = vmatprep.subr.mxu0 0.0
    %870 = vmatpush2.msra.mxu0 0.0
    %871 = vmatprep.mubr.f32.mxu0 0.0
    %872 = vmatmul.mubr.f32.gmra.mxu0 %v805
    %v873 = vpop.f32.mrf.mxu0
    %v874 = vadd.f32 %v496, %v873
    %v875 = vpop.f32.mrf.mxu0
    %v876 = vadd.f32 %v500, %v875
    %877 = vdwg.mxu0
    %878 = vmatprep.subr.mxu0 0.0
    %879 = vmatpush1.msra.mxu0 0.0
    %880 = vmatprep.subr.mxu0 0.0
    %881 = vmatpush1.msra.mxu0 0.0
    %882 = vmatprep.subr.mxu0 0.0
    %883 = vmatpush1.msra.mxu0 0.0
    %884 = vmatprep.subr.mxu0 0.0
    %885 = vmatpush1.msra.mxu0 0.0
    %886 = vmatprep.subr.mxu0 0.0
    %887 = vmatpush1.msra.mxu0 0.0
    %888 = vmatprep.subr.mxu0 0.0
    %889 = vmatpush1.msra.mxu0 0.0
    %890 = vmatprep.subr.mxu0 0.0
    %891 = vmatpush1.msra.mxu0 0.0
    %892 = vmatprep.subr.mxu0 0.0
    %893 = vmatpush1.msra.mxu0 0.0
    %894 = vmatprep.subr.mxu0 0.0
    %895 = vmatpush1.msra.mxu0 0.0
    %896 = vmatprep.subr.mxu0 0.0
    %897 = vmatpush1.msra.mxu0 0.0
    %898 = vmatprep.subr.mxu0 0.0
    %899 = vmatpush1.msra.mxu0 0.0
    %900 = vmatprep.subr.mxu0 %v143
    %901 = vmatpush1.msra.mxu0 %v142
    %902 = vmatprep.subr.mxu0 %v139
    %903 = vmatpush1.msra.mxu0 %v138
    %904 = vmatprep.subr.mxu0 %v135
    %905 = vmatpush1.msra.mxu0 %v134
    %906 = vmatprep.subr.mxu0 %v131
    %907 = vmatpush1.msra.mxu0 %v130
    %908 = vmatprep.subr.mxu0 %v127
    %909 = vmatpush1.msra.mxu0 %v126
    %910 = vmatprep.subr.mxu0 0.0
    %911 = vmatpush2.msra.mxu0 0.0
    %912 = vmatprep.subr.mxu0 0.0
    %913 = vmatpush2.msra.mxu0 0.0
    %914 = vmatprep.subr.mxu0 0.0
    %915 = vmatpush2.msra.mxu0 0.0
    %916 = vmatprep.subr.mxu0 0.0
    %917 = vmatpush2.msra.mxu0 0.0
    %918 = vmatprep.subr.mxu0 0.0
    %919 = vmatpush2.msra.mxu0 0.0
    %920 = vmatprep.subr.mxu0 0.0
    %921 = vmatpush2.msra.mxu0 0.0
    %922 = vmatprep.subr.mxu0 0.0
    %923 = vmatpush2.msra.mxu0 0.0
    %924 = vmatprep.subr.mxu0 0.0
    %925 = vmatpush2.msra.mxu0 0.0
    %926 = vmatprep.subr.mxu0 0.0
    %927 = vmatpush2.msra.mxu0 0.0
    %928 = vmatprep.subr.mxu0 0.0
    %929 = vmatpush2.msra.mxu0 0.0
    %930 = vmatprep.subr.mxu0 0.0
    %931 = vmatpush2.msra.mxu0 0.0
    %932 = vmatprep.subr.mxu0 0.0
    %933 = vmatpush2.msra.mxu0 0.0
    %934 = vmatprep.subr.mxu0 0.0
    %935 = vmatpush2.msra.mxu0 0.0
    %936 = vmatprep.subr.mxu0 0.0
    %937 = vmatpush2.msra.mxu0 0.0
    %938 = vmatprep.subr.mxu0 0.0
    %939 = vmatpush2.msra.mxu0 0.0
    %940 = vmatprep.subr.mxu0 0.0
    %941 = vmatpush2.msra.mxu0 0.0
    %942 = vmatprep.mubr.f32.mxu0 0.0
    %943 = vmatmul.mubr.f32.gmra.mxu0 %v805
    %v944 = vpop.f32.mrf.mxu0
    %v945 = vadd.f32 %v504, %v944
    %v946 = vpop.f32.mrf.mxu0
    %v947 = vadd.f32 %v508, %v946
    %948 = vdwg.mxu0
    %v950 = vsel %vm513, %v487, 0
    %952 = vmatprep.subr.mxu0 0.0
    %953 = vmatpush1.msra.mxu0 0.0
    %954 = vmatprep.subr.mxu0 0.0
    %955 = vmatpush1.msra.mxu0 0.0
    %956 = vmatprep.subr.mxu0 0.0
    %957 = vmatpush1.msra.mxu0 0.0
    %958 = vmatprep.subr.mxu0 0.0
    %959 = vmatpush1.msra.mxu0 0.0
    %960 = vmatprep.subr.mxu0 0.0
    %961 = vmatpush1.msra.mxu0 0.0
    %962 = vmatprep.subr.mxu0 0.0
    %963 = vmatpush1.msra.mxu0 0.0
    %964 = vmatprep.subr.mxu0 0.0
    %965 = vmatpush1.msra.mxu0 0.0
    %966 = vmatprep.subr.mxu0 0.0
    %967 = vmatpush1.msra.mxu0 0.0
    %968 = vmatprep.subr.mxu0 0.0
    %969 = vmatpush1.msra.mxu0 0.0
    %970 = vmatprep.subr.mxu0 0.0
    %971 = vmatpush1.msra.mxu0 0.0
    %972 = vmatprep.subr.mxu0 0.0
    %973 = vmatpush1.msra.mxu0 0.0
    %974 = vmatprep.subr.mxu0 %v141
    %975 = vmatpush1.msra.mxu0 %v140
    %976 = vmatprep.subr.mxu0 %v137
    %977 = vmatpush1.msra.mxu0 %v136
    %978 = vmatprep.subr.mxu0 %v133
    %979 = vmatpush1.msra.mxu0 %v132
    %980 = vmatprep.subr.mxu0 %v129
    %981 = vmatpush1.msra.mxu0 %v128
    %982 = vmatprep.subr.mxu0 %v125
    %983 = vmatpush1.msra.mxu0 %v124
    %984 = vmatprep.subr.mxu0 0.0
    %985 = vmatpush2.msra.mxu0 0.0
    %986 = vmatprep.subr.mxu0 0.0
    %987 = vmatpush2.msra.mxu0 0.0
    %988 = vmatprep.subr.mxu0 0.0
    %989 = vmatpush2.msra.mxu0 0.0
    %990 = vmatprep.subr.mxu0 0.0
    %991 = vmatpush2.msra.mxu0 0.0
    %992 = vmatprep.subr.mxu0 0.0
    %993 = vmatpush2.msra.mxu0 0.0
    %994 = vmatprep.subr.mxu0 0.0
    %995 = vmatpush2.msra.mxu0 0.0
    %996 = vmatprep.subr.mxu0 0.0
    %997 = vmatpush2.msra.mxu0 0.0
    %998 = vmatprep.subr.mxu0 0.0
    %999 = vmatpush2.msra.mxu0 0.0
    %1000 = vmatprep.subr.mxu0 0.0
    %1001 = vmatpush2.msra.mxu0 0.0
    %1002 = vmatprep.subr.mxu0 0.0
    %1003 = vmatpush2.msra.mxu0 0.0
    %1004 = vmatprep.subr.mxu0 0.0
    %1005 = vmatpush2.msra.mxu0 0.0
    %1006 = vmatprep.subr.mxu0 0.0
    %1007 = vmatpush2.msra.mxu0 0.0
    %1008 = vmatprep.subr.mxu0 0.0
    %1009 = vmatpush2.msra.mxu0 0.0
    %1010 = vmatprep.subr.mxu0 0.0
    %1011 = vmatpush2.msra.mxu0 0.0
    %1012 = vmatprep.subr.mxu0 0.0
    %1013 = vmatpush2.msra.mxu0 0.0
    %1014 = vmatprep.subr.mxu0 0.0
    %1015 = vmatpush2.msra.mxu0 0.0
    %1016 = vmatprep.mubr.f32.mxu0 0.0
    %1017 = vmatmul.mubr.f32.gmra.mxu0 %v950
    %v1018 = vpop.f32.mrf.mxu0
    %v1019 = vadd.f32 %v496, %v1018
    %v1020 = vpop.f32.mrf.mxu0
    %v1021 = vadd.f32 %v500, %v1020
    %1022 = vdwg.mxu0
    %1023 = vmatprep.subr.mxu0 0.0
    %1024 = vmatpush1.msra.mxu0 0.0
    %1025 = vmatprep.subr.mxu0 0.0
    %1026 = vmatpush1.msra.mxu0 0.0
    %1027 = vmatprep.subr.mxu0 0.0
    %1028 = vmatpush1.msra.mxu0 0.0
    %1029 = vmatprep.subr.mxu0 0.0
    %1030 = vmatpush1.msra.mxu0 0.0
    %1031 = vmatprep.subr.mxu0 0.0
    %1032 = vmatpush1.msra.mxu0 0.0
    %1033 = vmatprep.subr.mxu0 0.0
    %1034 = vmatpush1.msra.mxu0 0.0
    %1035 = vmatprep.subr.mxu0 0.0
    %1036 = vmatpush1.msra.mxu0 0.0
    %1037 = vmatprep.subr.mxu0 0.0
    %1038 = vmatpush1.msra.mxu0 0.0
    %1039 = vmatprep.subr.mxu0 0.0
    %1040 = vmatpush1.msra.mxu0 0.0
    %1041 = vmatprep.subr.mxu0 0.0
    %1042 = vmatpush1.msra.mxu0 0.0
    %1043 = vmatprep.subr.mxu0 0.0
    %1044 = vmatpush1.msra.mxu0 0.0
    %1045 = vmatprep.subr.mxu0 %v143
    %1046 = vmatpush1.msra.mxu0 %v142
    %1047 = vmatprep.subr.mxu0 %v139
    %1048 = vmatpush1.msra.mxu0 %v138
    %1049 = vmatprep.subr.mxu0 %v135
    %1050 = vmatpush1.msra.mxu0 %v134
    %1051 = vmatprep.subr.mxu0 %v131
    %1052 = vmatpush1.msra.mxu0 %v130
    %1053 = vmatprep.subr.mxu0 %v127
    %1054 = vmatpush1.msra.mxu0 %v126
    %1055 = vmatprep.subr.mxu0 0.0
    %1056 = vmatpush2.msra.mxu0 0.0
    %1057 = vmatprep.subr.mxu0 0.0
    %1058 = vmatpush2.msra.mxu0 0.0
    %1059 = vmatprep.subr.mxu0 0.0
    %1060 = vmatpush2.msra.mxu0 0.0
    %1061 = vmatprep.subr.mxu0 0.0
    %1062 = vmatpush2.msra.mxu0 0.0
    %1063 = vmatprep.subr.mxu0 0.0
    %1064 = vmatpush2.msra.mxu0 0.0
    %1065 = vmatprep.subr.mxu0 0.0
    %1066 = vmatpush2.msra.mxu0 0.0
    %1067 = vmatprep.subr.mxu0 0.0
    %1068 = vmatpush2.msra.mxu0 0.0
    %1069 = vmatprep.subr.mxu0 0.0
    %1070 = vmatpush2.msra.mxu0 0.0
    %1071 = vmatprep.subr.mxu0 0.0
    %1072 = vmatpush2.msra.mxu0 0.0
    %1073 = vmatprep.subr.mxu0 0.0
    %1074 = vmatpush2.msra.mxu0 0.0
    %1075 = vmatprep.subr.mxu0 0.0
    %1076 = vmatpush2.msra.mxu0 0.0
    %1077 = vmatprep.subr.mxu0 0.0
    %1078 = vmatpush2.msra.mxu0 0.0
    %1079 = vmatprep.subr.mxu0 0.0
    %1080 = vmatpush2.msra.mxu0 0.0
    %1081 = vmatprep.subr.mxu0 0.0
    %1082 = vmatpush2.msra.mxu0 0.0
    %1083 = vmatprep.subr.mxu0 0.0
    %1084 = vmatpush2.msra.mxu0 0.0
    %1085 = vmatprep.subr.mxu0 0.0
    %1086 = vmatpush2.msra.mxu0 0.0
    %1087 = vmatprep.mubr.f32.mxu0 0.0
    %1088 = vmatmul.mubr.f32.gmra.mxu0 %v950
    %v1089 = vpop.f32.mrf.mxu0
    %v1090 = vadd.f32 %v504, %v1089
    %v1091 = vpop.f32.mrf.mxu0
    %v1092 = vadd.f32 %v508, %v1091
    %1093 = vdwg.mxu0
    %v1095 = vsel %vm513, %v488, 0
    %1097 = vmatprep.subr.mxu0 0.0
    %1098 = vmatpush1.msra.mxu0 0.0
    %1099 = vmatprep.subr.mxu0 0.0
    %1100 = vmatpush1.msra.mxu0 0.0
    %1101 = vmatprep.subr.mxu0 0.0
    %1102 = vmatpush1.msra.mxu0 0.0
    %1103 = vmatprep.subr.mxu0 0.0
    %1104 = vmatpush1.msra.mxu0 0.0
    %1105 = vmatprep.subr.mxu0 0.0
    %1106 = vmatpush1.msra.mxu0 0.0
    %1107 = vmatprep.subr.mxu0 0.0
    %1108 = vmatpush1.msra.mxu0 0.0
    %1109 = vmatprep.subr.mxu0 0.0
    %1110 = vmatpush1.msra.mxu0 0.0
    %1111 = vmatprep.subr.mxu0 0.0
    %1112 = vmatpush1.msra.mxu0 0.0
    %1113 = vmatprep.subr.mxu0 0.0
    %1114 = vmatpush1.msra.mxu0 0.0
    %1115 = vmatprep.subr.mxu0 0.0
    %1116 = vmatpush1.msra.mxu0 0.0
    %1117 = vmatprep.subr.mxu0 0.0
    %1118 = vmatpush1.msra.mxu0 0.0
    %1119 = vmatprep.subr.mxu0 %v141
    %1120 = vmatpush1.msra.mxu0 %v140
    %1121 = vmatprep.subr.mxu0 %v137
    %1122 = vmatpush1.msra.mxu0 %v136
    %1123 = vmatprep.subr.mxu0 %v133
    %1124 = vmatpush1.msra.mxu0 %v132
    %1125 = vmatprep.subr.mxu0 %v129
    %1126 = vmatpush1.msra.mxu0 %v128
    %1127 = vmatprep.subr.mxu0 %v125
    %1128 = vmatpush1.msra.mxu0 %v124
    %1129 = vmatprep.subr.mxu0 0.0
    %1130 = vmatpush2.msra.mxu0 0.0
    %1131 = vmatprep.subr.mxu0 0.0
    %1132 = vmatpush2.msra.mxu0 0.0
    %1133 = vmatprep.subr.mxu0 0.0
    %1134 = vmatpush2.msra.mxu0 0.0
    %1135 = vmatprep.subr.mxu0 0.0
    %1136 = vmatpush2.msra.mxu0 0.0
    %1137 = vmatprep.subr.mxu0 0.0
    %1138 = vmatpush2.msra.mxu0 0.0
    %1139 = vmatprep.subr.mxu0 0.0
    %1140 = vmatpush2.msra.mxu0 0.0
    %1141 = vmatprep.subr.mxu0 0.0
    %1142 = vmatpush2.msra.mxu0 0.0
    %1143 = vmatprep.subr.mxu0 0.0
    %1144 = vmatpush2.msra.mxu0 0.0
    %1145 = vmatprep.subr.mxu0 0.0
    %1146 = vmatpush2.msra.mxu0 0.0
    %1147 = vmatprep.subr.mxu0 0.0
    %1148 = vmatpush2.msra.mxu0 0.0
    %1149 = vmatprep.subr.mxu0 0.0
    %1150 = vmatpush2.msra.mxu0 0.0
    %1151 = vmatprep.subr.mxu0 0.0
    %1152 = vmatpush2.msra.mxu0 0.0
    %1153 = vmatprep.subr.mxu0 0.0
    %1154 = vmatpush2.msra.mxu0 0.0
    %1155 = vmatprep.subr.mxu0 0.0
    %1156 = vmatpush2.msra.mxu0 0.0
    %1157 = vmatprep.subr.mxu0 0.0
    %1158 = vmatpush2.msra.mxu0 0.0
    %1159 = vmatprep.subr.mxu0 0.0
    %1160 = vmatpush2.msra.mxu0 0.0
    %1161 = vmatprep.mubr.f32.mxu0 0.0
    %1162 = vmatmul.mubr.f32.gmra.mxu0 %v1095
    %v1163 = vpop.f32.mrf.mxu0
    %v1164 = vadd.f32 %v496, %v1163
    %v1165 = vpop.f32.mrf.mxu0
    %v1166 = vadd.f32 %v500, %v1165
    %1167 = vdwg.mxu0
    %1168 = vmatprep.subr.mxu0 0.0
    %1169 = vmatpush1.msra.mxu0 0.0
    %1170 = vmatprep.subr.mxu0 0.0
    %1171 = vmatpush1.msra.mxu0 0.0
    %1172 = vmatprep.subr.mxu0 0.0
    %1173 = vmatpush1.msra.mxu0 0.0
    %1174 = vmatprep.subr.mxu0 0.0
    %1175 = vmatpush1.msra.mxu0 0.0
    %1176 = vmatprep.subr.mxu0 0.0
    %1177 = vmatpush1.msra.mxu0 0.0
    %1178 = vmatprep.subr.mxu0 0.0
    %1179 = vmatpush1.msra.mxu0 0.0
    %1180 = vmatprep.subr.mxu0 0.0
    %1181 = vmatpush1.msra.mxu0 0.0
    %1182 = vmatprep.subr.mxu0 0.0
    %1183 = vmatpush1.msra.mxu0 0.0
    %1184 = vmatprep.subr.mxu0 0.0
    %1185 = vmatpush1.msra.mxu0 0.0
    %1186 = vmatprep.subr.mxu0 0.0
    %1187 = vmatpush1.msra.mxu0 0.0
    %1188 = vmatprep.subr.mxu0 0.0
    %1189 = vmatpush1.msra.mxu0 0.0
    %1190 = vmatprep.subr.mxu0 %v143
    %1191 = vmatpush1.msra.mxu0 %v142
    %1192 = vmatprep.subr.mxu0 %v139
    %1193 = vmatpush1.msra.mxu0 %v138
    %1194 = vmatprep.subr.mxu0 %v135
    %1195 = vmatpush1.msra.mxu0 %v134
    %1196 = vmatprep.subr.mxu0 %v131
    %1197 = vmatpush1.msra.mxu0 %v130
    %1198 = vmatprep.subr.mxu0 %v127
    %1199 = vmatpush1.msra.mxu0 %v126
    %1200 = vmatprep.subr.mxu0 0.0
    %1201 = vmatpush2.msra.mxu0 0.0
    %1202 = vmatprep.subr.mxu0 0.0
    %1203 = vmatpush2.msra.mxu0 0.0
    %1204 = vmatprep.subr.mxu0 0.0
    %1205 = vmatpush2.msra.mxu0 0.0
    %1206 = vmatprep.subr.mxu0 0.0
    %1207 = vmatpush2.msra.mxu0 0.0
    %1208 = vmatprep.subr.mxu0 0.0
    %1209 = vmatpush2.msra.mxu0 0.0
    %1210 = vmatprep.subr.mxu0 0.0
    %1211 = vmatpush2.msra.mxu0 0.0
    %1212 = vmatprep.subr.mxu0 0.0
    %1213 = vmatpush2.msra.mxu0 0.0
    %1214 = vmatprep.subr.mxu0 0.0
    %1215 = vmatpush2.msra.mxu0 0.0
    %1216 = vmatprep.subr.mxu0 0.0
    %1217 = vmatpush2.msra.mxu0 0.0
    %1218 = vmatprep.subr.mxu0 0.0
    %1219 = vmatpush2.msra.mxu0 0.0
    %1220 = vmatprep.subr.mxu0 0.0
    %1221 = vmatpush2.msra.mxu0 0.0
    %1222 = vmatprep.subr.mxu0 0.0
    %1223 = vmatpush2.msra.mxu0 0.0
    %1224 = vmatprep.subr.mxu0 0.0
    %1225 = vmatpush2.msra.mxu0 0.0
    %1226 = vmatprep.subr.mxu0 0.0
    %1227 = vmatpush2.msra.mxu0 0.0
    %1228 = vmatprep.subr.mxu0 0.0
    %1229 = vmatpush2.msra.mxu0 0.0
    %1230 = vmatprep.subr.mxu0 0.0
    %1231 = vmatpush2.msra.mxu0 0.0
    %1232 = vmatprep.mubr.f32.mxu0 0.0
    %1233 = vmatmul.mubr.f32.gmra.mxu0 %v1095
    %v1234 = vpop.f32.mrf.mxu0
    %v1235 = vadd.f32 %v504, %v1234
    %v1236 = vpop.f32.mrf.mxu0
    %v1237 = vadd.f32 %v508, %v1236
    %1238 = vdwg.mxu0
    %v1240 = vsel %vm513, %v489, 0
    %1242 = vmatprep.subr.mxu0 0.0
    %1243 = vmatpush1.msra.mxu0 0.0
    %1244 = vmatprep.subr.mxu0 0.0
    %1245 = vmatpush1.msra.mxu0 0.0
    %1246 = vmatprep.subr.mxu0 0.0
    %1247 = vmatpush1.msra.mxu0 0.0
    %1248 = vmatprep.subr.mxu0 0.0
    %1249 = vmatpush1.msra.mxu0 0.0
    %1250 = vmatprep.subr.mxu0 0.0
    %1251 = vmatpush1.msra.mxu0 0.0
    %1252 = vmatprep.subr.mxu0 0.0
    %1253 = vmatpush1.msra.mxu0 0.0
    %1254 = vmatprep.subr.mxu0 0.0
    %1255 = vmatpush1.msra.mxu0 0.0
    %1256 = vmatprep.subr.mxu0 0.0
    %1257 = vmatpush1.msra.mxu0 0.0
    %1258 = vmatprep.subr.mxu0 0.0
    %1259 = vmatpush1.msra.mxu0 0.0
    %1260 = vmatprep.subr.mxu0 0.0
    %1261 = vmatpush1.msra.mxu0 0.0
    %1262 = vmatprep.subr.mxu0 0.0
    %1263 = vmatpush1.msra.mxu0 0.0
    %1264 = vmatprep.subr.mxu0 %v141
    %1265 = vmatpush1.msra.mxu0 %v140
    %1266 = vmatprep.subr.mxu0 %v137
    %1267 = vmatpush1.msra.mxu0 %v136
    %1268 = vmatprep.subr.mxu0 %v133
    %1269 = vmatpush1.msra.mxu0 %v132
    %1270 = vmatprep.subr.mxu0 %v129
    %1271 = vmatpush1.msra.mxu0 %v128
    %1272 = vmatprep.subr.mxu0 %v125
    %1273 = vmatpush1.msra.mxu0 %v124
    %1274 = vmatprep.subr.mxu0 0.0
    %1275 = vmatpush2.msra.mxu0 0.0
    %1276 = vmatprep.subr.mxu0 0.0
    %1277 = vmatpush2.msra.mxu0 0.0
    %1278 = vmatprep.subr.mxu0 0.0
    %1279 = vmatpush2.msra.mxu0 0.0
    %1280 = vmatprep.subr.mxu0 0.0
    %1281 = vmatpush2.msra.mxu0 0.0
    %1282 = vmatprep.subr.mxu0 0.0
    %1283 = vmatpush2.msra.mxu0 0.0
    %1284 = vmatprep.subr.mxu0 0.0
    %1285 = vmatpush2.msra.mxu0 0.0
    %1286 = vmatprep.subr.mxu0 0.0
    %1287 = vmatpush2.msra.mxu0 0.0
    %1288 = vmatprep.subr.mxu0 0.0
    %1289 = vmatpush2.msra.mxu0 0.0
    %1290 = vmatprep.subr.mxu0 0.0
    %1291 = vmatpush2.msra.mxu0 0.0
    %1292 = vmatprep.subr.mxu0 0.0
    %1293 = vmatpush2.msra.mxu0 0.0
    %1294 = vmatprep.subr.mxu0 0.0
    %1295 = vmatpush2.msra.mxu0 0.0
    %1296 = vmatprep.subr.mxu0 0.0
    %1297 = vmatpush2.msra.mxu0 0.0
    %1298 = vmatprep.subr.mxu0 0.0
    %1299 = vmatpush2.msra.mxu0 0.0
    %1300 = vmatprep.subr.mxu0 0.0
    %1301 = vmatpush2.msra.mxu0 0.0
    %1302 = vmatprep.subr.mxu0 0.0
    %1303 = vmatpush2.msra.mxu0 0.0
    %1304 = vmatprep.subr.mxu0 0.0
    %1305 = vmatpush2.msra.mxu0 0.0
    %1306 = vmatprep.mubr.f32.mxu0 0.0
    %1307 = vmatmul.mubr.f32.gmra.mxu0 %v1240
    %v1308 = vpop.f32.mrf.mxu0
    %v1309 = vadd.f32 %v496, %v1308
    %v1310 = vpop.f32.mrf.mxu0
    %v1311 = vadd.f32 %v500, %v1310
    %1312 = vdwg.mxu0
    %1313 = vmatprep.subr.mxu0 0.0
    %1314 = vmatpush1.msra.mxu0 0.0
    %1315 = vmatprep.subr.mxu0 0.0
    %1316 = vmatpush1.msra.mxu0 0.0
    %1317 = vmatprep.subr.mxu0 0.0
    %1318 = vmatpush1.msra.mxu0 0.0
    %1319 = vmatprep.subr.mxu0 0.0
    %1320 = vmatpush1.msra.mxu0 0.0
    %1321 = vmatprep.subr.mxu0 0.0
    %1322 = vmatpush1.msra.mxu0 0.0
    %1323 = vmatprep.subr.mxu0 0.0
    %1324 = vmatpush1.msra.mxu0 0.0
    %1325 = vmatprep.subr.mxu0 0.0
    %1326 = vmatpush1.msra.mxu0 0.0
    %1327 = vmatprep.subr.mxu0 0.0
    %1328 = vmatpush1.msra.mxu0 0.0
    %1329 = vmatprep.subr.mxu0 0.0
    %1330 = vmatpush1.msra.mxu0 0.0
    %1331 = vmatprep.subr.mxu0 0.0
    %1332 = vmatpush1.msra.mxu0 0.0
    %1333 = vmatprep.subr.mxu0 0.0
    %1334 = vmatpush1.msra.mxu0 0.0
    %1335 = vmatprep.subr.mxu0 %v143
    %1336 = vmatpush1.msra.mxu0 %v142
    %1337 = vmatprep.subr.mxu0 %v139
    %1338 = vmatpush1.msra.mxu0 %v138
    %1339 = vmatprep.subr.mxu0 %v135
    %1340 = vmatpush1.msra.mxu0 %v134
    %1341 = vmatprep.subr.mxu0 %v131
    %1342 = vmatpush1.msra.mxu0 %v130
    %1343 = vmatprep.subr.mxu0 %v127
    %1344 = vmatpush1.msra.mxu0 %v126
    %1345 = vmatprep.subr.mxu0 0.0
    %1346 = vmatpush2.msra.mxu0 0.0
    %1347 = vmatprep.subr.mxu0 0.0
    %1348 = vmatpush2.msra.mxu0 0.0
    %1349 = vmatprep.subr.mxu0 0.0
    %1350 = vmatpush2.msra.mxu0 0.0
    %1351 = vmatprep.subr.mxu0 0.0
    %1352 = vmatpush2.msra.mxu0 0.0
    %1353 = vmatprep.subr.mxu0 0.0
    %1354 = vmatpush2.msra.mxu0 0.0
    %1355 = vmatprep.subr.mxu0 0.0
    %1356 = vmatpush2.msra.mxu0 0.0
    %1357 = vmatprep.subr.mxu0 0.0
    %1358 = vmatpush2.msra.mxu0 0.0
    %1359 = vmatprep.subr.mxu0 0.0
    %1360 = vmatpush2.msra.mxu0 0.0
    %1361 = vmatprep.subr.mxu0 0.0
    %1362 = vmatpush2.msra.mxu0 0.0
    %1363 = vmatprep.subr.mxu0 0.0
    %1364 = vmatpush2.msra.mxu0 0.0
    %1365 = vmatprep.subr.mxu0 0.0
    %1366 = vmatpush2.msra.mxu0 0.0
    %1367 = vmatprep.subr.mxu0 0.0
    %1368 = vmatpush2.msra.mxu0 0.0
    %1369 = vmatprep.subr.mxu0 0.0
    %1370 = vmatpush2.msra.mxu0 0.0
    %1371 = vmatprep.subr.mxu0 0.0
    %1372 = vmatpush2.msra.mxu0 0.0
    %1373 = vmatprep.subr.mxu0 0.0
    %1374 = vmatpush2.msra.mxu0 0.0
    %1375 = vmatprep.subr.mxu0 0.0
    %1376 = vmatpush2.msra.mxu0 0.0
    %1377 = vmatprep.mubr.f32.mxu0 0.0
    %1378 = vmatmul.mubr.f32.gmra.mxu0 %v1240
    %v1379 = vpop.f32.mrf.mxu0
    %v1380 = vadd.f32 %v504, %v1379
    %v1381 = vpop.f32.mrf.mxu0
    %v1382 = vadd.f32 %v508, %v1381
    %1383 = vdwg.mxu0
    %v1385 = vsel %vm513, %v490, 0
    %1387 = vmatprep.subr.mxu0 0.0
    %1388 = vmatpush1.msra.mxu0 0.0
    %1389 = vmatprep.subr.mxu0 0.0
    %1390 = vmatpush1.msra.mxu0 0.0
    %1391 = vmatprep.subr.mxu0 0.0
    %1392 = vmatpush1.msra.mxu0 0.0
    %1393 = vmatprep.subr.mxu0 0.0
    %1394 = vmatpush1.msra.mxu0 0.0
    %1395 = vmatprep.subr.mxu0 0.0
    %1396 = vmatpush1.msra.mxu0 0.0
    %1397 = vmatprep.subr.mxu0 0.0
    %1398 = vmatpush1.msra.mxu0 0.0
    %1399 = vmatprep.subr.mxu0 0.0
    %1400 = vmatpush1.msra.mxu0 0.0
    %1401 = vmatprep.subr.mxu0 0.0
    %1402 = vmatpush1.msra.mxu0 0.0
    %1403 = vmatprep.subr.mxu0 0.0
    %1404 = vmatpush1.msra.mxu0 0.0
    %1405 = vmatprep.subr.mxu0 0.0
    %1406 = vmatpush1.msra.mxu0 0.0
    %1407 = vmatprep.subr.mxu0 0.0
    %1408 = vmatpush1.msra.mxu0 0.0
    %1409 = vmatprep.subr.mxu0 %v141
    %1410 = vmatpush1.msra.mxu0 %v140
    %1411 = vmatprep.subr.mxu0 %v137
    %1412 = vmatpush1.msra.mxu0 %v136
    %1413 = vmatprep.subr.mxu0 %v133
    %1414 = vmatpush1.msra.mxu0 %v132
    %1415 = vmatprep.subr.mxu0 %v129
    %1416 = vmatpush1.msra.mxu0 %v128
    %1417 = vmatprep.subr.mxu0 %v125
    %1418 = vmatpush1.msra.mxu0 %v124
    %1419 = vmatprep.subr.mxu0 0.0
    %1420 = vmatpush2.msra.mxu0 0.0
    %1421 = vmatprep.subr.mxu0 0.0
    %1422 = vmatpush2.msra.mxu0 0.0
    %1423 = vmatprep.subr.mxu0 0.0
    %1424 = vmatpush2.msra.mxu0 0.0
    %1425 = vmatprep.subr.mxu0 0.0
    %1426 = vmatpush2.msra.mxu0 0.0
    %1427 = vmatprep.subr.mxu0 0.0
    %1428 = vmatpush2.msra.mxu0 0.0
    %1429 = vmatprep.subr.mxu0 0.0
    %1430 = vmatpush2.msra.mxu0 0.0
    %1431 = vmatprep.subr.mxu0 0.0
    %1432 = vmatpush2.msra.mxu0 0.0
    %1433 = vmatprep.subr.mxu0 0.0
    %1434 = vmatpush2.msra.mxu0 0.0
    %1435 = vmatprep.subr.mxu0 0.0
    %1436 = vmatpush2.msra.mxu0 0.0
    %1437 = vmatprep.subr.mxu0 0.0
    %1438 = vmatpush2.msra.mxu0 0.0
    %1439 = vmatprep.subr.mxu0 0.0
    %1440 = vmatpush2.msra.mxu0 0.0
    %1441 = vmatprep.subr.mxu0 0.0
    %1442 = vmatpush2.msra.mxu0 0.0
    %1443 = vmatprep.subr.mxu0 0.0
    %1444 = vmatpush2.msra.mxu0 0.0
    %1445 = vmatprep.subr.mxu0 0.0
    %1446 = vmatpush2.msra.mxu0 0.0
    %1447 = vmatprep.subr.mxu0 0.0
    %1448 = vmatpush2.msra.mxu0 0.0
    %1449 = vmatprep.subr.mxu0 0.0
    %1450 = vmatpush2.msra.mxu0 0.0
    %1451 = vmatprep.mubr.f32.mxu0 0.0
    %1452 = vmatmul.mubr.f32.gmra.mxu0 %v1385
    %v1453 = vpop.f32.mrf.mxu0
    %v1454 = vadd.f32 %v496, %v1453
    %v1455 = vpop.f32.mrf.mxu0
    %v1456 = vadd.f32 %v500, %v1455
    %1457 = vdwg.mxu0
    %1458 = vmatprep.subr.mxu0 0.0
    %1459 = vmatpush1.msra.mxu0 0.0
    %1460 = vmatprep.subr.mxu0 0.0
    %1461 = vmatpush1.msra.mxu0 0.0
    %1462 = vmatprep.subr.mxu0 0.0
    %1463 = vmatpush1.msra.mxu0 0.0
    %1464 = vmatprep.subr.mxu0 0.0
    %1465 = vmatpush1.msra.mxu0 0.0
    %1466 = vmatprep.subr.mxu0 0.0
    %1467 = vmatpush1.msra.mxu0 0.0
    %1468 = vmatprep.subr.mxu0 0.0
    %1469 = vmatpush1.msra.mxu0 0.0
    %1470 = vmatprep.subr.mxu0 0.0
    %1471 = vmatpush1.msra.mxu0 0.0
    %1472 = vmatprep.subr.mxu0 0.0
    %1473 = vmatpush1.msra.mxu0 0.0
    %1474 = vmatprep.subr.mxu0 0.0
    %1475 = vmatpush1.msra.mxu0 0.0
    %1476 = vmatprep.subr.mxu0 0.0
    %1477 = vmatpush1.msra.mxu0 0.0
    %1478 = vmatprep.subr.mxu0 0.0
    %1479 = vmatpush1.msra.mxu0 0.0
    %1480 = vmatprep.subr.mxu0 %v143
    %1481 = vmatpush1.msra.mxu0 %v142
    %1482 = vmatprep.subr.mxu0 %v139
    %1483 = vmatpush1.msra.mxu0 %v138
    %1484 = vmatprep.subr.mxu0 %v135
    %1485 = vmatpush1.msra.mxu0 %v134
    %1486 = vmatprep.subr.mxu0 %v131
    %1487 = vmatpush1.msra.mxu0 %v130
    %1488 = vmatprep.subr.mxu0 %v127
    %1489 = vmatpush1.msra.mxu0 %v126
    %1490 = vmatprep.subr.mxu0 0.0
    %1491 = vmatpush2.msra.mxu0 0.0
    %1492 = vmatprep.subr.mxu0 0.0
    %1493 = vmatpush2.msra.mxu0 0.0
    %1494 = vmatprep.subr.mxu0 0.0
    %1495 = vmatpush2.msra.mxu0 0.0
    %1496 = vmatprep.subr.mxu0 0.0
    %1497 = vmatpush2.msra.mxu0 0.0
    %1498 = vmatprep.subr.mxu0 0.0
    %1499 = vmatpush2.msra.mxu0 0.0
    %1500 = vmatprep.subr.mxu0 0.0
    %1501 = vmatpush2.msra.mxu0 0.0
    %1502 = vmatprep.subr.mxu0 0.0
    %1503 = vmatpush2.msra.mxu0 0.0
    %1504 = vmatprep.subr.mxu0 0.0
    %1505 = vmatpush2.msra.mxu0 0.0
    %1506 = vmatprep.subr.mxu0 0.0
    %1507 = vmatpush2.msra.mxu0 0.0
    %1508 = vmatprep.subr.mxu0 0.0
    %1509 = vmatpush2.msra.mxu0 0.0
    %1510 = vmatprep.subr.mxu0 0.0
    %1511 = vmatpush2.msra.mxu0 0.0
    %1512 = vmatprep.subr.mxu0 0.0
    %1513 = vmatpush2.msra.mxu0 0.0
    %1514 = vmatprep.subr.mxu0 0.0
    %1515 = vmatpush2.msra.mxu0 0.0
    %1516 = vmatprep.subr.mxu0 0.0
    %1517 = vmatpush2.msra.mxu0 0.0
    %1518 = vmatprep.subr.mxu0 0.0
    %1519 = vmatpush2.msra.mxu0 0.0
    %1520 = vmatprep.subr.mxu0 0.0
    %1521 = vmatpush2.msra.mxu0 0.0
    %1522 = vmatprep.mubr.f32.mxu0 0.0
    %1523 = vmatmul.mubr.f32.gmra.mxu0 %v1385
    %v1524 = vpop.f32.mrf.mxu0
    %v1525 = vadd.f32 %v504, %v1524
    %v1526 = vpop.f32.mrf.mxu0
    %v1527 = vadd.f32 %v508, %v1526
    %1528 = vdwg.mxu0
    %v1530 = vsel %vm513, %v491, 0
    %1532 = vmatprep.subr.mxu0 0.0
    %1533 = vmatpush1.msra.mxu0 0.0
    %1534 = vmatprep.subr.mxu0 0.0
    %1535 = vmatpush1.msra.mxu0 0.0
    %1536 = vmatprep.subr.mxu0 0.0
    %1537 = vmatpush1.msra.mxu0 0.0
    %1538 = vmatprep.subr.mxu0 0.0
    %1539 = vmatpush1.msra.mxu0 0.0
    %1540 = vmatprep.subr.mxu0 0.0
    %1541 = vmatpush1.msra.mxu0 0.0
    %1542 = vmatprep.subr.mxu0 0.0
    %1543 = vmatpush1.msra.mxu0 0.0
    %1544 = vmatprep.subr.mxu0 0.0
    %1545 = vmatpush1.msra.mxu0 0.0
    %1546 = vmatprep.subr.mxu0 0.0
    %1547 = vmatpush1.msra.mxu0 0.0
    %1548 = vmatprep.subr.mxu0 0.0
    %1549 = vmatpush1.msra.mxu0 0.0
    %1550 = vmatprep.subr.mxu0 0.0
    %1551 = vmatpush1.msra.mxu0 0.0
    %1552 = vmatprep.subr.mxu0 0.0
    %1553 = vmatpush1.msra.mxu0 0.0
    %1554 = vmatprep.subr.mxu0 %v141
    %1555 = vmatpush1.msra.mxu0 %v140
    %1556 = vmatprep.subr.mxu0 %v137
    %1557 = vmatpush1.msra.mxu0 %v136
    %1558 = vmatprep.subr.mxu0 %v133
    %1559 = vmatpush1.msra.mxu0 %v132
    %1560 = vmatprep.subr.mxu0 %v129
    %1561 = vmatpush1.msra.mxu0 %v128
    %1562 = vmatprep.subr.mxu0 %v125
    %1563 = vmatpush1.msra.mxu0 %v124
    %1564 = vmatprep.subr.mxu0 0.0
    %1565 = vmatpush2.msra.mxu0 0.0
    %1566 = vmatprep.subr.mxu0 0.0
    %1567 = vmatpush2.msra.mxu0 0.0
    %1568 = vmatprep.subr.mxu0 0.0
    %1569 = vmatpush2.msra.mxu0 0.0
    %1570 = vmatprep.subr.mxu0 0.0
    %1571 = vmatpush2.msra.mxu0 0.0
    %1572 = vmatprep.subr.mxu0 0.0
    %1573 = vmatpush2.msra.mxu0 0.0
    %1574 = vmatprep.subr.mxu0 0.0
    %1575 = vmatpush2.msra.mxu0 0.0
    %1576 = vmatprep.subr.mxu0 0.0
    %1577 = vmatpush2.msra.mxu0 0.0
    %1578 = vmatprep.subr.mxu0 0.0
    %1579 = vmatpush2.msra.mxu0 0.0
    %1580 = vmatprep.subr.mxu0 0.0
    %1581 = vmatpush2.msra.mxu0 0.0
    %1582 = vmatprep.subr.mxu0 0.0
    %1583 = vmatpush2.msra.mxu0 0.0
    %1584 = vmatprep.subr.mxu0 0.0
    %1585 = vmatpush2.msra.mxu0 0.0
    %1586 = vmatprep.subr.mxu0 0.0
    %1587 = vmatpush2.msra.mxu0 0.0
    %1588 = vmatprep.subr.mxu0 0.0
    %1589 = vmatpush2.msra.mxu0 0.0
    %1590 = vmatprep.subr.mxu0 0.0
    %1591 = vmatpush2.msra.mxu0 0.0
    %1592 = vmatprep.subr.mxu0 0.0
    %1593 = vmatpush2.msra.mxu0 0.0
    %1594 = vmatprep.subr.mxu0 0.0
    %1595 = vmatpush2.msra.mxu0 0.0
    %1596 = vmatprep.mubr.f32.mxu0 0.0
    %1597 = vmatmul.mubr.f32.gmra.mxu0 %v1530
    %v1598 = vpop.f32.mrf.mxu0
    %v1599 = vadd.f32 %v496, %v1598
    %v1600 = vpop.f32.mrf.mxu0
    %v1601 = vadd.f32 %v500, %v1600
    %1602 = vdwg.mxu0
    %1603 = vmatprep.subr.mxu0 0.0
    %1604 = vmatpush1.msra.mxu0 0.0
    %1605 = vmatprep.subr.mxu0 0.0
    %1606 = vmatpush1.msra.mxu0 0.0
    %1607 = vmatprep.subr.mxu0 0.0
    %1608 = vmatpush1.msra.mxu0 0.0
    %1609 = vmatprep.subr.mxu0 0.0
    %1610 = vmatpush1.msra.mxu0 0.0
    %1611 = vmatprep.subr.mxu0 0.0
    %1612 = vmatpush1.msra.mxu0 0.0
    %1613 = vmatprep.subr.mxu0 0.0
    %1614 = vmatpush1.msra.mxu0 0.0
    %1615 = vmatprep.subr.mxu0 0.0
    %1616 = vmatpush1.msra.mxu0 0.0
    %1617 = vmatprep.subr.mxu0 0.0
    %1618 = vmatpush1.msra.mxu0 0.0
    %1619 = vmatprep.subr.mxu0 0.0
    %1620 = vmatpush1.msra.mxu0 0.0
    %1621 = vmatprep.subr.mxu0 0.0
    %1622 = vmatpush1.msra.mxu0 0.0
    %1623 = vmatprep.subr.mxu0 0.0
    %1624 = vmatpush1.msra.mxu0 0.0
    %1625 = vmatprep.subr.mxu0 %v143
    %1626 = vmatpush1.msra.mxu0 %v142
    %1627 = vmatprep.subr.mxu0 %v139
    %1628 = vmatpush1.msra.mxu0 %v138
    %1629 = vmatprep.subr.mxu0 %v135
    %1630 = vmatpush1.msra.mxu0 %v134
    %1631 = vmatprep.subr.mxu0 %v131
    %1632 = vmatpush1.msra.mxu0 %v130
    %1633 = vmatprep.subr.mxu0 %v127
    %1634 = vmatpush1.msra.mxu0 %v126
    %1635 = vmatprep.subr.mxu0 0.0
    %1636 = vmatpush2.msra.mxu0 0.0
    %1637 = vmatprep.subr.mxu0 0.0
    %1638 = vmatpush2.msra.mxu0 0.0
    %1639 = vmatprep.subr.mxu0 0.0
    %1640 = vmatpush2.msra.mxu0 0.0
    %1641 = vmatprep.subr.mxu0 0.0
    %1642 = vmatpush2.msra.mxu0 0.0
    %1643 = vmatprep.subr.mxu0 0.0
    %1644 = vmatpush2.msra.mxu0 0.0
    %1645 = vmatprep.subr.mxu0 0.0
    %1646 = vmatpush2.msra.mxu0 0.0
    %1647 = vmatprep.subr.mxu0 0.0
    %1648 = vmatpush2.msra.mxu0 0.0
    %1649 = vmatprep.subr.mxu0 0.0
    %1650 = vmatpush2.msra.mxu0 0.0
    %1651 = vmatprep.subr.mxu0 0.0
    %1652 = vmatpush2.msra.mxu0 0.0
    %1653 = vmatprep.subr.mxu0 0.0
    %1654 = vmatpush2.msra.mxu0 0.0
    %1655 = vmatprep.subr.mxu0 0.0
    %1656 = vmatpush2.msra.mxu0 0.0
    %1657 = vmatprep.subr.mxu0 0.0
    %1658 = vmatpush2.msra.mxu0 0.0
    %1659 = vmatprep.subr.mxu0 0.0
    %1660 = vmatpush2.msra.mxu0 0.0
    %1661 = vmatprep.subr.mxu0 0.0
    %1662 = vmatpush2.msra.mxu0 0.0
    %1663 = vmatprep.subr.mxu0 0.0
    %1664 = vmatpush2.msra.mxu0 0.0
    %1665 = vmatprep.subr.mxu0 0.0
    %1666 = vmatpush2.msra.mxu0 0.0
    %1667 = vmatprep.mubr.f32.mxu0 0.0
    %1668 = vmatmul.mubr.f32.gmra.mxu0 %v1530
    %v1669 = vpop.f32.mrf.mxu0
    %v1670 = vadd.f32 %v504, %v1669
    %v1671 = vpop.f32.mrf.mxu0
    %v1672 = vadd.f32 %v508, %v1671
    %1673 = vdwg.mxu0
    %1674 = vmatprep.subr.mxu0 %v333
    %1675 = vmatpush1.msra.mxu0 %v332
    %1676 = vmatprep.subr.mxu0 %v329
    %1677 = vmatpush1.msra.mxu0 %v328
    %1678 = vmatprep.subr.mxu0 %v325
    %1679 = vmatpush1.msra.mxu0 %v324
    %1680 = vmatprep.subr.mxu0 %v321
    %1681 = vmatpush1.msra.mxu0 %v320
    %1682 = vmatprep.subr.mxu0 %v317
    %1683 = vmatpush1.msra.mxu0 %v316
    %1684 = vmatprep.subr.mxu0 %v313
    %1685 = vmatpush1.msra.mxu0 %v312
    %1686 = vmatprep.subr.mxu0 %v309
    %1687 = vmatpush1.msra.mxu0 %v308
    %1688 = vmatprep.subr.mxu0 %v305
    %1689 = vmatpush1.msra.mxu0 %v304
    %1690 = vmatprep.subr.mxu0 %v301
    %1691 = vmatpush1.msra.mxu0 %v300
    %1692 = vmatprep.subr.mxu0 %v297
    %1693 = vmatpush1.msra.mxu0 %v296
    %1694 = vmatprep.subr.mxu0 %v293
    %1695 = vmatpush1.msra.mxu0 %v292
    %1696 = vmatprep.subr.mxu0 %v289
    %1697 = vmatpush1.msra.mxu0 %v288
    %1698 = vmatprep.subr.mxu0 %v285
    %1699 = vmatpush1.msra.mxu0 %v284
    %1700 = vmatprep.subr.mxu0 %v281
    %1701 = vmatpush1.msra.mxu0 %v280
    %1702 = vmatprep.subr.mxu0 %v277
    %1703 = vmatpush1.msra.mxu0 %v276
    %1704 = vmatprep.subr.mxu0 %v273
    %1705 = vmatpush1.msra.mxu0 %v272
    %1706 = vmatprep.subr.mxu0 0.0
    %1707 = vmatpush2.msra.mxu0 0.0
    %1708 = vmatprep.subr.mxu0 0.0
    %1709 = vmatpush2.msra.mxu0 0.0
    %1710 = vmatprep.subr.mxu0 0.0
    %1711 = vmatpush2.msra.mxu0 0.0
    %1712 = vmatprep.subr.mxu0 0.0
    %1713 = vmatpush2.msra.mxu0 0.0
    %1714 = vmatprep.subr.mxu0 0.0
    %1715 = vmatpush2.msra.mxu0 0.0
    %1716 = vmatprep.subr.mxu0 0.0
    %1717 = vmatpush2.msra.mxu0 0.0
    %1718 = vmatprep.subr.mxu0 0.0
    %1719 = vmatpush2.msra.mxu0 0.0
    %1720 = vmatprep.subr.mxu0 0.0
    %1721 = vmatpush2.msra.mxu0 0.0
    %1722 = vmatprep.subr.mxu0 0.0
    %1723 = vmatpush2.msra.mxu0 0.0
    %1724 = vmatprep.subr.mxu0 0.0
    %1725 = vmatpush2.msra.mxu0 0.0
    %1726 = vmatprep.subr.mxu0 0.0
    %1727 = vmatpush2.msra.mxu0 0.0
    %1728 = vmatprep.subr.mxu0 0.0
    %1729 = vmatpush2.msra.mxu0 0.0
    %1730 = vmatprep.subr.mxu0 0.0
    %1731 = vmatpush2.msra.mxu0 0.0
    %1732 = vmatprep.subr.mxu0 0.0
    %1733 = vmatpush2.msra.mxu0 0.0
    %1734 = vmatprep.subr.mxu0 0.0
    %1735 = vmatpush2.msra.mxu0 0.0
    %1736 = vmatprep.subr.mxu0 0.0
    %1737 = vmatpush2.msra.mxu0 0.0
    %1738 = vmatprep.mubr.f32.mxu0 0.0
    %1739 = vmatmul.mubr.f32.gmra.mxu0 0.0
    %v1740 = vpop.f32.mrf.mxu0
    %v1741 = vadd.f32 0.0, %v1740
    %v1742 = vpop.f32.mrf.mxu0
    %v1743 = vadd.f32 0.0, %v1742
    %1744 = vdwg.mxu0
    %1745 = vmatprep.subr.mxu0 %v335
    %1746 = vmatpush1.msra.mxu0 %v334
    %1747 = vmatprep.subr.mxu0 %v331
    %1748 = vmatpush1.msra.mxu0 %v330
    %1749 = vmatprep.subr.mxu0 %v327
    %1750 = vmatpush1.msra.mxu0 %v326
    %1751 = vmatprep.subr.mxu0 %v323
    %1752 = vmatpush1.msra.mxu0 %v322
    %1753 = vmatprep.subr.mxu0 %v319
    %1754 = vmatpush1.msra.mxu0 %v318
    %1755 = vmatprep.subr.mxu0 %v315
    %1756 = vmatpush1.msra.mxu0 %v314
    %1757 = vmatprep.subr.mxu0 %v311
    %1758 = vmatpush1.msra.mxu0 %v310
    %1759 = vmatprep.subr.mxu0 %v307
    %1760 = vmatpush1.msra.mxu0 %v306
    %1761 = vmatprep.subr.mxu0 %v303
    %1762 = vmatpush1.msra.mxu0 %v302
    %1763 = vmatprep.subr.mxu0 %v299
    %1764 = vmatpush1.msra.mxu0 %v298
    %1765 = vmatprep.subr.mxu0 %v295
    %1766 = vmatpush1.msra.mxu0 %v294
    %1767 = vmatprep.subr.mxu0 %v291
    %1768 = vmatpush1.msra.mxu0 %v290
    %1769 = vmatprep.subr.mxu0 %v287
    %1770 = vmatpush1.msra.mxu0 %v286
    %1771 = vmatprep.subr.mxu0 %v283
    %1772 = vmatpush1.msra.mxu0 %v282
    %1773 = vmatprep.subr.mxu0 %v279
    %1774 = vmatpush1.msra.mxu0 %v278
    %1775 = vmatprep.subr.mxu0 %v275
    %1776 = vmatpush1.msra.mxu0 %v274
    %1777 = vmatprep.subr.mxu0 0.0
    %1778 = vmatpush2.msra.mxu0 0.0
    %1779 = vmatprep.subr.mxu0 0.0
    %1780 = vmatpush2.msra.mxu0 0.0
    %1781 = vmatprep.subr.mxu0 0.0
    %1782 = vmatpush2.msra.mxu0 0.0
    %1783 = vmatprep.subr.mxu0 0.0
    %1784 = vmatpush2.msra.mxu0 0.0
    %1785 = vmatprep.subr.mxu0 0.0
    %1786 = vmatpush2.msra.mxu0 0.0
    %1787 = vmatprep.subr.mxu0 0.0
    %1788 = vmatpush2.msra.mxu0 0.0
    %1789 = vmatprep.subr.mxu0 0.0
    %1790 = vmatpush2.msra.mxu0 0.0
    %1791 = vmatprep.subr.mxu0 0.0
    %1792 = vmatpush2.msra.mxu0 0.0
    %1793 = vmatprep.subr.mxu0 0.0
    %1794 = vmatpush2.msra.mxu0 0.0
    %1795 = vmatprep.subr.mxu0 0.0
    %1796 = vmatpush2.msra.mxu0 0.0
    %1797 = vmatprep.subr.mxu0 0.0
    %1798 = vmatpush2.msra.mxu0 0.0
    %1799 = vmatprep.subr.mxu0 0.0
    %1800 = vmatpush2.msra.mxu0 0.0
    %1801 = vmatprep.subr.mxu0 0.0
    %1802 = vmatpush2.msra.mxu0 0.0
    %1803 = vmatprep.subr.mxu0 0.0
    %1804 = vmatpush2.msra.mxu0 0.0
    %1805 = vmatprep.subr.mxu0 0.0
    %1806 = vmatpush2.msra.mxu0 0.0
    %1807 = vmatprep.subr.mxu0 0.0
    %1808 = vmatpush2.msra.mxu0 0.0
    %1809 = vmatprep.mubr.f32.mxu0 0.0
    %1810 = vmatmul.mubr.f32.gmra.mxu0 0.0
    %v1811 = vpop.f32.mrf.mxu0
    %v1812 = vadd.f32 0.0, %v1811
    %v1813 = vpop.f32.mrf.mxu0
    %v1814 = vadd.f32 0.0, %v1813
    %1815 = vdwg.mxu0
    %v1816 = vadd.f32 %v584, %v1741
    %v1817 = vadd.f32 %v586, %v1743
    %v1818 = vadd.f32 %v655, %v1812
    %v1819 = vadd.f32 %v657, %v1814
    %v1820 = vxor.u32 %v1816, 2147483648
    %v1821 = vmul.f32 %v1820, 1.442695
    %v1822 = vpow.pop %v1821
    %v1823 = vadd.f32 %v1822, 1.0
    %v1824 = vrcp.pop %v1823
    %v1825 = vmul.f32 1.0, %v1824
    %v1826 = vxor.u32 %v1817, 2147483648
    %v1827 = vmul.f32 %v1826, 1.442695
    %v1828 = vpow.pop %v1827
    %v1829 = vadd.f32 %v1828, 1.0
    %v1830 = vrcp.pop %v1829
    %v1831 = vmul.f32 1.0, %v1830
    %v1832 = vtanh.pop %v1818
    %v1833 = vxor.u32 %v1819, 2147483648
    %v1834 = vmul.f32 %v1833, 1.442695
    %v1835 = vpow.pop %v1834
    %v1836 = vadd.f32 %v1835, 1.0
    %v1837 = vrcp.pop %v1836
    %v1838 = vmul.f32 1.0, %v1837
    %v1839 = vmul.f32 %v1831, 0.0
    %v1840 = vmul.f32 %v1825, %v1832
    %v1841 = vadd.f32 %v1839, %v1840
    %v1842 = vtanh.pop %v1841
    %v1843 = vmul.f32 %v1838, %v1842
    %1844 = vmatprep.subr.mxu0 %v333
    %1845 = vmatpush1.msra.mxu0 %v332
    %1846 = vmatprep.subr.mxu0 %v329
    %1847 = vmatpush1.msra.mxu0 %v328
    %1848 = vmatprep.subr.mxu0 %v325
    %1849 = vmatpush1.msra.mxu0 %v324
    %1850 = vmatprep.subr.mxu0 %v321
    %1851 = vmatpush1.msra.mxu0 %v320
    %1852 = vmatprep.subr.mxu0 %v317
    %1853 = vmatpush1.msra.mxu0 %v316
    %1854 = vmatprep.subr.mxu0 %v313
    %1855 = vmatpush1.msra.mxu0 %v312
    %1856 = vmatprep.subr.mxu0 %v309
    %1857 = vmatpush1.msra.mxu0 %v308
    %1858 = vmatprep.subr.mxu0 %v305
    %1859 = vmatpush1.msra.mxu0 %v304
    %1860 = vmatprep.subr.mxu0 %v301
    %1861 = vmatpush1.msra.mxu0 %v300
    %1862 = vmatprep.subr.mxu0 %v297
    %1863 = vmatpush1.msra.mxu0 %v296
    %1864 = vmatprep.subr.mxu0 %v293
    %1865 = vmatpush1.msra.mxu0 %v292
    %1866 = vmatprep.subr.mxu0 %v289
    %1867 = vmatpush1.msra.mxu0 %v288
    %1868 = vmatprep.subr.mxu0 %v285
    %1869 = vmatpush1.msra.mxu0 %v284
    %1870 = vmatprep.subr.mxu0 %v281
    %1871 = vmatpush1.msra.mxu0 %v280
    %1872 = vmatprep.subr.mxu0 %v277
    %1873 = vmatpush1.msra.mxu0 %v276
    %1874 = vmatprep.subr.mxu0 %v273
    %1875 = vmatpush1.msra.mxu0 %v272
    %1876 = vmatprep.subr.mxu0 0.0
    %1877 = vmatpush2.msra.mxu0 0.0
    %1878 = vmatprep.subr.mxu0 0.0
    %1879 = vmatpush2.msra.mxu0 0.0
    %1880 = vmatprep.subr.mxu0 0.0
    %1881 = vmatpush2.msra.mxu0 0.0
    %1882 = vmatprep.subr.mxu0 0.0
    %1883 = vmatpush2.msra.mxu0 0.0
    %1884 = vmatprep.subr.mxu0 0.0
    %1885 = vmatpush2.msra.mxu0 0.0
    %1886 = vmatprep.subr.mxu0 0.0
    %1887 = vmatpush2.msra.mxu0 0.0
    %1888 = vmatprep.subr.mxu0 0.0
    %1889 = vmatpush2.msra.mxu0 0.0
    %1890 = vmatprep.subr.mxu0 0.0
    %1891 = vmatpush2.msra.mxu0 0.0
    %1892 = vmatprep.subr.mxu0 0.0
    %1893 = vmatpush2.msra.mxu0 0.0
    %1894 = vmatprep.subr.mxu0 0.0
    %1895 = vmatpush2.msra.mxu0 0.0
    %1896 = vmatprep.subr.mxu0 0.0
    %1897 = vmatpush2.msra.mxu0 0.0
    %1898 = vmatprep.subr.mxu0 0.0
    %1899 = vmatpush2.msra.mxu0 0.0
    %1900 = vmatprep.subr.mxu0 0.0
    %1901 = vmatpush2.msra.mxu0 0.0
    %1902 = vmatprep.subr.mxu0 0.0
    %1903 = vmatpush2.msra.mxu0 0.0
    %1904 = vmatprep.subr.mxu0 0.0
    %1905 = vmatpush2.msra.mxu0 0.0
    %1906 = vmatprep.subr.mxu0 0.0
    %1907 = vmatpush2.msra.mxu0 0.0
    %1908 = vmatprep.mubr.f32.mxu0 0.0
    %1909 = vmatmul.mubr.f32.gmra.mxu0 %v1843
    %v1910 = vpop.f32.mrf.mxu0
    %v1911 = vadd.f32 0.0, %v1910
    %v1912 = vpop.f32.mrf.mxu0
    %v1913 = vadd.f32 0.0, %v1912
    %1914 = vdwg.mxu0
    %1915 = vmatprep.subr.mxu0 %v335
    %1916 = vmatpush1.msra.mxu0 %v334
    %1917 = vmatprep.subr.mxu0 %v331
    %1918 = vmatpush1.msra.mxu0 %v330
    %1919 = vmatprep.subr.mxu0 %v327
    %1920 = vmatpush1.msra.mxu0 %v326
    %1921 = vmatprep.subr.mxu0 %v323
    %1922 = vmatpush1.msra.mxu0 %v322
    %1923 = vmatprep.subr.mxu0 %v319
    %1924 = vmatpush1.msra.mxu0 %v318
    %1925 = vmatprep.subr.mxu0 %v315
    %1926 = vmatpush1.msra.mxu0 %v314
    %1927 = vmatprep.subr.mxu0 %v311
    %1928 = vmatpush1.msra.mxu0 %v310
    %1929 = vmatprep.subr.mxu0 %v307
    %1930 = vmatpush1.msra.mxu0 %v306
    %1931 = vmatprep.subr.mxu0 %v303
    %1932 = vmatpush1.msra.mxu0 %v302
    %1933 = vmatprep.subr.mxu0 %v299
    %1934 = vmatpush1.msra.mxu0 %v298
    %1935 = vmatprep.subr.mxu0 %v295
    %1936 = vmatpush1.msra.mxu0 %v294
    %1937 = vmatprep.subr.mxu0 %v291
    %1938 = vmatpush1.msra.mxu0 %v290
    %1939 = vmatprep.subr.mxu0 %v287
    %1940 = vmatpush1.msra.mxu0 %v286
    %1941 = vmatprep.subr.mxu0 %v283
    %1942 = vmatpush1.msra.mxu0 %v282
    %1943 = vmatprep.subr.mxu0 %v279
    %1944 = vmatpush1.msra.mxu0 %v278
    %1945 = vmatprep.subr.mxu0 %v275
    %1946 = vmatpush1.msra.mxu0 %v274
    %1947 = vmatprep.subr.mxu0 0.0
    %1948 = vmatpush2.msra.mxu0 0.0
    %1949 = vmatprep.subr.mxu0 0.0
    %1950 = vmatpush2.msra.mxu0 0.0
    %1951 = vmatprep.subr.mxu0 0.0
    %1952 = vmatpush2.msra.mxu0 0.0
    %1953 = vmatprep.subr.mxu0 0.0
    %1954 = vmatpush2.msra.mxu0 0.0
    %1955 = vmatprep.subr.mxu0 0.0
    %1956 = vmatpush2.msra.mxu0 0.0
    %1957 = vmatprep.subr.mxu0 0.0
    %1958 = vmatpush2.msra.mxu0 0.0
    %1959 = vmatprep.subr.mxu0 0.0
    %1960 = vmatpush2.msra.mxu0 0.0
    %1961 = vmatprep.subr.mxu0 0.0
    %1962 = vmatpush2.msra.mxu0 0.0
    %1963 = vmatprep.subr.mxu0 0.0
    %1964 = vmatpush2.msra.mxu0 0.0
    %1965 = vmatprep.subr.mxu0 0.0
    %1966 = vmatpush2.msra.mxu0 0.0
    %1967 = vmatprep.subr.mxu0 0.0
    %1968 = vmatpush2.msra.mxu0 0.0
    %1969 = vmatprep.subr.mxu0 0.0
    %1970 = vmatpush2.msra.mxu0 0.0
    %1971 = vmatprep.subr.mxu0 0.0
    %1972 = vmatpush2.msra.mxu0 0.0
    %1973 = vmatprep.subr.mxu0 0.0
    %1974 = vmatpush2.msra.mxu0 0.0
    %1975 = vmatprep.subr.mxu0 0.0
    %1976 = vmatpush2.msra.mxu0 0.0
    %1977 = vmatprep.subr.mxu0 0.0
    %1978 = vmatpush2.msra.mxu0 0.0
    %1979 = vmatprep.mubr.f32.mxu0 0.0
    %1980 = vmatmul.mubr.f32.gmra.mxu0 %v1843
    %v1981 = vpop.f32.mrf.mxu0
    %v1982 = vadd.f32 0.0, %v1981
    %v1983 = vpop.f32.mrf.mxu0
    %v1984 = vadd.f32 0.0, %v1983
    %1985 = vdwg.mxu0
    %v1986 = vadd.f32 %v729, %v1911
    %v1987 = vadd.f32 %v731, %v1913
    %v1988 = vadd.f32 %v800, %v1982
    %v1989 = vadd.f32 %v802, %v1984
    %v1990 = vxor.u32 %v1986, 2147483648
    %v1991 = vmul.f32 %v1990, 1.442695
    %v1992 = vpow.pop %v1991
    %v1993 = vadd.f32 %v1992, 1.0
    %v1994 = vrcp.pop %v1993
    %v1995 = vmul.f32 1.0, %v1994
    %v1996 = vxor.u32 %v1987, 2147483648
    %v1997 = vmul.f32 %v1996, 1.442695
    %v1998 = vpow.pop %v1997
    %v1999 = vadd.f32 %v1998, 1.0
    %v2000 = vrcp.pop %v1999
    %v2001 = vmul.f32 1.0, %v2000
    %v2002 = vtanh.pop %v1988
    %v2003 = vxor.u32 %v1989, 2147483648
    %v2004 = vmul.f32 %v2003, 1.442695
    %v2005 = vpow.pop %v2004
    %v2006 = vadd.f32 %v2005, 1.0
    %v2007 = vrcp.pop %v2006
    %v2008 = vmul.f32 1.0, %v2007
    %v2009 = vmul.f32 %v2001, %v1841
    %v2010 = vmul.f32 %v1995, %v2002
    %v2011 = vadd.f32 %v2009, %v2010
    %v2012 = vtanh.pop %v2011
    %v2013 = vmul.f32 %v2008, %v2012
    %2014 = vmatprep.subr.mxu0 %v397
    %2015 = vmatpush1.msra.mxu0 %v396
    %2016 = vmatprep.subr.mxu0 %v393
    %2017 = vmatpush1.msra.mxu0 %v392
    %2018 = vmatprep.subr.mxu0 %v389
    %2019 = vmatpush1.msra.mxu0 %v388
    %2020 = vmatprep.subr.mxu0 %v385
    %2021 = vmatpush1.msra.mxu0 %v384
    %2022 = vmatprep.subr.mxu0 %v381
    %2023 = vmatpush1.msra.mxu0 %v380
    %2024 = vmatprep.subr.mxu0 %v377
    %2025 = vmatpush1.msra.mxu0 %v376
    %2026 = vmatprep.subr.mxu0 %v373
    %2027 = vmatpush1.msra.mxu0 %v372
    %2028 = vmatprep.subr.mxu0 %v369
    %2029 = vmatpush1.msra.mxu0 %v368
    %2030 = vmatprep.subr.mxu0 %v365
    %2031 = vmatpush1.msra.mxu0 %v364
    %2032 = vmatprep.subr.mxu0 %v361
    %2033 = vmatpush1.msra.mxu0 %v360
    %2034 = vmatprep.subr.mxu0 %v357
    %2035 = vmatpush1.msra.mxu0 %v356
    %2036 = vmatprep.subr.mxu0 %v353
    %2037 = vmatpush1.msra.mxu0 %v352
    %2038 = vmatprep.subr.mxu0 %v349
    %2039 = vmatpush1.msra.mxu0 %v348
    %2040 = vmatprep.subr.mxu0 %v345
    %2041 = vmatpush1.msra.mxu0 %v344
    %2042 = vmatprep.subr.mxu0 %v341
    %2043 = vmatpush1.msra.mxu0 %v340
    %2044 = vmatprep.subr.mxu0 %v337
    %2045 = vmatpush1.msra.mxu0 %v336
    %2046 = vmatprep.subr.mxu0 0.0
    %2047 = vmatpush2.msra.mxu0 0.0
    %2048 = vmatprep.subr.mxu0 0.0
    %2049 = vmatpush2.msra.mxu0 0.0
    %2050 = vmatprep.subr.mxu0 0.0
    %2051 = vmatpush2.msra.mxu0 0.0
    %2052 = vmatprep.subr.mxu0 0.0
    %2053 = vmatpush2.msra.mxu0 0.0
    %2054 = vmatprep.subr.mxu0 0.0
    %2055 = vmatpush2.msra.mxu0 0.0
    %2056 = vmatprep.subr.mxu0 0.0
    %2057 = vmatpush2.msra.mxu0 0.0
    %2058 = vmatprep.subr.mxu0 0.0
    %2059 = vmatpush2.msra.mxu0 0.0
    %2060 = vmatprep.subr.mxu0 0.0
    %2061 = vmatpush2.msra.mxu0 0.0
    %2062 = vmatprep.subr.mxu0 0.0
    %2063 = vmatpush2.msra.mxu0 0.0
    %2064 = vmatprep.subr.mxu0 0.0
    %2065 = vmatpush2.msra.mxu0 0.0
    %2066 = vmatprep.subr.mxu0 0.0
    %2067 = vmatpush2.msra.mxu0 0.0
    %2068 = vmatprep.subr.mxu0 0.0
    %2069 = vmatpush2.msra.mxu0 0.0
    %2070 = vmatprep.subr.mxu0 0.0
    %2071 = vmatpush2.msra.mxu0 0.0
    %2072 = vmatprep.subr.mxu0 0.0
    %2073 = vmatpush2.msra.mxu0 0.0
    %2074 = vmatprep.subr.mxu0 0.0
    %2075 = vmatpush2.msra.mxu0 0.0
    %2076 = vmatprep.subr.mxu0 0.0
    %2077 = vmatpush2.msra.mxu0 0.0
    %2078 = vmatprep.mubr.f32.mxu0 0.0
    %2079 = vmatmul.mubr.f32.gmra.mxu0 0.0
    %v2080 = vpop.f32.mrf.mxu0
    %v2081 = vadd.f32 0.0, %v2080
    %v2082 = vpop.f32.mrf.mxu0
    %v2083 = vadd.f32 0.0, %v2082
    %2084 = vdwg.mxu0
    %2085 = vmatprep.subr.mxu0 %v399
    %2086 = vmatpush1.msra.mxu0 %v398
    %2087 = vmatprep.subr.mxu0 %v395
    %2088 = vmatpush1.msra.mxu0 %v394
    %2089 = vmatprep.subr.mxu0 %v391
    %2090 = vmatpush1.msra.mxu0 %v390
    %2091 = vmatprep.subr.mxu0 %v387
    %2092 = vmatpush1.msra.mxu0 %v386
    %2093 = vmatprep.subr.mxu0 %v383
    %2094 = vmatpush1.msra.mxu0 %v382
    %2095 = vmatprep.subr.mxu0 %v379
    %2096 = vmatpush1.msra.mxu0 %v378
    %2097 = vmatprep.subr.mxu0 %v375
    %2098 = vmatpush1.msra.mxu0 %v374
    %2099 = vmatprep.subr.mxu0 %v371
    %2100 = vmatpush1.msra.mxu0 %v370
    %2101 = vmatprep.subr.mxu0 %v367
    %2102 = vmatpush1.msra.mxu0 %v366
    %2103 = vmatprep.subr.mxu0 %v363
    %2104 = vmatpush1.msra.mxu0 %v362
    %2105 = vmatprep.subr.mxu0 %v359
    %2106 = vmatpush1.msra.mxu0 %v358
    %2107 = vmatprep.subr.mxu0 %v355
    %2108 = vmatpush1.msra.mxu0 %v354
    %2109 = vmatprep.subr.mxu0 %v351
    %2110 = vmatpush1.msra.mxu0 %v350
    %2111 = vmatprep.subr.mxu0 %v347
    %2112 = vmatpush1.msra.mxu0 %v346
    %2113 = vmatprep.subr.mxu0 %v343
    %2114 = vmatpush1.msra.mxu0 %v342
    %2115 = vmatprep.subr.mxu0 %v339
    %2116 = vmatpush1.msra.mxu0 %v338
    %2117 = vmatprep.subr.mxu0 0.0
    %2118 = vmatpush2.msra.mxu0 0.0
    %2119 = vmatprep.subr.mxu0 0.0
    %2120 = vmatpush2.msra.mxu0 0.0
    %2121 = vmatprep.subr.mxu0 0.0
    %2122 = vmatpush2.msra.mxu0 0.0
    %2123 = vmatprep.subr.mxu0 0.0
    %2124 = vmatpush2.msra.mxu0 0.0
    %2125 = vmatprep.subr.mxu0 0.0
    %2126 = vmatpush2.msra.mxu0 0.0
    %2127 = vmatprep.subr.mxu0 0.0
    %2128 = vmatpush2.msra.mxu0 0.0
    %2129 = vmatprep.subr.mxu0 0.0
    %2130 = vmatpush2.msra.mxu0 0.0
    %2131 = vmatprep.subr.mxu0 0.0
    %2132 = vmatpush2.msra.mxu0 0.0
    %2133 = vmatprep.subr.mxu0 0.0
    %2134 = vmatpush2.msra.mxu0 0.0
    %2135 = vmatprep.subr.mxu0 0.0
    %2136 = vmatpush2.msra.mxu0 0.0
    %2137 = vmatprep.subr.mxu0 0.0
    %2138 = vmatpush2.msra.mxu0 0.0
    %2139 = vmatprep.subr.mxu0 0.0
    %2140 = vmatpush2.msra.mxu0 0.0
    %2141 = vmatprep.subr.mxu0 0.0
    %2142 = vmatpush2.msra.mxu0 0.0
    %2143 = vmatprep.subr.mxu0 0.0
    %2144 = vmatpush2.msra.mxu0 0.0
    %2145 = vmatprep.subr.mxu0 0.0
    %2146 = vmatpush2.msra.mxu0 0.0
    %2147 = vmatprep.subr.mxu0 0.0
    %2148 = vmatpush2.msra.mxu0 0.0
    %2149 = vmatprep.mubr.f32.mxu0 0.0
    %2150 = vmatmul.mubr.f32.gmra.mxu0 0.0
    %v2151 = vpop.f32.mrf.mxu0
    %v2152 = vadd.f32 0.0, %v2151
    %v2153 = vpop.f32.mrf.mxu0
    %v2154 = vadd.f32 0.0, %v2153
    %2155 = vdwg.mxu0
    %2156 = vmatprep.subr.mxu0 %v205
    %2157 = vmatpush1.msra.mxu0 %v204
    %2158 = vmatprep.subr.mxu0 %v201
    %2159 = vmatpush1.msra.mxu0 %v200
    %2160 = vmatprep.subr.mxu0 %v197
    %2161 = vmatpush1.msra.mxu0 %v196
    %2162 = vmatprep.subr.mxu0 %v193
    %2163 = vmatpush1.msra.mxu0 %v192
    %2164 = vmatprep.subr.mxu0 %v189
    %2165 = vmatpush1.msra.mxu0 %v188
    %2166 = vmatprep.subr.mxu0 %v185
    %2167 = vmatpush1.msra.mxu0 %v184
    %2168 = vmatprep.subr.mxu0 %v181
    %2169 = vmatpush1.msra.mxu0 %v180
    %2170 = vmatprep.subr.mxu0 %v177
    %2171 = vmatpush1.msra.mxu0 %v176
    %2172 = vmatprep.subr.mxu0 %v173
    %2173 = vmatpush1.msra.mxu0 %v172
    %2174 = vmatprep.subr.mxu0 %v169
    %2175 = vmatpush1.msra.mxu0 %v168
    %2176 = vmatprep.subr.mxu0 %v165
    %2177 = vmatpush1.msra.mxu0 %v164
    %2178 = vmatprep.subr.mxu0 %v161
    %2179 = vmatpush1.msra.mxu0 %v160
    %2180 = vmatprep.subr.mxu0 %v157
    %2181 = vmatpush1.msra.mxu0 %v156
    %2182 = vmatprep.subr.mxu0 %v153
    %2183 = vmatpush1.msra.mxu0 %v152
    %2184 = vmatprep.subr.mxu0 %v149
    %2185 = vmatpush1.msra.mxu0 %v148
    %2186 = vmatprep.subr.mxu0 %v145
    %2187 = vmatpush1.msra.mxu0 %v144
    %2188 = vmatprep.subr.mxu0 0.0
    %2189 = vmatpush2.msra.mxu0 0.0
    %2190 = vmatprep.subr.mxu0 0.0
    %2191 = vmatpush2.msra.mxu0 0.0
    %2192 = vmatprep.subr.mxu0 0.0
    %2193 = vmatpush2.msra.mxu0 0.0
    %2194 = vmatprep.subr.mxu0 0.0
    %2195 = vmatpush2.msra.mxu0 0.0
    %2196 = vmatprep.subr.mxu0 0.0
    %2197 = vmatpush2.msra.mxu0 0.0
    %2198 = vmatprep.subr.mxu0 0.0
    %2199 = vmatpush2.msra.mxu0 0.0
    %2200 = vmatprep.subr.mxu0 0.0
    %2201 = vmatpush2.msra.mxu0 0.0
    %2202 = vmatprep.subr.mxu0 0.0
    %2203 = vmatpush2.msra.mxu0 0.0
    %2204 = vmatprep.subr.mxu0 0.0
    %2205 = vmatpush2.msra.mxu0 0.0
    %2206 = vmatprep.subr.mxu0 0.0
    %2207 = vmatpush2.msra.mxu0 0.0
    %2208 = vmatprep.subr.mxu0 0.0
    %2209 = vmatpush2.msra.mxu0 0.0
    %2210 = vmatprep.subr.mxu0 0.0
    %2211 = vmatpush2.msra.mxu0 0.0
    %2212 = vmatprep.subr.mxu0 0.0
    %2213 = vmatpush2.msra.mxu0 0.0
    %2214 = vmatprep.subr.mxu0 0.0
    %2215 = vmatpush2.msra.mxu0 0.0
    %2216 = vmatprep.subr.mxu0 0.0
    %2217 = vmatpush2.msra.mxu0 0.0
    %2218 = vmatprep.subr.mxu0 0.0
    %2219 = vmatpush2.msra.mxu0 0.0
    %2220 = vmatprep.mubr.f32.mxu0 0.0
    %2221 = vmatmul.mubr.f32.gmra.mxu0 %v1843
    %v2222 = vpop.f32.mrf.mxu0
    %v2223 = vadd.f32 %v2081, %v2222
    %v2224 = vpop.f32.mrf.mxu0
    %v2225 = vadd.f32 %v2083, %v2224
    %2226 = vdwg.mxu0
    %2227 = vmatprep.subr.mxu0 %v207
    %2228 = vmatpush1.msra.mxu0 %v206
    %2229 = vmatprep.subr.mxu0 %v203
    %2230 = vmatpush1.msra.mxu0 %v202
    %2231 = vmatprep.subr.mxu0 %v199
    %2232 = vmatpush1.msra.mxu0 %v198
    %2233 = vmatprep.subr.mxu0 %v195
    %2234 = vmatpush1.msra.mxu0 %v194
    %2235 = vmatprep.subr.mxu0 %v191
    %2236 = vmatpush1.msra.mxu0 %v190
    %2237 = vmatprep.subr.mxu0 %v187
    %2238 = vmatpush1.msra.mxu0 %v186
    %2239 = vmatprep.subr.mxu0 %v183
    %2240 = vmatpush1.msra.mxu0 %v182
    %2241 = vmatprep.subr.mxu0 %v179
    %2242 = vmatpush1.msra.mxu0 %v178
    %2243 = vmatprep.subr.mxu0 %v175
    %2244 = vmatpush1.msra.mxu0 %v174
    %2245 = vmatprep.subr.mxu0 %v171
    %2246 = vmatpush1.msra.mxu0 %v170
    %2247 = vmatprep.subr.mxu0 %v167
    %2248 = vmatpush1.msra.mxu0 %v166
    %2249 = vmatprep.subr.mxu0 %v163
    %2250 = vmatpush1.msra.mxu0 %v162
    %2251 = vmatprep.subr.mxu0 %v159
    %2252 = vmatpush1.msra.mxu0 %v158
    %2253 = vmatprep.subr.mxu0 %v155
    %2254 = vmatpush1.msra.mxu0 %v154
    %2255 = vmatprep.subr.mxu0 %v151
    %2256 = vmatpush1.msra.mxu0 %v150
    %2257 = vmatprep.subr.mxu0 %v147
    %2258 = vmatpush1.msra.mxu0 %v146
    %2259 = vmatprep.subr.mxu0 0.0
    %2260 = vmatpush2.msra.mxu0 0.0
    %2261 = vmatprep.subr.mxu0 0.0
    %2262 = vmatpush2.msra.mxu0 0.0
    %2263 = vmatprep.subr.mxu0 0.0
    %2264 = vmatpush2.msra.mxu0 0.0
    %2265 = vmatprep.subr.mxu0 0.0
    %2266 = vmatpush2.msra.mxu0 0.0
    %2267 = vmatprep.subr.mxu0 0.0
    %2268 = vmatpush2.msra.mxu0 0.0
    %2269 = vmatprep.subr.mxu0 0.0
    %2270 = vmatpush2.msra.mxu0 0.0
    %2271 = vmatprep.subr.mxu0 0.0
    %2272 = vmatpush2.msra.mxu0 0.0
    %2273 = vmatprep.subr.mxu0 0.0
    %2274 = vmatpush2.msra.mxu0 0.0
    %2275 = vmatprep.subr.mxu0 0.0
    %2276 = vmatpush2.msra.mxu0 0.0
    %2277 = vmatprep.subr.mxu0 0.0
    %2278 = vmatpush2.msra.mxu0 0.0
    %2279 = vmatprep.subr.mxu0 0.0
    %2280 = vmatpush2.msra.mxu0 0.0
    %2281 = vmatprep.subr.mxu0 0.0
    %2282 = vmatpush2.msra.mxu0 0.0
    %2283 = vmatprep.subr.mxu0 0.0
    %2284 = vmatpush2.msra.mxu0 0.0
    %2285 = vmatprep.subr.mxu0 0.0
    %2286 = vmatpush2.msra.mxu0 0.0
    %2287 = vmatprep.subr.mxu0 0.0
    %2288 = vmatpush2.msra.mxu0 0.0
    %2289 = vmatprep.subr.mxu0 0.0
    %2290 = vmatpush2.msra.mxu0 0.0
    %2291 = vmatprep.mubr.f32.mxu0 0.0
    %2292 = vmatmul.mubr.f32.gmra.mxu0 %v1843
    %v2293 = vpop.f32.mrf.mxu0
    %v2294 = vadd.f32 %v2152, %v2293
    %v2295 = vpop.f32.mrf.mxu0
    %v2296 = vadd.f32 %v2154, %v2295
    %2297 = vdwg.mxu0
    %v2299 = vlaneseq
    %v2300 = vshrl.u32 %v2299, 7
    %v2301 = vsub.s32 0, %v2300
    %v2302 = vrot.slane %v465, %v2301
    %v2303 = vlaneseq
    %v2304 = vshrl.u32 %v2303, 7
    %v2305 = vsub.s32 1, %v2304
    %v2306 = vrot.slane %v465, %v2305
    %v2307 = vlaneseq
    %v2308 = vshrl.u32 %v2307, 7
    %v2309 = vsub.s32 2, %v2308
    %v2310 = vrot.slane %v465, %v2309
    %v2311 = vlaneseq
    %v2312 = vshrl.u32 %v2311, 7
    %v2313 = vsub.s32 3, %v2312
    %v2314 = vrot.slane %v465, %v2313
    %v2319 = vadd.f32 %v2223, %v2302
    %v2320 = vadd.f32 %v2225, %v2306
    %v2321 = vadd.f32 %v2294, %v2310
    %v2322 = vadd.f32 %v2296, %v2314
    %v2323 = vxor.u32 %v2319, 2147483648
    %v2324 = vmul.f32 %v2323, 1.442695
    %v2325 = vpow.pop %v2324
    %v2326 = vadd.f32 %v2325, 1.0
    %v2327 = vrcp.pop %v2326
    %v2328 = vmul.f32 1.0, %v2327
    %v2329 = vxor.u32 %v2320, 2147483648
    %v2330 = vmul.f32 %v2329, 1.442695
    %v2331 = vpow.pop %v2330
    %v2332 = vadd.f32 %v2331, 1.0
    %v2333 = vrcp.pop %v2332
    %v2334 = vmul.f32 1.0, %v2333
    %v2335 = vtanh.pop %v2321
    %v2336 = vxor.u32 %v2322, 2147483648
    %v2337 = vmul.f32 %v2336, 1.442695
    %v2338 = vpow.pop %v2337
    %v2339 = vadd.f32 %v2338, 1.0
    %v2340 = vrcp.pop %v2339
    %v2341 = vmul.f32 1.0, %v2340
    %v2342 = vmul.f32 %v2334, 0.0
    %v2343 = vmul.f32 %v2328, %v2335
    %v2344 = vadd.f32 %v2342, %v2343
    %v2345 = vtanh.pop %v2344
    %v2346 = vmul.f32 %v2341, %v2345
    %2347 = vmatprep.subr.mxu0 %v333
    %2348 = vmatpush1.msra.mxu0 %v332
    %2349 = vmatprep.subr.mxu0 %v329
    %2350 = vmatpush1.msra.mxu0 %v328
    %2351 = vmatprep.subr.mxu0 %v325
    %2352 = vmatpush1.msra.mxu0 %v324
    %2353 = vmatprep.subr.mxu0 %v321
    %2354 = vmatpush1.msra.mxu0 %v320
    %2355 = vmatprep.subr.mxu0 %v317
    %2356 = vmatpush1.msra.mxu0 %v316
    %2357 = vmatprep.subr.mxu0 %v313
    %2358 = vmatpush1.msra.mxu0 %v312
    %2359 = vmatprep.subr.mxu0 %v309
    %2360 = vmatpush1.msra.mxu0 %v308
    %2361 = vmatprep.subr.mxu0 %v305
    %2362 = vmatpush1.msra.mxu0 %v304
    %2363 = vmatprep.subr.mxu0 %v301
    %2364 = vmatpush1.msra.mxu0 %v300
    %2365 = vmatprep.subr.mxu0 %v297
    %2366 = vmatpush1.msra.mxu0 %v296
    %2367 = vmatprep.subr.mxu0 %v293
    %2368 = vmatpush1.msra.mxu0 %v292
    %2369 = vmatprep.subr.mxu0 %v289
    %2370 = vmatpush1.msra.mxu0 %v288
    %2371 = vmatprep.subr.mxu0 %v285
    %2372 = vmatpush1.msra.mxu0 %v284
    %2373 = vmatprep.subr.mxu0 %v281
    %2374 = vmatpush1.msra.mxu0 %v280
    %2375 = vmatprep.subr.mxu0 %v277
    %2376 = vmatpush1.msra.mxu0 %v276
    %2377 = vmatprep.subr.mxu0 %v273
    %2378 = vmatpush1.msra.mxu0 %v272
    %2379 = vmatprep.subr.mxu0 0.0
    %2380 = vmatpush2.msra.mxu0 0.0
    %2381 = vmatprep.subr.mxu0 0.0
    %2382 = vmatpush2.msra.mxu0 0.0
    %2383 = vmatprep.subr.mxu0 0.0
    %2384 = vmatpush2.msra.mxu0 0.0
    %2385 = vmatprep.subr.mxu0 0.0
    %2386 = vmatpush2.msra.mxu0 0.0
    %2387 = vmatprep.subr.mxu0 0.0
    %2388 = vmatpush2.msra.mxu0 0.0
    %2389 = vmatprep.subr.mxu0 0.0
    %2390 = vmatpush2.msra.mxu0 0.0
    %2391 = vmatprep.subr.mxu0 0.0
    %2392 = vmatpush2.msra.mxu0 0.0
    %2393 = vmatprep.subr.mxu0 0.0
    %2394 = vmatpush2.msra.mxu0 0.0
    %2395 = vmatprep.subr.mxu0 0.0
    %2396 = vmatpush2.msra.mxu0 0.0
    %2397 = vmatprep.subr.mxu0 0.0
    %2398 = vmatpush2.msra.mxu0 0.0
    %2399 = vmatprep.subr.mxu0 0.0
    %2400 = vmatpush2.msra.mxu0 0.0
    %2401 = vmatprep.subr.mxu0 0.0
    %2402 = vmatpush2.msra.mxu0 0.0
    %2403 = vmatprep.subr.mxu0 0.0
    %2404 = vmatpush2.msra.mxu0 0.0
    %2405 = vmatprep.subr.mxu0 0.0
    %2406 = vmatpush2.msra.mxu0 0.0
    %2407 = vmatprep.subr.mxu0 0.0
    %2408 = vmatpush2.msra.mxu0 0.0
    %2409 = vmatprep.subr.mxu0 0.0
    %2410 = vmatpush2.msra.mxu0 0.0
    %2411 = vmatprep.mubr.f32.mxu0 0.0
    %2412 = vmatmul.mubr.f32.gmra.mxu0 %v2013
    %v2413 = vpop.f32.mrf.mxu0
    %v2414 = vadd.f32 0.0, %v2413
    %v2415 = vpop.f32.mrf.mxu0
    %v2416 = vadd.f32 0.0, %v2415
    %2417 = vdwg.mxu0
    %2418 = vmatprep.subr.mxu0 %v335
    %2419 = vmatpush1.msra.mxu0 %v334
    %2420 = vmatprep.subr.mxu0 %v331
    %2421 = vmatpush1.msra.mxu0 %v330
    %2422 = vmatprep.subr.mxu0 %v327
    %2423 = vmatpush1.msra.mxu0 %v326
    %2424 = vmatprep.subr.mxu0 %v323
    %2425 = vmatpush1.msra.mxu0 %v322
    %2426 = vmatprep.subr.mxu0 %v319
    %2427 = vmatpush1.msra.mxu0 %v318
    %2428 = vmatprep.subr.mxu0 %v315
    %2429 = vmatpush1.msra.mxu0 %v314
    %2430 = vmatprep.subr.mxu0 %v311
    %2431 = vmatpush1.msra.mxu0 %v310
    %2432 = vmatprep.subr.mxu0 %v307
    %2433 = vmatpush1.msra.mxu0 %v306
    %2434 = vmatprep.subr.mxu0 %v303
    %2435 = vmatpush1.msra.mxu0 %v302
    %2436 = vmatprep.subr.mxu0 %v299
    %2437 = vmatpush1.msra.mxu0 %v298
    %2438 = vmatprep.subr.mxu0 %v295
    %2439 = vmatpush1.msra.mxu0 %v294
    %2440 = vmatprep.subr.mxu0 %v291
    %2441 = vmatpush1.msra.mxu0 %v290
    %2442 = vmatprep.subr.mxu0 %v287
    %2443 = vmatpush1.msra.mxu0 %v286
    %2444 = vmatprep.subr.mxu0 %v283
    %2445 = vmatpush1.msra.mxu0 %v282
    %2446 = vmatprep.subr.mxu0 %v279
    %2447 = vmatpush1.msra.mxu0 %v278
    %2448 = vmatprep.subr.mxu0 %v275
    %2449 = vmatpush1.msra.mxu0 %v274
    %2450 = vmatprep.subr.mxu0 0.0
    %2451 = vmatpush2.msra.mxu0 0.0
    %2452 = vmatprep.subr.mxu0 0.0
    %2453 = vmatpush2.msra.mxu0 0.0
    %2454 = vmatprep.subr.mxu0 0.0
    %2455 = vmatpush2.msra.mxu0 0.0
    %2456 = vmatprep.subr.mxu0 0.0
    %2457 = vmatpush2.msra.mxu0 0.0
    %2458 = vmatprep.subr.mxu0 0.0
    %2459 = vmatpush2.msra.mxu0 0.0
    %2460 = vmatprep.subr.mxu0 0.0
    %2461 = vmatpush2.msra.mxu0 0.0
    %2462 = vmatprep.subr.mxu0 0.0
    %2463 = vmatpush2.msra.mxu0 0.0
    %2464 = vmatprep.subr.mxu0 0.0
    %2465 = vmatpush2.msra.mxu0 0.0
    %2466 = vmatprep.subr.mxu0 0.0
    %2467 = vmatpush2.msra.mxu0 0.0
    %2468 = vmatprep.subr.mxu0 0.0
    %2469 = vmatpush2.msra.mxu0 0.0
    %2470 = vmatprep.subr.mxu0 0.0
    %2471 = vmatpush2.msra.mxu0 0.0
    %2472 = vmatprep.subr.mxu0 0.0
    %2473 = vmatpush2.msra.mxu0 0.0
    %2474 = vmatprep.subr.mxu0 0.0
    %2475 = vmatpush2.msra.mxu0 0.0
    %2476 = vmatprep.subr.mxu0 0.0
    %2477 = vmatpush2.msra.mxu0 0.0
    %2478 = vmatprep.subr.mxu0 0.0
    %2479 = vmatpush2.msra.mxu0 0.0
    %2480 = vmatprep.subr.mxu0 0.0
    %2481 = vmatpush2.msra.mxu0 0.0
    %2482 = vmatprep.mubr.f32.mxu0 0.0
    %2483 = vmatmul.mubr.f32.gmra.mxu0 %v2013
    %v2484 = vpop.f32.mrf.mxu0
    %v2485 = vadd.f32 0.0, %v2484
    %v2486 = vpop.f32.mrf.mxu0
    %v2487 = vadd.f32 0.0, %v2486
    %2488 = vdwg.mxu0
    %v2489 = vadd.f32 %v874, %v2414
    %v2490 = vadd.f32 %v876, %v2416
    %v2491 = vadd.f32 %v945, %v2485
    %v2492 = vadd.f32 %v947, %v2487
    %v2493 = vxor.u32 %v2489, 2147483648
    %v2494 = vmul.f32 %v2493, 1.442695
    %v2495 = vpow.pop %v2494
    %v2496 = vadd.f32 %v2495, 1.0
    %v2497 = vrcp.pop %v2496
    %v2498 = vmul.f32 1.0, %v2497
    %v2499 = vxor.u32 %v2490, 2147483648
    %v2500 = vmul.f32 %v2499, 1.442695
    %v2501 = vpow.pop %v2500
    %v2502 = vadd.f32 %v2501, 1.0
    %v2503 = vrcp.pop %v2502
    %v2504 = vmul.f32 1.0, %v2503
    %v2505 = vtanh.pop %v2491
    %v2506 = vxor.u32 %v2492, 2147483648
    %v2507 = vmul.f32 %v2506, 1.442695
    %v2508 = vpow.pop %v2507
    %v2509 = vadd.f32 %v2508, 1.0
    %v2510 = vrcp.pop %v2509
    %v2511 = vmul.f32 1.0, %v2510
    %v2512 = vmul.f32 %v2504, %v2011
    %v2513 = vmul.f32 %v2498, %v2505
    %v2514 = vadd.f32 %v2512, %v2513
    %v2515 = vtanh.pop %v2514
    %v2516 = vmul.f32 %v2511, %v2515
    %2517 = vmatprep.subr.mxu0 %v397
    %2518 = vmatpush1.msra.mxu0 %v396
    %2519 = vmatprep.subr.mxu0 %v393
    %2520 = vmatpush1.msra.mxu0 %v392
    %2521 = vmatprep.subr.mxu0 %v389
    %2522 = vmatpush1.msra.mxu0 %v388
    %2523 = vmatprep.subr.mxu0 %v385
    %2524 = vmatpush1.msra.mxu0 %v384
    %2525 = vmatprep.subr.mxu0 %v381
    %2526 = vmatpush1.msra.mxu0 %v380
    %2527 = vmatprep.subr.mxu0 %v377
    %2528 = vmatpush1.msra.mxu0 %v376
    %2529 = vmatprep.subr.mxu0 %v373
    %2530 = vmatpush1.msra.mxu0 %v372
    %2531 = vmatprep.subr.mxu0 %v369
    %2532 = vmatpush1.msra.mxu0 %v368
    %2533 = vmatprep.subr.mxu0 %v365
    %2534 = vmatpush1.msra.mxu0 %v364
    %2535 = vmatprep.subr.mxu0 %v361
    %2536 = vmatpush1.msra.mxu0 %v360
    %2537 = vmatprep.subr.mxu0 %v357
    %2538 = vmatpush1.msra.mxu0 %v356
    %2539 = vmatprep.subr.mxu0 %v353
    %2540 = vmatpush1.msra.mxu0 %v352
    %2541 = vmatprep.subr.mxu0 %v349
    %2542 = vmatpush1.msra.mxu0 %v348
    %2543 = vmatprep.subr.mxu0 %v345
    %2544 = vmatpush1.msra.mxu0 %v344
    %2545 = vmatprep.subr.mxu0 %v341
    %2546 = vmatpush1.msra.mxu0 %v340
    %2547 = vmatprep.subr.mxu0 %v337
    %2548 = vmatpush1.msra.mxu0 %v336
    %2549 = vmatprep.subr.mxu0 0.0
    %2550 = vmatpush2.msra.mxu0 0.0
    %2551 = vmatprep.subr.mxu0 0.0
    %2552 = vmatpush2.msra.mxu0 0.0
    %2553 = vmatprep.subr.mxu0 0.0
    %2554 = vmatpush2.msra.mxu0 0.0
    %2555 = vmatprep.subr.mxu0 0.0
    %2556 = vmatpush2.msra.mxu0 0.0
    %2557 = vmatprep.subr.mxu0 0.0
    %2558 = vmatpush2.msra.mxu0 0.0
    %2559 = vmatprep.subr.mxu0 0.0
    %2560 = vmatpush2.msra.mxu0 0.0
    %2561 = vmatprep.subr.mxu0 0.0
    %2562 = vmatpush2.msra.mxu0 0.0
    %2563 = vmatprep.subr.mxu0 0.0
    %2564 = vmatpush2.msra.mxu0 0.0
    %2565 = vmatprep.subr.mxu0 0.0
    %2566 = vmatpush2.msra.mxu0 0.0
    %2567 = vmatprep.subr.mxu0 0.0
    %2568 = vmatpush2.msra.mxu0 0.0
    %2569 = vmatprep.subr.mxu0 0.0
    %2570 = vmatpush2.msra.mxu0 0.0
    %2571 = vmatprep.subr.mxu0 0.0
    %2572 = vmatpush2.msra.mxu0 0.0
    %2573 = vmatprep.subr.mxu0 0.0
    %2574 = vmatpush2.msra.mxu0 0.0
    %2575 = vmatprep.subr.mxu0 0.0
    %2576 = vmatpush2.msra.mxu0 0.0
    %2577 = vmatprep.subr.mxu0 0.0
    %2578 = vmatpush2.msra.mxu0 0.0
    %2579 = vmatprep.subr.mxu0 0.0
    %2580 = vmatpush2.msra.mxu0 0.0
    %2581 = vmatprep.mubr.f32.mxu0 0.0
    %2582 = vmatmul.mubr.f32.gmra.mxu0 %v2346
    %v2583 = vpop.f32.mrf.mxu0
    %v2584 = vadd.f32 0.0, %v2583
    %v2585 = vpop.f32.mrf.mxu0
    %v2586 = vadd.f32 0.0, %v2585
    %2587 = vdwg.mxu0
    %2588 = vmatprep.subr.mxu0 %v399
    %2589 = vmatpush1.msra.mxu0 %v398
    %2590 = vmatprep.subr.mxu0 %v395
    %2591 = vmatpush1.msra.mxu0 %v394
    %2592 = vmatprep.subr.mxu0 %v391
    %2593 = vmatpush1.msra.mxu0 %v390
    %2594 = vmatprep.subr.mxu0 %v387
    %2595 = vmatpush1.msra.mxu0 %v386
    %2596 = vmatprep.subr.mxu0 %v383
    %2597 = vmatpush1.msra.mxu0 %v382
    %2598 = vmatprep.subr.mxu0 %v379
    %2599 = vmatpush1.msra.mxu0 %v378
    %2600 = vmatprep.subr.mxu0 %v375
    %2601 = vmatpush1.msra.mxu0 %v374
    %2602 = vmatprep.subr.mxu0 %v371
    %2603 = vmatpush1.msra.mxu0 %v370
    %2604 = vmatprep.subr.mxu0 %v367
    %2605 = vmatpush1.msra.mxu0 %v366
    %2606 = vmatprep.subr.mxu0 %v363
    %2607 = vmatpush1.msra.mxu0 %v362
    %2608 = vmatprep.subr.mxu0 %v359
    %2609 = vmatpush1.msra.mxu0 %v358
    %2610 = vmatprep.subr.mxu0 %v355
    %2611 = vmatpush1.msra.mxu0 %v354
    %2612 = vmatprep.subr.mxu0 %v351
    %2613 = vmatpush1.msra.mxu0 %v350
    %2614 = vmatprep.subr.mxu0 %v347
    %2615 = vmatpush1.msra.mxu0 %v346
    %2616 = vmatprep.subr.mxu0 %v343
    %2617 = vmatpush1.msra.mxu0 %v342
    %2618 = vmatprep.subr.mxu0 %v339
    %2619 = vmatpush1.msra.mxu0 %v338
    %2620 = vmatprep.subr.mxu0 0.0
    %2621 = vmatpush2.msra.mxu0 0.0
    %2622 = vmatprep.subr.mxu0 0.0
    %2623 = vmatpush2.msra.mxu0 0.0
    %2624 = vmatprep.subr.mxu0 0.0
    %2625 = vmatpush2.msra.mxu0 0.0
    %2626 = vmatprep.subr.mxu0 0.0
    %2627 = vmatpush2.msra.mxu0 0.0
    %2628 = vmatprep.subr.mxu0 0.0
    %2629 = vmatpush2.msra.mxu0 0.0
    %2630 = vmatprep.subr.mxu0 0.0
    %2631 = vmatpush2.msra.mxu0 0.0
    %2632 = vmatprep.subr.mxu0 0.0
    %2633 = vmatpush2.msra.mxu0 0.0
    %2634 = vmatprep.subr.mxu0 0.0
    %2635 = vmatpush2.msra.mxu0 0.0
    %2636 = vmatprep.subr.mxu0 0.0
    %2637 = vmatpush2.msra.mxu0 0.0
    %2638 = vmatprep.subr.mxu0 0.0
    %2639 = vmatpush2.msra.mxu0 0.0
    %2640 = vmatprep.subr.mxu0 0.0
    %2641 = vmatpush2.msra.mxu0 0.0
    %2642 = vmatprep.subr.mxu0 0.0
    %2643 = vmatpush2.msra.mxu0 0.0
    %2644 = vmatprep.subr.mxu0 0.0
    %2645 = vmatpush2.msra.mxu0 0.0
    %2646 = vmatprep.subr.mxu0 0.0
    %2647 = vmatpush2.msra.mxu0 0.0
    %2648 = vmatprep.subr.mxu0 0.0
    %2649 = vmatpush2.msra.mxu0 0.0
    %2650 = vmatprep.subr.mxu0 0.0
    %2651 = vmatpush2.msra.mxu0 0.0
    %2652 = vmatprep.mubr.f32.mxu0 0.0
    %2653 = vmatmul.mubr.f32.gmra.mxu0 %v2346
    %v2654 = vpop.f32.mrf.mxu0
    %v2655 = vadd.f32 0.0, %v2654
    %v2656 = vpop.f32.mrf.mxu0
    %v2657 = vadd.f32 0.0, %v2656
    %2658 = vdwg.mxu0
    %2659 = vmatprep.subr.mxu0 %v205
    %2660 = vmatpush1.msra.mxu0 %v204
    %2661 = vmatprep.subr.mxu0 %v201
    %2662 = vmatpush1.msra.mxu0 %v200
    %2663 = vmatprep.subr.mxu0 %v197
    %2664 = vmatpush1.msra.mxu0 %v196
    %2665 = vmatprep.subr.mxu0 %v193
    %2666 = vmatpush1.msra.mxu0 %v192
    %2667 = vmatprep.subr.mxu0 %v189
    %2668 = vmatpush1.msra.mxu0 %v188
    %2669 = vmatprep.subr.mxu0 %v185
    %2670 = vmatpush1.msra.mxu0 %v184
    %2671 = vmatprep.subr.mxu0 %v181
    %2672 = vmatpush1.msra.mxu0 %v180
    %2673 = vmatprep.subr.mxu0 %v177
    %2674 = vmatpush1.msra.mxu0 %v176
    %2675 = vmatprep.subr.mxu0 %v173
    %2676 = vmatpush1.msra.mxu0 %v172
    %2677 = vmatprep.subr.mxu0 %v169
    %2678 = vmatpush1.msra.mxu0 %v168
    %2679 = vmatprep.subr.mxu0 %v165
    %2680 = vmatpush1.msra.mxu0 %v164
    %2681 = vmatprep.subr.mxu0 %v161
    %2682 = vmatpush1.msra.mxu0 %v160
    %2683 = vmatprep.subr.mxu0 %v157
    %2684 = vmatpush1.msra.mxu0 %v156
    %2685 = vmatprep.subr.mxu0 %v153
    %2686 = vmatpush1.msra.mxu0 %v152
    %2687 = vmatprep.subr.mxu0 %v149
    %2688 = vmatpush1.msra.mxu0 %v148
    %2689 = vmatprep.subr.mxu0 %v145
    %2690 = vmatpush1.msra.mxu0 %v144
    %2691 = vmatprep.subr.mxu0 0.0
    %2692 = vmatpush2.msra.mxu0 0.0
    %2693 = vmatprep.subr.mxu0 0.0
    %2694 = vmatpush2.msra.mxu0 0.0
    %2695 = vmatprep.subr.mxu0 0.0
    %2696 = vmatpush2.msra.mxu0 0.0
    %2697 = vmatprep.subr.mxu0 0.0
    %2698 = vmatpush2.msra.mxu0 0.0
    %2699 = vmatprep.subr.mxu0 0.0
    %2700 = vmatpush2.msra.mxu0 0.0
    %2701 = vmatprep.subr.mxu0 0.0
    %2702 = vmatpush2.msra.mxu0 0.0
    %2703 = vmatprep.subr.mxu0 0.0
    %2704 = vmatpush2.msra.mxu0 0.0
    %2705 = vmatprep.subr.mxu0 0.0
    %2706 = vmatpush2.msra.mxu0 0.0
    %2707 = vmatprep.subr.mxu0 0.0
    %2708 = vmatpush2.msra.mxu0 0.0
    %2709 = vmatprep.subr.mxu0 0.0
    %2710 = vmatpush2.msra.mxu0 0.0
    %2711 = vmatprep.subr.mxu0 0.0
    %2712 = vmatpush2.msra.mxu0 0.0
    %2713 = vmatprep.subr.mxu0 0.0
    %2714 = vmatpush2.msra.mxu0 0.0
    %2715 = vmatprep.subr.mxu0 0.0
    %2716 = vmatpush2.msra.mxu0 0.0
    %2717 = vmatprep.subr.mxu0 0.0
    %2718 = vmatpush2.msra.mxu0 0.0
    %2719 = vmatprep.subr.mxu0 0.0
    %2720 = vmatpush2.msra.mxu0 0.0
    %2721 = vmatprep.subr.mxu0 0.0
    %2722 = vmatpush2.msra.mxu0 0.0
    %2723 = vmatprep.mubr.f32.mxu0 0.0
    %2724 = vmatmul.mubr.f32.gmra.mxu0 %v2013
    %v2725 = vpop.f32.mrf.mxu0
    %v2726 = vadd.f32 %v2584, %v2725
    %v2727 = vpop.f32.mrf.mxu0
    %v2728 = vadd.f32 %v2586, %v2727
    %2729 = vdwg.mxu0
    %2730 = vmatprep.subr.mxu0 %v207
    %2731 = vmatpush1.msra.mxu0 %v206
    %2732 = vmatprep.subr.mxu0 %v203
    %2733 = vmatpush1.msra.mxu0 %v202
    %2734 = vmatprep.subr.mxu0 %v199
    %2735 = vmatpush1.msra.mxu0 %v198
    %2736 = vmatprep.subr.mxu0 %v195
    %2737 = vmatpush1.msra.mxu0 %v194
    %2738 = vmatprep.subr.mxu0 %v191
    %2739 = vmatpush1.msra.mxu0 %v190
    %2740 = vmatprep.subr.mxu0 %v187
    %2741 = vmatpush1.msra.mxu0 %v186
    %2742 = vmatprep.subr.mxu0 %v183
    %2743 = vmatpush1.msra.mxu0 %v182
    %2744 = vmatprep.subr.mxu0 %v179
    %2745 = vmatpush1.msra.mxu0 %v178
    %2746 = vmatprep.subr.mxu0 %v175
    %2747 = vmatpush1.msra.mxu0 %v174
    %2748 = vmatprep.subr.mxu0 %v171
    %2749 = vmatpush1.msra.mxu0 %v170
    %2750 = vmatprep.subr.mxu0 %v167
    %2751 = vmatpush1.msra.mxu0 %v166
    %2752 = vmatprep.subr.mxu0 %v163
    %2753 = vmatpush1.msra.mxu0 %v162
    %2754 = vmatprep.subr.mxu0 %v159
    %2755 = vmatpush1.msra.mxu0 %v158
    %2756 = vmatprep.subr.mxu0 %v155
    %2757 = vmatpush1.msra.mxu0 %v154
    %2758 = vmatprep.subr.mxu0 %v151
    %2759 = vmatpush1.msra.mxu0 %v150
    %2760 = vmatprep.subr.mxu0 %v147
    %2761 = vmatpush1.msra.mxu0 %v146
    %2762 = vmatprep.subr.mxu0 0.0
    %2763 = vmatpush2.msra.mxu0 0.0
    %2764 = vmatprep.subr.mxu0 0.0
    %2765 = vmatpush2.msra.mxu0 0.0
    %2766 = vmatprep.subr.mxu0 0.0
    %2767 = vmatpush2.msra.mxu0 0.0
    %2768 = vmatprep.subr.mxu0 0.0
    %2769 = vmatpush2.msra.mxu0 0.0
    %2770 = vmatprep.subr.mxu0 0.0
    %2771 = vmatpush2.msra.mxu0 0.0
    %2772 = vmatprep.subr.mxu0 0.0
    %2773 = vmatpush2.msra.mxu0 0.0
    %2774 = vmatprep.subr.mxu0 0.0
    %2775 = vmatpush2.msra.mxu0 0.0
    %2776 = vmatprep.subr.mxu0 0.0
    %2777 = vmatpush2.msra.mxu0 0.0
    %2778 = vmatprep.subr.mxu0 0.0
    %2779 = vmatpush2.msra.mxu0 0.0
    %2780 = vmatprep.subr.mxu0 0.0
    %2781 = vmatpush2.msra.mxu0 0.0
    %2782 = vmatprep.subr.mxu0 0.0
    %2783 = vmatpush2.msra.mxu0 0.0
    %2784 = vmatprep.subr.mxu0 0.0
    %2785 = vmatpush2.msra.mxu0 0.0
    %2786 = vmatprep.subr.mxu0 0.0
    %2787 = vmatpush2.msra.mxu0 0.0
    %2788 = vmatprep.subr.mxu0 0.0
    %2789 = vmatpush2.msra.mxu0 0.0
    %2790 = vmatprep.subr.mxu0 0.0
    %2791 = vmatpush2.msra.mxu0 0.0
    %2792 = vmatprep.subr.mxu0 0.0
    %2793 = vmatpush2.msra.mxu0 0.0
    %2794 = vmatprep.mubr.f32.mxu0 0.0
    %2795 = vmatmul.mubr.f32.gmra.mxu0 %v2013
    %v2796 = vpop.f32.mrf.mxu0
    %v2797 = vadd.f32 %v2655, %v2796
    %v2798 = vpop.f32.mrf.mxu0
    %v2799 = vadd.f32 %v2657, %v2798
    %2800 = vdwg.mxu0
    %v2801 = vadd.f32 %v2726, %v2302
    %v2802 = vadd.f32 %v2728, %v2306
    %v2803 = vadd.f32 %v2797, %v2310
    %v2804 = vadd.f32 %v2799, %v2314
    %v2805 = vxor.u32 %v2801, 2147483648
    %v2806 = vmul.f32 %v2805, 1.442695
    %v2807 = vpow.pop %v2806
    %v2808 = vadd.f32 %v2807, 1.0
    %v2809 = vrcp.pop %v2808
    %v2810 = vmul.f32 1.0, %v2809
    %v2811 = vxor.u32 %v2802, 2147483648
    %v2812 = vmul.f32 %v2811, 1.442695
    %v2813 = vpow.pop %v2812
    %v2814 = vadd.f32 %v2813, 1.0
    %v2815 = vrcp.pop %v2814
    %v2816 = vmul.f32 1.0, %v2815
    %v2817 = vtanh.pop %v2803
    %v2818 = vxor.u32 %v2804, 2147483648
    %v2819 = vmul.f32 %v2818, 1.442695
    %v2820 = vpow.pop %v2819
    %v2821 = vadd.f32 %v2820, 1.0
    %v2822 = vrcp.pop %v2821
    %v2823 = vmul.f32 1.0, %v2822
    %v2824 = vmul.f32 %v2816, %v2344
    %v2825 = vmul.f32 %v2810, %v2817
    %v2826 = vadd.f32 %v2824, %v2825
    %v2827 = vtanh.pop %v2826
    %v2828 = vmul.f32 %v2823, %v2827
    %2829 = vmatprep.subr.mxu0 %v461
    %2830 = vmatpush1.msra.mxu0 %v460
    %2831 = vmatprep.subr.mxu0 %v457
    %2832 = vmatpush1.msra.mxu0 %v456
    %2833 = vmatprep.subr.mxu0 %v453
    %2834 = vmatpush1.msra.mxu0 %v452
    %2835 = vmatprep.subr.mxu0 %v449
    %2836 = vmatpush1.msra.mxu0 %v448
    %2837 = vmatprep.subr.mxu0 %v445
    %2838 = vmatpush1.msra.mxu0 %v444
    %2839 = vmatprep.subr.mxu0 %v441
    %2840 = vmatpush1.msra.mxu0 %v440
    %2841 = vmatprep.subr.mxu0 %v437
    %2842 = vmatpush1.msra.mxu0 %v436
    %2843 = vmatprep.subr.mxu0 %v433
    %2844 = vmatpush1.msra.mxu0 %v432
    %2845 = vmatprep.subr.mxu0 %v429
    %2846 = vmatpush1.msra.mxu0 %v428
    %2847 = vmatprep.subr.mxu0 %v425
    %2848 = vmatpush1.msra.mxu0 %v424
    %2849 = vmatprep.subr.mxu0 %v421
    %2850 = vmatpush1.msra.mxu0 %v420
    %2851 = vmatprep.subr.mxu0 %v417
    %2852 = vmatpush1.msra.mxu0 %v416
    %2853 = vmatprep.subr.mxu0 %v413
    %2854 = vmatpush1.msra.mxu0 %v412
    %2855 = vmatprep.subr.mxu0 %v409
    %2856 = vmatpush1.msra.mxu0 %v408
    %2857 = vmatprep.subr.mxu0 %v405
    %2858 = vmatpush1.msra.mxu0 %v404
    %2859 = vmatprep.subr.mxu0 %v401
    %2860 = vmatpush1.msra.mxu0 %v400
    %2861 = vmatprep.subr.mxu0 0.0
    %2862 = vmatpush2.msra.mxu0 0.0
    %2863 = vmatprep.subr.mxu0 0.0
    %2864 = vmatpush2.msra.mxu0 0.0
    %2865 = vmatprep.subr.mxu0 0.0
    %2866 = vmatpush2.msra.mxu0 0.0
    %2867 = vmatprep.subr.mxu0 0.0
    %2868 = vmatpush2.msra.mxu0 0.0
    %2869 = vmatprep.subr.mxu0 0.0
    %2870 = vmatpush2.msra.mxu0 0.0
    %2871 = vmatprep.subr.mxu0 0.0
    %2872 = vmatpush2.msra.mxu0 0.0
    %2873 = vmatprep.subr.mxu0 0.0
    %2874 = vmatpush2.msra.mxu0 0.0
    %2875 = vmatprep.subr.mxu0 0.0
    %2876 = vmatpush2.msra.mxu0 0.0
    %2877 = vmatprep.subr.mxu0 0.0
    %2878 = vmatpush2.msra.mxu0 0.0
    %2879 = vmatprep.subr.mxu0 0.0
    %2880 = vmatpush2.msra.mxu0 0.0
    %2881 = vmatprep.subr.mxu0 0.0
    %2882 = vmatpush2.msra.mxu0 0.0
    %2883 = vmatprep.subr.mxu0 0.0
    %2884 = vmatpush2.msra.mxu0 0.0
    %2885 = vmatprep.subr.mxu0 0.0
    %2886 = vmatpush2.msra.mxu0 0.0
    %2887 = vmatprep.subr.mxu0 0.0
    %2888 = vmatpush2.msra.mxu0 0.0
    %2889 = vmatprep.subr.mxu0 0.0
    %2890 = vmatpush2.msra.mxu0 0.0
    %2891 = vmatprep.subr.mxu0 0.0
    %2892 = vmatpush2.msra.mxu0 0.0
    %2893 = vmatprep.mubr.f32.mxu0 0.0
    %2894 = vmatmul.mubr.f32.gmra.mxu0 0.0
    %v2895 = vpop.f32.mrf.mxu0
    %v2896 = vadd.f32 0.0, %v2895
    %v2897 = vpop.f32.mrf.mxu0
    %v2898 = vadd.f32 0.0, %v2897
    %2899 = vdwg.mxu0
    %2900 = vmatprep.subr.mxu0 %v463
    %2901 = vmatpush1.msra.mxu0 %v462
    %2902 = vmatprep.subr.mxu0 %v459
    %2903 = vmatpush1.msra.mxu0 %v458
    %2904 = vmatprep.subr.mxu0 %v455
    %2905 = vmatpush1.msra.mxu0 %v454
    %2906 = vmatprep.subr.mxu0 %v451
    %2907 = vmatpush1.msra.mxu0 %v450
    %2908 = vmatprep.subr.mxu0 %v447
    %2909 = vmatpush1.msra.mxu0 %v446
    %2910 = vmatprep.subr.mxu0 %v443
    %2911 = vmatpush1.msra.mxu0 %v442
    %2912 = vmatprep.subr.mxu0 %v439
    %2913 = vmatpush1.msra.mxu0 %v438
    %2914 = vmatprep.subr.mxu0 %v435
    %2915 = vmatpush1.msra.mxu0 %v434
    %2916 = vmatprep.subr.mxu0 %v431
    %2917 = vmatpush1.msra.mxu0 %v430
    %2918 = vmatprep.subr.mxu0 %v427
    %2919 = vmatpush1.msra.mxu0 %v426
    %2920 = vmatprep.subr.mxu0 %v423
    %2921 = vmatpush1.msra.mxu0 %v422
    %2922 = vmatprep.subr.mxu0 %v419
    %2923 = vmatpush1.msra.mxu0 %v418
    %2924 = vmatprep.subr.mxu0 %v415
    %2925 = vmatpush1.msra.mxu0 %v414
    %2926 = vmatprep.subr.mxu0 %v411
    %2927 = vmatpush1.msra.mxu0 %v410
    %2928 = vmatprep.subr.mxu0 %v407
    %2929 = vmatpush1.msra.mxu0 %v406
    %2930 = vmatprep.subr.mxu0 %v403
    %2931 = vmatpush1.msra.mxu0 %v402
    %2932 = vmatprep.subr.mxu0 0.0
    %2933 = vmatpush2.msra.mxu0 0.0
    %2934 = vmatprep.subr.mxu0 0.0
    %2935 = vmatpush2.msra.mxu0 0.0
    %2936 = vmatprep.subr.mxu0 0.0
    %2937 = vmatpush2.msra.mxu0 0.0
    %2938 = vmatprep.subr.mxu0 0.0
    %2939 = vmatpush2.msra.mxu0 0.0
    %2940 = vmatprep.subr.mxu0 0.0
    %2941 = vmatpush2.msra.mxu0 0.0
    %2942 = vmatprep.subr.mxu0 0.0
    %2943 = vmatpush2.msra.mxu0 0.0
    %2944 = vmatprep.subr.mxu0 0.0
    %2945 = vmatpush2.msra.mxu0 0.0
    %2946 = vmatprep.subr.mxu0 0.0
    %2947 = vmatpush2.msra.mxu0 0.0
    %2948 = vmatprep.subr.mxu0 0.0
    %2949 = vmatpush2.msra.mxu0 0.0
    %2950 = vmatprep.subr.mxu0 0.0
    %2951 = vmatpush2.msra.mxu0 0.0
    %2952 = vmatprep.subr.mxu0 0.0
    %2953 = vmatpush2.msra.mxu0 0.0
    %2954 = vmatprep.subr.mxu0 0.0
    %2955 = vmatpush2.msra.mxu0 0.0
    %2956 = vmatprep.subr.mxu0 0.0
    %2957 = vmatpush2.msra.mxu0 0.0
    %2958 = vmatprep.subr.mxu0 0.0
    %2959 = vmatpush2.msra.mxu0 0.0
    %2960 = vmatprep.subr.mxu0 0.0
    %2961 = vmatpush2.msra.mxu0 0.0
    %2962 = vmatprep.subr.mxu0 0.0
    %2963 = vmatpush2.msra.mxu0 0.0
    %2964 = vmatprep.mubr.f32.mxu0 0.0
    %2965 = vmatmul.mubr.f32.gmra.mxu0 0.0
    %v2966 = vpop.f32.mrf.mxu0
    %v2967 = vadd.f32 0.0, %v2966
    %v2968 = vpop.f32.mrf.mxu0
    %v2969 = vadd.f32 0.0, %v2968
    %2970 = vdwg.mxu0
    %2971 = vmatprep.subr.mxu0 %v269
    %2972 = vmatpush1.msra.mxu0 %v268
    %2973 = vmatprep.subr.mxu0 %v265
    %2974 = vmatpush1.msra.mxu0 %v264
    %2975 = vmatprep.subr.mxu0 %v261
    %2976 = vmatpush1.msra.mxu0 %v260
    %2977 = vmatprep.subr.mxu0 %v257
    %2978 = vmatpush1.msra.mxu0 %v256
    %2979 = vmatprep.subr.mxu0 %v253
    %2980 = vmatpush1.msra.mxu0 %v252
    %2981 = vmatprep.subr.mxu0 %v249
    %2982 = vmatpush1.msra.mxu0 %v248
    %2983 = vmatprep.subr.mxu0 %v245
    %2984 = vmatpush1.msra.mxu0 %v244
    %2985 = vmatprep.subr.mxu0 %v241
    %2986 = vmatpush1.msra.mxu0 %v240
    %2987 = vmatprep.subr.mxu0 %v237
    %2988 = vmatpush1.msra.mxu0 %v236
    %2989 = vmatprep.subr.mxu0 %v233
    %2990 = vmatpush1.msra.mxu0 %v232
    %2991 = vmatprep.subr.mxu0 %v229
    %2992 = vmatpush1.msra.mxu0 %v228
    %2993 = vmatprep.subr.mxu0 %v225
    %2994 = vmatpush1.msra.mxu0 %v224
    %2995 = vmatprep.subr.mxu0 %v221
    %2996 = vmatpush1.msra.mxu0 %v220
    %2997 = vmatprep.subr.mxu0 %v217
    %2998 = vmatpush1.msra.mxu0 %v216
    %2999 = vmatprep.subr.mxu0 %v213
    %3000 = vmatpush1.msra.mxu0 %v212
    %3001 = vmatprep.subr.mxu0 %v209
    %3002 = vmatpush1.msra.mxu0 %v208
    %3003 = vmatprep.subr.mxu0 0.0
    %3004 = vmatpush2.msra.mxu0 0.0
    %3005 = vmatprep.subr.mxu0 0.0
    %3006 = vmatpush2.msra.mxu0 0.0
    %3007 = vmatprep.subr.mxu0 0.0
    %3008 = vmatpush2.msra.mxu0 0.0
    %3009 = vmatprep.subr.mxu0 0.0
    %3010 = vmatpush2.msra.mxu0 0.0
    %3011 = vmatprep.subr.mxu0 0.0
    %3012 = vmatpush2.msra.mxu0 0.0
    %3013 = vmatprep.subr.mxu0 0.0
    %3014 = vmatpush2.msra.mxu0 0.0
    %3015 = vmatprep.subr.mxu0 0.0
    %3016 = vmatpush2.msra.mxu0 0.0
    %3017 = vmatprep.subr.mxu0 0.0
    %3018 = vmatpush2.msra.mxu0 0.0
    %3019 = vmatprep.subr.mxu0 0.0
    %3020 = vmatpush2.msra.mxu0 0.0
    %3021 = vmatprep.subr.mxu0 0.0
    %3022 = vmatpush2.msra.mxu0 0.0
    %3023 = vmatprep.subr.mxu0 0.0
    %3024 = vmatpush2.msra.mxu0 0.0
    %3025 = vmatprep.subr.mxu0 0.0
    %3026 = vmatpush2.msra.mxu0 0.0
    %3027 = vmatprep.subr.mxu0 0.0
    %3028 = vmatpush2.msra.mxu0 0.0
    %3029 = vmatprep.subr.mxu0 0.0
    %3030 = vmatpush2.msra.mxu0 0.0
    %3031 = vmatprep.subr.mxu0 0.0
    %3032 = vmatpush2.msra.mxu0 0.0
    %3033 = vmatprep.subr.mxu0 0.0
    %3034 = vmatpush2.msra.mxu0 0.0
    %3035 = vmatprep.mubr.f32.mxu0 0.0
    %3036 = vmatmul.mubr.f32.gmra.mxu0 %v2346
    %v3037 = vpop.f32.mrf.mxu0
    %v3038 = vadd.f32 %v2896, %v3037
    %v3039 = vpop.f32.mrf.mxu0
    %v3040 = vadd.f32 %v2898, %v3039
    %3041 = vdwg.mxu0
    %3042 = vmatprep.subr.mxu0 %v271
    %3043 = vmatpush1.msra.mxu0 %v270
    %3044 = vmatprep.subr.mxu0 %v267
    %3045 = vmatpush1.msra.mxu0 %v266
    %3046 = vmatprep.subr.mxu0 %v263
    %3047 = vmatpush1.msra.mxu0 %v262
    %3048 = vmatprep.subr.mxu0 %v259
    %3049 = vmatpush1.msra.mxu0 %v258
    %3050 = vmatprep.subr.mxu0 %v255
    %3051 = vmatpush1.msra.mxu0 %v254
    %3052 = vmatprep.subr.mxu0 %v251
    %3053 = vmatpush1.msra.mxu0 %v250
    %3054 = vmatprep.subr.mxu0 %v247
    %3055 = vmatpush1.msra.mxu0 %v246
    %3056 = vmatprep.subr.mxu0 %v243
    %3057 = vmatpush1.msra.mxu0 %v242
    %3058 = vmatprep.subr.mxu0 %v239
    %3059 = vmatpush1.msra.mxu0 %v238
    %3060 = vmatprep.subr.mxu0 %v235
    %3061 = vmatpush1.msra.mxu0 %v234
    %3062 = vmatprep.subr.mxu0 %v231
    %3063 = vmatpush1.msra.mxu0 %v230
    %3064 = vmatprep.subr.mxu0 %v227
    %3065 = vmatpush1.msra.mxu0 %v226
    %3066 = vmatprep.subr.mxu0 %v223
    %3067 = vmatpush1.msra.mxu0 %v222
    %3068 = vmatprep.subr.mxu0 %v219
    %3069 = vmatpush1.msra.mxu0 %v218
    %3070 = vmatprep.subr.mxu0 %v215
    %3071 = vmatpush1.msra.mxu0 %v214
    %3072 = vmatprep.subr.mxu0 %v211
    %3073 = vmatpush1.msra.mxu0 %v210
    %3074 = vmatprep.subr.mxu0 0.0
    %3075 = vmatpush2.msra.mxu0 0.0
    %3076 = vmatprep.subr.mxu0 0.0
    %3077 = vmatpush2.msra.mxu0 0.0
    %3078 = vmatprep.subr.mxu0 0.0
    %3079 = vmatpush2.msra.mxu0 0.0
    %3080 = vmatprep.subr.mxu0 0.0
    %3081 = vmatpush2.msra.mxu0 0.0
    %3082 = vmatprep.subr.mxu0 0.0
    %3083 = vmatpush2.msra.mxu0 0.0
    %3084 = vmatprep.subr.mxu0 0.0
    %3085 = vmatpush2.msra.mxu0 0.0
    %3086 = vmatprep.subr.mxu0 0.0
    %3087 = vmatpush2.msra.mxu0 0.0
    %3088 = vmatprep.subr.mxu0 0.0
    %3089 = vmatpush2.msra.mxu0 0.0
    %3090 = vmatprep.subr.mxu0 0.0
    %3091 = vmatpush2.msra.mxu0 0.0
    %3092 = vmatprep.subr.mxu0 0.0
    %3093 = vmatpush2.msra.mxu0 0.0
    %3094 = vmatprep.subr.mxu0 0.0
    %3095 = vmatpush2.msra.mxu0 0.0
    %3096 = vmatprep.subr.mxu0 0.0
    %3097 = vmatpush2.msra.mxu0 0.0
    %3098 = vmatprep.subr.mxu0 0.0
    %3099 = vmatpush2.msra.mxu0 0.0
    %3100 = vmatprep.subr.mxu0 0.0
    %3101 = vmatpush2.msra.mxu0 0.0
    %3102 = vmatprep.subr.mxu0 0.0
    %3103 = vmatpush2.msra.mxu0 0.0
    %3104 = vmatprep.subr.mxu0 0.0
    %3105 = vmatpush2.msra.mxu0 0.0
    %3106 = vmatprep.mubr.f32.mxu0 0.0
    %3107 = vmatmul.mubr.f32.gmra.mxu0 %v2346
    %v3108 = vpop.f32.mrf.mxu0
    %v3109 = vadd.f32 %v2967, %v3108
    %v3110 = vpop.f32.mrf.mxu0
    %v3111 = vadd.f32 %v2969, %v3110
    %3112 = vdwg.mxu0
    %v3114 = vlaneseq
    %v3115 = vshrl.u32 %v3114, 7
    %v3116 = vsub.s32 0, %v3115
    %v3117 = vrot.slane %v466, %v3116
    %v3118 = vlaneseq
    %v3119 = vshrl.u32 %v3118, 7
    %v3120 = vsub.s32 1, %v3119
    %v3121 = vrot.slane %v466, %v3120
    %v3122 = vlaneseq
    %v3123 = vshrl.u32 %v3122, 7
    %v3124 = vsub.s32 2, %v3123
    %v3125 = vrot.slane %v466, %v3124
    %v3126 = vlaneseq
    %v3127 = vshrl.u32 %v3126, 7
    %v3128 = vsub.s32 3, %v3127
    %v3129 = vrot.slane %v466, %v3128
    %v3134 = vadd.f32 %v3038, %v3117
    %v3135 = vadd.f32 %v3040, %v3121
    %v3136 = vadd.f32 %v3109, %v3125
    %v3137 = vadd.f32 %v3111, %v3129
    %v3138 = vxor.u32 %v3134, 2147483648
    %v3139 = vmul.f32 %v3138, 1.442695
    %v3140 = vpow.pop %v3139
    %v3141 = vadd.f32 %v3140, 1.0
    %v3142 = vrcp.pop %v3141
    %v3143 = vmul.f32 1.0, %v3142
    %v3144 = vxor.u32 %v3135, 2147483648
    %v3145 = vmul.f32 %v3144, 1.442695
    %v3146 = vpow.pop %v3145
    %v3147 = vadd.f32 %v3146, 1.0
    %v3148 = vrcp.pop %v3147
    %v3149 = vmul.f32 1.0, %v3148
    %v3150 = vtanh.pop %v3136
    %v3151 = vxor.u32 %v3137, 2147483648
    %v3152 = vmul.f32 %v3151, 1.442695
    %v3153 = vpow.pop %v3152
    %v3154 = vadd.f32 %v3153, 1.0
    %v3155 = vrcp.pop %v3154
    %v3156 = vmul.f32 1.0, %v3155
    %v3157 = vmul.f32 %v3149, 0.0
    %v3158 = vmul.f32 %v3143, %v3150
    %v3159 = vadd.f32 %v3157, %v3158
    %v3160 = vtanh.pop %v3159
    %v3161 = vmul.f32 %v3156, %v3160
    %3162 = vmatprep.subr.mxu0 %v333
    %3163 = vmatpush1.msra.mxu0 %v332
    %3164 = vmatprep.subr.mxu0 %v329
    %3165 = vmatpush1.msra.mxu0 %v328
    %3166 = vmatprep.subr.mxu0 %v325
    %3167 = vmatpush1.msra.mxu0 %v324
    %3168 = vmatprep.subr.mxu0 %v321
    %3169 = vmatpush1.msra.mxu0 %v320
    %3170 = vmatprep.subr.mxu0 %v317
    %3171 = vmatpush1.msra.mxu0 %v316
    %3172 = vmatprep.subr.mxu0 %v313
    %3173 = vmatpush1.msra.mxu0 %v312
    %3174 = vmatprep.subr.mxu0 %v309
    %3175 = vmatpush1.msra.mxu0 %v308
    %3176 = vmatprep.subr.mxu0 %v305
    %3177 = vmatpush1.msra.mxu0 %v304
    %3178 = vmatprep.subr.mxu0 %v301
    %3179 = vmatpush1.msra.mxu0 %v300
    %3180 = vmatprep.subr.mxu0 %v297
    %3181 = vmatpush1.msra.mxu0 %v296
    %3182 = vmatprep.subr.mxu0 %v293
    %3183 = vmatpush1.msra.mxu0 %v292
    %3184 = vmatprep.subr.mxu0 %v289
    %3185 = vmatpush1.msra.mxu0 %v288
    %3186 = vmatprep.subr.mxu0 %v285
    %3187 = vmatpush1.msra.mxu0 %v284
    %3188 = vmatprep.subr.mxu0 %v281
    %3189 = vmatpush1.msra.mxu0 %v280
    %3190 = vmatprep.subr.mxu0 %v277
    %3191 = vmatpush1.msra.mxu0 %v276
    %3192 = vmatprep.subr.mxu0 %v273
    %3193 = vmatpush1.msra.mxu0 %v272
    %3194 = vmatprep.subr.mxu0 0.0
    %3195 = vmatpush2.msra.mxu0 0.0
    %3196 = vmatprep.subr.mxu0 0.0
    %3197 = vmatpush2.msra.mxu0 0.0
    %3198 = vmatprep.subr.mxu0 0.0
    %3199 = vmatpush2.msra.mxu0 0.0
    %3200 = vmatprep.subr.mxu0 0.0
    %3201 = vmatpush2.msra.mxu0 0.0
    %3202 = vmatprep.subr.mxu0 0.0
    %3203 = vmatpush2.msra.mxu0 0.0
    %3204 = vmatprep.subr.mxu0 0.0
    %3205 = vmatpush2.msra.mxu0 0.0
    %3206 = vmatprep.subr.mxu0 0.0
    %3207 = vmatpush2.msra.mxu0 0.0
    %3208 = vmatprep.subr.mxu0 0.0
    %3209 = vmatpush2.msra.mxu0 0.0
    %3210 = vmatprep.subr.mxu0 0.0
    %3211 = vmatpush2.msra.mxu0 0.0
    %3212 = vmatprep.subr.mxu0 0.0
    %3213 = vmatpush2.msra.mxu0 0.0
    %3214 = vmatprep.subr.mxu0 0.0
    %3215 = vmatpush2.msra.mxu0 0.0
    %3216 = vmatprep.subr.mxu0 0.0
    %3217 = vmatpush2.msra.mxu0 0.0
    %3218 = vmatprep.subr.mxu0 0.0
    %3219 = vmatpush2.msra.mxu0 0.0
    %3220 = vmatprep.subr.mxu0 0.0
    %3221 = vmatpush2.msra.mxu0 0.0
    %3222 = vmatprep.subr.mxu0 0.0
    %3223 = vmatpush2.msra.mxu0 0.0
    %3224 = vmatprep.subr.mxu0 0.0
    %3225 = vmatpush2.msra.mxu0 0.0
    %3226 = vmatprep.mubr.f32.mxu0 0.0
    %3227 = vmatmul.mubr.f32.gmra.mxu0 %v2516
    %v3228 = vpop.f32.mrf.mxu0
    %v3229 = vadd.f32 0.0, %v3228
    %v3230 = vpop.f32.mrf.mxu0
    %v3231 = vadd.f32 0.0, %v3230
    %3232 = vdwg.mxu0
    %3233 = vmatprep.subr.mxu0 %v335
    %3234 = vmatpush1.msra.mxu0 %v334
    %3235 = vmatprep.subr.mxu0 %v331
    %3236 = vmatpush1.msra.mxu0 %v330
    %3237 = vmatprep.subr.mxu0 %v327
    %3238 = vmatpush1.msra.mxu0 %v326
    %3239 = vmatprep.subr.mxu0 %v323
    %3240 = vmatpush1.msra.mxu0 %v322
    %3241 = vmatprep.subr.mxu0 %v319
    %3242 = vmatpush1.msra.mxu0 %v318
    %3243 = vmatprep.subr.mxu0 %v315
    %3244 = vmatpush1.msra.mxu0 %v314
    %3245 = vmatprep.subr.mxu0 %v311
    %3246 = vmatpush1.msra.mxu0 %v310
    %3247 = vmatprep.subr.mxu0 %v307
    %3248 = vmatpush1.msra.mxu0 %v306
    %3249 = vmatprep.subr.mxu0 %v303
    %3250 = vmatpush1.msra.mxu0 %v302
    %3251 = vmatprep.subr.mxu0 %v299
    %3252 = vmatpush1.msra.mxu0 %v298
    %3253 = vmatprep.subr.mxu0 %v295
    %3254 = vmatpush1.msra.mxu0 %v294
    %3255 = vmatprep.subr.mxu0 %v291
    %3256 = vmatpush1.msra.mxu0 %v290
    %3257 = vmatprep.subr.mxu0 %v287
    %3258 = vmatpush1.msra.mxu0 %v286
    %3259 = vmatprep.subr.mxu0 %v283
    %3260 = vmatpush1.msra.mxu0 %v282
    %3261 = vmatprep.subr.mxu0 %v279
    %3262 = vmatpush1.msra.mxu0 %v278
    %3263 = vmatprep.subr.mxu0 %v275
    %3264 = vmatpush1.msra.mxu0 %v274
    %3265 = vmatprep.subr.mxu0 0.0
    %3266 = vmatpush2.msra.mxu0 0.0
    %3267 = vmatprep.subr.mxu0 0.0
    %3268 = vmatpush2.msra.mxu0 0.0
    %3269 = vmatprep.subr.mxu0 0.0
    %3270 = vmatpush2.msra.mxu0 0.0
    %3271 = vmatprep.subr.mxu0 0.0
    %3272 = vmatpush2.msra.mxu0 0.0
    %3273 = vmatprep.subr.mxu0 0.0
    %3274 = vmatpush2.msra.mxu0 0.0
    %3275 = vmatprep.subr.mxu0 0.0
    %3276 = vmatpush2.msra.mxu0 0.0
    %3277 = vmatprep.subr.mxu0 0.0
    %3278 = vmatpush2.msra.mxu0 0.0
    %3279 = vmatprep.subr.mxu0 0.0
    %3280 = vmatpush2.msra.mxu0 0.0
    %3281 = vmatprep.subr.mxu0 0.0
    %3282 = vmatpush2.msra.mxu0 0.0
    %3283 = vmatprep.subr.mxu0 0.0
    %3284 = vmatpush2.msra.mxu0 0.0
    %3285 = vmatprep.subr.mxu0 0.0
    %3286 = vmatpush2.msra.mxu0 0.0
    %3287 = vmatprep.subr.mxu0 0.0
    %3288 = vmatpush2.msra.mxu0 0.0
    %3289 = vmatprep.subr.mxu0 0.0
    %3290 = vmatpush2.msra.mxu0 0.0
    %3291 = vmatprep.subr.mxu0 0.0
    %3292 = vmatpush2.msra.mxu0 0.0
    %3293 = vmatprep.subr.mxu0 0.0
    %3294 = vmatpush2.msra.mxu0 0.0
    %3295 = vmatprep.subr.mxu0 0.0
    %3296 = vmatpush2.msra.mxu0 0.0
    %3297 = vmatprep.mubr.f32.mxu0 0.0
    %3298 = vmatmul.mubr.f32.gmra.mxu0 %v2516
    %v3299 = vpop.f32.mrf.mxu0
    %v3300 = vadd.f32 0.0, %v3299
    %v3301 = vpop.f32.mrf.mxu0
    %v3302 = vadd.f32 0.0, %v3301
    %3303 = vdwg.mxu0
    %v3304 = vadd.f32 %v1019, %v3229
    %v3305 = vadd.f32 %v1021, %v3231
    %v3306 = vadd.f32 %v1090, %v3300
    %v3307 = vadd.f32 %v1092, %v3302
    %v3308 = vxor.u32 %v3304, 2147483648
    %v3309 = vmul.f32 %v3308, 1.442695
    %v3310 = vpow.pop %v3309
    %v3311 = vadd.f32 %v3310, 1.0
    %v3312 = vrcp.pop %v3311
    %v3313 = vmul.f32 1.0, %v3312
    %v3314 = vxor.u32 %v3305, 2147483648
    %v3315 = vmul.f32 %v3314, 1.442695
    %v3316 = vpow.pop %v3315
    %v3317 = vadd.f32 %v3316, 1.0
    %v3318 = vrcp.pop %v3317
    %v3319 = vmul.f32 1.0, %v3318
    %v3320 = vtanh.pop %v3306
    %v3321 = vxor.u32 %v3307, 2147483648
    %v3322 = vmul.f32 %v3321, 1.442695
    %v3323 = vpow.pop %v3322
    %v3324 = vadd.f32 %v3323, 1.0
    %v3325 = vrcp.pop %v3324
    %v3326 = vmul.f32 1.0, %v3325
    %v3327 = vmul.f32 %v3319, %v2514
    %v3328 = vmul.f32 %v3313, %v3320
    %v3329 = vadd.f32 %v3327, %v3328
    %v3330 = vtanh.pop %v3329
    %v3331 = vmul.f32 %v3326, %v3330
    %3332 = vmatprep.subr.mxu0 %v397
    %3333 = vmatpush1.msra.mxu0 %v396
    %3334 = vmatprep.subr.mxu0 %v393
    %3335 = vmatpush1.msra.mxu0 %v392
    %3336 = vmatprep.subr.mxu0 %v389
    %3337 = vmatpush1.msra.mxu0 %v388
    %3338 = vmatprep.subr.mxu0 %v385
    %3339 = vmatpush1.msra.mxu0 %v384
    %3340 = vmatprep.subr.mxu0 %v381
    %3341 = vmatpush1.msra.mxu0 %v380
    %3342 = vmatprep.subr.mxu0 %v377
    %3343 = vmatpush1.msra.mxu0 %v376
    %3344 = vmatprep.subr.mxu0 %v373
    %3345 = vmatpush1.msra.mxu0 %v372
    %3346 = vmatprep.subr.mxu0 %v369
    %3347 = vmatpush1.msra.mxu0 %v368
    %3348 = vmatprep.subr.mxu0 %v365
    %3349 = vmatpush1.msra.mxu0 %v364
    %3350 = vmatprep.subr.mxu0 %v361
    %3351 = vmatpush1.msra.mxu0 %v360
    %3352 = vmatprep.subr.mxu0 %v357
    %3353 = vmatpush1.msra.mxu0 %v356
    %3354 = vmatprep.subr.mxu0 %v353
    %3355 = vmatpush1.msra.mxu0 %v352
    %3356 = vmatprep.subr.mxu0 %v349
    %3357 = vmatpush1.msra.mxu0 %v348
    %3358 = vmatprep.subr.mxu0 %v345
    %3359 = vmatpush1.msra.mxu0 %v344
    %3360 = vmatprep.subr.mxu0 %v341
    %3361 = vmatpush1.msra.mxu0 %v340
    %3362 = vmatprep.subr.mxu0 %v337
    %3363 = vmatpush1.msra.mxu0 %v336
    %3364 = vmatprep.subr.mxu0 0.0
    %3365 = vmatpush2.msra.mxu0 0.0
    %3366 = vmatprep.subr.mxu0 0.0
    %3367 = vmatpush2.msra.mxu0 0.0
    %3368 = vmatprep.subr.mxu0 0.0
    %3369 = vmatpush2.msra.mxu0 0.0
    %3370 = vmatprep.subr.mxu0 0.0
    %3371 = vmatpush2.msra.mxu0 0.0
    %3372 = vmatprep.subr.mxu0 0.0
    %3373 = vmatpush2.msra.mxu0 0.0
    %3374 = vmatprep.subr.mxu0 0.0
    %3375 = vmatpush2.msra.mxu0 0.0
    %3376 = vmatprep.subr.mxu0 0.0
    %3377 = vmatpush2.msra.mxu0 0.0
    %3378 = vmatprep.subr.mxu0 0.0
    %3379 = vmatpush2.msra.mxu0 0.0
    %3380 = vmatprep.subr.mxu0 0.0
    %3381 = vmatpush2.msra.mxu0 0.0
    %3382 = vmatprep.subr.mxu0 0.0
    %3383 = vmatpush2.msra.mxu0 0.0
    %3384 = vmatprep.subr.mxu0 0.0
    %3385 = vmatpush2.msra.mxu0 0.0
    %3386 = vmatprep.subr.mxu0 0.0
    %3387 = vmatpush2.msra.mxu0 0.0
    %3388 = vmatprep.subr.mxu0 0.0
    %3389 = vmatpush2.msra.mxu0 0.0
    %3390 = vmatprep.subr.mxu0 0.0
    %3391 = vmatpush2.msra.mxu0 0.0
    %3392 = vmatprep.subr.mxu0 0.0
    %3393 = vmatpush2.msra.mxu0 0.0
    %3394 = vmatprep.subr.mxu0 0.0
    %3395 = vmatpush2.msra.mxu0 0.0
    %3396 = vmatprep.mubr.f32.mxu0 0.0
    %3397 = vmatmul.mubr.f32.gmra.mxu0 %v2828
    %v3398 = vpop.f32.mrf.mxu0
    %v3399 = vadd.f32 0.0, %v3398
    %v3400 = vpop.f32.mrf.mxu0
    %v3401 = vadd.f32 0.0, %v3400
    %3402 = vdwg.mxu0
    %3403 = vmatprep.subr.mxu0 %v399
    %3404 = vmatpush1.msra.mxu0 %v398
    %3405 = vmatprep.subr.mxu0 %v395
    %3406 = vmatpush1.msra.mxu0 %v394
    %3407 = vmatprep.subr.mxu0 %v391
    %3408 = vmatpush1.msra.mxu0 %v390
    %3409 = vmatprep.subr.mxu0 %v387
    %3410 = vmatpush1.msra.mxu0 %v386
    %3411 = vmatprep.subr.mxu0 %v383
    %3412 = vmatpush1.msra.mxu0 %v382
    %3413 = vmatprep.subr.mxu0 %v379
    %3414 = vmatpush1.msra.mxu0 %v378
    %3415 = vmatprep.subr.mxu0 %v375
    %3416 = vmatpush1.msra.mxu0 %v374
    %3417 = vmatprep.subr.mxu0 %v371
    %3418 = vmatpush1.msra.mxu0 %v370
    %3419 = vmatprep.subr.mxu0 %v367
    %3420 = vmatpush1.msra.mxu0 %v366
    %3421 = vmatprep.subr.mxu0 %v363
    %3422 = vmatpush1.msra.mxu0 %v362
    %3423 = vmatprep.subr.mxu0 %v359
    %3424 = vmatpush1.msra.mxu0 %v358
    %3425 = vmatprep.subr.mxu0 %v355
    %3426 = vmatpush1.msra.mxu0 %v354
    %3427 = vmatprep.subr.mxu0 %v351
    %3428 = vmatpush1.msra.mxu0 %v350
    %3429 = vmatprep.subr.mxu0 %v347
    %3430 = vmatpush1.msra.mxu0 %v346
    %3431 = vmatprep.subr.mxu0 %v343
    %3432 = vmatpush1.msra.mxu0 %v342
    %3433 = vmatprep.subr.mxu0 %v339
    %3434 = vmatpush1.msra.mxu0 %v338
    %3435 = vmatprep.subr.mxu0 0.0
    %3436 = vmatpush2.msra.mxu0 0.0
    %3437 = vmatprep.subr.mxu0 0.0
    %3438 = vmatpush2.msra.mxu0 0.0
    %3439 = vmatprep.subr.mxu0 0.0
    %3440 = vmatpush2.msra.mxu0 0.0
    %3441 = vmatprep.subr.mxu0 0.0
    %3442 = vmatpush2.msra.mxu0 0.0
    %3443 = vmatprep.subr.mxu0 0.0
    %3444 = vmatpush2.msra.mxu0 0.0
    %3445 = vmatprep.subr.mxu0 0.0
    %3446 = vmatpush2.msra.mxu0 0.0
    %3447 = vmatprep.subr.mxu0 0.0
    %3448 = vmatpush2.msra.mxu0 0.0
    %3449 = vmatprep.subr.mxu0 0.0
    %3450 = vmatpush2.msra.mxu0 0.0
    %3451 = vmatprep.subr.mxu0 0.0
    %3452 = vmatpush2.msra.mxu0 0.0
    %3453 = vmatprep.subr.mxu0 0.0
    %3454 = vmatpush2.msra.mxu0 0.0
    %3455 = vmatprep.subr.mxu0 0.0
    %3456 = vmatpush2.msra.mxu0 0.0
    %3457 = vmatprep.subr.mxu0 0.0
    %3458 = vmatpush2.msra.mxu0 0.0
    %3459 = vmatprep.subr.mxu0 0.0
    %3460 = vmatpush2.msra.mxu0 0.0
    %3461 = vmatprep.subr.mxu0 0.0
    %3462 = vmatpush2.msra.mxu0 0.0
    %3463 = vmatprep.subr.mxu0 0.0
    %3464 = vmatpush2.msra.mxu0 0.0
    %3465 = vmatprep.subr.mxu0 0.0
    %3466 = vmatpush2.msra.mxu0 0.0
    %3467 = vmatprep.mubr.f32.mxu0 0.0
    %3468 = vmatmul.mubr.f32.gmra.mxu0 %v2828
    %v3469 = vpop.f32.mrf.mxu0
    %v3470 = vadd.f32 0.0, %v3469
    %v3471 = vpop.f32.mrf.mxu0
    %v3472 = vadd.f32 0.0, %v3471
    %3473 = vdwg.mxu0
    %3474 = vmatprep.subr.mxu0 %v205
    %3475 = vmatpush1.msra.mxu0 %v204
    %3476 = vmatprep.subr.mxu0 %v201
    %3477 = vmatpush1.msra.mxu0 %v200
    %3478 = vmatprep.subr.mxu0 %v197
    %3479 = vmatpush1.msra.mxu0 %v196
    %3480 = vmatprep.subr.mxu0 %v193
    %3481 = vmatpush1.msra.mxu0 %v192
    %3482 = vmatprep.subr.mxu0 %v189
    %3483 = vmatpush1.msra.mxu0 %v188
    %3484 = vmatprep.subr.mxu0 %v185
    %3485 = vmatpush1.msra.mxu0 %v184
    %3486 = vmatprep.subr.mxu0 %v181
    %3487 = vmatpush1.msra.mxu0 %v180
    %3488 = vmatprep.subr.mxu0 %v177
    %3489 = vmatpush1.msra.mxu0 %v176
    %3490 = vmatprep.subr.mxu0 %v173
    %3491 = vmatpush1.msra.mxu0 %v172
    %3492 = vmatprep.subr.mxu0 %v169
    %3493 = vmatpush1.msra.mxu0 %v168
    %3494 = vmatprep.subr.mxu0 %v165
    %3495 = vmatpush1.msra.mxu0 %v164
    %3496 = vmatprep.subr.mxu0 %v161
    %3497 = vmatpush1.msra.mxu0 %v160
    %3498 = vmatprep.subr.mxu0 %v157
    %3499 = vmatpush1.msra.mxu0 %v156
    %3500 = vmatprep.subr.mxu0 %v153
    %3501 = vmatpush1.msra.mxu0 %v152
    %3502 = vmatprep.subr.mxu0 %v149
    %3503 = vmatpush1.msra.mxu0 %v148
    %3504 = vmatprep.subr.mxu0 %v145
    %3505 = vmatpush1.msra.mxu0 %v144
    %3506 = vmatprep.subr.mxu0 0.0
    %3507 = vmatpush2.msra.mxu0 0.0
    %3508 = vmatprep.subr.mxu0 0.0
    %3509 = vmatpush2.msra.mxu0 0.0
    %3510 = vmatprep.subr.mxu0 0.0
    %3511 = vmatpush2.msra.mxu0 0.0
    %3512 = vmatprep.subr.mxu0 0.0
    %3513 = vmatpush2.msra.mxu0 0.0
    %3514 = vmatprep.subr.mxu0 0.0
    %3515 = vmatpush2.msra.mxu0 0.0
    %3516 = vmatprep.subr.mxu0 0.0
    %3517 = vmatpush2.msra.mxu0 0.0
    %3518 = vmatprep.subr.mxu0 0.0
    %3519 = vmatpush2.msra.mxu0 0.0
    %3520 = vmatprep.subr.mxu0 0.0
    %3521 = vmatpush2.msra.mxu0 0.0
    %3522 = vmatprep.subr.mxu0 0.0
    %3523 = vmatpush2.msra.mxu0 0.0
    %3524 = vmatprep.subr.mxu0 0.0
    %3525 = vmatpush2.msra.mxu0 0.0
    %3526 = vmatprep.subr.mxu0 0.0
    %3527 = vmatpush2.msra.mxu0 0.0
    %3528 = vmatprep.subr.mxu0 0.0
    %3529 = vmatpush2.msra.mxu0 0.0
    %3530 = vmatprep.subr.mxu0 0.0
    %3531 = vmatpush2.msra.mxu0 0.0
    %3532 = vmatprep.subr.mxu0 0.0
    %3533 = vmatpush2.msra.mxu0 0.0
    %3534 = vmatprep.subr.mxu0 0.0
    %3535 = vmatpush2.msra.mxu0 0.0
    %3536 = vmatprep.subr.mxu0 0.0
    %3537 = vmatpush2.msra.mxu0 0.0
    %3538 = vmatprep.mubr.f32.mxu0 0.0
    %3539 = vmatmul.mubr.f32.gmra.mxu0 %v2516
    %v3540 = vpop.f32.mrf.mxu0
    %v3541 = vadd.f32 %v3399, %v3540
    %v3542 = vpop.f32.mrf.mxu0
    %v3543 = vadd.f32 %v3401, %v3542
    %3544 = vdwg.mxu0
    %3545 = vmatprep.subr.mxu0 %v207
    %3546 = vmatpush1.msra.mxu0 %v206
    %3547 = vmatprep.subr.mxu0 %v203
    %3548 = vmatpush1.msra.mxu0 %v202
    %3549 = vmatprep.subr.mxu0 %v199
    %3550 = vmatpush1.msra.mxu0 %v198
    %3551 = vmatprep.subr.mxu0 %v195
    %3552 = vmatpush1.msra.mxu0 %v194
    %3553 = vmatprep.subr.mxu0 %v191
    %3554 = vmatpush1.msra.mxu0 %v190
    %3555 = vmatprep.subr.mxu0 %v187
    %3556 = vmatpush1.msra.mxu0 %v186
    %3557 = vmatprep.subr.mxu0 %v183
    %3558 = vmatpush1.msra.mxu0 %v182
    %3559 = vmatprep.subr.mxu0 %v179
    %3560 = vmatpush1.msra.mxu0 %v178
    %3561 = vmatprep.subr.mxu0 %v175
    %3562 = vmatpush1.msra.mxu0 %v174
    %3563 = vmatprep.subr.mxu0 %v171
    %3564 = vmatpush1.msra.mxu0 %v170
    %3565 = vmatprep.subr.mxu0 %v167
    %3566 = vmatpush1.msra.mxu0 %v166
    %3567 = vmatprep.subr.mxu0 %v163
    %3568 = vmatpush1.msra.mxu0 %v162
    %3569 = vmatprep.subr.mxu0 %v159
    %3570 = vmatpush1.msra.mxu0 %v158
    %3571 = vmatprep.subr.mxu0 %v155
    %3572 = vmatpush1.msra.mxu0 %v154
    %3573 = vmatprep.subr.mxu0 %v151
    %3574 = vmatpush1.msra.mxu0 %v150
    %3575 = vmatprep.subr.mxu0 %v147
    %3576 = vmatpush1.msra.mxu0 %v146
    %3577 = vmatprep.subr.mxu0 0.0
    %3578 = vmatpush2.msra.mxu0 0.0
    %3579 = vmatprep.subr.mxu0 0.0
    %3580 = vmatpush2.msra.mxu0 0.0
    %3581 = vmatprep.subr.mxu0 0.0
    %3582 = vmatpush2.msra.mxu0 0.0
    %3583 = vmatprep.subr.mxu0 0.0
    %3584 = vmatpush2.msra.mxu0 0.0
    %3585 = vmatprep.subr.mxu0 0.0
    %3586 = vmatpush2.msra.mxu0 0.0
    %3587 = vmatprep.subr.mxu0 0.0
    %3588 = vmatpush2.msra.mxu0 0.0
    %3589 = vmatprep.subr.mxu0 0.0
    %3590 = vmatpush2.msra.mxu0 0.0
    %3591 = vmatprep.subr.mxu0 0.0
    %3592 = vmatpush2.msra.mxu0 0.0
    %3593 = vmatprep.subr.mxu0 0.0
    %3594 = vmatpush2.msra.mxu0 0.0
    %3595 = vmatprep.subr.mxu0 0.0
    %3596 = vmatpush2.msra.mxu0 0.0
    %3597 = vmatprep.subr.mxu0 0.0
    %3598 = vmatpush2.msra.mxu0 0.0
    %3599 = vmatprep.subr.mxu0 0.0
    %3600 = vmatpush2.msra.mxu0 0.0
    %3601 = vmatprep.subr.mxu0 0.0
    %3602 = vmatpush2.msra.mxu0 0.0
    %3603 = vmatprep.subr.mxu0 0.0
    %3604 = vmatpush2.msra.mxu0 0.0
    %3605 = vmatprep.subr.mxu0 0.0
    %3606 = vmatpush2.msra.mxu0 0.0
    %3607 = vmatprep.subr.mxu0 0.0
    %3608 = vmatpush2.msra.mxu0 0.0
    %3609 = vmatprep.mubr.f32.mxu0 0.0
    %3610 = vmatmul.mubr.f32.gmra.mxu0 %v2516
    %v3611 = vpop.f32.mrf.mxu0
    %v3612 = vadd.f32 %v3470, %v3611
    %v3613 = vpop.f32.mrf.mxu0
    %v3614 = vadd.f32 %v3472, %v3613
    %3615 = vdwg.mxu0
    %v3616 = vadd.f32 %v3541, %v2302
    %v3617 = vadd.f32 %v3543, %v2306
    %v3618 = vadd.f32 %v3612, %v2310
    %v3619 = vadd.f32 %v3614, %v2314
    %v3620 = vxor.u32 %v3616, 2147483648
    %v3621 = vmul.f32 %v3620, 1.442695
    %v3622 = vpow.pop %v3621
    %v3623 = vadd.f32 %v3622, 1.0
    %v3624 = vrcp.pop %v3623
    %v3625 = vmul.f32 1.0, %v3624
    %v3626 = vxor.u32 %v3617, 2147483648
    %v3627 = vmul.f32 %v3626, 1.442695
    %v3628 = vpow.pop %v3627
    %v3629 = vadd.f32 %v3628, 1.0
    %v3630 = vrcp.pop %v3629
    %v3631 = vmul.f32 1.0, %v3630
    %v3632 = vtanh.pop %v3618
    %v3633 = vxor.u32 %v3619, 2147483648
    %v3634 = vmul.f32 %v3633, 1.442695
    %v3635 = vpow.pop %v3634
    %v3636 = vadd.f32 %v3635, 1.0
    %v3637 = vrcp.pop %v3636
    %v3638 = vmul.f32 1.0, %v3637
    %v3639 = vmul.f32 %v3631, %v2826
    %v3640 = vmul.f32 %v3625, %v3632
    %v3641 = vadd.f32 %v3639, %v3640
    %v3642 = vtanh.pop %v3641
    %v3643 = vmul.f32 %v3638, %v3642
    %3644 = vmatprep.subr.mxu0 %v461
    %3645 = vmatpush1.msra.mxu0 %v460
    %3646 = vmatprep.subr.mxu0 %v457
    %3647 = vmatpush1.msra.mxu0 %v456
    %3648 = vmatprep.subr.mxu0 %v453
    %3649 = vmatpush1.msra.mxu0 %v452
    %3650 = vmatprep.subr.mxu0 %v449
    %3651 = vmatpush1.msra.mxu0 %v448
    %3652 = vmatprep.subr.mxu0 %v445
    %3653 = vmatpush1.msra.mxu0 %v444
    %3654 = vmatprep.subr.mxu0 %v441
    %3655 = vmatpush1.msra.mxu0 %v440
    %3656 = vmatprep.subr.mxu0 %v437
    %3657 = vmatpush1.msra.mxu0 %v436
    %3658 = vmatprep.subr.mxu0 %v433
    %3659 = vmatpush1.msra.mxu0 %v432
    %3660 = vmatprep.subr.mxu0 %v429
    %3661 = vmatpush1.msra.mxu0 %v428
    %3662 = vmatprep.subr.mxu0 %v425
    %3663 = vmatpush1.msra.mxu0 %v424
    %3664 = vmatprep.subr.mxu0 %v421
    %3665 = vmatpush1.msra.mxu0 %v420
    %3666 = vmatprep.subr.mxu0 %v417
    %3667 = vmatpush1.msra.mxu0 %v416
    %3668 = vmatprep.subr.mxu0 %v413
    %3669 = vmatpush1.msra.mxu0 %v412
    %3670 = vmatprep.subr.mxu0 %v409
    %3671 = vmatpush1.msra.mxu0 %v408
    %3672 = vmatprep.subr.mxu0 %v405
    %3673 = vmatpush1.msra.mxu0 %v404
    %3674 = vmatprep.subr.mxu0 %v401
    %3675 = vmatpush1.msra.mxu0 %v400
    %3676 = vmatprep.subr.mxu0 0.0
    %3677 = vmatpush2.msra.mxu0 0.0
    %3678 = vmatprep.subr.mxu0 0.0
    %3679 = vmatpush2.msra.mxu0 0.0
    %3680 = vmatprep.subr.mxu0 0.0
    %3681 = vmatpush2.msra.mxu0 0.0
    %3682 = vmatprep.subr.mxu0 0.0
    %3683 = vmatpush2.msra.mxu0 0.0
    %3684 = vmatprep.subr.mxu0 0.0
    %3685 = vmatpush2.msra.mxu0 0.0
    %3686 = vmatprep.subr.mxu0 0.0
    %3687 = vmatpush2.msra.mxu0 0.0
    %3688 = vmatprep.subr.mxu0 0.0
    %3689 = vmatpush2.msra.mxu0 0.0
    %3690 = vmatprep.subr.mxu0 0.0
    %3691 = vmatpush2.msra.mxu0 0.0
    %3692 = vmatprep.subr.mxu0 0.0
    %3693 = vmatpush2.msra.mxu0 0.0
    %3694 = vmatprep.subr.mxu0 0.0
    %3695 = vmatpush2.msra.mxu0 0.0
    %3696 = vmatprep.subr.mxu0 0.0
    %3697 = vmatpush2.msra.mxu0 0.0
    %3698 = vmatprep.subr.mxu0 0.0
    %3699 = vmatpush2.msra.mxu0 0.0
    %3700 = vmatprep.subr.mxu0 0.0
    %3701 = vmatpush2.msra.mxu0 0.0
    %3702 = vmatprep.subr.mxu0 0.0
    %3703 = vmatpush2.msra.mxu0 0.0
    %3704 = vmatprep.subr.mxu0 0.0
    %3705 = vmatpush2.msra.mxu0 0.0
    %3706 = vmatprep.subr.mxu0 0.0
    %3707 = vmatpush2.msra.mxu0 0.0
    %3708 = vmatprep.mubr.f32.mxu0 0.0
    %3709 = vmatmul.mubr.f32.gmra.mxu0 %v3161
    %v3710 = vpop.f32.mrf.mxu0
    %v3711 = vadd.f32 0.0, %v3710
    %v3712 = vpop.f32.mrf.mxu0
    %v3713 = vadd.f32 0.0, %v3712
    %3714 = vdwg.mxu0
    %3715 = vmatprep.subr.mxu0 %v463
    %3716 = vmatpush1.msra.mxu0 %v462
    %3717 = vmatprep.subr.mxu0 %v459
    %3718 = vmatpush1.msra.mxu0 %v458
    %3719 = vmatprep.subr.mxu0 %v455
    %3720 = vmatpush1.msra.mxu0 %v454
    %3721 = vmatprep.subr.mxu0 %v451
    %3722 = vmatpush1.msra.mxu0 %v450
    %3723 = vmatprep.subr.mxu0 %v447
    %3724 = vmatpush1.msra.mxu0 %v446
    %3725 = vmatprep.subr.mxu0 %v443
    %3726 = vmatpush1.msra.mxu0 %v442
    %3727 = vmatprep.subr.mxu0 %v439
    %3728 = vmatpush1.msra.mxu0 %v438
    %3729 = vmatprep.subr.mxu0 %v435
    %3730 = vmatpush1.msra.mxu0 %v434
    %3731 = vmatprep.subr.mxu0 %v431
    %3732 = vmatpush1.msra.mxu0 %v430
    %3733 = vmatprep.subr.mxu0 %v427
    %3734 = vmatpush1.msra.mxu0 %v426
    %3735 = vmatprep.subr.mxu0 %v423
    %3736 = vmatpush1.msra.mxu0 %v422
    %3737 = vmatprep.subr.mxu0 %v419
    %3738 = vmatpush1.msra.mxu0 %v418
    %3739 = vmatprep.subr.mxu0 %v415
    %3740 = vmatpush1.msra.mxu0 %v414
    %3741 = vmatprep.subr.mxu0 %v411
    %3742 = vmatpush1.msra.mxu0 %v410
    %3743 = vmatprep.subr.mxu0 %v407
    %3744 = vmatpush1.msra.mxu0 %v406
    %3745 = vmatprep.subr.mxu0 %v403
    %3746 = vmatpush1.msra.mxu0 %v402
    %3747 = vmatprep.subr.mxu0 0.0
    %3748 = vmatpush2.msra.mxu0 0.0
    %3749 = vmatprep.subr.mxu0 0.0
    %3750 = vmatpush2.msra.mxu0 0.0
    %3751 = vmatprep.subr.mxu0 0.0
    %3752 = vmatpush2.msra.mxu0 0.0
    %3753 = vmatprep.subr.mxu0 0.0
    %3754 = vmatpush2.msra.mxu0 0.0
    %3755 = vmatprep.subr.mxu0 0.0
    %3756 = vmatpush2.msra.mxu0 0.0
    %3757 = vmatprep.subr.mxu0 0.0
    %3758 = vmatpush2.msra.mxu0 0.0
    %3759 = vmatprep.subr.mxu0 0.0
    %3760 = vmatpush2.msra.mxu0 0.0
    %3761 = vmatprep.subr.mxu0 0.0
    %3762 = vmatpush2.msra.mxu0 0.0
    %3763 = vmatprep.subr.mxu0 0.0
    %3764 = vmatpush2.msra.mxu0 0.0
    %3765 = vmatprep.subr.mxu0 0.0
    %3766 = vmatpush2.msra.mxu0 0.0
    %3767 = vmatprep.subr.mxu0 0.0
    %3768 = vmatpush2.msra.mxu0 0.0
    %3769 = vmatprep.subr.mxu0 0.0
    %3770 = vmatpush2.msra.mxu0 0.0
    %3771 = vmatprep.subr.mxu0 0.0
    %3772 = vmatpush2.msra.mxu0 0.0
    %3773 = vmatprep.subr.mxu0 0.0
    %3774 = vmatpush2.msra.mxu0 0.0
    %3775 = vmatprep.subr.mxu0 0.0
    %3776 = vmatpush2.msra.mxu0 0.0
    %3777 = vmatprep.subr.mxu0 0.0
    %3778 = vmatpush2.msra.mxu0 0.0
    %3779 = vmatprep.mubr.f32.mxu0 0.0
    %3780 = vmatmul.mubr.f32.gmra.mxu0 %v3161
    %v3781 = vpop.f32.mrf.mxu0
    %v3782 = vadd.f32 0.0, %v3781
    %v3783 = vpop.f32.mrf.mxu0
    %v3784 = vadd.f32 0.0, %v3783
    %3785 = vdwg.mxu0
    %3786 = vmatprep.subr.mxu0 %v269
    %3787 = vmatpush1.msra.mxu0 %v268
    %3788 = vmatprep.subr.mxu0 %v265
    %3789 = vmatpush1.msra.mxu0 %v264
    %3790 = vmatprep.subr.mxu0 %v261
    %3791 = vmatpush1.msra.mxu0 %v260
    %3792 = vmatprep.subr.mxu0 %v257
    %3793 = vmatpush1.msra.mxu0 %v256
    %3794 = vmatprep.subr.mxu0 %v253
    %3795 = vmatpush1.msra.mxu0 %v252
    %3796 = vmatprep.subr.mxu0 %v249
    %3797 = vmatpush1.msra.mxu0 %v248
    %3798 = vmatprep.subr.mxu0 %v245
    %3799 = vmatpush1.msra.mxu0 %v244
    %3800 = vmatprep.subr.mxu0 %v241
    %3801 = vmatpush1.msra.mxu0 %v240
    %3802 = vmatprep.subr.mxu0 %v237
    %3803 = vmatpush1.msra.mxu0 %v236
    %3804 = vmatprep.subr.mxu0 %v233
    %3805 = vmatpush1.msra.mxu0 %v232
    %3806 = vmatprep.subr.mxu0 %v229
    %3807 = vmatpush1.msra.mxu0 %v228
    %3808 = vmatprep.subr.mxu0 %v225
    %3809 = vmatpush1.msra.mxu0 %v224
    %3810 = vmatprep.subr.mxu0 %v221
    %3811 = vmatpush1.msra.mxu0 %v220
    %3812 = vmatprep.subr.mxu0 %v217
    %3813 = vmatpush1.msra.mxu0 %v216
    %3814 = vmatprep.subr.mxu0 %v213
    %3815 = vmatpush1.msra.mxu0 %v212
    %3816 = vmatprep.subr.mxu0 %v209
    %3817 = vmatpush1.msra.mxu0 %v208
    %3818 = vmatprep.subr.mxu0 0.0
    %3819 = vmatpush2.msra.mxu0 0.0
    %3820 = vmatprep.subr.mxu0 0.0
    %3821 = vmatpush2.msra.mxu0 0.0
    %3822 = vmatprep.subr.mxu0 0.0
    %3823 = vmatpush2.msra.mxu0 0.0
    %3824 = vmatprep.subr.mxu0 0.0
    %3825 = vmatpush2.msra.mxu0 0.0
    %3826 = vmatprep.subr.mxu0 0.0
    %3827 = vmatpush2.msra.mxu0 0.0
    %3828 = vmatprep.subr.mxu0 0.0
    %3829 = vmatpush2.msra.mxu0 0.0
    %3830 = vmatprep.subr.mxu0 0.0
    %3831 = vmatpush2.msra.mxu0 0.0
    %3832 = vmatprep.subr.mxu0 0.0
    %3833 = vmatpush2.msra.mxu0 0.0
    %3834 = vmatprep.subr.mxu0 0.0
    %3835 = vmatpush2.msra.mxu0 0.0
    %3836 = vmatprep.subr.mxu0 0.0
    %3837 = vmatpush2.msra.mxu0 0.0
    %3838 = vmatprep.subr.mxu0 0.0
    %3839 = vmatpush2.msra.mxu0 0.0
    %3840 = vmatprep.subr.mxu0 0.0
    %3841 = vmatpush2.msra.mxu0 0.0
    %3842 = vmatprep.subr.mxu0 0.0
    %3843 = vmatpush2.msra.mxu0 0.0
    %3844 = vmatprep.subr.mxu0 0.0
    %3845 = vmatpush2.msra.mxu0 0.0
    %3846 = vmatprep.subr.mxu0 0.0
    %3847 = vmatpush2.msra.mxu0 0.0
    %3848 = vmatprep.subr.mxu0 0.0
    %3849 = vmatpush2.msra.mxu0 0.0
    %3850 = vmatprep.mubr.f32.mxu0 0.0
    %3851 = vmatmul.mubr.f32.gmra.mxu0 %v2828
    %v3852 = vpop.f32.mrf.mxu0
    %v3853 = vadd.f32 %v3711, %v3852
    %v3854 = vpop.f32.mrf.mxu0
    %v3855 = vadd.f32 %v3713, %v3854
    %3856 = vdwg.mxu0
    %3857 = vmatprep.subr.mxu0 %v271
    %3858 = vmatpush1.msra.mxu0 %v270
    %3859 = vmatprep.subr.mxu0 %v267
    %3860 = vmatpush1.msra.mxu0 %v266
    %3861 = vmatprep.subr.mxu0 %v263
    %3862 = vmatpush1.msra.mxu0 %v262
    %3863 = vmatprep.subr.mxu0 %v259
    %3864 = vmatpush1.msra.mxu0 %v258
    %3865 = vmatprep.subr.mxu0 %v255
    %3866 = vmatpush1.msra.mxu0 %v254
    %3867 = vmatprep.subr.mxu0 %v251
    %3868 = vmatpush1.msra.mxu0 %v250
    %3869 = vmatprep.subr.mxu0 %v247
    %3870 = vmatpush1.msra.mxu0 %v246
    %3871 = vmatprep.subr.mxu0 %v243
    %3872 = vmatpush1.msra.mxu0 %v242
    %3873 = vmatprep.subr.mxu0 %v239
    %3874 = vmatpush1.msra.mxu0 %v238
    %3875 = vmatprep.subr.mxu0 %v235
    %3876 = vmatpush1.msra.mxu0 %v234
    %3877 = vmatprep.subr.mxu0 %v231
    %3878 = vmatpush1.msra.mxu0 %v230
    %3879 = vmatprep.subr.mxu0 %v227
    %3880 = vmatpush1.msra.mxu0 %v226
    %3881 = vmatprep.subr.mxu0 %v223
    %3882 = vmatpush1.msra.mxu0 %v222
    %3883 = vmatprep.subr.mxu0 %v219
    %3884 = vmatpush1.msra.mxu0 %v218
    %3885 = vmatprep.subr.mxu0 %v215
    %3886 = vmatpush1.msra.mxu0 %v214
    %3887 = vmatprep.subr.mxu0 %v211
    %3888 = vmatpush1.msra.mxu0 %v210
    %3889 = vmatprep.subr.mxu0 0.0
    %3890 = vmatpush2.msra.mxu0 0.0
    %3891 = vmatprep.subr.mxu0 0.0
    %3892 = vmatpush2.msra.mxu0 0.0
    %3893 = vmatprep.subr.mxu0 0.0
    %3894 = vmatpush2.msra.mxu0 0.0
    %3895 = vmatprep.subr.mxu0 0.0
    %3896 = vmatpush2.msra.mxu0 0.0
    %3897 = vmatprep.subr.mxu0 0.0
    %3898 = vmatpush2.msra.mxu0 0.0
    %3899 = vmatprep.subr.mxu0 0.0
    %3900 = vmatpush2.msra.mxu0 0.0
    %3901 = vmatprep.subr.mxu0 0.0
    %3902 = vmatpush2.msra.mxu0 0.0
    %3903 = vmatprep.subr.mxu0 0.0
    %3904 = vmatpush2.msra.mxu0 0.0
    %3905 = vmatprep.subr.mxu0 0.0
    %3906 = vmatpush2.msra.mxu0 0.0
    %3907 = vmatprep.subr.mxu0 0.0
    %3908 = vmatpush2.msra.mxu0 0.0
    %3909 = vmatprep.subr.mxu0 0.0
    %3910 = vmatpush2.msra.mxu0 0.0
    %3911 = vmatprep.subr.mxu0 0.0
    %3912 = vmatpush2.msra.mxu0 0.0
    %3913 = vmatprep.subr.mxu0 0.0
    %3914 = vmatpush2.msra.mxu0 0.0
    %3915 = vmatprep.subr.mxu0 0.0
    %3916 = vmatpush2.msra.mxu0 0.0
    %3917 = vmatprep.subr.mxu0 0.0
    %3918 = vmatpush2.msra.mxu0 0.0
    %3919 = vmatprep.subr.mxu0 0.0
    %3920 = vmatpush2.msra.mxu0 0.0
    %3921 = vmatprep.mubr.f32.mxu0 0.0
    %3922 = vmatmul.mubr.f32.gmra.mxu0 %v2828
    %v3923 = vpop.f32.mrf.mxu0
    %v3924 = vadd.f32 %v3782, %v3923
    %v3925 = vpop.f32.mrf.mxu0
    %v3926 = vadd.f32 %v3784, %v3925
    %3927 = vdwg.mxu0
    %v3928 = vadd.f32 %v3853, %v3117
    %v3929 = vadd.f32 %v3855, %v3121
    %v3930 = vadd.f32 %v3924, %v3125
    %v3931 = vadd.f32 %v3926, %v3129
    %v3932 = vxor.u32 %v3928, 2147483648
    %v3933 = vmul.f32 %v3932, 1.442695
    %v3934 = vpow.pop %v3933
    %v3935 = vadd.f32 %v3934, 1.0
    %v3936 = vrcp.pop %v3935
    %v3937 = vmul.f32 1.0, %v3936
    %v3938 = vxor.u32 %v3929, 2147483648
    %v3939 = vmul.f32 %v3938, 1.442695
    %v3940 = vpow.pop %v3939
    %v3941 = vadd.f32 %v3940, 1.0
    %v3942 = vrcp.pop %v3941
    %v3943 = vmul.f32 1.0, %v3942
    %v3944 = vtanh.pop %v3930
    %v3945 = vxor.u32 %v3931, 2147483648
    %v3946 = vmul.f32 %v3945, 1.442695
    %v3947 = vpow.pop %v3946
    %v3948 = vadd.f32 %v3947, 1.0
    %v3949 = vrcp.pop %v3948
    %v3950 = vmul.f32 1.0, %v3949
    %v3951 = vmul.f32 %v3943, %v3159
    %v3952 = vmul.f32 %v3937, %v3944
    %v3953 = vadd.f32 %v3951, %v3952
    %v3954 = vtanh.pop %v3953
    %v3955 = vmul.f32 %v3950, %v3954
    %3956 = vmatprep.subr.mxu0 %v333
    %3957 = vmatpush1.msra.mxu0 %v332
    %3958 = vmatprep.subr.mxu0 %v329
    %3959 = vmatpush1.msra.mxu0 %v328
    %3960 = vmatprep.subr.mxu0 %v325
    %3961 = vmatpush1.msra.mxu0 %v324
    %3962 = vmatprep.subr.mxu0 %v321
    %3963 = vmatpush1.msra.mxu0 %v320
    %3964 = vmatprep.subr.mxu0 %v317
    %3965 = vmatpush1.msra.mxu0 %v316
    %3966 = vmatprep.subr.mxu0 %v313
    %3967 = vmatpush1.msra.mxu0 %v312
    %3968 = vmatprep.subr.mxu0 %v309
    %3969 = vmatpush1.msra.mxu0 %v308
    %3970 = vmatprep.subr.mxu0 %v305
    %3971 = vmatpush1.msra.mxu0 %v304
    %3972 = vmatprep.subr.mxu0 %v301
    %3973 = vmatpush1.msra.mxu0 %v300
    %3974 = vmatprep.subr.mxu0 %v297
    %3975 = vmatpush1.msra.mxu0 %v296
    %3976 = vmatprep.subr.mxu0 %v293
    %3977 = vmatpush1.msra.mxu0 %v292
    %3978 = vmatprep.subr.mxu0 %v289
    %3979 = vmatpush1.msra.mxu0 %v288
    %3980 = vmatprep.subr.mxu0 %v285
    %3981 = vmatpush1.msra.mxu0 %v284
    %3982 = vmatprep.subr.mxu0 %v281
    %3983 = vmatpush1.msra.mxu0 %v280
    %3984 = vmatprep.subr.mxu0 %v277
    %3985 = vmatpush1.msra.mxu0 %v276
    %3986 = vmatprep.subr.mxu0 %v273
    %3987 = vmatpush1.msra.mxu0 %v272
    %3988 = vmatprep.subr.mxu0 0.0
    %3989 = vmatpush2.msra.mxu0 0.0
    %3990 = vmatprep.subr.mxu0 0.0
    %3991 = vmatpush2.msra.mxu0 0.0
    %3992 = vmatprep.subr.mxu0 0.0
    %3993 = vmatpush2.msra.mxu0 0.0
    %3994 = vmatprep.subr.mxu0 0.0
    %3995 = vmatpush2.msra.mxu0 0.0
    %3996 = vmatprep.subr.mxu0 0.0
    %3997 = vmatpush2.msra.mxu0 0.0
    %3998 = vmatprep.subr.mxu0 0.0
    %3999 = vmatpush2.msra.mxu0 0.0
    %4000 = vmatprep.subr.mxu0 0.0
    %4001 = vmatpush2.msra.mxu0 0.0
    %4002 = vmatprep.subr.mxu0 0.0
    %4003 = vmatpush2.msra.mxu0 0.0
    %4004 = vmatprep.subr.mxu0 0.0
    %4005 = vmatpush2.msra.mxu0 0.0
    %4006 = vmatprep.subr.mxu0 0.0
    %4007 = vmatpush2.msra.mxu0 0.0
    %4008 = vmatprep.subr.mxu0 0.0
    %4009 = vmatpush2.msra.mxu0 0.0
    %4010 = vmatprep.subr.mxu0 0.0
    %4011 = vmatpush2.msra.mxu0 0.0
    %4012 = vmatprep.subr.mxu0 0.0
    %4013 = vmatpush2.msra.mxu0 0.0
    %4014 = vmatprep.subr.mxu0 0.0
    %4015 = vmatpush2.msra.mxu0 0.0
    %4016 = vmatprep.subr.mxu0 0.0
    %4017 = vmatpush2.msra.mxu0 0.0
    %4018 = vmatprep.subr.mxu0 0.0
    %4019 = vmatpush2.msra.mxu0 0.0
    %4020 = vmatprep.mubr.f32.mxu0 0.0
    %4021 = vmatmul.mubr.f32.gmra.mxu0 %v3331
    %v4022 = vpop.f32.mrf.mxu0
    %v4023 = vadd.f32 0.0, %v4022
    %v4024 = vpop.f32.mrf.mxu0
    %v4025 = vadd.f32 0.0, %v4024
    %4026 = vdwg.mxu0
    %4027 = vmatprep.subr.mxu0 %v335
    %4028 = vmatpush1.msra.mxu0 %v334
    %4029 = vmatprep.subr.mxu0 %v331
    %4030 = vmatpush1.msra.mxu0 %v330
    %4031 = vmatprep.subr.mxu0 %v327
    %4032 = vmatpush1.msra.mxu0 %v326
    %4033 = vmatprep.subr.mxu0 %v323
    %4034 = vmatpush1.msra.mxu0 %v322
    %4035 = vmatprep.subr.mxu0 %v319
    %4036 = vmatpush1.msra.mxu0 %v318
    %4037 = vmatprep.subr.mxu0 %v315
    %4038 = vmatpush1.msra.mxu0 %v314
    %4039 = vmatprep.subr.mxu0 %v311
    %4040 = vmatpush1.msra.mxu0 %v310
    %4041 = vmatprep.subr.mxu0 %v307
    %4042 = vmatpush1.msra.mxu0 %v306
    %4043 = vmatprep.subr.mxu0 %v303
    %4044 = vmatpush1.msra.mxu0 %v302
    %4045 = vmatprep.subr.mxu0 %v299
    %4046 = vmatpush1.msra.mxu0 %v298
    %4047 = vmatprep.subr.mxu0 %v295
    %4048 = vmatpush1.msra.mxu0 %v294
    %4049 = vmatprep.subr.mxu0 %v291
    %4050 = vmatpush1.msra.mxu0 %v290
    %4051 = vmatprep.subr.mxu0 %v287
    %4052 = vmatpush1.msra.mxu0 %v286
    %4053 = vmatprep.subr.mxu0 %v283
    %4054 = vmatpush1.msra.mxu0 %v282
    %4055 = vmatprep.subr.mxu0 %v279
    %4056 = vmatpush1.msra.mxu0 %v278
    %4057 = vmatprep.subr.mxu0 %v275
    %4058 = vmatpush1.msra.mxu0 %v274
    %4059 = vmatprep.subr.mxu0 0.0
    %4060 = vmatpush2.msra.mxu0 0.0
    %4061 = vmatprep.subr.mxu0 0.0
    %4062 = vmatpush2.msra.mxu0 0.0
    %4063 = vmatprep.subr.mxu0 0.0
    %4064 = vmatpush2.msra.mxu0 0.0
    %4065 = vmatprep.subr.mxu0 0.0
    %4066 = vmatpush2.msra.mxu0 0.0
    %4067 = vmatprep.subr.mxu0 0.0
    %4068 = vmatpush2.msra.mxu0 0.0
    %4069 = vmatprep.subr.mxu0 0.0
    %4070 = vmatpush2.msra.mxu0 0.0
    %4071 = vmatprep.subr.mxu0 0.0
    %4072 = vmatpush2.msra.mxu0 0.0
    %4073 = vmatprep.subr.mxu0 0.0
    %4074 = vmatpush2.msra.mxu0 0.0
    %4075 = vmatprep.subr.mxu0 0.0
    %4076 = vmatpush2.msra.mxu0 0.0
    %4077 = vmatprep.subr.mxu0 0.0
    %4078 = vmatpush2.msra.mxu0 0.0
    %4079 = vmatprep.subr.mxu0 0.0
    %4080 = vmatpush2.msra.mxu0 0.0
    %4081 = vmatprep.subr.mxu0 0.0
    %4082 = vmatpush2.msra.mxu0 0.0
    %4083 = vmatprep.subr.mxu0 0.0
    %4084 = vmatpush2.msra.mxu0 0.0
    %4085 = vmatprep.subr.mxu0 0.0
    %4086 = vmatpush2.msra.mxu0 0.0
    %4087 = vmatprep.subr.mxu0 0.0
    %4088 = vmatpush2.msra.mxu0 0.0
    %4089 = vmatprep.subr.mxu0 0.0
    %4090 = vmatpush2.msra.mxu0 0.0
    %4091 = vmatprep.mubr.f32.mxu0 0.0
    %4092 = vmatmul.mubr.f32.gmra.mxu0 %v3331
    %v4093 = vpop.f32.mrf.mxu0
    %v4094 = vadd.f32 0.0, %v4093
    %v4095 = vpop.f32.mrf.mxu0
    %v4096 = vadd.f32 0.0, %v4095
    %4097 = vdwg.mxu0
    %v4098 = vadd.f32 %v1164, %v4023
    %v4099 = vadd.f32 %v1166, %v4025
    %v4100 = vadd.f32 %v1235, %v4094
    %v4101 = vadd.f32 %v1237, %v4096
    %v4102 = vxor.u32 %v4098, 2147483648
    %v4103 = vmul.f32 %v4102, 1.442695
    %v4104 = vpow.pop %v4103
    %v4105 = vadd.f32 %v4104, 1.0
    %v4106 = vrcp.pop %v4105
    %v4107 = vmul.f32 1.0, %v4106
    %v4108 = vxor.u32 %v4099, 2147483648
    %v4109 = vmul.f32 %v4108, 1.442695
    %v4110 = vpow.pop %v4109
    %v4111 = vadd.f32 %v4110, 1.0
    %v4112 = vrcp.pop %v4111
    %v4113 = vmul.f32 1.0, %v4112
    %v4114 = vtanh.pop %v4100
    %v4115 = vxor.u32 %v4101, 2147483648
    %v4116 = vmul.f32 %v4115, 1.442695
    %v4117 = vpow.pop %v4116
    %v4118 = vadd.f32 %v4117, 1.0
    %v4119 = vrcp.pop %v4118
    %v4120 = vmul.f32 1.0, %v4119
    %v4121 = vmul.f32 %v4113, %v3329
    %v4122 = vmul.f32 %v4107, %v4114
    %v4123 = vadd.f32 %v4121, %v4122
    %v4124 = vtanh.pop %v4123
    %v4125 = vmul.f32 %v4120, %v4124
    %4126 = vmatprep.subr.mxu0 %v397
    %4127 = vmatpush1.msra.mxu0 %v396
    %4128 = vmatprep.subr.mxu0 %v393
    %4129 = vmatpush1.msra.mxu0 %v392
    %4130 = vmatprep.subr.mxu0 %v389
    %4131 = vmatpush1.msra.mxu0 %v388
    %4132 = vmatprep.subr.mxu0 %v385
    %4133 = vmatpush1.msra.mxu0 %v384
    %4134 = vmatprep.subr.mxu0 %v381
    %4135 = vmatpush1.msra.mxu0 %v380
    %4136 = vmatprep.subr.mxu0 %v377
    %4137 = vmatpush1.msra.mxu0 %v376
    %4138 = vmatprep.subr.mxu0 %v373
    %4139 = vmatpush1.msra.mxu0 %v372
    %4140 = vmatprep.subr.mxu0 %v369
    %4141 = vmatpush1.msra.mxu0 %v368
    %4142 = vmatprep.subr.mxu0 %v365
    %4143 = vmatpush1.msra.mxu0 %v364
    %4144 = vmatprep.subr.mxu0 %v361
    %4145 = vmatpush1.msra.mxu0 %v360
    %4146 = vmatprep.subr.mxu0 %v357
    %4147 = vmatpush1.msra.mxu0 %v356
    %4148 = vmatprep.subr.mxu0 %v353
    %4149 = vmatpush1.msra.mxu0 %v352
    %4150 = vmatprep.subr.mxu0 %v349
    %4151 = vmatpush1.msra.mxu0 %v348
    %4152 = vmatprep.subr.mxu0 %v345
    %4153 = vmatpush1.msra.mxu0 %v344
    %4154 = vmatprep.subr.mxu0 %v341
    %4155 = vmatpush1.msra.mxu0 %v340
    %4156 = vmatprep.subr.mxu0 %v337
    %4157 = vmatpush1.msra.mxu0 %v336
    %4158 = vmatprep.subr.mxu0 0.0
    %4159 = vmatpush2.msra.mxu0 0.0
    %4160 = vmatprep.subr.mxu0 0.0
    %4161 = vmatpush2.msra.mxu0 0.0
    %4162 = vmatprep.subr.mxu0 0.0
    %4163 = vmatpush2.msra.mxu0 0.0
    %4164 = vmatprep.subr.mxu0 0.0
    %4165 = vmatpush2.msra.mxu0 0.0
    %4166 = vmatprep.subr.mxu0 0.0
    %4167 = vmatpush2.msra.mxu0 0.0
    %4168 = vmatprep.subr.mxu0 0.0
    %4169 = vmatpush2.msra.mxu0 0.0
    %4170 = vmatprep.subr.mxu0 0.0
    %4171 = vmatpush2.msra.mxu0 0.0
    %4172 = vmatprep.subr.mxu0 0.0
    %4173 = vmatpush2.msra.mxu0 0.0
    %4174 = vmatprep.subr.mxu0 0.0
    %4175 = vmatpush2.msra.mxu0 0.0
    %4176 = vmatprep.subr.mxu0 0.0
    %4177 = vmatpush2.msra.mxu0 0.0
    %4178 = vmatprep.subr.mxu0 0.0
    %4179 = vmatpush2.msra.mxu0 0.0
    %4180 = vmatprep.subr.mxu0 0.0
    %4181 = vmatpush2.msra.mxu0 0.0
    %4182 = vmatprep.subr.mxu0 0.0
    %4183 = vmatpush2.msra.mxu0 0.0
    %4184 = vmatprep.subr.mxu0 0.0
    %4185 = vmatpush2.msra.mxu0 0.0
    %4186 = vmatprep.subr.mxu0 0.0
    %4187 = vmatpush2.msra.mxu0 0.0
    %4188 = vmatprep.subr.mxu0 0.0
    %4189 = vmatpush2.msra.mxu0 0.0
    %4190 = vmatprep.mubr.f32.mxu0 0.0
    %4191 = vmatmul.mubr.f32.gmra.mxu0 %v3643
    %v4192 = vpop.f32.mrf.mxu0
    %v4193 = vadd.f32 0.0, %v4192
    %v4194 = vpop.f32.mrf.mxu0
    %v4195 = vadd.f32 0.0, %v4194
    %4196 = vdwg.mxu0
    %4197 = vmatprep.subr.mxu0 %v399
    %4198 = vmatpush1.msra.mxu0 %v398
    %4199 = vmatprep.subr.mxu0 %v395
    %4200 = vmatpush1.msra.mxu0 %v394
    %4201 = vmatprep.subr.mxu0 %v391
    %4202 = vmatpush1.msra.mxu0 %v390
    %4203 = vmatprep.subr.mxu0 %v387
    %4204 = vmatpush1.msra.mxu0 %v386
    %4205 = vmatprep.subr.mxu0 %v383
    %4206 = vmatpush1.msra.mxu0 %v382
    %4207 = vmatprep.subr.mxu0 %v379
    %4208 = vmatpush1.msra.mxu0 %v378
    %4209 = vmatprep.subr.mxu0 %v375
    %4210 = vmatpush1.msra.mxu0 %v374
    %4211 = vmatprep.subr.mxu0 %v371
    %4212 = vmatpush1.msra.mxu0 %v370
    %4213 = vmatprep.subr.mxu0 %v367
    %4214 = vmatpush1.msra.mxu0 %v366
    %4215 = vmatprep.subr.mxu0 %v363
    %4216 = vmatpush1.msra.mxu0 %v362
    %4217 = vmatprep.subr.mxu0 %v359
    %4218 = vmatpush1.msra.mxu0 %v358
    %4219 = vmatprep.subr.mxu0 %v355
    %4220 = vmatpush1.msra.mxu0 %v354
    %4221 = vmatprep.subr.mxu0 %v351
    %4222 = vmatpush1.msra.mxu0 %v350
    %4223 = vmatprep.subr.mxu0 %v347
    %4224 = vmatpush1.msra.mxu0 %v346
    %4225 = vmatprep.subr.mxu0 %v343
    %4226 = vmatpush1.msra.mxu0 %v342
    %4227 = vmatprep.subr.mxu0 %v339
    %4228 = vmatpush1.msra.mxu0 %v338
    %4229 = vmatprep.subr.mxu0 0.0
    %4230 = vmatpush2.msra.mxu0 0.0
    %4231 = vmatprep.subr.mxu0 0.0
    %4232 = vmatpush2.msra.mxu0 0.0
    %4233 = vmatprep.subr.mxu0 0.0
    %4234 = vmatpush2.msra.mxu0 0.0
    %4235 = vmatprep.subr.mxu0 0.0
    %4236 = vmatpush2.msra.mxu0 0.0
    %4237 = vmatprep.subr.mxu0 0.0
    %4238 = vmatpush2.msra.mxu0 0.0
    %4239 = vmatprep.subr.mxu0 0.0
    %4240 = vmatpush2.msra.mxu0 0.0
    %4241 = vmatprep.subr.mxu0 0.0
    %4242 = vmatpush2.msra.mxu0 0.0
    %4243 = vmatprep.subr.mxu0 0.0
    %4244 = vmatpush2.msra.mxu0 0.0
    %4245 = vmatprep.subr.mxu0 0.0
    %4246 = vmatpush2.msra.mxu0 0.0
    %4247 = vmatprep.subr.mxu0 0.0
    %4248 = vmatpush2.msra.mxu0 0.0
    %4249 = vmatprep.subr.mxu0 0.0
    %4250 = vmatpush2.msra.mxu0 0.0
    %4251 = vmatprep.subr.mxu0 0.0
    %4252 = vmatpush2.msra.mxu0 0.0
    %4253 = vmatprep.subr.mxu0 0.0
    %4254 = vmatpush2.msra.mxu0 0.0
    %4255 = vmatprep.subr.mxu0 0.0
    %4256 = vmatpush2.msra.mxu0 0.0
    %4257 = vmatprep.subr.mxu0 0.0
    %4258 = vmatpush2.msra.mxu0 0.0
    %4259 = vmatprep.subr.mxu0 0.0
    %4260 = vmatpush2.msra.mxu0 0.0
    %4261 = vmatprep.mubr.f32.mxu0 0.0
    %4262 = vmatmul.mubr.f32.gmra.mxu0 %v3643
    %v4263 = vpop.f32.mrf.mxu0
    %v4264 = vadd.f32 0.0, %v4263
    %v4265 = vpop.f32.mrf.mxu0
    %v4266 = vadd.f32 0.0, %v4265
    %4267 = vdwg.mxu0
    %4268 = vmatprep.subr.mxu0 %v205
    %4269 = vmatpush1.msra.mxu0 %v204
    %4270 = vmatprep.subr.mxu0 %v201
    %4271 = vmatpush1.msra.mxu0 %v200
    %4272 = vmatprep.subr.mxu0 %v197
    %4273 = vmatpush1.msra.mxu0 %v196
    %4274 = vmatprep.subr.mxu0 %v193
    %4275 = vmatpush1.msra.mxu0 %v192
    %4276 = vmatprep.subr.mxu0 %v189
    %4277 = vmatpush1.msra.mxu0 %v188
    %4278 = vmatprep.subr.mxu0 %v185
    %4279 = vmatpush1.msra.mxu0 %v184
    %4280 = vmatprep.subr.mxu0 %v181
    %4281 = vmatpush1.msra.mxu0 %v180
    %4282 = vmatprep.subr.mxu0 %v177
    %4283 = vmatpush1.msra.mxu0 %v176
    %4284 = vmatprep.subr.mxu0 %v173
    %4285 = vmatpush1.msra.mxu0 %v172
    %4286 = vmatprep.subr.mxu0 %v169
    %4287 = vmatpush1.msra.mxu0 %v168
    %4288 = vmatprep.subr.mxu0 %v165
    %4289 = vmatpush1.msra.mxu0 %v164
    %4290 = vmatprep.subr.mxu0 %v161
    %4291 = vmatpush1.msra.mxu0 %v160
    %4292 = vmatprep.subr.mxu0 %v157
    %4293 = vmatpush1.msra.mxu0 %v156
    %4294 = vmatprep.subr.mxu0 %v153
    %4295 = vmatpush1.msra.mxu0 %v152
    %4296 = vmatprep.subr.mxu0 %v149
    %4297 = vmatpush1.msra.mxu0 %v148
    %4298 = vmatprep.subr.mxu0 %v145
    %4299 = vmatpush1.msra.mxu0 %v144
    %4300 = vmatprep.subr.mxu0 0.0
    %4301 = vmatpush2.msra.mxu0 0.0
    %4302 = vmatprep.subr.mxu0 0.0
    %4303 = vmatpush2.msra.mxu0 0.0
    %4304 = vmatprep.subr.mxu0 0.0
    %4305 = vmatpush2.msra.mxu0 0.0
    %4306 = vmatprep.subr.mxu0 0.0
    %4307 = vmatpush2.msra.mxu0 0.0
    %4308 = vmatprep.subr.mxu0 0.0
    %4309 = vmatpush2.msra.mxu0 0.0
    %4310 = vmatprep.subr.mxu0 0.0
    %4311 = vmatpush2.msra.mxu0 0.0
    %4312 = vmatprep.subr.mxu0 0.0
    %4313 = vmatpush2.msra.mxu0 0.0
    %4314 = vmatprep.subr.mxu0 0.0
    %4315 = vmatpush2.msra.mxu0 0.0
    %4316 = vmatprep.subr.mxu0 0.0
    %4317 = vmatpush2.msra.mxu0 0.0
    %4318 = vmatprep.subr.mxu0 0.0
    %4319 = vmatpush2.msra.mxu0 0.0
    %4320 = vmatprep.subr.mxu0 0.0
    %4321 = vmatpush2.msra.mxu0 0.0
    %4322 = vmatprep.subr.mxu0 0.0
    %4323 = vmatpush2.msra.mxu0 0.0
    %4324 = vmatprep.subr.mxu0 0.0
    %4325 = vmatpush2.msra.mxu0 0.0
    %4326 = vmatprep.subr.mxu0 0.0
    %4327 = vmatpush2.msra.mxu0 0.0
    %4328 = vmatprep.subr.mxu0 0.0
    %4329 = vmatpush2.msra.mxu0 0.0
    %4330 = vmatprep.subr.mxu0 0.0
    %4331 = vmatpush2.msra.mxu0 0.0
    %4332 = vmatprep.mubr.f32.mxu0 0.0
    %4333 = vmatmul.mubr.f32.gmra.mxu0 %v3331
    %v4334 = vpop.f32.mrf.mxu0
    %v4335 = vadd.f32 %v4193, %v4334
    %v4336 = vpop.f32.mrf.mxu0
    %v4337 = vadd.f32 %v4195, %v4336
    %4338 = vdwg.mxu0
    %4339 = vmatprep.subr.mxu0 %v207
    %4340 = vmatpush1.msra.mxu0 %v206
    %4341 = vmatprep.subr.mxu0 %v203
    %4342 = vmatpush1.msra.mxu0 %v202
    %4343 = vmatprep.subr.mxu0 %v199
    %4344 = vmatpush1.msra.mxu0 %v198
    %4345 = vmatprep.subr.mxu0 %v195
    %4346 = vmatpush1.msra.mxu0 %v194
    %4347 = vmatprep.subr.mxu0 %v191
    %4348 = vmatpush1.msra.mxu0 %v190
    %4349 = vmatprep.subr.mxu0 %v187
    %4350 = vmatpush1.msra.mxu0 %v186
    %4351 = vmatprep.subr.mxu0 %v183
    %4352 = vmatpush1.msra.mxu0 %v182
    %4353 = vmatprep.subr.mxu0 %v179
    %4354 = vmatpush1.msra.mxu0 %v178
    %4355 = vmatprep.subr.mxu0 %v175
    %4356 = vmatpush1.msra.mxu0 %v174
    %4357 = vmatprep.subr.mxu0 %v171
    %4358 = vmatpush1.msra.mxu0 %v170
    %4359 = vmatprep.subr.mxu0 %v167
    %4360 = vmatpush1.msra.mxu0 %v166
    %4361 = vmatprep.subr.mxu0 %v163
    %4362 = vmatpush1.msra.mxu0 %v162
    %4363 = vmatprep.subr.mxu0 %v159
    %4364 = vmatpush1.msra.mxu0 %v158
    %4365 = vmatprep.subr.mxu0 %v155
    %4366 = vmatpush1.msra.mxu0 %v154
    %4367 = vmatprep.subr.mxu0 %v151
    %4368 = vmatpush1.msra.mxu0 %v150
    %4369 = vmatprep.subr.mxu0 %v147
    %4370 = vmatpush1.msra.mxu0 %v146
    %4371 = vmatprep.subr.mxu0 0.0
    %4372 = vmatpush2.msra.mxu0 0.0
    %4373 = vmatprep.subr.mxu0 0.0
    %4374 = vmatpush2.msra.mxu0 0.0
    %4375 = vmatprep.subr.mxu0 0.0
    %4376 = vmatpush2.msra.mxu0 0.0
    %4377 = vmatprep.subr.mxu0 0.0
    %4378 = vmatpush2.msra.mxu0 0.0
    %4379 = vmatprep.subr.mxu0 0.0
    %4380 = vmatpush2.msra.mxu0 0.0
    %4381 = vmatprep.subr.mxu0 0.0
    %4382 = vmatpush2.msra.mxu0 0.0
    %4383 = vmatprep.subr.mxu0 0.0
    %4384 = vmatpush2.msra.mxu0 0.0
    %4385 = vmatprep.subr.mxu0 0.0
    %4386 = vmatpush2.msra.mxu0 0.0
    %4387 = vmatprep.subr.mxu0 0.0
    %4388 = vmatpush2.msra.mxu0 0.0
    %4389 = vmatprep.subr.mxu0 0.0
    %4390 = vmatpush2.msra.mxu0 0.0
    %4391 = vmatprep.subr.mxu0 0.0
    %4392 = vmatpush2.msra.mxu0 0.0
    %4393 = vmatprep.subr.mxu0 0.0
    %4394 = vmatpush2.msra.mxu0 0.0
    %4395 = vmatprep.subr.mxu0 0.0
    %4396 = vmatpush2.msra.mxu0 0.0
    %4397 = vmatprep.subr.mxu0 0.0
    %4398 = vmatpush2.msra.mxu0 0.0
    %4399 = vmatprep.subr.mxu0 0.0
    %4400 = vmatpush2.msra.mxu0 0.0
    %4401 = vmatprep.subr.mxu0 0.0
    %4402 = vmatpush2.msra.mxu0 0.0
    %4403 = vmatprep.mubr.f32.mxu0 0.0
    %4404 = vmatmul.mubr.f32.gmra.mxu0 %v3331
    %v4405 = vpop.f32.mrf.mxu0
    %v4406 = vadd.f32 %v4264, %v4405
    %v4407 = vpop.f32.mrf.mxu0
    %v4408 = vadd.f32 %v4266, %v4407
    %4409 = vdwg.mxu0
    %v4410 = vadd.f32 %v4335, %v2302
    %v4411 = vadd.f32 %v4337, %v2306
    %v4412 = vadd.f32 %v4406, %v2310
    %v4413 = vadd.f32 %v4408, %v2314
    %v4414 = vxor.u32 %v4410, 2147483648
    %v4415 = vmul.f32 %v4414, 1.442695
    %v4416 = vpow.pop %v4415
    %v4417 = vadd.f32 %v4416, 1.0
    %v4418 = vrcp.pop %v4417
    %v4419 = vmul.f32 1.0, %v4418
    %v4420 = vxor.u32 %v4411, 2147483648
    %v4421 = vmul.f32 %v4420, 1.442695
    %v4422 = vpow.pop %v4421
    %v4423 = vadd.f32 %v4422, 1.0
    %v4424 = vrcp.pop %v4423
    %v4425 = vmul.f32 1.0, %v4424
    %v4426 = vtanh.pop %v4412
    %v4427 = vxor.u32 %v4413, 2147483648
    %v4428 = vmul.f32 %v4427, 1.442695
    %v4429 = vpow.pop %v4428
    %v4430 = vadd.f32 %v4429, 1.0
    %v4431 = vrcp.pop %v4430
    %v4432 = vmul.f32 1.0, %v4431
    %v4433 = vmul.f32 %v4425, %v3641
    %v4434 = vmul.f32 %v4419, %v4426
    %v4435 = vadd.f32 %v4433, %v4434
    %v4436 = vtanh.pop %v4435
    %v4437 = vmul.f32 %v4432, %v4436
    %4438 = vmatprep.subr.mxu0 %v461
    %4439 = vmatpush1.msra.mxu0 %v460
    %4440 = vmatprep.subr.mxu0 %v457
    %4441 = vmatpush1.msra.mxu0 %v456
    %4442 = vmatprep.subr.mxu0 %v453
    %4443 = vmatpush1.msra.mxu0 %v452
    %4444 = vmatprep.subr.mxu0 %v449
    %4445 = vmatpush1.msra.mxu0 %v448
    %4446 = vmatprep.subr.mxu0 %v445
    %4447 = vmatpush1.msra.mxu0 %v444
    %4448 = vmatprep.subr.mxu0 %v441
    %4449 = vmatpush1.msra.mxu0 %v440
    %4450 = vmatprep.subr.mxu0 %v437
    %4451 = vmatpush1.msra.mxu0 %v436
    %4452 = vmatprep.subr.mxu0 %v433
    %4453 = vmatpush1.msra.mxu0 %v432
    %4454 = vmatprep.subr.mxu0 %v429
    %4455 = vmatpush1.msra.mxu0 %v428
    %4456 = vmatprep.subr.mxu0 %v425
    %4457 = vmatpush1.msra.mxu0 %v424
    %4458 = vmatprep.subr.mxu0 %v421
    %4459 = vmatpush1.msra.mxu0 %v420
    %4460 = vmatprep.subr.mxu0 %v417
    %4461 = vmatpush1.msra.mxu0 %v416
    %4462 = vmatprep.subr.mxu0 %v413
    %4463 = vmatpush1.msra.mxu0 %v412
    %4464 = vmatprep.subr.mxu0 %v409
    %4465 = vmatpush1.msra.mxu0 %v408
    %4466 = vmatprep.subr.mxu0 %v405
    %4467 = vmatpush1.msra.mxu0 %v404
    %4468 = vmatprep.subr.mxu0 %v401
    %4469 = vmatpush1.msra.mxu0 %v400
    %4470 = vmatprep.subr.mxu0 0.0
    %4471 = vmatpush2.msra.mxu0 0.0
    %4472 = vmatprep.subr.mxu0 0.0
    %4473 = vmatpush2.msra.mxu0 0.0
    %4474 = vmatprep.subr.mxu0 0.0
    %4475 = vmatpush2.msra.mxu0 0.0
    %4476 = vmatprep.subr.mxu0 0.0
    %4477 = vmatpush2.msra.mxu0 0.0
    %4478 = vmatprep.subr.mxu0 0.0
    %4479 = vmatpush2.msra.mxu0 0.0
    %4480 = vmatprep.subr.mxu0 0.0
    %4481 = vmatpush2.msra.mxu0 0.0
    %4482 = vmatprep.subr.mxu0 0.0
    %4483 = vmatpush2.msra.mxu0 0.0
    %4484 = vmatprep.subr.mxu0 0.0
    %4485 = vmatpush2.msra.mxu0 0.0
    %4486 = vmatprep.subr.mxu0 0.0
    %4487 = vmatpush2.msra.mxu0 0.0
    %4488 = vmatprep.subr.mxu0 0.0
    %4489 = vmatpush2.msra.mxu0 0.0
    %4490 = vmatprep.subr.mxu0 0.0
    %4491 = vmatpush2.msra.mxu0 0.0
    %4492 = vmatprep.subr.mxu0 0.0
    %4493 = vmatpush2.msra.mxu0 0.0
    %4494 = vmatprep.subr.mxu0 0.0
    %4495 = vmatpush2.msra.mxu0 0.0
    %4496 = vmatprep.subr.mxu0 0.0
    %4497 = vmatpush2.msra.mxu0 0.0
    %4498 = vmatprep.subr.mxu0 0.0
    %4499 = vmatpush2.msra.mxu0 0.0
    %4500 = vmatprep.subr.mxu0 0.0
    %4501 = vmatpush2.msra.mxu0 0.0
    %4502 = vmatprep.mubr.f32.mxu0 0.0
    %4503 = vmatmul.mubr.f32.gmra.mxu0 %v3955
    %v4504 = vpop.f32.mrf.mxu0
    %v4505 = vadd.f32 0.0, %v4504
    %v4506 = vpop.f32.mrf.mxu0
    %v4507 = vadd.f32 0.0, %v4506
    %4508 = vdwg.mxu0
    %4509 = vmatprep.subr.mxu0 %v463
    %4510 = vmatpush1.msra.mxu0 %v462
    %4511 = vmatprep.subr.mxu0 %v459
    %4512 = vmatpush1.msra.mxu0 %v458
    %4513 = vmatprep.subr.mxu0 %v455
    %4514 = vmatpush1.msra.mxu0 %v454
    %4515 = vmatprep.subr.mxu0 %v451
    %4516 = vmatpush1.msra.mxu0 %v450
    %4517 = vmatprep.subr.mxu0 %v447
    %4518 = vmatpush1.msra.mxu0 %v446
    %4519 = vmatprep.subr.mxu0 %v443
    %4520 = vmatpush1.msra.mxu0 %v442
    %4521 = vmatprep.subr.mxu0 %v439
    %4522 = vmatpush1.msra.mxu0 %v438
    %4523 = vmatprep.subr.mxu0 %v435
    %4524 = vmatpush1.msra.mxu0 %v434
    %4525 = vmatprep.subr.mxu0 %v431
    %4526 = vmatpush1.msra.mxu0 %v430
    %4527 = vmatprep.subr.mxu0 %v427
    %4528 = vmatpush1.msra.mxu0 %v426
    %4529 = vmatprep.subr.mxu0 %v423
    %4530 = vmatpush1.msra.mxu0 %v422
    %4531 = vmatprep.subr.mxu0 %v419
    %4532 = vmatpush1.msra.mxu0 %v418
    %4533 = vmatprep.subr.mxu0 %v415
    %4534 = vmatpush1.msra.mxu0 %v414
    %4535 = vmatprep.subr.mxu0 %v411
    %4536 = vmatpush1.msra.mxu0 %v410
    %4537 = vmatprep.subr.mxu0 %v407
    %4538 = vmatpush1.msra.mxu0 %v406
    %4539 = vmatprep.subr.mxu0 %v403
    %4540 = vmatpush1.msra.mxu0 %v402
    %4541 = vmatprep.subr.mxu0 0.0
    %4542 = vmatpush2.msra.mxu0 0.0
    %4543 = vmatprep.subr.mxu0 0.0
    %4544 = vmatpush2.msra.mxu0 0.0
    %4545 = vmatprep.subr.mxu0 0.0
    %4546 = vmatpush2.msra.mxu0 0.0
    %4547 = vmatprep.subr.mxu0 0.0
    %4548 = vmatpush2.msra.mxu0 0.0
    %4549 = vmatprep.subr.mxu0 0.0
    %4550 = vmatpush2.msra.mxu0 0.0
    %4551 = vmatprep.subr.mxu0 0.0
    %4552 = vmatpush2.msra.mxu0 0.0
    %4553 = vmatprep.subr.mxu0 0.0
    %4554 = vmatpush2.msra.mxu0 0.0
    %4555 = vmatprep.subr.mxu0 0.0
    %4556 = vmatpush2.msra.mxu0 0.0
    %4557 = vmatprep.subr.mxu0 0.0
    %4558 = vmatpush2.msra.mxu0 0.0
    %4559 = vmatprep.subr.mxu0 0.0
    %4560 = vmatpush2.msra.mxu0 0.0
    %4561 = vmatprep.subr.mxu0 0.0
    %4562 = vmatpush2.msra.mxu0 0.0
    %4563 = vmatprep.subr.mxu0 0.0
    %4564 = vmatpush2.msra.mxu0 0.0
    %4565 = vmatprep.subr.mxu0 0.0
    %4566 = vmatpush2.msra.mxu0 0.0
    %4567 = vmatprep.subr.mxu0 0.0
    %4568 = vmatpush2.msra.mxu0 0.0
    %4569 = vmatprep.subr.mxu0 0.0
    %4570 = vmatpush2.msra.mxu0 0.0
    %4571 = vmatprep.subr.mxu0 0.0
    %4572 = vmatpush2.msra.mxu0 0.0
    %4573 = vmatprep.mubr.f32.mxu0 0.0
    %4574 = vmatmul.mubr.f32.gmra.mxu0 %v3955
    %v4575 = vpop.f32.mrf.mxu0
    %v4576 = vadd.f32 0.0, %v4575
    %v4577 = vpop.f32.mrf.mxu0
    %v4578 = vadd.f32 0.0, %v4577
    %4579 = vdwg.mxu0
    %4580 = vmatprep.subr.mxu0 %v269
    %4581 = vmatpush1.msra.mxu0 %v268
    %4582 = vmatprep.subr.mxu0 %v265
    %4583 = vmatpush1.msra.mxu0 %v264
    %4584 = vmatprep.subr.mxu0 %v261
    %4585 = vmatpush1.msra.mxu0 %v260
    %4586 = vmatprep.subr.mxu0 %v257
    %4587 = vmatpush1.msra.mxu0 %v256
    %4588 = vmatprep.subr.mxu0 %v253
    %4589 = vmatpush1.msra.mxu0 %v252
    %4590 = vmatprep.subr.mxu0 %v249
    %4591 = vmatpush1.msra.mxu0 %v248
    %4592 = vmatprep.subr.mxu0 %v245
    %4593 = vmatpush1.msra.mxu0 %v244
    %4594 = vmatprep.subr.mxu0 %v241
    %4595 = vmatpush1.msra.mxu0 %v240
    %4596 = vmatprep.subr.mxu0 %v237
    %4597 = vmatpush1.msra.mxu0 %v236
    %4598 = vmatprep.subr.mxu0 %v233
    %4599 = vmatpush1.msra.mxu0 %v232
    %4600 = vmatprep.subr.mxu0 %v229
    %4601 = vmatpush1.msra.mxu0 %v228
    %4602 = vmatprep.subr.mxu0 %v225
    %4603 = vmatpush1.msra.mxu0 %v224
    %4604 = vmatprep.subr.mxu0 %v221
    %4605 = vmatpush1.msra.mxu0 %v220
    %4606 = vmatprep.subr.mxu0 %v217
    %4607 = vmatpush1.msra.mxu0 %v216
    %4608 = vmatprep.subr.mxu0 %v213
    %4609 = vmatpush1.msra.mxu0 %v212
    %4610 = vmatprep.subr.mxu0 %v209
    %4611 = vmatpush1.msra.mxu0 %v208
    %4612 = vmatprep.subr.mxu0 0.0
    %4613 = vmatpush2.msra.mxu0 0.0
    %4614 = vmatprep.subr.mxu0 0.0
    %4615 = vmatpush2.msra.mxu0 0.0
    %4616 = vmatprep.subr.mxu0 0.0
    %4617 = vmatpush2.msra.mxu0 0.0
    %4618 = vmatprep.subr.mxu0 0.0
    %4619 = vmatpush2.msra.mxu0 0.0
    %4620 = vmatprep.subr.mxu0 0.0
    %4621 = vmatpush2.msra.mxu0 0.0
    %4622 = vmatprep.subr.mxu0 0.0
    %4623 = vmatpush2.msra.mxu0 0.0
    %4624 = vmatprep.subr.mxu0 0.0
    %4625 = vmatpush2.msra.mxu0 0.0
    %4626 = vmatprep.subr.mxu0 0.0
    %4627 = vmatpush2.msra.mxu0 0.0
    %4628 = vmatprep.subr.mxu0 0.0
    %4629 = vmatpush2.msra.mxu0 0.0
    %4630 = vmatprep.subr.mxu0 0.0
    %4631 = vmatpush2.msra.mxu0 0.0
    %4632 = vmatprep.subr.mxu0 0.0
    %4633 = vmatpush2.msra.mxu0 0.0
    %4634 = vmatprep.subr.mxu0 0.0
    %4635 = vmatpush2.msra.mxu0 0.0
    %4636 = vmatprep.subr.mxu0 0.0
    %4637 = vmatpush2.msra.mxu0 0.0
    %4638 = vmatprep.subr.mxu0 0.0
    %4639 = vmatpush2.msra.mxu0 0.0
    %4640 = vmatprep.subr.mxu0 0.0
    %4641 = vmatpush2.msra.mxu0 0.0
    %4642 = vmatprep.subr.mxu0 0.0
    %4643 = vmatpush2.msra.mxu0 0.0
    %4644 = vmatprep.mubr.f32.mxu0 0.0
    %4645 = vmatmul.mubr.f32.gmra.mxu0 %v3643
    %v4646 = vpop.f32.mrf.mxu0
    %v4647 = vadd.f32 %v4505, %v4646
    %v4648 = vpop.f32.mrf.mxu0
    %v4649 = vadd.f32 %v4507, %v4648
    %4650 = vdwg.mxu0
    %4651 = vmatprep.subr.mxu0 %v271
    %4652 = vmatpush1.msra.mxu0 %v270
    %4653 = vmatprep.subr.mxu0 %v267
    %4654 = vmatpush1.msra.mxu0 %v266
    %4655 = vmatprep.subr.mxu0 %v263
    %4656 = vmatpush1.msra.mxu0 %v262
    %4657 = vmatprep.subr.mxu0 %v259
    %4658 = vmatpush1.msra.mxu0 %v258
    %4659 = vmatprep.subr.mxu0 %v255
    %4660 = vmatpush1.msra.mxu0 %v254
    %4661 = vmatprep.subr.mxu0 %v251
    %4662 = vmatpush1.msra.mxu0 %v250
    %4663 = vmatprep.subr.mxu0 %v247
    %4664 = vmatpush1.msra.mxu0 %v246
    %4665 = vmatprep.subr.mxu0 %v243
    %4666 = vmatpush1.msra.mxu0 %v242
    %4667 = vmatprep.subr.mxu0 %v239
    %4668 = vmatpush1.msra.mxu0 %v238
    %4669 = vmatprep.subr.mxu0 %v235
    %4670 = vmatpush1.msra.mxu0 %v234
    %4671 = vmatprep.subr.mxu0 %v231
    %4672 = vmatpush1.msra.mxu0 %v230
    %4673 = vmatprep.subr.mxu0 %v227
    %4674 = vmatpush1.msra.mxu0 %v226
    %4675 = vmatprep.subr.mxu0 %v223
    %4676 = vmatpush1.msra.mxu0 %v222
    %4677 = vmatprep.subr.mxu0 %v219
    %4678 = vmatpush1.msra.mxu0 %v218
    %4679 = vmatprep.subr.mxu0 %v215
    %4680 = vmatpush1.msra.mxu0 %v214
    %4681 = vmatprep.subr.mxu0 %v211
    %4682 = vmatpush1.msra.mxu0 %v210
    %4683 = vmatprep.subr.mxu0 0.0
    %4684 = vmatpush2.msra.mxu0 0.0
    %4685 = vmatprep.subr.mxu0 0.0
    %4686 = vmatpush2.msra.mxu0 0.0
    %4687 = vmatprep.subr.mxu0 0.0
    %4688 = vmatpush2.msra.mxu0 0.0
    %4689 = vmatprep.subr.mxu0 0.0
    %4690 = vmatpush2.msra.mxu0 0.0
    %4691 = vmatprep.subr.mxu0 0.0
    %4692 = vmatpush2.msra.mxu0 0.0
    %4693 = vmatprep.subr.mxu0 0.0
    %4694 = vmatpush2.msra.mxu0 0.0
    %4695 = vmatprep.subr.mxu0 0.0
    %4696 = vmatpush2.msra.mxu0 0.0
    %4697 = vmatprep.subr.mxu0 0.0
    %4698 = vmatpush2.msra.mxu0 0.0
    %4699 = vmatprep.subr.mxu0 0.0
    %4700 = vmatpush2.msra.mxu0 0.0
    %4701 = vmatprep.subr.mxu0 0.0
    %4702 = vmatpush2.msra.mxu0 0.0
    %4703 = vmatprep.subr.mxu0 0.0
    %4704 = vmatpush2.msra.mxu0 0.0
    %4705 = vmatprep.subr.mxu0 0.0
    %4706 = vmatpush2.msra.mxu0 0.0
    %4707 = vmatprep.subr.mxu0 0.0
    %4708 = vmatpush2.msra.mxu0 0.0
    %4709 = vmatprep.subr.mxu0 0.0
    %4710 = vmatpush2.msra.mxu0 0.0
    %4711 = vmatprep.subr.mxu0 0.0
    %4712 = vmatpush2.msra.mxu0 0.0
    %4713 = vmatprep.subr.mxu0 0.0
    %4714 = vmatpush2.msra.mxu0 0.0
    %4715 = vmatprep.mubr.f32.mxu0 0.0
    %4716 = vmatmul.mubr.f32.gmra.mxu0 %v3643
    %v4717 = vpop.f32.mrf.mxu0
    %v4718 = vadd.f32 %v4576, %v4717
    %v4719 = vpop.f32.mrf.mxu0
    %v4720 = vadd.f32 %v4578, %v4719
    %4721 = vdwg.mxu0
    %v4722 = vadd.f32 %v4647, %v3117
    %v4723 = vadd.f32 %v4649, %v3121
    %v4724 = vadd.f32 %v4718, %v3125
    %v4725 = vadd.f32 %v4720, %v3129
    %v4726 = vxor.u32 %v4722, 2147483648
    %v4727 = vmul.f32 %v4726, 1.442695
    %v4728 = vpow.pop %v4727
    %v4729 = vadd.f32 %v4728, 1.0
    %v4730 = vrcp.pop %v4729
    %v4731 = vmul.f32 1.0, %v4730
    %v4732 = vxor.u32 %v4723, 2147483648
    %v4733 = vmul.f32 %v4732, 1.442695
    %v4734 = vpow.pop %v4733
    %v4735 = vadd.f32 %v4734, 1.0
    %v4736 = vrcp.pop %v4735
    %v4737 = vmul.f32 1.0, %v4736
    %v4738 = vtanh.pop %v4724
    %v4739 = vxor.u32 %v4725, 2147483648
    %v4740 = vmul.f32 %v4739, 1.442695
    %v4741 = vpow.pop %v4740
    %v4742 = vadd.f32 %v4741, 1.0
    %v4743 = vrcp.pop %v4742
    %v4744 = vmul.f32 1.0, %v4743
    %v4745 = vmul.f32 %v4737, %v3953
    %v4746 = vmul.f32 %v4731, %v4738
    %v4747 = vadd.f32 %v4745, %v4746
    %v4748 = vtanh.pop %v4747
    %v4749 = vmul.f32 %v4744, %v4748
    %4750 = vmatprep.subr.mxu0 %v333
    %4751 = vmatpush1.msra.mxu0 %v332
    %4752 = vmatprep.subr.mxu0 %v329
    %4753 = vmatpush1.msra.mxu0 %v328
    %4754 = vmatprep.subr.mxu0 %v325
    %4755 = vmatpush1.msra.mxu0 %v324
    %4756 = vmatprep.subr.mxu0 %v321
    %4757 = vmatpush1.msra.mxu0 %v320
    %4758 = vmatprep.subr.mxu0 %v317
    %4759 = vmatpush1.msra.mxu0 %v316
    %4760 = vmatprep.subr.mxu0 %v313
    %4761 = vmatpush1.msra.mxu0 %v312
    %4762 = vmatprep.subr.mxu0 %v309
    %4763 = vmatpush1.msra.mxu0 %v308
    %4764 = vmatprep.subr.mxu0 %v305
    %4765 = vmatpush1.msra.mxu0 %v304
    %4766 = vmatprep.subr.mxu0 %v301
    %4767 = vmatpush1.msra.mxu0 %v300
    %4768 = vmatprep.subr.mxu0 %v297
    %4769 = vmatpush1.msra.mxu0 %v296
    %4770 = vmatprep.subr.mxu0 %v293
    %4771 = vmatpush1.msra.mxu0 %v292
    %4772 = vmatprep.subr.mxu0 %v289
    %4773 = vmatpush1.msra.mxu0 %v288
    %4774 = vmatprep.subr.mxu0 %v285
    %4775 = vmatpush1.msra.mxu0 %v284
    %4776 = vmatprep.subr.mxu0 %v281
    %4777 = vmatpush1.msra.mxu0 %v280
    %4778 = vmatprep.subr.mxu0 %v277
    %4779 = vmatpush1.msra.mxu0 %v276
    %4780 = vmatprep.subr.mxu0 %v273
    %4781 = vmatpush1.msra.mxu0 %v272
    %4782 = vmatprep.subr.mxu0 0.0
    %4783 = vmatpush2.msra.mxu0 0.0
    %4784 = vmatprep.subr.mxu0 0.0
    %4785 = vmatpush2.msra.mxu0 0.0
    %4786 = vmatprep.subr.mxu0 0.0
    %4787 = vmatpush2.msra.mxu0 0.0
    %4788 = vmatprep.subr.mxu0 0.0
    %4789 = vmatpush2.msra.mxu0 0.0
    %4790 = vmatprep.subr.mxu0 0.0
    %4791 = vmatpush2.msra.mxu0 0.0
    %4792 = vmatprep.subr.mxu0 0.0
    %4793 = vmatpush2.msra.mxu0 0.0
    %4794 = vmatprep.subr.mxu0 0.0
    %4795 = vmatpush2.msra.mxu0 0.0
    %4796 = vmatprep.subr.mxu0 0.0
    %4797 = vmatpush2.msra.mxu0 0.0
    %4798 = vmatprep.subr.mxu0 0.0
    %4799 = vmatpush2.msra.mxu0 0.0
    %4800 = vmatprep.subr.mxu0 0.0
    %4801 = vmatpush2.msra.mxu0 0.0
    %4802 = vmatprep.subr.mxu0 0.0
    %4803 = vmatpush2.msra.mxu0 0.0
    %4804 = vmatprep.subr.mxu0 0.0
    %4805 = vmatpush2.msra.mxu0 0.0
    %4806 = vmatprep.subr.mxu0 0.0
    %4807 = vmatpush2.msra.mxu0 0.0
    %4808 = vmatprep.subr.mxu0 0.0
    %4809 = vmatpush2.msra.mxu0 0.0
    %4810 = vmatprep.subr.mxu0 0.0
    %4811 = vmatpush2.msra.mxu0 0.0
    %4812 = vmatprep.subr.mxu0 0.0
    %4813 = vmatpush2.msra.mxu0 0.0
    %4814 = vmatprep.mubr.f32.mxu0 0.0
    %4815 = vmatmul.mubr.f32.gmra.mxu0 %v4125
    %v4816 = vpop.f32.mrf.mxu0
    %v4817 = vadd.f32 0.0, %v4816
    %v4818 = vpop.f32.mrf.mxu0
    %v4819 = vadd.f32 0.0, %v4818
    %4820 = vdwg.mxu0
    %4821 = vmatprep.subr.mxu0 %v335
    %4822 = vmatpush1.msra.mxu0 %v334
    %4823 = vmatprep.subr.mxu0 %v331
    %4824 = vmatpush1.msra.mxu0 %v330
    %4825 = vmatprep.subr.mxu0 %v327
    %4826 = vmatpush1.msra.mxu0 %v326
    %4827 = vmatprep.subr.mxu0 %v323
    %4828 = vmatpush1.msra.mxu0 %v322
    %4829 = vmatprep.subr.mxu0 %v319
    %4830 = vmatpush1.msra.mxu0 %v318
    %4831 = vmatprep.subr.mxu0 %v315
    %4832 = vmatpush1.msra.mxu0 %v314
    %4833 = vmatprep.subr.mxu0 %v311
    %4834 = vmatpush1.msra.mxu0 %v310
    %4835 = vmatprep.subr.mxu0 %v307
    %4836 = vmatpush1.msra.mxu0 %v306
    %4837 = vmatprep.subr.mxu0 %v303
    %4838 = vmatpush1.msra.mxu0 %v302
    %4839 = vmatprep.subr.mxu0 %v299
    %4840 = vmatpush1.msra.mxu0 %v298
    %4841 = vmatprep.subr.mxu0 %v295
    %4842 = vmatpush1.msra.mxu0 %v294
    %4843 = vmatprep.subr.mxu0 %v291
    %4844 = vmatpush1.msra.mxu0 %v290
    %4845 = vmatprep.subr.mxu0 %v287
    %4846 = vmatpush1.msra.mxu0 %v286
    %4847 = vmatprep.subr.mxu0 %v283
    %4848 = vmatpush1.msra.mxu0 %v282
    %4849 = vmatprep.subr.mxu0 %v279
    %4850 = vmatpush1.msra.mxu0 %v278
    %4851 = vmatprep.subr.mxu0 %v275
    %4852 = vmatpush1.msra.mxu0 %v274
    %4853 = vmatprep.subr.mxu0 0.0
    %4854 = vmatpush2.msra.mxu0 0.0
    %4855 = vmatprep.subr.mxu0 0.0
    %4856 = vmatpush2.msra.mxu0 0.0
    %4857 = vmatprep.subr.mxu0 0.0
    %4858 = vmatpush2.msra.mxu0 0.0
    %4859 = vmatprep.subr.mxu0 0.0
    %4860 = vmatpush2.msra.mxu0 0.0
    %4861 = vmatprep.subr.mxu0 0.0
    %4862 = vmatpush2.msra.mxu0 0.0
    %4863 = vmatprep.subr.mxu0 0.0
    %4864 = vmatpush2.msra.mxu0 0.0
    %4865 = vmatprep.subr.mxu0 0.0
    %4866 = vmatpush2.msra.mxu0 0.0
    %4867 = vmatprep.subr.mxu0 0.0
    %4868 = vmatpush2.msra.mxu0 0.0
    %4869 = vmatprep.subr.mxu0 0.0
    %4870 = vmatpush2.msra.mxu0 0.0
    %4871 = vmatprep.subr.mxu0 0.0
    %4872 = vmatpush2.msra.mxu0 0.0
    %4873 = vmatprep.subr.mxu0 0.0
    %4874 = vmatpush2.msra.mxu0 0.0
    %4875 = vmatprep.subr.mxu0 0.0
    %4876 = vmatpush2.msra.mxu0 0.0
    %4877 = vmatprep.subr.mxu0 0.0
    %4878 = vmatpush2.msra.mxu0 0.0
    %4879 = vmatprep.subr.mxu0 0.0
    %4880 = vmatpush2.msra.mxu0 0.0
    %4881 = vmatprep.subr.mxu0 0.0
    %4882 = vmatpush2.msra.mxu0 0.0
    %4883 = vmatprep.subr.mxu0 0.0
    %4884 = vmatpush2.msra.mxu0 0.0
    %4885 = vmatprep.mubr.f32.mxu0 0.0
    %4886 = vmatmul.mubr.f32.gmra.mxu0 %v4125
    %v4887 = vpop.f32.mrf.mxu0
    %v4888 = vadd.f32 0.0, %v4887
    %v4889 = vpop.f32.mrf.mxu0
    %v4890 = vadd.f32 0.0, %v4889
    %4891 = vdwg.mxu0
    %v4892 = vadd.f32 %v1309, %v4817
    %v4893 = vadd.f32 %v1311, %v4819
    %v4894 = vadd.f32 %v1380, %v4888
    %v4895 = vadd.f32 %v1382, %v4890
    %v4896 = vxor.u32 %v4892, 2147483648
    %v4897 = vmul.f32 %v4896, 1.442695
    %v4898 = vpow.pop %v4897
    %v4899 = vadd.f32 %v4898, 1.0
    %v4900 = vrcp.pop %v4899
    %v4901 = vmul.f32 1.0, %v4900
    %v4902 = vxor.u32 %v4893, 2147483648
    %v4903 = vmul.f32 %v4902, 1.442695
    %v4904 = vpow.pop %v4903
    %v4905 = vadd.f32 %v4904, 1.0
    %v4906 = vrcp.pop %v4905
    %v4907 = vmul.f32 1.0, %v4906
    %v4908 = vtanh.pop %v4894
    %v4909 = vxor.u32 %v4895, 2147483648
    %v4910 = vmul.f32 %v4909, 1.442695
    %v4911 = vpow.pop %v4910
    %v4912 = vadd.f32 %v4911, 1.0
    %v4913 = vrcp.pop %v4912
    %v4914 = vmul.f32 1.0, %v4913
    %v4915 = vmul.f32 %v4907, %v4123
    %v4916 = vmul.f32 %v4901, %v4908
    %v4917 = vadd.f32 %v4915, %v4916
    %v4918 = vtanh.pop %v4917
    %v4919 = vmul.f32 %v4914, %v4918
    %4920 = vmatprep.subr.mxu0 %v397
    %4921 = vmatpush1.msra.mxu0 %v396
    %4922 = vmatprep.subr.mxu0 %v393
    %4923 = vmatpush1.msra.mxu0 %v392
    %4924 = vmatprep.subr.mxu0 %v389
    %4925 = vmatpush1.msra.mxu0 %v388
    %4926 = vmatprep.subr.mxu0 %v385
    %4927 = vmatpush1.msra.mxu0 %v384
    %4928 = vmatprep.subr.mxu0 %v381
    %4929 = vmatpush1.msra.mxu0 %v380
    %4930 = vmatprep.subr.mxu0 %v377
    %4931 = vmatpush1.msra.mxu0 %v376
    %4932 = vmatprep.subr.mxu0 %v373
    %4933 = vmatpush1.msra.mxu0 %v372
    %4934 = vmatprep.subr.mxu0 %v369
    %4935 = vmatpush1.msra.mxu0 %v368
    %4936 = vmatprep.subr.mxu0 %v365
    %4937 = vmatpush1.msra.mxu0 %v364
    %4938 = vmatprep.subr.mxu0 %v361
    %4939 = vmatpush1.msra.mxu0 %v360
    %4940 = vmatprep.subr.mxu0 %v357
    %4941 = vmatpush1.msra.mxu0 %v356
    %4942 = vmatprep.subr.mxu0 %v353
    %4943 = vmatpush1.msra.mxu0 %v352
    %4944 = vmatprep.subr.mxu0 %v349
    %4945 = vmatpush1.msra.mxu0 %v348
    %4946 = vmatprep.subr.mxu0 %v345
    %4947 = vmatpush1.msra.mxu0 %v344
    %4948 = vmatprep.subr.mxu0 %v341
    %4949 = vmatpush1.msra.mxu0 %v340
    %4950 = vmatprep.subr.mxu0 %v337
    %4951 = vmatpush1.msra.mxu0 %v336
    %4952 = vmatprep.subr.mxu0 0.0
    %4953 = vmatpush2.msra.mxu0 0.0
    %4954 = vmatprep.subr.mxu0 0.0
    %4955 = vmatpush2.msra.mxu0 0.0
    %4956 = vmatprep.subr.mxu0 0.0
    %4957 = vmatpush2.msra.mxu0 0.0
    %4958 = vmatprep.subr.mxu0 0.0
    %4959 = vmatpush2.msra.mxu0 0.0
    %4960 = vmatprep.subr.mxu0 0.0
    %4961 = vmatpush2.msra.mxu0 0.0
    %4962 = vmatprep.subr.mxu0 0.0
    %4963 = vmatpush2.msra.mxu0 0.0
    %4964 = vmatprep.subr.mxu0 0.0
    %4965 = vmatpush2.msra.mxu0 0.0
    %4966 = vmatprep.subr.mxu0 0.0
    %4967 = vmatpush2.msra.mxu0 0.0
    %4968 = vmatprep.subr.mxu0 0.0
    %4969 = vmatpush2.msra.mxu0 0.0
    %4970 = vmatprep.subr.mxu0 0.0
    %4971 = vmatpush2.msra.mxu0 0.0
    %4972 = vmatprep.subr.mxu0 0.0
    %4973 = vmatpush2.msra.mxu0 0.0
    %4974 = vmatprep.subr.mxu0 0.0
    %4975 = vmatpush2.msra.mxu0 0.0
    %4976 = vmatprep.subr.mxu0 0.0
    %4977 = vmatpush2.msra.mxu0 0.0
    %4978 = vmatprep.subr.mxu0 0.0
    %4979 = vmatpush2.msra.mxu0 0.0
    %4980 = vmatprep.subr.mxu0 0.0
    %4981 = vmatpush2.msra.mxu0 0.0
    %4982 = vmatprep.subr.mxu0 0.0
    %4983 = vmatpush2.msra.mxu0 0.0
    %4984 = vmatprep.mubr.f32.mxu0 0.0
    %4985 = vmatmul.mubr.f32.gmra.mxu0 %v4437
    %v4986 = vpop.f32.mrf.mxu0
    %v4987 = vadd.f32 0.0, %v4986
    %v4988 = vpop.f32.mrf.mxu0
    %v4989 = vadd.f32 0.0, %v4988
    %4990 = vdwg.mxu0
    %4991 = vmatprep.subr.mxu0 %v399
    %4992 = vmatpush1.msra.mxu0 %v398
    %4993 = vmatprep.subr.mxu0 %v395
    %4994 = vmatpush1.msra.mxu0 %v394
    %4995 = vmatprep.subr.mxu0 %v391
    %4996 = vmatpush1.msra.mxu0 %v390
    %4997 = vmatprep.subr.mxu0 %v387
    %4998 = vmatpush1.msra.mxu0 %v386
    %4999 = vmatprep.subr.mxu0 %v383
    %5000 = vmatpush1.msra.mxu0 %v382
    %5001 = vmatprep.subr.mxu0 %v379
    %5002 = vmatpush1.msra.mxu0 %v378
    %5003 = vmatprep.subr.mxu0 %v375
    %5004 = vmatpush1.msra.mxu0 %v374
    %5005 = vmatprep.subr.mxu0 %v371
    %5006 = vmatpush1.msra.mxu0 %v370
    %5007 = vmatprep.subr.mxu0 %v367
    %5008 = vmatpush1.msra.mxu0 %v366
    %5009 = vmatprep.subr.mxu0 %v363
    %5010 = vmatpush1.msra.mxu0 %v362
    %5011 = vmatprep.subr.mxu0 %v359
    %5012 = vmatpush1.msra.mxu0 %v358
    %5013 = vmatprep.subr.mxu0 %v355
    %5014 = vmatpush1.msra.mxu0 %v354
    %5015 = vmatprep.subr.mxu0 %v351
    %5016 = vmatpush1.msra.mxu0 %v350
    %5017 = vmatprep.subr.mxu0 %v347
    %5018 = vmatpush1.msra.mxu0 %v346
    %5019 = vmatprep.subr.mxu0 %v343
    %5020 = vmatpush1.msra.mxu0 %v342
    %5021 = vmatprep.subr.mxu0 %v339
    %5022 = vmatpush1.msra.mxu0 %v338
    %5023 = vmatprep.subr.mxu0 0.0
    %5024 = vmatpush2.msra.mxu0 0.0
    %5025 = vmatprep.subr.mxu0 0.0
    %5026 = vmatpush2.msra.mxu0 0.0
    %5027 = vmatprep.subr.mxu0 0.0
    %5028 = vmatpush2.msra.mxu0 0.0
    %5029 = vmatprep.subr.mxu0 0.0
    %5030 = vmatpush2.msra.mxu0 0.0
    %5031 = vmatprep.subr.mxu0 0.0
    %5032 = vmatpush2.msra.mxu0 0.0
    %5033 = vmatprep.subr.mxu0 0.0
    %5034 = vmatpush2.msra.mxu0 0.0
    %5035 = vmatprep.subr.mxu0 0.0
    %5036 = vmatpush2.msra.mxu0 0.0
    %5037 = vmatprep.subr.mxu0 0.0
    %5038 = vmatpush2.msra.mxu0 0.0
    %5039 = vmatprep.subr.mxu0 0.0
    %5040 = vmatpush2.msra.mxu0 0.0
    %5041 = vmatprep.subr.mxu0 0.0
    %5042 = vmatpush2.msra.mxu0 0.0
    %5043 = vmatprep.subr.mxu0 0.0
    %5044 = vmatpush2.msra.mxu0 0.0
    %5045 = vmatprep.subr.mxu0 0.0
    %5046 = vmatpush2.msra.mxu0 0.0
    %5047 = vmatprep.subr.mxu0 0.0
    %5048 = vmatpush2.msra.mxu0 0.0
    %5049 = vmatprep.subr.mxu0 0.0
    %5050 = vmatpush2.msra.mxu0 0.0
    %5051 = vmatprep.subr.mxu0 0.0
    %5052 = vmatpush2.msra.mxu0 0.0
    %5053 = vmatprep.subr.mxu0 0.0
    %5054 = vmatpush2.msra.mxu0 0.0
    %5055 = vmatprep.mubr.f32.mxu0 0.0
    %5056 = vmatmul.mubr.f32.gmra.mxu0 %v4437
    %v5057 = vpop.f32.mrf.mxu0
    %v5058 = vadd.f32 0.0, %v5057
    %v5059 = vpop.f32.mrf.mxu0
    %v5060 = vadd.f32 0.0, %v5059
    %5061 = vdwg.mxu0
    %5062 = vmatprep.subr.mxu0 %v205
    %5063 = vmatpush1.msra.mxu0 %v204
    %5064 = vmatprep.subr.mxu0 %v201
    %5065 = vmatpush1.msra.mxu0 %v200
    %5066 = vmatprep.subr.mxu0 %v197
    %5067 = vmatpush1.msra.mxu0 %v196
    %5068 = vmatprep.subr.mxu0 %v193
    %5069 = vmatpush1.msra.mxu0 %v192
    %5070 = vmatprep.subr.mxu0 %v189
    %5071 = vmatpush1.msra.mxu0 %v188
    %5072 = vmatprep.subr.mxu0 %v185
    %5073 = vmatpush1.msra.mxu0 %v184
    %5074 = vmatprep.subr.mxu0 %v181
    %5075 = vmatpush1.msra.mxu0 %v180
    %5076 = vmatprep.subr.mxu0 %v177
    %5077 = vmatpush1.msra.mxu0 %v176
    %5078 = vmatprep.subr.mxu0 %v173
    %5079 = vmatpush1.msra.mxu0 %v172
    %5080 = vmatprep.subr.mxu0 %v169
    %5081 = vmatpush1.msra.mxu0 %v168
    %5082 = vmatprep.subr.mxu0 %v165
    %5083 = vmatpush1.msra.mxu0 %v164
    %5084 = vmatprep.subr.mxu0 %v161
    %5085 = vmatpush1.msra.mxu0 %v160
    %5086 = vmatprep.subr.mxu0 %v157
    %5087 = vmatpush1.msra.mxu0 %v156
    %5088 = vmatprep.subr.mxu0 %v153
    %5089 = vmatpush1.msra.mxu0 %v152
    %5090 = vmatprep.subr.mxu0 %v149
    %5091 = vmatpush1.msra.mxu0 %v148
    %5092 = vmatprep.subr.mxu0 %v145
    %5093 = vmatpush1.msra.mxu0 %v144
    %5094 = vmatprep.subr.mxu0 0.0
    %5095 = vmatpush2.msra.mxu0 0.0
    %5096 = vmatprep.subr.mxu0 0.0
    %5097 = vmatpush2.msra.mxu0 0.0
    %5098 = vmatprep.subr.mxu0 0.0
    %5099 = vmatpush2.msra.mxu0 0.0
    %5100 = vmatprep.subr.mxu0 0.0
    %5101 = vmatpush2.msra.mxu0 0.0
    %5102 = vmatprep.subr.mxu0 0.0
    %5103 = vmatpush2.msra.mxu0 0.0
    %5104 = vmatprep.subr.mxu0 0.0
    %5105 = vmatpush2.msra.mxu0 0.0
    %5106 = vmatprep.subr.mxu0 0.0
    %5107 = vmatpush2.msra.mxu0 0.0
    %5108 = vmatprep.subr.mxu0 0.0
    %5109 = vmatpush2.msra.mxu0 0.0
    %5110 = vmatprep.subr.mxu0 0.0
    %5111 = vmatpush2.msra.mxu0 0.0
    %5112 = vmatprep.subr.mxu0 0.0
    %5113 = vmatpush2.msra.mxu0 0.0
    %5114 = vmatprep.subr.mxu0 0.0
    %5115 = vmatpush2.msra.mxu0 0.0
    %5116 = vmatprep.subr.mxu0 0.0
    %5117 = vmatpush2.msra.mxu0 0.0
    %5118 = vmatprep.subr.mxu0 0.0
    %5119 = vmatpush2.msra.mxu0 0.0
    %5120 = vmatprep.subr.mxu0 0.0
    %5121 = vmatpush2.msra.mxu0 0.0
    %5122 = vmatprep.subr.mxu0 0.0
    %5123 = vmatpush2.msra.mxu0 0.0
    %5124 = vmatprep.subr.mxu0 0.0
    %5125 = vmatpush2.msra.mxu0 0.0
    %5126 = vmatprep.mubr.f32.mxu0 0.0
    %5127 = vmatmul.mubr.f32.gmra.mxu0 %v4125
    %v5128 = vpop.f32.mrf.mxu0
    %v5129 = vadd.f32 %v4987, %v5128
    %v5130 = vpop.f32.mrf.mxu0
    %v5131 = vadd.f32 %v4989, %v5130
    %5132 = vdwg.mxu0
    %5133 = vmatprep.subr.mxu0 %v207
    %5134 = vmatpush1.msra.mxu0 %v206
    %5135 = vmatprep.subr.mxu0 %v203
    %5136 = vmatpush1.msra.mxu0 %v202
    %5137 = vmatprep.subr.mxu0 %v199
    %5138 = vmatpush1.msra.mxu0 %v198
    %5139 = vmatprep.subr.mxu0 %v195
    %5140 = vmatpush1.msra.mxu0 %v194
    %5141 = vmatprep.subr.mxu0 %v191
    %5142 = vmatpush1.msra.mxu0 %v190
    %5143 = vmatprep.subr.mxu0 %v187
    %5144 = vmatpush1.msra.mxu0 %v186
    %5145 = vmatprep.subr.mxu0 %v183
    %5146 = vmatpush1.msra.mxu0 %v182
    %5147 = vmatprep.subr.mxu0 %v179
    %5148 = vmatpush1.msra.mxu0 %v178
    %5149 = vmatprep.subr.mxu0 %v175
    %5150 = vmatpush1.msra.mxu0 %v174
    %5151 = vmatprep.subr.mxu0 %v171
    %5152 = vmatpush1.msra.mxu0 %v170
    %5153 = vmatprep.subr.mxu0 %v167
    %5154 = vmatpush1.msra.mxu0 %v166
    %5155 = vmatprep.subr.mxu0 %v163
    %5156 = vmatpush1.msra.mxu0 %v162
    %5157 = vmatprep.subr.mxu0 %v159
    %5158 = vmatpush1.msra.mxu0 %v158
    %5159 = vmatprep.subr.mxu0 %v155
    %5160 = vmatpush1.msra.mxu0 %v154
    %5161 = vmatprep.subr.mxu0 %v151
    %5162 = vmatpush1.msra.mxu0 %v150
    %5163 = vmatprep.subr.mxu0 %v147
    %5164 = vmatpush1.msra.mxu0 %v146
    %5165 = vmatprep.subr.mxu0 0.0
    %5166 = vmatpush2.msra.mxu0 0.0
    %5167 = vmatprep.subr.mxu0 0.0
    %5168 = vmatpush2.msra.mxu0 0.0
    %5169 = vmatprep.subr.mxu0 0.0
    %5170 = vmatpush2.msra.mxu0 0.0
    %5171 = vmatprep.subr.mxu0 0.0
    %5172 = vmatpush2.msra.mxu0 0.0
    %5173 = vmatprep.subr.mxu0 0.0
    %5174 = vmatpush2.msra.mxu0 0.0
    %5175 = vmatprep.subr.mxu0 0.0
    %5176 = vmatpush2.msra.mxu0 0.0
    %5177 = vmatprep.subr.mxu0 0.0
    %5178 = vmatpush2.msra.mxu0 0.0
    %5179 = vmatprep.subr.mxu0 0.0
    %5180 = vmatpush2.msra.mxu0 0.0
    %5181 = vmatprep.subr.mxu0 0.0
    %5182 = vmatpush2.msra.mxu0 0.0
    %5183 = vmatprep.subr.mxu0 0.0
    %5184 = vmatpush2.msra.mxu0 0.0
    %5185 = vmatprep.subr.mxu0 0.0
    %5186 = vmatpush2.msra.mxu0 0.0
    %5187 = vmatprep.subr.mxu0 0.0
    %5188 = vmatpush2.msra.mxu0 0.0
    %5189 = vmatprep.subr.mxu0 0.0
    %5190 = vmatpush2.msra.mxu0 0.0
    %5191 = vmatprep.subr.mxu0 0.0
    %5192 = vmatpush2.msra.mxu0 0.0
    %5193 = vmatprep.subr.mxu0 0.0
    %5194 = vmatpush2.msra.mxu0 0.0
    %5195 = vmatprep.subr.mxu0 0.0
    %5196 = vmatpush2.msra.mxu0 0.0
    %5197 = vmatprep.mubr.f32.mxu0 0.0
    %5198 = vmatmul.mubr.f32.gmra.mxu0 %v4125
    %v5199 = vpop.f32.mrf.mxu0
    %v5200 = vadd.f32 %v5058, %v5199
    %v5201 = vpop.f32.mrf.mxu0
    %v5202 = vadd.f32 %v5060, %v5201
    %5203 = vdwg.mxu0
    %v5204 = vadd.f32 %v5129, %v2302
    %v5205 = vadd.f32 %v5131, %v2306
    %v5206 = vadd.f32 %v5200, %v2310
    %v5207 = vadd.f32 %v5202, %v2314
    %v5208 = vxor.u32 %v5204, 2147483648
    %v5209 = vmul.f32 %v5208, 1.442695
    %v5210 = vpow.pop %v5209
    %v5211 = vadd.f32 %v5210, 1.0
    %v5212 = vrcp.pop %v5211
    %v5213 = vmul.f32 1.0, %v5212
    %v5214 = vxor.u32 %v5205, 2147483648
    %v5215 = vmul.f32 %v5214, 1.442695
    %v5216 = vpow.pop %v5215
    %v5217 = vadd.f32 %v5216, 1.0
    %v5218 = vrcp.pop %v5217
    %v5219 = vmul.f32 1.0, %v5218
    %v5220 = vtanh.pop %v5206
    %v5221 = vxor.u32 %v5207, 2147483648
    %v5222 = vmul.f32 %v5221, 1.442695
    %v5223 = vpow.pop %v5222
    %v5224 = vadd.f32 %v5223, 1.0
    %v5225 = vrcp.pop %v5224
    %v5226 = vmul.f32 1.0, %v5225
    %v5227 = vmul.f32 %v5219, %v4435
    %v5228 = vmul.f32 %v5213, %v5220
    %v5229 = vadd.f32 %v5227, %v5228
    %v5230 = vtanh.pop %v5229
    %v5231 = vmul.f32 %v5226, %v5230
    %5232 = vmatprep.subr.mxu0 %v461
    %5233 = vmatpush1.msra.mxu0 %v460
    %5234 = vmatprep.subr.mxu0 %v457
    %5235 = vmatpush1.msra.mxu0 %v456
    %5236 = vmatprep.subr.mxu0 %v453
    %5237 = vmatpush1.msra.mxu0 %v452
    %5238 = vmatprep.subr.mxu0 %v449
    %5239 = vmatpush1.msra.mxu0 %v448
    %5240 = vmatprep.subr.mxu0 %v445
    %5241 = vmatpush1.msra.mxu0 %v444
    %5242 = vmatprep.subr.mxu0 %v441
    %5243 = vmatpush1.msra.mxu0 %v440
    %5244 = vmatprep.subr.mxu0 %v437
    %5245 = vmatpush1.msra.mxu0 %v436
    %5246 = vmatprep.subr.mxu0 %v433
    %5247 = vmatpush1.msra.mxu0 %v432
    %5248 = vmatprep.subr.mxu0 %v429
    %5249 = vmatpush1.msra.mxu0 %v428
    %5250 = vmatprep.subr.mxu0 %v425
    %5251 = vmatpush1.msra.mxu0 %v424
    %5252 = vmatprep.subr.mxu0 %v421
    %5253 = vmatpush1.msra.mxu0 %v420
    %5254 = vmatprep.subr.mxu0 %v417
    %5255 = vmatpush1.msra.mxu0 %v416
    %5256 = vmatprep.subr.mxu0 %v413
    %5257 = vmatpush1.msra.mxu0 %v412
    %5258 = vmatprep.subr.mxu0 %v409
    %5259 = vmatpush1.msra.mxu0 %v408
    %5260 = vmatprep.subr.mxu0 %v405
    %5261 = vmatpush1.msra.mxu0 %v404
    %5262 = vmatprep.subr.mxu0 %v401
    %5263 = vmatpush1.msra.mxu0 %v400
    %5264 = vmatprep.subr.mxu0 0.0
    %5265 = vmatpush2.msra.mxu0 0.0
    %5266 = vmatprep.subr.mxu0 0.0
    %5267 = vmatpush2.msra.mxu0 0.0
    %5268 = vmatprep.subr.mxu0 0.0
    %5269 = vmatpush2.msra.mxu0 0.0
    %5270 = vmatprep.subr.mxu0 0.0
    %5271 = vmatpush2.msra.mxu0 0.0
    %5272 = vmatprep.subr.mxu0 0.0
    %5273 = vmatpush2.msra.mxu0 0.0
    %5274 = vmatprep.subr.mxu0 0.0
    %5275 = vmatpush2.msra.mxu0 0.0
    %5276 = vmatprep.subr.mxu0 0.0
    %5277 = vmatpush2.msra.mxu0 0.0
    %5278 = vmatprep.subr.mxu0 0.0
    %5279 = vmatpush2.msra.mxu0 0.0
    %5280 = vmatprep.subr.mxu0 0.0
    %5281 = vmatpush2.msra.mxu0 0.0
    %5282 = vmatprep.subr.mxu0 0.0
    %5283 = vmatpush2.msra.mxu0 0.0
    %5284 = vmatprep.subr.mxu0 0.0
    %5285 = vmatpush2.msra.mxu0 0.0
    %5286 = vmatprep.subr.mxu0 0.0
    %5287 = vmatpush2.msra.mxu0 0.0
    %5288 = vmatprep.subr.mxu0 0.0
    %5289 = vmatpush2.msra.mxu0 0.0
    %5290 = vmatprep.subr.mxu0 0.0
    %5291 = vmatpush2.msra.mxu0 0.0
    %5292 = vmatprep.subr.mxu0 0.0
    %5293 = vmatpush2.msra.mxu0 0.0
    %5294 = vmatprep.subr.mxu0 0.0
    %5295 = vmatpush2.msra.mxu0 0.0
    %5296 = vmatprep.mubr.f32.mxu0 0.0
    %5297 = vmatmul.mubr.f32.gmra.mxu0 %v4749
    %v5298 = vpop.f32.mrf.mxu0
    %v5299 = vadd.f32 0.0, %v5298
    %v5300 = vpop.f32.mrf.mxu0
    %v5301 = vadd.f32 0.0, %v5300
    %5302 = vdwg.mxu0
    %5303 = vmatprep.subr.mxu0 %v463
    %5304 = vmatpush1.msra.mxu0 %v462
    %5305 = vmatprep.subr.mxu0 %v459
    %5306 = vmatpush1.msra.mxu0 %v458
    %5307 = vmatprep.subr.mxu0 %v455
    %5308 = vmatpush1.msra.mxu0 %v454
    %5309 = vmatprep.subr.mxu0 %v451
    %5310 = vmatpush1.msra.mxu0 %v450
    %5311 = vmatprep.subr.mxu0 %v447
    %5312 = vmatpush1.msra.mxu0 %v446
    %5313 = vmatprep.subr.mxu0 %v443
    %5314 = vmatpush1.msra.mxu0 %v442
    %5315 = vmatprep.subr.mxu0 %v439
    %5316 = vmatpush1.msra.mxu0 %v438
    %5317 = vmatprep.subr.mxu0 %v435
    %5318 = vmatpush1.msra.mxu0 %v434
    %5319 = vmatprep.subr.mxu0 %v431
    %5320 = vmatpush1.msra.mxu0 %v430
    %5321 = vmatprep.subr.mxu0 %v427
    %5322 = vmatpush1.msra.mxu0 %v426
    %5323 = vmatprep.subr.mxu0 %v423
    %5324 = vmatpush1.msra.mxu0 %v422
    %5325 = vmatprep.subr.mxu0 %v419
    %5326 = vmatpush1.msra.mxu0 %v418
    %5327 = vmatprep.subr.mxu0 %v415
    %5328 = vmatpush1.msra.mxu0 %v414
    %5329 = vmatprep.subr.mxu0 %v411
    %5330 = vmatpush1.msra.mxu0 %v410
    %5331 = vmatprep.subr.mxu0 %v407
    %5332 = vmatpush1.msra.mxu0 %v406
    %5333 = vmatprep.subr.mxu0 %v403
    %5334 = vmatpush1.msra.mxu0 %v402
    %5335 = vmatprep.subr.mxu0 0.0
    %5336 = vmatpush2.msra.mxu0 0.0
    %5337 = vmatprep.subr.mxu0 0.0
    %5338 = vmatpush2.msra.mxu0 0.0
    %5339 = vmatprep.subr.mxu0 0.0
    %5340 = vmatpush2.msra.mxu0 0.0
    %5341 = vmatprep.subr.mxu0 0.0
    %5342 = vmatpush2.msra.mxu0 0.0
    %5343 = vmatprep.subr.mxu0 0.0
    %5344 = vmatpush2.msra.mxu0 0.0
    %5345 = vmatprep.subr.mxu0 0.0
    %5346 = vmatpush2.msra.mxu0 0.0
    %5347 = vmatprep.subr.mxu0 0.0
    %5348 = vmatpush2.msra.mxu0 0.0
    %5349 = vmatprep.subr.mxu0 0.0
    %5350 = vmatpush2.msra.mxu0 0.0
    %5351 = vmatprep.subr.mxu0 0.0
    %5352 = vmatpush2.msra.mxu0 0.0
    %5353 = vmatprep.subr.mxu0 0.0
    %5354 = vmatpush2.msra.mxu0 0.0
    %5355 = vmatprep.subr.mxu0 0.0
    %5356 = vmatpush2.msra.mxu0 0.0
    %5357 = vmatprep.subr.mxu0 0.0
    %5358 = vmatpush2.msra.mxu0 0.0
    %5359 = vmatprep.subr.mxu0 0.0
    %5360 = vmatpush2.msra.mxu0 0.0
    %5361 = vmatprep.subr.mxu0 0.0
    %5362 = vmatpush2.msra.mxu0 0.0
    %5363 = vmatprep.subr.mxu0 0.0
    %5364 = vmatpush2.msra.mxu0 0.0
    %5365 = vmatprep.subr.mxu0 0.0
    %5366 = vmatpush2.msra.mxu0 0.0
    %5367 = vmatprep.mubr.f32.mxu0 0.0
    %5368 = vmatmul.mubr.f32.gmra.mxu0 %v4749
    %v5369 = vpop.f32.mrf.mxu0
    %v5370 = vadd.f32 0.0, %v5369
    %v5371 = vpop.f32.mrf.mxu0
    %v5372 = vadd.f32 0.0, %v5371
    %5373 = vdwg.mxu0
    %5374 = vmatprep.subr.mxu0 %v269
    %5375 = vmatpush1.msra.mxu0 %v268
    %5376 = vmatprep.subr.mxu0 %v265
    %5377 = vmatpush1.msra.mxu0 %v264
    %5378 = vmatprep.subr.mxu0 %v261
    %5379 = vmatpush1.msra.mxu0 %v260
    %5380 = vmatprep.subr.mxu0 %v257
    %5381 = vmatpush1.msra.mxu0 %v256
    %5382 = vmatprep.subr.mxu0 %v253
    %5383 = vmatpush1.msra.mxu0 %v252
    %5384 = vmatprep.subr.mxu0 %v249
    %5385 = vmatpush1.msra.mxu0 %v248
    %5386 = vmatprep.subr.mxu0 %v245
    %5387 = vmatpush1.msra.mxu0 %v244
    %5388 = vmatprep.subr.mxu0 %v241
    %5389 = vmatpush1.msra.mxu0 %v240
    %5390 = vmatprep.subr.mxu0 %v237
    %5391 = vmatpush1.msra.mxu0 %v236
    %5392 = vmatprep.subr.mxu0 %v233
    %5393 = vmatpush1.msra.mxu0 %v232
    %5394 = vmatprep.subr.mxu0 %v229
    %5395 = vmatpush1.msra.mxu0 %v228
    %5396 = vmatprep.subr.mxu0 %v225
    %5397 = vmatpush1.msra.mxu0 %v224
    %5398 = vmatprep.subr.mxu0 %v221
    %5399 = vmatpush1.msra.mxu0 %v220
    %5400 = vmatprep.subr.mxu0 %v217
    %5401 = vmatpush1.msra.mxu0 %v216
    %5402 = vmatprep.subr.mxu0 %v213
    %5403 = vmatpush1.msra.mxu0 %v212
    %5404 = vmatprep.subr.mxu0 %v209
    %5405 = vmatpush1.msra.mxu0 %v208
    %5406 = vmatprep.subr.mxu0 0.0
    %5407 = vmatpush2.msra.mxu0 0.0
    %5408 = vmatprep.subr.mxu0 0.0
    %5409 = vmatpush2.msra.mxu0 0.0
    %5410 = vmatprep.subr.mxu0 0.0
    %5411 = vmatpush2.msra.mxu0 0.0
    %5412 = vmatprep.subr.mxu0 0.0
    %5413 = vmatpush2.msra.mxu0 0.0
    %5414 = vmatprep.subr.mxu0 0.0
    %5415 = vmatpush2.msra.mxu0 0.0
    %5416 = vmatprep.subr.mxu0 0.0
    %5417 = vmatpush2.msra.mxu0 0.0
    %5418 = vmatprep.subr.mxu0 0.0
    %5419 = vmatpush2.msra.mxu0 0.0
    %5420 = vmatprep.subr.mxu0 0.0
    %5421 = vmatpush2.msra.mxu0 0.0
    %5422 = vmatprep.subr.mxu0 0.0
    %5423 = vmatpush2.msra.mxu0 0.0
    %5424 = vmatprep.subr.mxu0 0.0
    %5425 = vmatpush2.msra.mxu0 0.0
    %5426 = vmatprep.subr.mxu0 0.0
    %5427 = vmatpush2.msra.mxu0 0.0
    %5428 = vmatprep.subr.mxu0 0.0
    %5429 = vmatpush2.msra.mxu0 0.0
    %5430 = vmatprep.subr.mxu0 0.0
    %5431 = vmatpush2.msra.mxu0 0.0
    %5432 = vmatprep.subr.mxu0 0.0
    %5433 = vmatpush2.msra.mxu0 0.0
    %5434 = vmatprep.subr.mxu0 0.0
    %5435 = vmatpush2.msra.mxu0 0.0
    %5436 = vmatprep.subr.mxu0 0.0
    %5437 = vmatpush2.msra.mxu0 0.0
    %5438 = vmatprep.mubr.f32.mxu0 0.0
    %5439 = vmatmul.mubr.f32.gmra.mxu0 %v4437
    %v5440 = vpop.f32.mrf.mxu0
    %v5441 = vadd.f32 %v5299, %v5440
    %v5442 = vpop.f32.mrf.mxu0
    %v5443 = vadd.f32 %v5301, %v5442
    %5444 = vdwg.mxu0
    %5445 = vmatprep.subr.mxu0 %v271
    %5446 = vmatpush1.msra.mxu0 %v270
    %5447 = vmatprep.subr.mxu0 %v267
    %5448 = vmatpush1.msra.mxu0 %v266
    %5449 = vmatprep.subr.mxu0 %v263
    %5450 = vmatpush1.msra.mxu0 %v262
    %5451 = vmatprep.subr.mxu0 %v259
    %5452 = vmatpush1.msra.mxu0 %v258
    %5453 = vmatprep.subr.mxu0 %v255
    %5454 = vmatpush1.msra.mxu0 %v254
    %5455 = vmatprep.subr.mxu0 %v251
    %5456 = vmatpush1.msra.mxu0 %v250
    %5457 = vmatprep.subr.mxu0 %v247
    %5458 = vmatpush1.msra.mxu0 %v246
    %5459 = vmatprep.subr.mxu0 %v243
    %5460 = vmatpush1.msra.mxu0 %v242
    %5461 = vmatprep.subr.mxu0 %v239
    %5462 = vmatpush1.msra.mxu0 %v238
    %5463 = vmatprep.subr.mxu0 %v235
    %5464 = vmatpush1.msra.mxu0 %v234
    %5465 = vmatprep.subr.mxu0 %v231
    %5466 = vmatpush1.msra.mxu0 %v230
    %5467 = vmatprep.subr.mxu0 %v227
    %5468 = vmatpush1.msra.mxu0 %v226
    %5469 = vmatprep.subr.mxu0 %v223
    %5470 = vmatpush1.msra.mxu0 %v222
    %5471 = vmatprep.subr.mxu0 %v219
    %5472 = vmatpush1.msra.mxu0 %v218
    %5473 = vmatprep.subr.mxu0 %v215
    %5474 = vmatpush1.msra.mxu0 %v214
    %5475 = vmatprep.subr.mxu0 %v211
    %5476 = vmatpush1.msra.mxu0 %v210
    %5477 = vmatprep.subr.mxu0 0.0
    %5478 = vmatpush2.msra.mxu0 0.0
    %5479 = vmatprep.subr.mxu0 0.0
    %5480 = vmatpush2.msra.mxu0 0.0
    %5481 = vmatprep.subr.mxu0 0.0
    %5482 = vmatpush2.msra.mxu0 0.0
    %5483 = vmatprep.subr.mxu0 0.0
    %5484 = vmatpush2.msra.mxu0 0.0
    %5485 = vmatprep.subr.mxu0 0.0
    %5486 = vmatpush2.msra.mxu0 0.0
    %5487 = vmatprep.subr.mxu0 0.0
    %5488 = vmatpush2.msra.mxu0 0.0
    %5489 = vmatprep.subr.mxu0 0.0
    %5490 = vmatpush2.msra.mxu0 0.0
    %5491 = vmatprep.subr.mxu0 0.0
    %5492 = vmatpush2.msra.mxu0 0.0
    %5493 = vmatprep.subr.mxu0 0.0
    %5494 = vmatpush2.msra.mxu0 0.0
    %5495 = vmatprep.subr.mxu0 0.0
    %5496 = vmatpush2.msra.mxu0 0.0
    %5497 = vmatprep.subr.mxu0 0.0
    %5498 = vmatpush2.msra.mxu0 0.0
    %5499 = vmatprep.subr.mxu0 0.0
    %5500 = vmatpush2.msra.mxu0 0.0
    %5501 = vmatprep.subr.mxu0 0.0
    %5502 = vmatpush2.msra.mxu0 0.0
    %5503 = vmatprep.subr.mxu0 0.0
    %5504 = vmatpush2.msra.mxu0 0.0
    %5505 = vmatprep.subr.mxu0 0.0
    %5506 = vmatpush2.msra.mxu0 0.0
    %5507 = vmatprep.subr.mxu0 0.0
    %5508 = vmatpush2.msra.mxu0 0.0
    %5509 = vmatprep.mubr.f32.mxu0 0.0
    %5510 = vmatmul.mubr.f32.gmra.mxu0 %v4437
    %v5511 = vpop.f32.mrf.mxu0
    %v5512 = vadd.f32 %v5370, %v5511
    %v5513 = vpop.f32.mrf.mxu0
    %v5514 = vadd.f32 %v5372, %v5513
    %5515 = vdwg.mxu0
    %v5516 = vadd.f32 %v5441, %v3117
    %v5517 = vadd.f32 %v5443, %v3121
    %v5518 = vadd.f32 %v5512, %v3125
    %v5519 = vadd.f32 %v5514, %v3129
    %v5520 = vxor.u32 %v5516, 2147483648
    %v5521 = vmul.f32 %v5520, 1.442695
    %v5522 = vpow.pop %v5521
    %v5523 = vadd.f32 %v5522, 1.0
    %v5524 = vrcp.pop %v5523
    %v5525 = vmul.f32 1.0, %v5524
    %v5526 = vxor.u32 %v5517, 2147483648
    %v5527 = vmul.f32 %v5526, 1.442695
    %v5528 = vpow.pop %v5527
    %v5529 = vadd.f32 %v5528, 1.0
    %v5530 = vrcp.pop %v5529
    %v5531 = vmul.f32 1.0, %v5530
    %v5532 = vtanh.pop %v5518
    %v5533 = vxor.u32 %v5519, 2147483648
    %v5534 = vmul.f32 %v5533, 1.442695
    %v5535 = vpow.pop %v5534
    %v5536 = vadd.f32 %v5535, 1.0
    %v5537 = vrcp.pop %v5536
    %v5538 = vmul.f32 1.0, %v5537
    %v5539 = vmul.f32 %v5531, %v4747
    %v5540 = vmul.f32 %v5525, %v5532
    %v5541 = vadd.f32 %v5539, %v5540
    %v5542 = vtanh.pop %v5541
    %v5543 = vmul.f32 %v5538, %v5542
    %5544 = vmatprep.subr.mxu0 %v333
    %5545 = vmatpush1.msra.mxu0 %v332
    %5546 = vmatprep.subr.mxu0 %v329
    %5547 = vmatpush1.msra.mxu0 %v328
    %5548 = vmatprep.subr.mxu0 %v325
    %5549 = vmatpush1.msra.mxu0 %v324
    %5550 = vmatprep.subr.mxu0 %v321
    %5551 = vmatpush1.msra.mxu0 %v320
    %5552 = vmatprep.subr.mxu0 %v317
    %5553 = vmatpush1.msra.mxu0 %v316
    %5554 = vmatprep.subr.mxu0 %v313
    %5555 = vmatpush1.msra.mxu0 %v312
    %5556 = vmatprep.subr.mxu0 %v309
    %5557 = vmatpush1.msra.mxu0 %v308
    %5558 = vmatprep.subr.mxu0 %v305
    %5559 = vmatpush1.msra.mxu0 %v304
    %5560 = vmatprep.subr.mxu0 %v301
    %5561 = vmatpush1.msra.mxu0 %v300
    %5562 = vmatprep.subr.mxu0 %v297
    %5563 = vmatpush1.msra.mxu0 %v296
    %5564 = vmatprep.subr.mxu0 %v293
    %5565 = vmatpush1.msra.mxu0 %v292
    %5566 = vmatprep.subr.mxu0 %v289
    %5567 = vmatpush1.msra.mxu0 %v288
    %5568 = vmatprep.subr.mxu0 %v285
    %5569 = vmatpush1.msra.mxu0 %v284
    %5570 = vmatprep.subr.mxu0 %v281
    %5571 = vmatpush1.msra.mxu0 %v280
    %5572 = vmatprep.subr.mxu0 %v277
    %5573 = vmatpush1.msra.mxu0 %v276
    %5574 = vmatprep.subr.mxu0 %v273
    %5575 = vmatpush1.msra.mxu0 %v272
    %5576 = vmatprep.subr.mxu0 0.0
    %5577 = vmatpush2.msra.mxu0 0.0
    %5578 = vmatprep.subr.mxu0 0.0
    %5579 = vmatpush2.msra.mxu0 0.0
    %5580 = vmatprep.subr.mxu0 0.0
    %5581 = vmatpush2.msra.mxu0 0.0
    %5582 = vmatprep.subr.mxu0 0.0
    %5583 = vmatpush2.msra.mxu0 0.0
    %5584 = vmatprep.subr.mxu0 0.0
    %5585 = vmatpush2.msra.mxu0 0.0
    %5586 = vmatprep.subr.mxu0 0.0
    %5587 = vmatpush2.msra.mxu0 0.0
    %5588 = vmatprep.subr.mxu0 0.0
    %5589 = vmatpush2.msra.mxu0 0.0
    %5590 = vmatprep.subr.mxu0 0.0
    %5591 = vmatpush2.msra.mxu0 0.0
    %5592 = vmatprep.subr.mxu0 0.0
    %5593 = vmatpush2.msra.mxu0 0.0
    %5594 = vmatprep.subr.mxu0 0.0
    %5595 = vmatpush2.msra.mxu0 0.0
    %5596 = vmatprep.subr.mxu0 0.0
    %5597 = vmatpush2.msra.mxu0 0.0
    %5598 = vmatprep.subr.mxu0 0.0
    %5599 = vmatpush2.msra.mxu0 0.0
    %5600 = vmatprep.subr.mxu0 0.0
    %5601 = vmatpush2.msra.mxu0 0.0
    %5602 = vmatprep.subr.mxu0 0.0
    %5603 = vmatpush2.msra.mxu0 0.0
    %5604 = vmatprep.subr.mxu0 0.0
    %5605 = vmatpush2.msra.mxu0 0.0
    %5606 = vmatprep.subr.mxu0 0.0
    %5607 = vmatpush2.msra.mxu0 0.0
    %5608 = vmatprep.mubr.f32.mxu0 0.0
    %5609 = vmatmul.mubr.f32.gmra.mxu0 %v4919
    %v5610 = vpop.f32.mrf.mxu0
    %v5611 = vadd.f32 0.0, %v5610
    %v5612 = vpop.f32.mrf.mxu0
    %v5613 = vadd.f32 0.0, %v5612
    %5614 = vdwg.mxu0
    %5615 = vmatprep.subr.mxu0 %v335
    %5616 = vmatpush1.msra.mxu0 %v334
    %5617 = vmatprep.subr.mxu0 %v331
    %5618 = vmatpush1.msra.mxu0 %v330
    %5619 = vmatprep.subr.mxu0 %v327
    %5620 = vmatpush1.msra.mxu0 %v326
    %5621 = vmatprep.subr.mxu0 %v323
    %5622 = vmatpush1.msra.mxu0 %v322
    %5623 = vmatprep.subr.mxu0 %v319
    %5624 = vmatpush1.msra.mxu0 %v318
    %5625 = vmatprep.subr.mxu0 %v315
    %5626 = vmatpush1.msra.mxu0 %v314
    %5627 = vmatprep.subr.mxu0 %v311
    %5628 = vmatpush1.msra.mxu0 %v310
    %5629 = vmatprep.subr.mxu0 %v307
    %5630 = vmatpush1.msra.mxu0 %v306
    %5631 = vmatprep.subr.mxu0 %v303
    %5632 = vmatpush1.msra.mxu0 %v302
    %5633 = vmatprep.subr.mxu0 %v299
    %5634 = vmatpush1.msra.mxu0 %v298
    %5635 = vmatprep.subr.mxu0 %v295
    %5636 = vmatpush1.msra.mxu0 %v294
    %5637 = vmatprep.subr.mxu0 %v291
    %5638 = vmatpush1.msra.mxu0 %v290
    %5639 = vmatprep.subr.mxu0 %v287
    %5640 = vmatpush1.msra.mxu0 %v286
    %5641 = vmatprep.subr.mxu0 %v283
    %5642 = vmatpush1.msra.mxu0 %v282
    %5643 = vmatprep.subr.mxu0 %v279
    %5644 = vmatpush1.msra.mxu0 %v278
    %5645 = vmatprep.subr.mxu0 %v275
    %5646 = vmatpush1.msra.mxu0 %v274
    %5647 = vmatprep.subr.mxu0 0.0
    %5648 = vmatpush2.msra.mxu0 0.0
    %5649 = vmatprep.subr.mxu0 0.0
    %5650 = vmatpush2.msra.mxu0 0.0
    %5651 = vmatprep.subr.mxu0 0.0
    %5652 = vmatpush2.msra.mxu0 0.0
    %5653 = vmatprep.subr.mxu0 0.0
    %5654 = vmatpush2.msra.mxu0 0.0
    %5655 = vmatprep.subr.mxu0 0.0
    %5656 = vmatpush2.msra.mxu0 0.0
    %5657 = vmatprep.subr.mxu0 0.0
    %5658 = vmatpush2.msra.mxu0 0.0
    %5659 = vmatprep.subr.mxu0 0.0
    %5660 = vmatpush2.msra.mxu0 0.0
    %5661 = vmatprep.subr.mxu0 0.0
    %5662 = vmatpush2.msra.mxu0 0.0
    %5663 = vmatprep.subr.mxu0 0.0
    %5664 = vmatpush2.msra.mxu0 0.0
    %5665 = vmatprep.subr.mxu0 0.0
    %5666 = vmatpush2.msra.mxu0 0.0
    %5667 = vmatprep.subr.mxu0 0.0
    %5668 = vmatpush2.msra.mxu0 0.0
    %5669 = vmatprep.subr.mxu0 0.0
    %5670 = vmatpush2.msra.mxu0 0.0
    %5671 = vmatprep.subr.mxu0 0.0
    %5672 = vmatpush2.msra.mxu0 0.0
    %5673 = vmatprep.subr.mxu0 0.0
    %5674 = vmatpush2.msra.mxu0 0.0
    %5675 = vmatprep.subr.mxu0 0.0
    %5676 = vmatpush2.msra.mxu0 0.0
    %5677 = vmatprep.subr.mxu0 0.0
    %5678 = vmatpush2.msra.mxu0 0.0
    %5679 = vmatprep.mubr.f32.mxu0 0.0
    %5680 = vmatmul.mubr.f32.gmra.mxu0 %v4919
    %v5681 = vpop.f32.mrf.mxu0
    %v5682 = vadd.f32 0.0, %v5681
    %v5683 = vpop.f32.mrf.mxu0
    %v5684 = vadd.f32 0.0, %v5683
    %5685 = vdwg.mxu0
    %v5686 = vadd.f32 %v1454, %v5611
    %v5687 = vadd.f32 %v1456, %v5613
    %v5688 = vadd.f32 %v1525, %v5682
    %v5689 = vadd.f32 %v1527, %v5684
    %v5690 = vxor.u32 %v5686, 2147483648
    %v5691 = vmul.f32 %v5690, 1.442695
    %v5692 = vpow.pop %v5691
    %v5693 = vadd.f32 %v5692, 1.0
    %v5694 = vrcp.pop %v5693
    %v5695 = vmul.f32 1.0, %v5694
    %v5696 = vxor.u32 %v5687, 2147483648
    %v5697 = vmul.f32 %v5696, 1.442695
    %v5698 = vpow.pop %v5697
    %v5699 = vadd.f32 %v5698, 1.0
    %v5700 = vrcp.pop %v5699
    %v5701 = vmul.f32 1.0, %v5700
    %v5702 = vtanh.pop %v5688
    %v5703 = vxor.u32 %v5689, 2147483648
    %v5704 = vmul.f32 %v5703, 1.442695
    %v5705 = vpow.pop %v5704
    %v5706 = vadd.f32 %v5705, 1.0
    %v5707 = vrcp.pop %v5706
    %v5708 = vmul.f32 1.0, %v5707
    %v5709 = vmul.f32 %v5701, %v4917
    %v5710 = vmul.f32 %v5695, %v5702
    %v5711 = vadd.f32 %v5709, %v5710
    %v5712 = vtanh.pop %v5711
    %v5713 = vmul.f32 %v5708, %v5712
    %5714 = vmatprep.subr.mxu0 %v397
    %5715 = vmatpush1.msra.mxu0 %v396
    %5716 = vmatprep.subr.mxu0 %v393
    %5717 = vmatpush1.msra.mxu0 %v392
    %5718 = vmatprep.subr.mxu0 %v389
    %5719 = vmatpush1.msra.mxu0 %v388
    %5720 = vmatprep.subr.mxu0 %v385
    %5721 = vmatpush1.msra.mxu0 %v384
    %5722 = vmatprep.subr.mxu0 %v381
    %5723 = vmatpush1.msra.mxu0 %v380
    %5724 = vmatprep.subr.mxu0 %v377
    %5725 = vmatpush1.msra.mxu0 %v376
    %5726 = vmatprep.subr.mxu0 %v373
    %5727 = vmatpush1.msra.mxu0 %v372
    %5728 = vmatprep.subr.mxu0 %v369
    %5729 = vmatpush1.msra.mxu0 %v368
    %5730 = vmatprep.subr.mxu0 %v365
    %5731 = vmatpush1.msra.mxu0 %v364
    %5732 = vmatprep.subr.mxu0 %v361
    %5733 = vmatpush1.msra.mxu0 %v360
    %5734 = vmatprep.subr.mxu0 %v357
    %5735 = vmatpush1.msra.mxu0 %v356
    %5736 = vmatprep.subr.mxu0 %v353
    %5737 = vmatpush1.msra.mxu0 %v352
    %5738 = vmatprep.subr.mxu0 %v349
    %5739 = vmatpush1.msra.mxu0 %v348
    %5740 = vmatprep.subr.mxu0 %v345
    %5741 = vmatpush1.msra.mxu0 %v344
    %5742 = vmatprep.subr.mxu0 %v341
    %5743 = vmatpush1.msra.mxu0 %v340
    %5744 = vmatprep.subr.mxu0 %v337
    %5745 = vmatpush1.msra.mxu0 %v336
    %5746 = vmatprep.subr.mxu0 0.0
    %5747 = vmatpush2.msra.mxu0 0.0
    %5748 = vmatprep.subr.mxu0 0.0
    %5749 = vmatpush2.msra.mxu0 0.0
    %5750 = vmatprep.subr.mxu0 0.0
    %5751 = vmatpush2.msra.mxu0 0.0
    %5752 = vmatprep.subr.mxu0 0.0
    %5753 = vmatpush2.msra.mxu0 0.0
    %5754 = vmatprep.subr.mxu0 0.0
    %5755 = vmatpush2.msra.mxu0 0.0
    %5756 = vmatprep.subr.mxu0 0.0
    %5757 = vmatpush2.msra.mxu0 0.0
    %5758 = vmatprep.subr.mxu0 0.0
    %5759 = vmatpush2.msra.mxu0 0.0
    %5760 = vmatprep.subr.mxu0 0.0
    %5761 = vmatpush2.msra.mxu0 0.0
    %5762 = vmatprep.subr.mxu0 0.0
    %5763 = vmatpush2.msra.mxu0 0.0
    %5764 = vmatprep.subr.mxu0 0.0
    %5765 = vmatpush2.msra.mxu0 0.0
    %5766 = vmatprep.subr.mxu0 0.0
    %5767 = vmatpush2.msra.mxu0 0.0
    %5768 = vmatprep.subr.mxu0 0.0
    %5769 = vmatpush2.msra.mxu0 0.0
    %5770 = vmatprep.subr.mxu0 0.0
    %5771 = vmatpush2.msra.mxu0 0.0
    %5772 = vmatprep.subr.mxu0 0.0
    %5773 = vmatpush2.msra.mxu0 0.0
    %5774 = vmatprep.subr.mxu0 0.0
    %5775 = vmatpush2.msra.mxu0 0.0
    %5776 = vmatprep.subr.mxu0 0.0
    %5777 = vmatpush2.msra.mxu0 0.0
    %5778 = vmatprep.mubr.f32.mxu0 0.0
    %5779 = vmatmul.mubr.f32.gmra.mxu0 %v5231
    %v5780 = vpop.f32.mrf.mxu0
    %v5781 = vadd.f32 0.0, %v5780
    %v5782 = vpop.f32.mrf.mxu0
    %v5783 = vadd.f32 0.0, %v5782
    %5784 = vdwg.mxu0
    %5785 = vmatprep.subr.mxu0 %v399
    %5786 = vmatpush1.msra.mxu0 %v398
    %5787 = vmatprep.subr.mxu0 %v395
    %5788 = vmatpush1.msra.mxu0 %v394
    %5789 = vmatprep.subr.mxu0 %v391
    %5790 = vmatpush1.msra.mxu0 %v390
    %5791 = vmatprep.subr.mxu0 %v387
    %5792 = vmatpush1.msra.mxu0 %v386
    %5793 = vmatprep.subr.mxu0 %v383
    %5794 = vmatpush1.msra.mxu0 %v382
    %5795 = vmatprep.subr.mxu0 %v379
    %5796 = vmatpush1.msra.mxu0 %v378
    %5797 = vmatprep.subr.mxu0 %v375
    %5798 = vmatpush1.msra.mxu0 %v374
    %5799 = vmatprep.subr.mxu0 %v371
    %5800 = vmatpush1.msra.mxu0 %v370
    %5801 = vmatprep.subr.mxu0 %v367
    %5802 = vmatpush1.msra.mxu0 %v366
    %5803 = vmatprep.subr.mxu0 %v363
    %5804 = vmatpush1.msra.mxu0 %v362
    %5805 = vmatprep.subr.mxu0 %v359
    %5806 = vmatpush1.msra.mxu0 %v358
    %5807 = vmatprep.subr.mxu0 %v355
    %5808 = vmatpush1.msra.mxu0 %v354
    %5809 = vmatprep.subr.mxu0 %v351
    %5810 = vmatpush1.msra.mxu0 %v350
    %5811 = vmatprep.subr.mxu0 %v347
    %5812 = vmatpush1.msra.mxu0 %v346
    %5813 = vmatprep.subr.mxu0 %v343
    %5814 = vmatpush1.msra.mxu0 %v342
    %5815 = vmatprep.subr.mxu0 %v339
    %5816 = vmatpush1.msra.mxu0 %v338
    %5817 = vmatprep.subr.mxu0 0.0
    %5818 = vmatpush2.msra.mxu0 0.0
    %5819 = vmatprep.subr.mxu0 0.0
    %5820 = vmatpush2.msra.mxu0 0.0
    %5821 = vmatprep.subr.mxu0 0.0
    %5822 = vmatpush2.msra.mxu0 0.0
    %5823 = vmatprep.subr.mxu0 0.0
    %5824 = vmatpush2.msra.mxu0 0.0
    %5825 = vmatprep.subr.mxu0 0.0
    %5826 = vmatpush2.msra.mxu0 0.0
    %5827 = vmatprep.subr.mxu0 0.0
    %5828 = vmatpush2.msra.mxu0 0.0
    %5829 = vmatprep.subr.mxu0 0.0
    %5830 = vmatpush2.msra.mxu0 0.0
    %5831 = vmatprep.subr.mxu0 0.0
    %5832 = vmatpush2.msra.mxu0 0.0
    %5833 = vmatprep.subr.mxu0 0.0
    %5834 = vmatpush2.msra.mxu0 0.0
    %5835 = vmatprep.subr.mxu0 0.0
    %5836 = vmatpush2.msra.mxu0 0.0
    %5837 = vmatprep.subr.mxu0 0.0
    %5838 = vmatpush2.msra.mxu0 0.0
    %5839 = vmatprep.subr.mxu0 0.0
    %5840 = vmatpush2.msra.mxu0 0.0
    %5841 = vmatprep.subr.mxu0 0.0
    %5842 = vmatpush2.msra.mxu0 0.0
    %5843 = vmatprep.subr.mxu0 0.0
    %5844 = vmatpush2.msra.mxu0 0.0
    %5845 = vmatprep.subr.mxu0 0.0
    %5846 = vmatpush2.msra.mxu0 0.0
    %5847 = vmatprep.subr.mxu0 0.0
    %5848 = vmatpush2.msra.mxu0 0.0
    %5849 = vmatprep.mubr.f32.mxu0 0.0
    %5850 = vmatmul.mubr.f32.gmra.mxu0 %v5231
    %v5851 = vpop.f32.mrf.mxu0
    %v5852 = vadd.f32 0.0, %v5851
    %v5853 = vpop.f32.mrf.mxu0
    %v5854 = vadd.f32 0.0, %v5853
    %5855 = vdwg.mxu0
    %5856 = vmatprep.subr.mxu0 %v205
    %5857 = vmatpush1.msra.mxu0 %v204
    %5858 = vmatprep.subr.mxu0 %v201
    %5859 = vmatpush1.msra.mxu0 %v200
    %5860 = vmatprep.subr.mxu0 %v197
    %5861 = vmatpush1.msra.mxu0 %v196
    %5862 = vmatprep.subr.mxu0 %v193
    %5863 = vmatpush1.msra.mxu0 %v192
    %5864 = vmatprep.subr.mxu0 %v189
    %5865 = vmatpush1.msra.mxu0 %v188
    %5866 = vmatprep.subr.mxu0 %v185
    %5867 = vmatpush1.msra.mxu0 %v184
    %5868 = vmatprep.subr.mxu0 %v181
    %5869 = vmatpush1.msra.mxu0 %v180
    %5870 = vmatprep.subr.mxu0 %v177
    %5871 = vmatpush1.msra.mxu0 %v176
    %5872 = vmatprep.subr.mxu0 %v173
    %5873 = vmatpush1.msra.mxu0 %v172
    %5874 = vmatprep.subr.mxu0 %v169
    %5875 = vmatpush1.msra.mxu0 %v168
    %5876 = vmatprep.subr.mxu0 %v165
    %5877 = vmatpush1.msra.mxu0 %v164
    %5878 = vmatprep.subr.mxu0 %v161
    %5879 = vmatpush1.msra.mxu0 %v160
    %5880 = vmatprep.subr.mxu0 %v157
    %5881 = vmatpush1.msra.mxu0 %v156
    %5882 = vmatprep.subr.mxu0 %v153
    %5883 = vmatpush1.msra.mxu0 %v152
    %5884 = vmatprep.subr.mxu0 %v149
    %5885 = vmatpush1.msra.mxu0 %v148
    %5886 = vmatprep.subr.mxu0 %v145
    %5887 = vmatpush1.msra.mxu0 %v144
    %5888 = vmatprep.subr.mxu0 0.0
    %5889 = vmatpush2.msra.mxu0 0.0
    %5890 = vmatprep.subr.mxu0 0.0
    %5891 = vmatpush2.msra.mxu0 0.0
    %5892 = vmatprep.subr.mxu0 0.0
    %5893 = vmatpush2.msra.mxu0 0.0
    %5894 = vmatprep.subr.mxu0 0.0
    %5895 = vmatpush2.msra.mxu0 0.0
    %5896 = vmatprep.subr.mxu0 0.0
    %5897 = vmatpush2.msra.mxu0 0.0
    %5898 = vmatprep.subr.mxu0 0.0
    %5899 = vmatpush2.msra.mxu0 0.0
    %5900 = vmatprep.subr.mxu0 0.0
    %5901 = vmatpush2.msra.mxu0 0.0
    %5902 = vmatprep.subr.mxu0 0.0
    %5903 = vmatpush2.msra.mxu0 0.0
    %5904 = vmatprep.subr.mxu0 0.0
    %5905 = vmatpush2.msra.mxu0 0.0
    %5906 = vmatprep.subr.mxu0 0.0
    %5907 = vmatpush2.msra.mxu0 0.0
    %5908 = vmatprep.subr.mxu0 0.0
    %5909 = vmatpush2.msra.mxu0 0.0
    %5910 = vmatprep.subr.mxu0 0.0
    %5911 = vmatpush2.msra.mxu0 0.0
    %5912 = vmatprep.subr.mxu0 0.0
    %5913 = vmatpush2.msra.mxu0 0.0
    %5914 = vmatprep.subr.mxu0 0.0
    %5915 = vmatpush2.msra.mxu0 0.0
    %5916 = vmatprep.subr.mxu0 0.0
    %5917 = vmatpush2.msra.mxu0 0.0
    %5918 = vmatprep.subr.mxu0 0.0
    %5919 = vmatpush2.msra.mxu0 0.0
    %5920 = vmatprep.mubr.f32.mxu0 0.0
    %5921 = vmatmul.mubr.f32.gmra.mxu0 %v4919
    %v5922 = vpop.f32.mrf.mxu0
    %v5923 = vadd.f32 %v5781, %v5922
    %v5924 = vpop.f32.mrf.mxu0
    %v5925 = vadd.f32 %v5783, %v5924
    %5926 = vdwg.mxu0
    %5927 = vmatprep.subr.mxu0 %v207
    %5928 = vmatpush1.msra.mxu0 %v206
    %5929 = vmatprep.subr.mxu0 %v203
    %5930 = vmatpush1.msra.mxu0 %v202
    %5931 = vmatprep.subr.mxu0 %v199
    %5932 = vmatpush1.msra.mxu0 %v198
    %5933 = vmatprep.subr.mxu0 %v195
    %5934 = vmatpush1.msra.mxu0 %v194
    %5935 = vmatprep.subr.mxu0 %v191
    %5936 = vmatpush1.msra.mxu0 %v190
    %5937 = vmatprep.subr.mxu0 %v187
    %5938 = vmatpush1.msra.mxu0 %v186
    %5939 = vmatprep.subr.mxu0 %v183
    %5940 = vmatpush1.msra.mxu0 %v182
    %5941 = vmatprep.subr.mxu0 %v179
    %5942 = vmatpush1.msra.mxu0 %v178
    %5943 = vmatprep.subr.mxu0 %v175
    %5944 = vmatpush1.msra.mxu0 %v174
    %5945 = vmatprep.subr.mxu0 %v171
    %5946 = vmatpush1.msra.mxu0 %v170
    %5947 = vmatprep.subr.mxu0 %v167
    %5948 = vmatpush1.msra.mxu0 %v166
    %5949 = vmatprep.subr.mxu0 %v163
    %5950 = vmatpush1.msra.mxu0 %v162
    %5951 = vmatprep.subr.mxu0 %v159
    %5952 = vmatpush1.msra.mxu0 %v158
    %5953 = vmatprep.subr.mxu0 %v155
    %5954 = vmatpush1.msra.mxu0 %v154
    %5955 = vmatprep.subr.mxu0 %v151
    %5956 = vmatpush1.msra.mxu0 %v150
    %5957 = vmatprep.subr.mxu0 %v147
    %5958 = vmatpush1.msra.mxu0 %v146
    %5959 = vmatprep.subr.mxu0 0.0
    %5960 = vmatpush2.msra.mxu0 0.0
    %5961 = vmatprep.subr.mxu0 0.0
    %5962 = vmatpush2.msra.mxu0 0.0
    %5963 = vmatprep.subr.mxu0 0.0
    %5964 = vmatpush2.msra.mxu0 0.0
    %5965 = vmatprep.subr.mxu0 0.0
    %5966 = vmatpush2.msra.mxu0 0.0
    %5967 = vmatprep.subr.mxu0 0.0
    %5968 = vmatpush2.msra.mxu0 0.0
    %5969 = vmatprep.subr.mxu0 0.0
    %5970 = vmatpush2.msra.mxu0 0.0
    %5971 = vmatprep.subr.mxu0 0.0
    %5972 = vmatpush2.msra.mxu0 0.0
    %5973 = vmatprep.subr.mxu0 0.0
    %5974 = vmatpush2.msra.mxu0 0.0
    %5975 = vmatprep.subr.mxu0 0.0
    %5976 = vmatpush2.msra.mxu0 0.0
    %5977 = vmatprep.subr.mxu0 0.0
    %5978 = vmatpush2.msra.mxu0 0.0
    %5979 = vmatprep.subr.mxu0 0.0
    %5980 = vmatpush2.msra.mxu0 0.0
    %5981 = vmatprep.subr.mxu0 0.0
    %5982 = vmatpush2.msra.mxu0 0.0
    %5983 = vmatprep.subr.mxu0 0.0
    %5984 = vmatpush2.msra.mxu0 0.0
    %5985 = vmatprep.subr.mxu0 0.0
    %5986 = vmatpush2.msra.mxu0 0.0
    %5987 = vmatprep.subr.mxu0 0.0
    %5988 = vmatpush2.msra.mxu0 0.0
    %5989 = vmatprep.subr.mxu0 0.0
    %5990 = vmatpush2.msra.mxu0 0.0
    %5991 = vmatprep.mubr.f32.mxu0 0.0
    %5992 = vmatmul.mubr.f32.gmra.mxu0 %v4919
    %v5993 = vpop.f32.mrf.mxu0
    %v5994 = vadd.f32 %v5852, %v5993
    %v5995 = vpop.f32.mrf.mxu0
    %v5996 = vadd.f32 %v5854, %v5995
    %5997 = vdwg.mxu0
    %v5998 = vadd.f32 %v5923, %v2302
    %v5999 = vadd.f32 %v5925, %v2306
    %v6000 = vadd.f32 %v5994, %v2310
    %v6001 = vadd.f32 %v5996, %v2314
    %v6002 = vxor.u32 %v5998, 2147483648
    %v6003 = vmul.f32 %v6002, 1.442695
    %v6004 = vpow.pop %v6003
    %v6005 = vadd.f32 %v6004, 1.0
    %v6006 = vrcp.pop %v6005
    %v6007 = vmul.f32 1.0, %v6006
    %v6008 = vxor.u32 %v5999, 2147483648
    %v6009 = vmul.f32 %v6008, 1.442695
    %v6010 = vpow.pop %v6009
    %v6011 = vadd.f32 %v6010, 1.0
    %v6012 = vrcp.pop %v6011
    %v6013 = vmul.f32 1.0, %v6012
    %v6014 = vtanh.pop %v6000
    %v6015 = vxor.u32 %v6001, 2147483648
    %v6016 = vmul.f32 %v6015, 1.442695
    %v6017 = vpow.pop %v6016
    %v6018 = vadd.f32 %v6017, 1.0
    %v6019 = vrcp.pop %v6018
    %v6020 = vmul.f32 1.0, %v6019
    %v6021 = vmul.f32 %v6013, %v5229
    %v6022 = vmul.f32 %v6007, %v6014
    %v6023 = vadd.f32 %v6021, %v6022
    %v6024 = vtanh.pop %v6023
    %v6025 = vmul.f32 %v6020, %v6024
    %6026 = vmatprep.subr.mxu0 %v461
    %6027 = vmatpush1.msra.mxu0 %v460
    %6028 = vmatprep.subr.mxu0 %v457
    %6029 = vmatpush1.msra.mxu0 %v456
    %6030 = vmatprep.subr.mxu0 %v453
    %6031 = vmatpush1.msra.mxu0 %v452
    %6032 = vmatprep.subr.mxu0 %v449
    %6033 = vmatpush1.msra.mxu0 %v448
    %6034 = vmatprep.subr.mxu0 %v445
    %6035 = vmatpush1.msra.mxu0 %v444
    %6036 = vmatprep.subr.mxu0 %v441
    %6037 = vmatpush1.msra.mxu0 %v440
    %6038 = vmatprep.subr.mxu0 %v437
    %6039 = vmatpush1.msra.mxu0 %v436
    %6040 = vmatprep.subr.mxu0 %v433
    %6041 = vmatpush1.msra.mxu0 %v432
    %6042 = vmatprep.subr.mxu0 %v429
    %6043 = vmatpush1.msra.mxu0 %v428
    %6044 = vmatprep.subr.mxu0 %v425
    %6045 = vmatpush1.msra.mxu0 %v424
    %6046 = vmatprep.subr.mxu0 %v421
    %6047 = vmatpush1.msra.mxu0 %v420
    %6048 = vmatprep.subr.mxu0 %v417
    %6049 = vmatpush1.msra.mxu0 %v416
    %6050 = vmatprep.subr.mxu0 %v413
    %6051 = vmatpush1.msra.mxu0 %v412
    %6052 = vmatprep.subr.mxu0 %v409
    %6053 = vmatpush1.msra.mxu0 %v408
    %6054 = vmatprep.subr.mxu0 %v405
    %6055 = vmatpush1.msra.mxu0 %v404
    %6056 = vmatprep.subr.mxu0 %v401
    %6057 = vmatpush1.msra.mxu0 %v400
    %6058 = vmatprep.subr.mxu0 0.0
    %6059 = vmatpush2.msra.mxu0 0.0
    %6060 = vmatprep.subr.mxu0 0.0
    %6061 = vmatpush2.msra.mxu0 0.0
    %6062 = vmatprep.subr.mxu0 0.0
    %6063 = vmatpush2.msra.mxu0 0.0
    %6064 = vmatprep.subr.mxu0 0.0
    %6065 = vmatpush2.msra.mxu0 0.0
    %6066 = vmatprep.subr.mxu0 0.0
    %6067 = vmatpush2.msra.mxu0 0.0
    %6068 = vmatprep.subr.mxu0 0.0
    %6069 = vmatpush2.msra.mxu0 0.0
    %6070 = vmatprep.subr.mxu0 0.0
    %6071 = vmatpush2.msra.mxu0 0.0
    %6072 = vmatprep.subr.mxu0 0.0
    %6073 = vmatpush2.msra.mxu0 0.0
    %6074 = vmatprep.subr.mxu0 0.0
    %6075 = vmatpush2.msra.mxu0 0.0
    %6076 = vmatprep.subr.mxu0 0.0
    %6077 = vmatpush2.msra.mxu0 0.0
    %6078 = vmatprep.subr.mxu0 0.0
    %6079 = vmatpush2.msra.mxu0 0.0
    %6080 = vmatprep.subr.mxu0 0.0
    %6081 = vmatpush2.msra.mxu0 0.0
    %6082 = vmatprep.subr.mxu0 0.0
    %6083 = vmatpush2.msra.mxu0 0.0
    %6084 = vmatprep.subr.mxu0 0.0
    %6085 = vmatpush2.msra.mxu0 0.0
    %6086 = vmatprep.subr.mxu0 0.0
    %6087 = vmatpush2.msra.mxu0 0.0
    %6088 = vmatprep.subr.mxu0 0.0
    %6089 = vmatpush2.msra.mxu0 0.0
    %6090 = vmatprep.mubr.f32.mxu0 0.0
    %6091 = vmatmul.mubr.f32.gmra.mxu0 %v5543
    %v6092 = vpop.f32.mrf.mxu0
    %v6093 = vadd.f32 0.0, %v6092
    %v6094 = vpop.f32.mrf.mxu0
    %v6095 = vadd.f32 0.0, %v6094
    %6096 = vdwg.mxu0
    %6097 = vmatprep.subr.mxu0 %v463
    %6098 = vmatpush1.msra.mxu0 %v462
    %6099 = vmatprep.subr.mxu0 %v459
    %6100 = vmatpush1.msra.mxu0 %v458
    %6101 = vmatprep.subr.mxu0 %v455
    %6102 = vmatpush1.msra.mxu0 %v454
    %6103 = vmatprep.subr.mxu0 %v451
    %6104 = vmatpush1.msra.mxu0 %v450
    %6105 = vmatprep.subr.mxu0 %v447
    %6106 = vmatpush1.msra.mxu0 %v446
    %6107 = vmatprep.subr.mxu0 %v443
    %6108 = vmatpush1.msra.mxu0 %v442
    %6109 = vmatprep.subr.mxu0 %v439
    %6110 = vmatpush1.msra.mxu0 %v438
    %6111 = vmatprep.subr.mxu0 %v435
    %6112 = vmatpush1.msra.mxu0 %v434
    %6113 = vmatprep.subr.mxu0 %v431
    %6114 = vmatpush1.msra.mxu0 %v430
    %6115 = vmatprep.subr.mxu0 %v427
    %6116 = vmatpush1.msra.mxu0 %v426
    %6117 = vmatprep.subr.mxu0 %v423
    %6118 = vmatpush1.msra.mxu0 %v422
    %6119 = vmatprep.subr.mxu0 %v419
    %6120 = vmatpush1.msra.mxu0 %v418
    %6121 = vmatprep.subr.mxu0 %v415
    %6122 = vmatpush1.msra.mxu0 %v414
    %6123 = vmatprep.subr.mxu0 %v411
    %6124 = vmatpush1.msra.mxu0 %v410
    %6125 = vmatprep.subr.mxu0 %v407
    %6126 = vmatpush1.msra.mxu0 %v406
    %6127 = vmatprep.subr.mxu0 %v403
    %6128 = vmatpush1.msra.mxu0 %v402
    %6129 = vmatprep.subr.mxu0 0.0
    %6130 = vmatpush2.msra.mxu0 0.0
    %6131 = vmatprep.subr.mxu0 0.0
    %6132 = vmatpush2.msra.mxu0 0.0
    %6133 = vmatprep.subr.mxu0 0.0
    %6134 = vmatpush2.msra.mxu0 0.0
    %6135 = vmatprep.subr.mxu0 0.0
    %6136 = vmatpush2.msra.mxu0 0.0
    %6137 = vmatprep.subr.mxu0 0.0
    %6138 = vmatpush2.msra.mxu0 0.0
    %6139 = vmatprep.subr.mxu0 0.0
    %6140 = vmatpush2.msra.mxu0 0.0
    %6141 = vmatprep.subr.mxu0 0.0
    %6142 = vmatpush2.msra.mxu0 0.0
    %6143 = vmatprep.subr.mxu0 0.0
    %6144 = vmatpush2.msra.mxu0 0.0
    %6145 = vmatprep.subr.mxu0 0.0
    %6146 = vmatpush2.msra.mxu0 0.0
    %6147 = vmatprep.subr.mxu0 0.0
    %6148 = vmatpush2.msra.mxu0 0.0
    %6149 = vmatprep.subr.mxu0 0.0
    %6150 = vmatpush2.msra.mxu0 0.0
    %6151 = vmatprep.subr.mxu0 0.0
    %6152 = vmatpush2.msra.mxu0 0.0
    %6153 = vmatprep.subr.mxu0 0.0
    %6154 = vmatpush2.msra.mxu0 0.0
    %6155 = vmatprep.subr.mxu0 0.0
    %6156 = vmatpush2.msra.mxu0 0.0
    %6157 = vmatprep.subr.mxu0 0.0
    %6158 = vmatpush2.msra.mxu0 0.0
    %6159 = vmatprep.subr.mxu0 0.0
    %6160 = vmatpush2.msra.mxu0 0.0
    %6161 = vmatprep.mubr.f32.mxu0 0.0
    %6162 = vmatmul.mubr.f32.gmra.mxu0 %v5543
    %v6163 = vpop.f32.mrf.mxu0
    %v6164 = vadd.f32 0.0, %v6163
    %v6165 = vpop.f32.mrf.mxu0
    %v6166 = vadd.f32 0.0, %v6165
    %6167 = vdwg.mxu0
    %6168 = vmatprep.subr.mxu0 %v269
    %6169 = vmatpush1.msra.mxu0 %v268
    %6170 = vmatprep.subr.mxu0 %v265
    %6171 = vmatpush1.msra.mxu0 %v264
    %6172 = vmatprep.subr.mxu0 %v261
    %6173 = vmatpush1.msra.mxu0 %v260
    %6174 = vmatprep.subr.mxu0 %v257
    %6175 = vmatpush1.msra.mxu0 %v256
    %6176 = vmatprep.subr.mxu0 %v253
    %6177 = vmatpush1.msra.mxu0 %v252
    %6178 = vmatprep.subr.mxu0 %v249
    %6179 = vmatpush1.msra.mxu0 %v248
    %6180 = vmatprep.subr.mxu0 %v245
    %6181 = vmatpush1.msra.mxu0 %v244
    %6182 = vmatprep.subr.mxu0 %v241
    %6183 = vmatpush1.msra.mxu0 %v240
    %6184 = vmatprep.subr.mxu0 %v237
    %6185 = vmatpush1.msra.mxu0 %v236
    %6186 = vmatprep.subr.mxu0 %v233
    %6187 = vmatpush1.msra.mxu0 %v232
    %6188 = vmatprep.subr.mxu0 %v229
    %6189 = vmatpush1.msra.mxu0 %v228
    %6190 = vmatprep.subr.mxu0 %v225
    %6191 = vmatpush1.msra.mxu0 %v224
    %6192 = vmatprep.subr.mxu0 %v221
    %6193 = vmatpush1.msra.mxu0 %v220
    %6194 = vmatprep.subr.mxu0 %v217
    %6195 = vmatpush1.msra.mxu0 %v216
    %6196 = vmatprep.subr.mxu0 %v213
    %6197 = vmatpush1.msra.mxu0 %v212
    %6198 = vmatprep.subr.mxu0 %v209
    %6199 = vmatpush1.msra.mxu0 %v208
    %6200 = vmatprep.subr.mxu0 0.0
    %6201 = vmatpush2.msra.mxu0 0.0
    %6202 = vmatprep.subr.mxu0 0.0
    %6203 = vmatpush2.msra.mxu0 0.0
    %6204 = vmatprep.subr.mxu0 0.0
    %6205 = vmatpush2.msra.mxu0 0.0
    %6206 = vmatprep.subr.mxu0 0.0
    %6207 = vmatpush2.msra.mxu0 0.0
    %6208 = vmatprep.subr.mxu0 0.0
    %6209 = vmatpush2.msra.mxu0 0.0
    %6210 = vmatprep.subr.mxu0 0.0
    %6211 = vmatpush2.msra.mxu0 0.0
    %6212 = vmatprep.subr.mxu0 0.0
    %6213 = vmatpush2.msra.mxu0 0.0
    %6214 = vmatprep.subr.mxu0 0.0
    %6215 = vmatpush2.msra.mxu0 0.0
    %6216 = vmatprep.subr.mxu0 0.0
    %6217 = vmatpush2.msra.mxu0 0.0
    %6218 = vmatprep.subr.mxu0 0.0
    %6219 = vmatpush2.msra.mxu0 0.0
    %6220 = vmatprep.subr.mxu0 0.0
    %6221 = vmatpush2.msra.mxu0 0.0
    %6222 = vmatprep.subr.mxu0 0.0
    %6223 = vmatpush2.msra.mxu0 0.0
    %6224 = vmatprep.subr.mxu0 0.0
    %6225 = vmatpush2.msra.mxu0 0.0
    %6226 = vmatprep.subr.mxu0 0.0
    %6227 = vmatpush2.msra.mxu0 0.0
    %6228 = vmatprep.subr.mxu0 0.0
    %6229 = vmatpush2.msra.mxu0 0.0
    %6230 = vmatprep.subr.mxu0 0.0
    %6231 = vmatpush2.msra.mxu0 0.0
    %6232 = vmatprep.mubr.f32.mxu0 0.0
    %6233 = vmatmul.mubr.f32.gmra.mxu0 %v5231
    %v6234 = vpop.f32.mrf.mxu0
    %v6235 = vadd.f32 %v6093, %v6234
    %v6236 = vpop.f32.mrf.mxu0
    %v6237 = vadd.f32 %v6095, %v6236
    %6238 = vdwg.mxu0
    %6239 = vmatprep.subr.mxu0 %v271
    %6240 = vmatpush1.msra.mxu0 %v270
    %6241 = vmatprep.subr.mxu0 %v267
    %6242 = vmatpush1.msra.mxu0 %v266
    %6243 = vmatprep.subr.mxu0 %v263
    %6244 = vmatpush1.msra.mxu0 %v262
    %6245 = vmatprep.subr.mxu0 %v259
    %6246 = vmatpush1.msra.mxu0 %v258
    %6247 = vmatprep.subr.mxu0 %v255
    %6248 = vmatpush1.msra.mxu0 %v254
    %6249 = vmatprep.subr.mxu0 %v251
    %6250 = vmatpush1.msra.mxu0 %v250
    %6251 = vmatprep.subr.mxu0 %v247
    %6252 = vmatpush1.msra.mxu0 %v246
    %6253 = vmatprep.subr.mxu0 %v243
    %6254 = vmatpush1.msra.mxu0 %v242
    %6255 = vmatprep.subr.mxu0 %v239
    %6256 = vmatpush1.msra.mxu0 %v238
    %6257 = vmatprep.subr.mxu0 %v235
    %6258 = vmatpush1.msra.mxu0 %v234
    %6259 = vmatprep.subr.mxu0 %v231
    %6260 = vmatpush1.msra.mxu0 %v230
    %6261 = vmatprep.subr.mxu0 %v227
    %6262 = vmatpush1.msra.mxu0 %v226
    %6263 = vmatprep.subr.mxu0 %v223
    %6264 = vmatpush1.msra.mxu0 %v222
    %6265 = vmatprep.subr.mxu0 %v219
    %6266 = vmatpush1.msra.mxu0 %v218
    %6267 = vmatprep.subr.mxu0 %v215
    %6268 = vmatpush1.msra.mxu0 %v214
    %6269 = vmatprep.subr.mxu0 %v211
    %6270 = vmatpush1.msra.mxu0 %v210
    %6271 = vmatprep.subr.mxu0 0.0
    %6272 = vmatpush2.msra.mxu0 0.0
    %6273 = vmatprep.subr.mxu0 0.0
    %6274 = vmatpush2.msra.mxu0 0.0
    %6275 = vmatprep.subr.mxu0 0.0
    %6276 = vmatpush2.msra.mxu0 0.0
    %6277 = vmatprep.subr.mxu0 0.0
    %6278 = vmatpush2.msra.mxu0 0.0
    %6279 = vmatprep.subr.mxu0 0.0
    %6280 = vmatpush2.msra.mxu0 0.0
    %6281 = vmatprep.subr.mxu0 0.0
    %6282 = vmatpush2.msra.mxu0 0.0
    %6283 = vmatprep.subr.mxu0 0.0
    %6284 = vmatpush2.msra.mxu0 0.0
    %6285 = vmatprep.subr.mxu0 0.0
    %6286 = vmatpush2.msra.mxu0 0.0
    %6287 = vmatprep.subr.mxu0 0.0
    %6288 = vmatpush2.msra.mxu0 0.0
    %6289 = vmatprep.subr.mxu0 0.0
    %6290 = vmatpush2.msra.mxu0 0.0
    %6291 = vmatprep.subr.mxu0 0.0
    %6292 = vmatpush2.msra.mxu0 0.0
    %6293 = vmatprep.subr.mxu0 0.0
    %6294 = vmatpush2.msra.mxu0 0.0
    %6295 = vmatprep.subr.mxu0 0.0
    %6296 = vmatpush2.msra.mxu0 0.0
    %6297 = vmatprep.subr.mxu0 0.0
    %6298 = vmatpush2.msra.mxu0 0.0
    %6299 = vmatprep.subr.mxu0 0.0
    %6300 = vmatpush2.msra.mxu0 0.0
    %6301 = vmatprep.subr.mxu0 0.0
    %6302 = vmatpush2.msra.mxu0 0.0
    %6303 = vmatprep.mubr.f32.mxu0 0.0
    %6304 = vmatmul.mubr.f32.gmra.mxu0 %v5231
    %v6305 = vpop.f32.mrf.mxu0
    %v6306 = vadd.f32 %v6164, %v6305
    %v6307 = vpop.f32.mrf.mxu0
    %v6308 = vadd.f32 %v6166, %v6307
    %6309 = vdwg.mxu0
    %v6310 = vadd.f32 %v6235, %v3117
    %v6311 = vadd.f32 %v6237, %v3121
    %v6312 = vadd.f32 %v6306, %v3125
    %v6313 = vadd.f32 %v6308, %v3129
    %v6314 = vxor.u32 %v6310, 2147483648
    %v6315 = vmul.f32 %v6314, 1.442695
    %v6316 = vpow.pop %v6315
    %v6317 = vadd.f32 %v6316, 1.0
    %v6318 = vrcp.pop %v6317
    %v6319 = vmul.f32 1.0, %v6318
    %v6320 = vxor.u32 %v6311, 2147483648
    %v6321 = vmul.f32 %v6320, 1.442695
    %v6322 = vpow.pop %v6321
    %v6323 = vadd.f32 %v6322, 1.0
    %v6324 = vrcp.pop %v6323
    %v6325 = vmul.f32 1.0, %v6324
    %v6326 = vtanh.pop %v6312
    %v6327 = vxor.u32 %v6313, 2147483648
    %v6328 = vmul.f32 %v6327, 1.442695
    %v6329 = vpow.pop %v6328
    %v6330 = vadd.f32 %v6329, 1.0
    %v6331 = vrcp.pop %v6330
    %v6332 = vmul.f32 1.0, %v6331
    %v6333 = vmul.f32 %v6325, %v5541
    %v6334 = vmul.f32 %v6319, %v6326
    %v6335 = vadd.f32 %v6333, %v6334
    %v6336 = vtanh.pop %v6335
    %v6337 = vmul.f32 %v6332, %v6336
    %6338 = vmatprep.subr.mxu0 %v333
    %6339 = vmatpush1.msra.mxu0 %v332
    %6340 = vmatprep.subr.mxu0 %v329
    %6341 = vmatpush1.msra.mxu0 %v328
    %6342 = vmatprep.subr.mxu0 %v325
    %6343 = vmatpush1.msra.mxu0 %v324
    %6344 = vmatprep.subr.mxu0 %v321
    %6345 = vmatpush1.msra.mxu0 %v320
    %6346 = vmatprep.subr.mxu0 %v317
    %6347 = vmatpush1.msra.mxu0 %v316
    %6348 = vmatprep.subr.mxu0 %v313
    %6349 = vmatpush1.msra.mxu0 %v312
    %6350 = vmatprep.subr.mxu0 %v309
    %6351 = vmatpush1.msra.mxu0 %v308
    %6352 = vmatprep.subr.mxu0 %v305
    %6353 = vmatpush1.msra.mxu0 %v304
    %6354 = vmatprep.subr.mxu0 %v301
    %6355 = vmatpush1.msra.mxu0 %v300
    %6356 = vmatprep.subr.mxu0 %v297
    %6357 = vmatpush1.msra.mxu0 %v296
    %6358 = vmatprep.subr.mxu0 %v293
    %6359 = vmatpush1.msra.mxu0 %v292
    %6360 = vmatprep.subr.mxu0 %v289
    %6361 = vmatpush1.msra.mxu0 %v288
    %6362 = vmatprep.subr.mxu0 %v285
    %6363 = vmatpush1.msra.mxu0 %v284
    %6364 = vmatprep.subr.mxu0 %v281
    %6365 = vmatpush1.msra.mxu0 %v280
    %6366 = vmatprep.subr.mxu0 %v277
    %6367 = vmatpush1.msra.mxu0 %v276
    %6368 = vmatprep.subr.mxu0 %v273
    %6369 = vmatpush1.msra.mxu0 %v272
    %6370 = vmatprep.subr.mxu0 0.0
    %6371 = vmatpush2.msra.mxu0 0.0
    %6372 = vmatprep.subr.mxu0 0.0
    %6373 = vmatpush2.msra.mxu0 0.0
    %6374 = vmatprep.subr.mxu0 0.0
    %6375 = vmatpush2.msra.mxu0 0.0
    %6376 = vmatprep.subr.mxu0 0.0
    %6377 = vmatpush2.msra.mxu0 0.0
    %6378 = vmatprep.subr.mxu0 0.0
    %6379 = vmatpush2.msra.mxu0 0.0
    %6380 = vmatprep.subr.mxu0 0.0
    %6381 = vmatpush2.msra.mxu0 0.0
    %6382 = vmatprep.subr.mxu0 0.0
    %6383 = vmatpush2.msra.mxu0 0.0
    %6384 = vmatprep.subr.mxu0 0.0
    %6385 = vmatpush2.msra.mxu0 0.0
    %6386 = vmatprep.subr.mxu0 0.0
    %6387 = vmatpush2.msra.mxu0 0.0
    %6388 = vmatprep.subr.mxu0 0.0
    %6389 = vmatpush2.msra.mxu0 0.0
    %6390 = vmatprep.subr.mxu0 0.0
    %6391 = vmatpush2.msra.mxu0 0.0
    %6392 = vmatprep.subr.mxu0 0.0
    %6393 = vmatpush2.msra.mxu0 0.0
    %6394 = vmatprep.subr.mxu0 0.0
    %6395 = vmatpush2.msra.mxu0 0.0
    %6396 = vmatprep.subr.mxu0 0.0
    %6397 = vmatpush2.msra.mxu0 0.0
    %6398 = vmatprep.subr.mxu0 0.0
    %6399 = vmatpush2.msra.mxu0 0.0
    %6400 = vmatprep.subr.mxu0 0.0
    %6401 = vmatpush2.msra.mxu0 0.0
    %6402 = vmatprep.mubr.f32.mxu0 0.0
    %6403 = vmatmul.mubr.f32.gmra.mxu0 %v5713
    %v6404 = vpop.f32.mrf.mxu0
    %v6405 = vadd.f32 0.0, %v6404
    %v6406 = vpop.f32.mrf.mxu0
    %v6407 = vadd.f32 0.0, %v6406
    %6408 = vdwg.mxu0
    %6409 = vmatprep.subr.mxu0 %v335
    %6410 = vmatpush1.msra.mxu0 %v334
    %6411 = vmatprep.subr.mxu0 %v331
    %6412 = vmatpush1.msra.mxu0 %v330
    %6413 = vmatprep.subr.mxu0 %v327
    %6414 = vmatpush1.msra.mxu0 %v326
    %6415 = vmatprep.subr.mxu0 %v323
    %6416 = vmatpush1.msra.mxu0 %v322
    %6417 = vmatprep.subr.mxu0 %v319
    %6418 = vmatpush1.msra.mxu0 %v318
    %6419 = vmatprep.subr.mxu0 %v315
    %6420 = vmatpush1.msra.mxu0 %v314
    %6421 = vmatprep.subr.mxu0 %v311
    %6422 = vmatpush1.msra.mxu0 %v310
    %6423 = vmatprep.subr.mxu0 %v307
    %6424 = vmatpush1.msra.mxu0 %v306
    %6425 = vmatprep.subr.mxu0 %v303
    %6426 = vmatpush1.msra.mxu0 %v302
    %6427 = vmatprep.subr.mxu0 %v299
    %6428 = vmatpush1.msra.mxu0 %v298
    %6429 = vmatprep.subr.mxu0 %v295
    %6430 = vmatpush1.msra.mxu0 %v294
    %6431 = vmatprep.subr.mxu0 %v291
    %6432 = vmatpush1.msra.mxu0 %v290
    %6433 = vmatprep.subr.mxu0 %v287
    %6434 = vmatpush1.msra.mxu0 %v286
    %6435 = vmatprep.subr.mxu0 %v283
    %6436 = vmatpush1.msra.mxu0 %v282
    %6437 = vmatprep.subr.mxu0 %v279
    %6438 = vmatpush1.msra.mxu0 %v278
    %6439 = vmatprep.subr.mxu0 %v275
    %6440 = vmatpush1.msra.mxu0 %v274
    %6441 = vmatprep.subr.mxu0 0.0
    %6442 = vmatpush2.msra.mxu0 0.0
    %6443 = vmatprep.subr.mxu0 0.0
    %6444 = vmatpush2.msra.mxu0 0.0
    %6445 = vmatprep.subr.mxu0 0.0
    %6446 = vmatpush2.msra.mxu0 0.0
    %6447 = vmatprep.subr.mxu0 0.0
    %6448 = vmatpush2.msra.mxu0 0.0
    %6449 = vmatprep.subr.mxu0 0.0
    %6450 = vmatpush2.msra.mxu0 0.0
    %6451 = vmatprep.subr.mxu0 0.0
    %6452 = vmatpush2.msra.mxu0 0.0
    %6453 = vmatprep.subr.mxu0 0.0
    %6454 = vmatpush2.msra.mxu0 0.0
    %6455 = vmatprep.subr.mxu0 0.0
    %6456 = vmatpush2.msra.mxu0 0.0
    %6457 = vmatprep.subr.mxu0 0.0
    %6458 = vmatpush2.msra.mxu0 0.0
    %6459 = vmatprep.subr.mxu0 0.0
    %6460 = vmatpush2.msra.mxu0 0.0
    %6461 = vmatprep.subr.mxu0 0.0
    %6462 = vmatpush2.msra.mxu0 0.0
    %6463 = vmatprep.subr.mxu0 0.0
    %6464 = vmatpush2.msra.mxu0 0.0
    %6465 = vmatprep.subr.mxu0 0.0
    %6466 = vmatpush2.msra.mxu0 0.0
    %6467 = vmatprep.subr.mxu0 0.0
    %6468 = vmatpush2.msra.mxu0 0.0
    %6469 = vmatprep.subr.mxu0 0.0
    %6470 = vmatpush2.msra.mxu0 0.0
    %6471 = vmatprep.subr.mxu0 0.0
    %6472 = vmatpush2.msra.mxu0 0.0
    %6473 = vmatprep.mubr.f32.mxu0 0.0
    %6474 = vmatmul.mubr.f32.gmra.mxu0 %v5713
    %v6475 = vpop.f32.mrf.mxu0
    %v6476 = vadd.f32 0.0, %v6475
    %v6477 = vpop.f32.mrf.mxu0
    %v6478 = vadd.f32 0.0, %v6477
    %6479 = vdwg.mxu0
    %v6480 = vadd.f32 %v1599, %v6405
    %v6481 = vadd.f32 %v1601, %v6407
    %v6482 = vadd.f32 %v1670, %v6476
    %v6483 = vadd.f32 %v1672, %v6478
    %v6484 = vxor.u32 %v6480, 2147483648
    %v6485 = vmul.f32 %v6484, 1.442695
    %v6486 = vpow.pop %v6485
    %v6487 = vadd.f32 %v6486, 1.0
    %v6488 = vrcp.pop %v6487
    %v6489 = vmul.f32 1.0, %v6488
    %v6490 = vxor.u32 %v6481, 2147483648
    %v6491 = vmul.f32 %v6490, 1.442695
    %v6492 = vpow.pop %v6491
    %v6493 = vadd.f32 %v6492, 1.0
    %v6494 = vrcp.pop %v6493
    %v6495 = vmul.f32 1.0, %v6494
    %v6496 = vtanh.pop %v6482
    %v6497 = vxor.u32 %v6483, 2147483648
    %v6498 = vmul.f32 %v6497, 1.442695
    %v6499 = vpow.pop %v6498
    %v6500 = vadd.f32 %v6499, 1.0
    %v6501 = vrcp.pop %v6500
    %v6502 = vmul.f32 1.0, %v6501
    %v6503 = vmul.f32 %v6495, %v5711
    %v6504 = vmul.f32 %v6489, %v6496
    %v6505 = vadd.f32 %v6503, %v6504
    %v6506 = vtanh.pop %v6505
    %v6507 = vmul.f32 %v6502, %v6506
    %6508 = vmatprep.subr.mxu0 %v397
    %6509 = vmatpush1.msra.mxu0 %v396
    %6510 = vmatprep.subr.mxu0 %v393
    %6511 = vmatpush1.msra.mxu0 %v392
    %6512 = vmatprep.subr.mxu0 %v389
    %6513 = vmatpush1.msra.mxu0 %v388
    %6514 = vmatprep.subr.mxu0 %v385
    %6515 = vmatpush1.msra.mxu0 %v384
    %6516 = vmatprep.subr.mxu0 %v381
    %6517 = vmatpush1.msra.mxu0 %v380
    %6518 = vmatprep.subr.mxu0 %v377
    %6519 = vmatpush1.msra.mxu0 %v376
    %6520 = vmatprep.subr.mxu0 %v373
    %6521 = vmatpush1.msra.mxu0 %v372
    %6522 = vmatprep.subr.mxu0 %v369
    %6523 = vmatpush1.msra.mxu0 %v368
    %6524 = vmatprep.subr.mxu0 %v365
    %6525 = vmatpush1.msra.mxu0 %v364
    %6526 = vmatprep.subr.mxu0 %v361
    %6527 = vmatpush1.msra.mxu0 %v360
    %6528 = vmatprep.subr.mxu0 %v357
    %6529 = vmatpush1.msra.mxu0 %v356
    %6530 = vmatprep.subr.mxu0 %v353
    %6531 = vmatpush1.msra.mxu0 %v352
    %6532 = vmatprep.subr.mxu0 %v349
    %6533 = vmatpush1.msra.mxu0 %v348
    %6534 = vmatprep.subr.mxu0 %v345
    %6535 = vmatpush1.msra.mxu0 %v344
    %6536 = vmatprep.subr.mxu0 %v341
    %6537 = vmatpush1.msra.mxu0 %v340
    %6538 = vmatprep.subr.mxu0 %v337
    %6539 = vmatpush1.msra.mxu0 %v336
    %6540 = vmatprep.subr.mxu0 0.0
    %6541 = vmatpush2.msra.mxu0 0.0
    %6542 = vmatprep.subr.mxu0 0.0
    %6543 = vmatpush2.msra.mxu0 0.0
    %6544 = vmatprep.subr.mxu0 0.0
    %6545 = vmatpush2.msra.mxu0 0.0
    %6546 = vmatprep.subr.mxu0 0.0
    %6547 = vmatpush2.msra.mxu0 0.0
    %6548 = vmatprep.subr.mxu0 0.0
    %6549 = vmatpush2.msra.mxu0 0.0
    %6550 = vmatprep.subr.mxu0 0.0
    %6551 = vmatpush2.msra.mxu0 0.0
    %6552 = vmatprep.subr.mxu0 0.0
    %6553 = vmatpush2.msra.mxu0 0.0
    %6554 = vmatprep.subr.mxu0 0.0
    %6555 = vmatpush2.msra.mxu0 0.0
    %6556 = vmatprep.subr.mxu0 0.0
    %6557 = vmatpush2.msra.mxu0 0.0
    %6558 = vmatprep.subr.mxu0 0.0
    %6559 = vmatpush2.msra.mxu0 0.0
    %6560 = vmatprep.subr.mxu0 0.0
    %6561 = vmatpush2.msra.mxu0 0.0
    %6562 = vmatprep.subr.mxu0 0.0
    %6563 = vmatpush2.msra.mxu0 0.0
    %6564 = vmatprep.subr.mxu0 0.0
    %6565 = vmatpush2.msra.mxu0 0.0
    %6566 = vmatprep.subr.mxu0 0.0
    %6567 = vmatpush2.msra.mxu0 0.0
    %6568 = vmatprep.subr.mxu0 0.0
    %6569 = vmatpush2.msra.mxu0 0.0
    %6570 = vmatprep.subr.mxu0 0.0
    %6571 = vmatpush2.msra.mxu0 0.0
    %6572 = vmatprep.mubr.f32.mxu0 0.0
    %6573 = vmatmul.mubr.f32.gmra.mxu0 %v6025
    %v6574 = vpop.f32.mrf.mxu0
    %v6575 = vadd.f32 0.0, %v6574
    %v6576 = vpop.f32.mrf.mxu0
    %v6577 = vadd.f32 0.0, %v6576
    %6578 = vdwg.mxu0
    %6579 = vmatprep.subr.mxu0 %v399
    %6580 = vmatpush1.msra.mxu0 %v398
    %6581 = vmatprep.subr.mxu0 %v395
    %6582 = vmatpush1.msra.mxu0 %v394
    %6583 = vmatprep.subr.mxu0 %v391
    %6584 = vmatpush1.msra.mxu0 %v390
    %6585 = vmatprep.subr.mxu0 %v387
    %6586 = vmatpush1.msra.mxu0 %v386
    %6587 = vmatprep.subr.mxu0 %v383
    %6588 = vmatpush1.msra.mxu0 %v382
    %6589 = vmatprep.subr.mxu0 %v379
    %6590 = vmatpush1.msra.mxu0 %v378
    %6591 = vmatprep.subr.mxu0 %v375
    %6592 = vmatpush1.msra.mxu0 %v374
    %6593 = vmatprep.subr.mxu0 %v371
    %6594 = vmatpush1.msra.mxu0 %v370
    %6595 = vmatprep.subr.mxu0 %v367
    %6596 = vmatpush1.msra.mxu0 %v366
    %6597 = vmatprep.subr.mxu0 %v363
    %6598 = vmatpush1.msra.mxu0 %v362
    %6599 = vmatprep.subr.mxu0 %v359
    %6600 = vmatpush1.msra.mxu0 %v358
    %6601 = vmatprep.subr.mxu0 %v355
    %6602 = vmatpush1.msra.mxu0 %v354
    %6603 = vmatprep.subr.mxu0 %v351
    %6604 = vmatpush1.msra.mxu0 %v350
    %6605 = vmatprep.subr.mxu0 %v347
    %6606 = vmatpush1.msra.mxu0 %v346
    %6607 = vmatprep.subr.mxu0 %v343
    %6608 = vmatpush1.msra.mxu0 %v342
    %6609 = vmatprep.subr.mxu0 %v339
    %6610 = vmatpush1.msra.mxu0 %v338
    %6611 = vmatprep.subr.mxu0 0.0
    %6612 = vmatpush2.msra.mxu0 0.0
    %6613 = vmatprep.subr.mxu0 0.0
    %6614 = vmatpush2.msra.mxu0 0.0
    %6615 = vmatprep.subr.mxu0 0.0
    %6616 = vmatpush2.msra.mxu0 0.0
    %6617 = vmatprep.subr.mxu0 0.0
    %6618 = vmatpush2.msra.mxu0 0.0
    %6619 = vmatprep.subr.mxu0 0.0
    %6620 = vmatpush2.msra.mxu0 0.0
    %6621 = vmatprep.subr.mxu0 0.0
    %6622 = vmatpush2.msra.mxu0 0.0
    %6623 = vmatprep.subr.mxu0 0.0
    %6624 = vmatpush2.msra.mxu0 0.0
    %6625 = vmatprep.subr.mxu0 0.0
    %6626 = vmatpush2.msra.mxu0 0.0
    %6627 = vmatprep.subr.mxu0 0.0
    %6628 = vmatpush2.msra.mxu0 0.0
    %6629 = vmatprep.subr.mxu0 0.0
    %6630 = vmatpush2.msra.mxu0 0.0
    %6631 = vmatprep.subr.mxu0 0.0
    %6632 = vmatpush2.msra.mxu0 0.0
    %6633 = vmatprep.subr.mxu0 0.0
    %6634 = vmatpush2.msra.mxu0 0.0
    %6635 = vmatprep.subr.mxu0 0.0
    %6636 = vmatpush2.msra.mxu0 0.0
    %6637 = vmatprep.subr.mxu0 0.0
    %6638 = vmatpush2.msra.mxu0 0.0
    %6639 = vmatprep.subr.mxu0 0.0
    %6640 = vmatpush2.msra.mxu0 0.0
    %6641 = vmatprep.subr.mxu0 0.0
    %6642 = vmatpush2.msra.mxu0 0.0
    %6643 = vmatprep.mubr.f32.mxu0 0.0
    %6644 = vmatmul.mubr.f32.gmra.mxu0 %v6025
    %v6645 = vpop.f32.mrf.mxu0
    %v6646 = vadd.f32 0.0, %v6645
    %v6647 = vpop.f32.mrf.mxu0
    %v6648 = vadd.f32 0.0, %v6647
    %6649 = vdwg.mxu0
    %6650 = vmatprep.subr.mxu0 %v205
    %6651 = vmatpush1.msra.mxu0 %v204
    %6652 = vmatprep.subr.mxu0 %v201
    %6653 = vmatpush1.msra.mxu0 %v200
    %6654 = vmatprep.subr.mxu0 %v197
    %6655 = vmatpush1.msra.mxu0 %v196
    %6656 = vmatprep.subr.mxu0 %v193
    %6657 = vmatpush1.msra.mxu0 %v192
    %6658 = vmatprep.subr.mxu0 %v189
    %6659 = vmatpush1.msra.mxu0 %v188
    %6660 = vmatprep.subr.mxu0 %v185
    %6661 = vmatpush1.msra.mxu0 %v184
    %6662 = vmatprep.subr.mxu0 %v181
    %6663 = vmatpush1.msra.mxu0 %v180
    %6664 = vmatprep.subr.mxu0 %v177
    %6665 = vmatpush1.msra.mxu0 %v176
    %6666 = vmatprep.subr.mxu0 %v173
    %6667 = vmatpush1.msra.mxu0 %v172
    %6668 = vmatprep.subr.mxu0 %v169
    %6669 = vmatpush1.msra.mxu0 %v168
    %6670 = vmatprep.subr.mxu0 %v165
    %6671 = vmatpush1.msra.mxu0 %v164
    %6672 = vmatprep.subr.mxu0 %v161
    %6673 = vmatpush1.msra.mxu0 %v160
    %6674 = vmatprep.subr.mxu0 %v157
    %6675 = vmatpush1.msra.mxu0 %v156
    %6676 = vmatprep.subr.mxu0 %v153
    %6677 = vmatpush1.msra.mxu0 %v152
    %6678 = vmatprep.subr.mxu0 %v149
    %6679 = vmatpush1.msra.mxu0 %v148
    %6680 = vmatprep.subr.mxu0 %v145
    %6681 = vmatpush1.msra.mxu0 %v144
    %6682 = vmatprep.subr.mxu0 0.0
    %6683 = vmatpush2.msra.mxu0 0.0
    %6684 = vmatprep.subr.mxu0 0.0
    %6685 = vmatpush2.msra.mxu0 0.0
    %6686 = vmatprep.subr.mxu0 0.0
    %6687 = vmatpush2.msra.mxu0 0.0
    %6688 = vmatprep.subr.mxu0 0.0
    %6689 = vmatpush2.msra.mxu0 0.0
    %6690 = vmatprep.subr.mxu0 0.0
    %6691 = vmatpush2.msra.mxu0 0.0
    %6692 = vmatprep.subr.mxu0 0.0
    %6693 = vmatpush2.msra.mxu0 0.0
    %6694 = vmatprep.subr.mxu0 0.0
    %6695 = vmatpush2.msra.mxu0 0.0
    %6696 = vmatprep.subr.mxu0 0.0
    %6697 = vmatpush2.msra.mxu0 0.0
    %6698 = vmatprep.subr.mxu0 0.0
    %6699 = vmatpush2.msra.mxu0 0.0
    %6700 = vmatprep.subr.mxu0 0.0
    %6701 = vmatpush2.msra.mxu0 0.0
    %6702 = vmatprep.subr.mxu0 0.0
    %6703 = vmatpush2.msra.mxu0 0.0
    %6704 = vmatprep.subr.mxu0 0.0
    %6705 = vmatpush2.msra.mxu0 0.0
    %6706 = vmatprep.subr.mxu0 0.0
    %6707 = vmatpush2.msra.mxu0 0.0
    %6708 = vmatprep.subr.mxu0 0.0
    %6709 = vmatpush2.msra.mxu0 0.0
    %6710 = vmatprep.subr.mxu0 0.0
    %6711 = vmatpush2.msra.mxu0 0.0
    %6712 = vmatprep.subr.mxu0 0.0
    %6713 = vmatpush2.msra.mxu0 0.0
    %6714 = vmatprep.mubr.f32.mxu0 0.0
    %6715 = vmatmul.mubr.f32.gmra.mxu0 %v5713
    %v6716 = vpop.f32.mrf.mxu0
    %v6717 = vadd.f32 %v6575, %v6716
    %v6718 = vpop.f32.mrf.mxu0
    %v6719 = vadd.f32 %v6577, %v6718
    %6720 = vdwg.mxu0
    %6721 = vmatprep.subr.mxu0 %v207
    %6722 = vmatpush1.msra.mxu0 %v206
    %6723 = vmatprep.subr.mxu0 %v203
    %6724 = vmatpush1.msra.mxu0 %v202
    %6725 = vmatprep.subr.mxu0 %v199
    %6726 = vmatpush1.msra.mxu0 %v198
    %6727 = vmatprep.subr.mxu0 %v195
    %6728 = vmatpush1.msra.mxu0 %v194
    %6729 = vmatprep.subr.mxu0 %v191
    %6730 = vmatpush1.msra.mxu0 %v190
    %6731 = vmatprep.subr.mxu0 %v187
    %6732 = vmatpush1.msra.mxu0 %v186
    %6733 = vmatprep.subr.mxu0 %v183
    %6734 = vmatpush1.msra.mxu0 %v182
    %6735 = vmatprep.subr.mxu0 %v179
    %6736 = vmatpush1.msra.mxu0 %v178
    %6737 = vmatprep.subr.mxu0 %v175
    %6738 = vmatpush1.msra.mxu0 %v174
    %6739 = vmatprep.subr.mxu0 %v171
    %6740 = vmatpush1.msra.mxu0 %v170
    %6741 = vmatprep.subr.mxu0 %v167
    %6742 = vmatpush1.msra.mxu0 %v166
    %6743 = vmatprep.subr.mxu0 %v163
    %6744 = vmatpush1.msra.mxu0 %v162
    %6745 = vmatprep.subr.mxu0 %v159
    %6746 = vmatpush1.msra.mxu0 %v158
    %6747 = vmatprep.subr.mxu0 %v155
    %6748 = vmatpush1.msra.mxu0 %v154
    %6749 = vmatprep.subr.mxu0 %v151
    %6750 = vmatpush1.msra.mxu0 %v150
    %6751 = vmatprep.subr.mxu0 %v147
    %6752 = vmatpush1.msra.mxu0 %v146
    %6753 = vmatprep.subr.mxu0 0.0
    %6754 = vmatpush2.msra.mxu0 0.0
    %6755 = vmatprep.subr.mxu0 0.0
    %6756 = vmatpush2.msra.mxu0 0.0
    %6757 = vmatprep.subr.mxu0 0.0
    %6758 = vmatpush2.msra.mxu0 0.0
    %6759 = vmatprep.subr.mxu0 0.0
    %6760 = vmatpush2.msra.mxu0 0.0
    %6761 = vmatprep.subr.mxu0 0.0
    %6762 = vmatpush2.msra.mxu0 0.0
    %6763 = vmatprep.subr.mxu0 0.0
    %6764 = vmatpush2.msra.mxu0 0.0
    %6765 = vmatprep.subr.mxu0 0.0
    %6766 = vmatpush2.msra.mxu0 0.0
    %6767 = vmatprep.subr.mxu0 0.0
    %6768 = vmatpush2.msra.mxu0 0.0
    %6769 = vmatprep.subr.mxu0 0.0
    %6770 = vmatpush2.msra.mxu0 0.0
    %6771 = vmatprep.subr.mxu0 0.0
    %6772 = vmatpush2.msra.mxu0 0.0
    %6773 = vmatprep.subr.mxu0 0.0
    %6774 = vmatpush2.msra.mxu0 0.0
    %6775 = vmatprep.subr.mxu0 0.0
    %6776 = vmatpush2.msra.mxu0 0.0
    %6777 = vmatprep.subr.mxu0 0.0
    %6778 = vmatpush2.msra.mxu0 0.0
    %6779 = vmatprep.subr.mxu0 0.0
    %6780 = vmatpush2.msra.mxu0 0.0
    %6781 = vmatprep.subr.mxu0 0.0
    %6782 = vmatpush2.msra.mxu0 0.0
    %6783 = vmatprep.subr.mxu0 0.0
    %6784 = vmatpush2.msra.mxu0 0.0
    %6785 = vmatprep.mubr.f32.mxu0 0.0
    %6786 = vmatmul.mubr.f32.gmra.mxu0 %v5713
    %v6787 = vpop.f32.mrf.mxu0
    %v6788 = vadd.f32 %v6646, %v6787
    %v6789 = vpop.f32.mrf.mxu0
    %v6790 = vadd.f32 %v6648, %v6789
    %6791 = vdwg.mxu0
    %v6792 = vadd.f32 %v6717, %v2302
    %v6793 = vadd.f32 %v6719, %v2306
    %v6794 = vadd.f32 %v6788, %v2310
    %v6795 = vadd.f32 %v6790, %v2314
    %v6796 = vxor.u32 %v6792, 2147483648
    %v6797 = vmul.f32 %v6796, 1.442695
    %v6798 = vpow.pop %v6797
    %v6799 = vadd.f32 %v6798, 1.0
    %v6800 = vrcp.pop %v6799
    %v6801 = vmul.f32 1.0, %v6800
    %v6802 = vxor.u32 %v6793, 2147483648
    %v6803 = vmul.f32 %v6802, 1.442695
    %v6804 = vpow.pop %v6803
    %v6805 = vadd.f32 %v6804, 1.0
    %v6806 = vrcp.pop %v6805
    %v6807 = vmul.f32 1.0, %v6806
    %v6808 = vtanh.pop %v6794
    %v6809 = vxor.u32 %v6795, 2147483648
    %v6810 = vmul.f32 %v6809, 1.442695
    %v6811 = vpow.pop %v6810
    %v6812 = vadd.f32 %v6811, 1.0
    %v6813 = vrcp.pop %v6812
    %v6814 = vmul.f32 1.0, %v6813
    %v6815 = vmul.f32 %v6807, %v6023
    %v6816 = vmul.f32 %v6801, %v6808
    %v6817 = vadd.f32 %v6815, %v6816
    %v6818 = vtanh.pop %v6817
    %v6819 = vmul.f32 %v6814, %v6818
    %6820 = vmatprep.subr.mxu0 %v461
    %6821 = vmatpush1.msra.mxu0 %v460
    %6822 = vmatprep.subr.mxu0 %v457
    %6823 = vmatpush1.msra.mxu0 %v456
    %6824 = vmatprep.subr.mxu0 %v453
    %6825 = vmatpush1.msra.mxu0 %v452
    %6826 = vmatprep.subr.mxu0 %v449
    %6827 = vmatpush1.msra.mxu0 %v448
    %6828 = vmatprep.subr.mxu0 %v445
    %6829 = vmatpush1.msra.mxu0 %v444
    %6830 = vmatprep.subr.mxu0 %v441
    %6831 = vmatpush1.msra.mxu0 %v440
    %6832 = vmatprep.subr.mxu0 %v437
    %6833 = vmatpush1.msra.mxu0 %v436
    %6834 = vmatprep.subr.mxu0 %v433
    %6835 = vmatpush1.msra.mxu0 %v432
    %6836 = vmatprep.subr.mxu0 %v429
    %6837 = vmatpush1.msra.mxu0 %v428
    %6838 = vmatprep.subr.mxu0 %v425
    %6839 = vmatpush1.msra.mxu0 %v424
    %6840 = vmatprep.subr.mxu0 %v421
    %6841 = vmatpush1.msra.mxu0 %v420
    %6842 = vmatprep.subr.mxu0 %v417
    %6843 = vmatpush1.msra.mxu0 %v416
    %6844 = vmatprep.subr.mxu0 %v413
    %6845 = vmatpush1.msra.mxu0 %v412
    %6846 = vmatprep.subr.mxu0 %v409
    %6847 = vmatpush1.msra.mxu0 %v408
    %6848 = vmatprep.subr.mxu0 %v405
    %6849 = vmatpush1.msra.mxu0 %v404
    %6850 = vmatprep.subr.mxu0 %v401
    %6851 = vmatpush1.msra.mxu0 %v400
    %6852 = vmatprep.subr.mxu0 0.0
    %6853 = vmatpush2.msra.mxu0 0.0
    %6854 = vmatprep.subr.mxu0 0.0
    %6855 = vmatpush2.msra.mxu0 0.0
    %6856 = vmatprep.subr.mxu0 0.0
    %6857 = vmatpush2.msra.mxu0 0.0
    %6858 = vmatprep.subr.mxu0 0.0
    %6859 = vmatpush2.msra.mxu0 0.0
    %6860 = vmatprep.subr.mxu0 0.0
    %6861 = vmatpush2.msra.mxu0 0.0
    %6862 = vmatprep.subr.mxu0 0.0
    %6863 = vmatpush2.msra.mxu0 0.0
    %6864 = vmatprep.subr.mxu0 0.0
    %6865 = vmatpush2.msra.mxu0 0.0
    %6866 = vmatprep.subr.mxu0 0.0
    %6867 = vmatpush2.msra.mxu0 0.0
    %6868 = vmatprep.subr.mxu0 0.0
    %6869 = vmatpush2.msra.mxu0 0.0
    %6870 = vmatprep.subr.mxu0 0.0
    %6871 = vmatpush2.msra.mxu0 0.0
    %6872 = vmatprep.subr.mxu0 0.0
    %6873 = vmatpush2.msra.mxu0 0.0
    %6874 = vmatprep.subr.mxu0 0.0
    %6875 = vmatpush2.msra.mxu0 0.0
    %6876 = vmatprep.subr.mxu0 0.0
    %6877 = vmatpush2.msra.mxu0 0.0
    %6878 = vmatprep.subr.mxu0 0.0
    %6879 = vmatpush2.msra.mxu0 0.0
    %6880 = vmatprep.subr.mxu0 0.0
    %6881 = vmatpush2.msra.mxu0 0.0
    %6882 = vmatprep.subr.mxu0 0.0
    %6883 = vmatpush2.msra.mxu0 0.0
    %6884 = vmatprep.mubr.f32.mxu0 0.0
    %6885 = vmatmul.mubr.f32.gmra.mxu0 %v6337
    %v6886 = vpop.f32.mrf.mxu0
    %v6887 = vadd.f32 0.0, %v6886
    %v6888 = vpop.f32.mrf.mxu0
    %v6889 = vadd.f32 0.0, %v6888
    %6890 = vdwg.mxu0
    %6891 = vmatprep.subr.mxu0 %v463
    %6892 = vmatpush1.msra.mxu0 %v462
    %6893 = vmatprep.subr.mxu0 %v459
    %6894 = vmatpush1.msra.mxu0 %v458
    %6895 = vmatprep.subr.mxu0 %v455
    %6896 = vmatpush1.msra.mxu0 %v454
    %6897 = vmatprep.subr.mxu0 %v451
    %6898 = vmatpush1.msra.mxu0 %v450
    %6899 = vmatprep.subr.mxu0 %v447
    %6900 = vmatpush1.msra.mxu0 %v446
    %6901 = vmatprep.subr.mxu0 %v443
    %6902 = vmatpush1.msra.mxu0 %v442
    %6903 = vmatprep.subr.mxu0 %v439
    %6904 = vmatpush1.msra.mxu0 %v438
    %6905 = vmatprep.subr.mxu0 %v435
    %6906 = vmatpush1.msra.mxu0 %v434
    %6907 = vmatprep.subr.mxu0 %v431
    %6908 = vmatpush1.msra.mxu0 %v430
    %6909 = vmatprep.subr.mxu0 %v427
    %6910 = vmatpush1.msra.mxu0 %v426
    %6911 = vmatprep.subr.mxu0 %v423
    %6912 = vmatpush1.msra.mxu0 %v422
    %6913 = vmatprep.subr.mxu0 %v419
    %6914 = vmatpush1.msra.mxu0 %v418
    %6915 = vmatprep.subr.mxu0 %v415
    %6916 = vmatpush1.msra.mxu0 %v414
    %6917 = vmatprep.subr.mxu0 %v411
    %6918 = vmatpush1.msra.mxu0 %v410
    %6919 = vmatprep.subr.mxu0 %v407
    %6920 = vmatpush1.msra.mxu0 %v406
    %6921 = vmatprep.subr.mxu0 %v403
    %6922 = vmatpush1.msra.mxu0 %v402
    %6923 = vmatprep.subr.mxu0 0.0
    %6924 = vmatpush2.msra.mxu0 0.0
    %6925 = vmatprep.subr.mxu0 0.0
    %6926 = vmatpush2.msra.mxu0 0.0
    %6927 = vmatprep.subr.mxu0 0.0
    %6928 = vmatpush2.msra.mxu0 0.0
    %6929 = vmatprep.subr.mxu0 0.0
    %6930 = vmatpush2.msra.mxu0 0.0
    %6931 = vmatprep.subr.mxu0 0.0
    %6932 = vmatpush2.msra.mxu0 0.0
    %6933 = vmatprep.subr.mxu0 0.0
    %6934 = vmatpush2.msra.mxu0 0.0
    %6935 = vmatprep.subr.mxu0 0.0
    %6936 = vmatpush2.msra.mxu0 0.0
    %6937 = vmatprep.subr.mxu0 0.0
    %6938 = vmatpush2.msra.mxu0 0.0
    %6939 = vmatprep.subr.mxu0 0.0
    %6940 = vmatpush2.msra.mxu0 0.0
    %6941 = vmatprep.subr.mxu0 0.0
    %6942 = vmatpush2.msra.mxu0 0.0
    %6943 = vmatprep.subr.mxu0 0.0
    %6944 = vmatpush2.msra.mxu0 0.0
    %6945 = vmatprep.subr.mxu0 0.0
    %6946 = vmatpush2.msra.mxu0 0.0
    %6947 = vmatprep.subr.mxu0 0.0
    %6948 = vmatpush2.msra.mxu0 0.0
    %6949 = vmatprep.subr.mxu0 0.0
    %6950 = vmatpush2.msra.mxu0 0.0
    %6951 = vmatprep.subr.mxu0 0.0
    %6952 = vmatpush2.msra.mxu0 0.0
    %6953 = vmatprep.subr.mxu0 0.0
    %6954 = vmatpush2.msra.mxu0 0.0
    %6955 = vmatprep.mubr.f32.mxu0 0.0
    %6956 = vmatmul.mubr.f32.gmra.mxu0 %v6337
    %v6957 = vpop.f32.mrf.mxu0
    %v6958 = vadd.f32 0.0, %v6957
    %v6959 = vpop.f32.mrf.mxu0
    %v6960 = vadd.f32 0.0, %v6959
    %6961 = vdwg.mxu0
    %6962 = vmatprep.subr.mxu0 %v269
    %6963 = vmatpush1.msra.mxu0 %v268
    %6964 = vmatprep.subr.mxu0 %v265
    %6965 = vmatpush1.msra.mxu0 %v264
    %6966 = vmatprep.subr.mxu0 %v261
    %6967 = vmatpush1.msra.mxu0 %v260
    %6968 = vmatprep.subr.mxu0 %v257
    %6969 = vmatpush1.msra.mxu0 %v256
    %6970 = vmatprep.subr.mxu0 %v253
    %6971 = vmatpush1.msra.mxu0 %v252
    %6972 = vmatprep.subr.mxu0 %v249
    %6973 = vmatpush1.msra.mxu0 %v248
    %6974 = vmatprep.subr.mxu0 %v245
    %6975 = vmatpush1.msra.mxu0 %v244
    %6976 = vmatprep.subr.mxu0 %v241
    %6977 = vmatpush1.msra.mxu0 %v240
    %6978 = vmatprep.subr.mxu0 %v237
    %6979 = vmatpush1.msra.mxu0 %v236
    %6980 = vmatprep.subr.mxu0 %v233
    %6981 = vmatpush1.msra.mxu0 %v232
    %6982 = vmatprep.subr.mxu0 %v229
    %6983 = vmatpush1.msra.mxu0 %v228
    %6984 = vmatprep.subr.mxu0 %v225
    %6985 = vmatpush1.msra.mxu0 %v224
    %6986 = vmatprep.subr.mxu0 %v221
    %6987 = vmatpush1.msra.mxu0 %v220
    %6988 = vmatprep.subr.mxu0 %v217
    %6989 = vmatpush1.msra.mxu0 %v216
    %6990 = vmatprep.subr.mxu0 %v213
    %6991 = vmatpush1.msra.mxu0 %v212
    %6992 = vmatprep.subr.mxu0 %v209
    %6993 = vmatpush1.msra.mxu0 %v208
    %6994 = vmatprep.subr.mxu0 0.0
    %6995 = vmatpush2.msra.mxu0 0.0
    %6996 = vmatprep.subr.mxu0 0.0
    %6997 = vmatpush2.msra.mxu0 0.0
    %6998 = vmatprep.subr.mxu0 0.0
    %6999 = vmatpush2.msra.mxu0 0.0
    %7000 = vmatprep.subr.mxu0 0.0
    %7001 = vmatpush2.msra.mxu0 0.0
    %7002 = vmatprep.subr.mxu0 0.0
    %7003 = vmatpush2.msra.mxu0 0.0
    %7004 = vmatprep.subr.mxu0 0.0
    %7005 = vmatpush2.msra.mxu0 0.0
    %7006 = vmatprep.subr.mxu0 0.0
    %7007 = vmatpush2.msra.mxu0 0.0
    %7008 = vmatprep.subr.mxu0 0.0
    %7009 = vmatpush2.msra.mxu0 0.0
    %7010 = vmatprep.subr.mxu0 0.0
    %7011 = vmatpush2.msra.mxu0 0.0
    %7012 = vmatprep.subr.mxu0 0.0
    %7013 = vmatpush2.msra.mxu0 0.0
    %7014 = vmatprep.subr.mxu0 0.0
    %7015 = vmatpush2.msra.mxu0 0.0
    %7016 = vmatprep.subr.mxu0 0.0
    %7017 = vmatpush2.msra.mxu0 0.0
    %7018 = vmatprep.subr.mxu0 0.0
    %7019 = vmatpush2.msra.mxu0 0.0
    %7020 = vmatprep.subr.mxu0 0.0
    %7021 = vmatpush2.msra.mxu0 0.0
    %7022 = vmatprep.subr.mxu0 0.0
    %7023 = vmatpush2.msra.mxu0 0.0
    %7024 = vmatprep.subr.mxu0 0.0
    %7025 = vmatpush2.msra.mxu0 0.0
    %7026 = vmatprep.mubr.f32.mxu0 0.0
    %7027 = vmatmul.mubr.f32.gmra.mxu0 %v6025
    %v7028 = vpop.f32.mrf.mxu0
    %v7029 = vadd.f32 %v6887, %v7028
    %v7030 = vpop.f32.mrf.mxu0
    %v7031 = vadd.f32 %v6889, %v7030
    %7032 = vdwg.mxu0
    %7033 = vmatprep.subr.mxu0 %v271
    %7034 = vmatpush1.msra.mxu0 %v270
    %7035 = vmatprep.subr.mxu0 %v267
    %7036 = vmatpush1.msra.mxu0 %v266
    %7037 = vmatprep.subr.mxu0 %v263
    %7038 = vmatpush1.msra.mxu0 %v262
    %7039 = vmatprep.subr.mxu0 %v259
    %7040 = vmatpush1.msra.mxu0 %v258
    %7041 = vmatprep.subr.mxu0 %v255
    %7042 = vmatpush1.msra.mxu0 %v254
    %7043 = vmatprep.subr.mxu0 %v251
    %7044 = vmatpush1.msra.mxu0 %v250
    %7045 = vmatprep.subr.mxu0 %v247
    %7046 = vmatpush1.msra.mxu0 %v246
    %7047 = vmatprep.subr.mxu0 %v243
    %7048 = vmatpush1.msra.mxu0 %v242
    %7049 = vmatprep.subr.mxu0 %v239
    %7050 = vmatpush1.msra.mxu0 %v238
    %7051 = vmatprep.subr.mxu0 %v235
    %7052 = vmatpush1.msra.mxu0 %v234
    %7053 = vmatprep.subr.mxu0 %v231
    %7054 = vmatpush1.msra.mxu0 %v230
    %7055 = vmatprep.subr.mxu0 %v227
    %7056 = vmatpush1.msra.mxu0 %v226
    %7057 = vmatprep.subr.mxu0 %v223
    %7058 = vmatpush1.msra.mxu0 %v222
    %7059 = vmatprep.subr.mxu0 %v219
    %7060 = vmatpush1.msra.mxu0 %v218
    %7061 = vmatprep.subr.mxu0 %v215
    %7062 = vmatpush1.msra.mxu0 %v214
    %7063 = vmatprep.subr.mxu0 %v211
    %7064 = vmatpush1.msra.mxu0 %v210
    %7065 = vmatprep.subr.mxu0 0.0
    %7066 = vmatpush2.msra.mxu0 0.0
    %7067 = vmatprep.subr.mxu0 0.0
    %7068 = vmatpush2.msra.mxu0 0.0
    %7069 = vmatprep.subr.mxu0 0.0
    %7070 = vmatpush2.msra.mxu0 0.0
    %7071 = vmatprep.subr.mxu0 0.0
    %7072 = vmatpush2.msra.mxu0 0.0
    %7073 = vmatprep.subr.mxu0 0.0
    %7074 = vmatpush2.msra.mxu0 0.0
    %7075 = vmatprep.subr.mxu0 0.0
    %7076 = vmatpush2.msra.mxu0 0.0
    %7077 = vmatprep.subr.mxu0 0.0
    %7078 = vmatpush2.msra.mxu0 0.0
    %7079 = vmatprep.subr.mxu0 0.0
    %7080 = vmatpush2.msra.mxu0 0.0
    %7081 = vmatprep.subr.mxu0 0.0
    %7082 = vmatpush2.msra.mxu0 0.0
    %7083 = vmatprep.subr.mxu0 0.0
    %7084 = vmatpush2.msra.mxu0 0.0
    %7085 = vmatprep.subr.mxu0 0.0
    %7086 = vmatpush2.msra.mxu0 0.0
    %7087 = vmatprep.subr.mxu0 0.0
    %7088 = vmatpush2.msra.mxu0 0.0
    %7089 = vmatprep.subr.mxu0 0.0
    %7090 = vmatpush2.msra.mxu0 0.0
    %7091 = vmatprep.subr.mxu0 0.0
    %7092 = vmatpush2.msra.mxu0 0.0
    %7093 = vmatprep.subr.mxu0 0.0
    %7094 = vmatpush2.msra.mxu0 0.0
    %7095 = vmatprep.subr.mxu0 0.0
    %7096 = vmatpush2.msra.mxu0 0.0
    %7097 = vmatprep.mubr.f32.mxu0 0.0
    %7098 = vmatmul.mubr.f32.gmra.mxu0 %v6025
    %v7099 = vpop.f32.mrf.mxu0
    %v7100 = vadd.f32 %v6958, %v7099
    %v7101 = vpop.f32.mrf.mxu0
    %v7102 = vadd.f32 %v6960, %v7101
    %7103 = vdwg.mxu0
    %v7104 = vadd.f32 %v7029, %v3117
    %v7105 = vadd.f32 %v7031, %v3121
    %v7106 = vadd.f32 %v7100, %v3125
    %v7107 = vadd.f32 %v7102, %v3129
    %v7108 = vxor.u32 %v7104, 2147483648
    %v7109 = vmul.f32 %v7108, 1.442695
    %v7110 = vpow.pop %v7109
    %v7111 = vadd.f32 %v7110, 1.0
    %v7112 = vrcp.pop %v7111
    %v7113 = vmul.f32 1.0, %v7112
    %v7114 = vxor.u32 %v7105, 2147483648
    %v7115 = vmul.f32 %v7114, 1.442695
    %v7116 = vpow.pop %v7115
    %v7117 = vadd.f32 %v7116, 1.0
    %v7118 = vrcp.pop %v7117
    %v7119 = vmul.f32 1.0, %v7118
    %v7120 = vtanh.pop %v7106
    %v7121 = vxor.u32 %v7107, 2147483648
    %v7122 = vmul.f32 %v7121, 1.442695
    %v7123 = vpow.pop %v7122
    %v7124 = vadd.f32 %v7123, 1.0
    %v7125 = vrcp.pop %v7124
    %v7126 = vmul.f32 1.0, %v7125
    %v7127 = vmul.f32 %v7119, %v6335
    %v7128 = vmul.f32 %v7113, %v7120
    %v7129 = vadd.f32 %v7127, %v7128
    %v7130 = vtanh.pop %v7129
    %v7131 = vmul.f32 %v7126, %v7130
    %7132 = vmatprep.subr.mxu0 %v397
    %7133 = vmatpush1.msra.mxu0 %v396
    %7134 = vmatprep.subr.mxu0 %v393
    %7135 = vmatpush1.msra.mxu0 %v392
    %7136 = vmatprep.subr.mxu0 %v389
    %7137 = vmatpush1.msra.mxu0 %v388
    %7138 = vmatprep.subr.mxu0 %v385
    %7139 = vmatpush1.msra.mxu0 %v384
    %7140 = vmatprep.subr.mxu0 %v381
    %7141 = vmatpush1.msra.mxu0 %v380
    %7142 = vmatprep.subr.mxu0 %v377
    %7143 = vmatpush1.msra.mxu0 %v376
    %7144 = vmatprep.subr.mxu0 %v373
    %7145 = vmatpush1.msra.mxu0 %v372
    %7146 = vmatprep.subr.mxu0 %v369
    %7147 = vmatpush1.msra.mxu0 %v368
    %7148 = vmatprep.subr.mxu0 %v365
    %7149 = vmatpush1.msra.mxu0 %v364
    %7150 = vmatprep.subr.mxu0 %v361
    %7151 = vmatpush1.msra.mxu0 %v360
    %7152 = vmatprep.subr.mxu0 %v357
    %7153 = vmatpush1.msra.mxu0 %v356
    %7154 = vmatprep.subr.mxu0 %v353
    %7155 = vmatpush1.msra.mxu0 %v352
    %7156 = vmatprep.subr.mxu0 %v349
    %7157 = vmatpush1.msra.mxu0 %v348
    %7158 = vmatprep.subr.mxu0 %v345
    %7159 = vmatpush1.msra.mxu0 %v344
    %7160 = vmatprep.subr.mxu0 %v341
    %7161 = vmatpush1.msra.mxu0 %v340
    %7162 = vmatprep.subr.mxu0 %v337
    %7163 = vmatpush1.msra.mxu0 %v336
    %7164 = vmatprep.subr.mxu0 0.0
    %7165 = vmatpush2.msra.mxu0 0.0
    %7166 = vmatprep.subr.mxu0 0.0
    %7167 = vmatpush2.msra.mxu0 0.0
    %7168 = vmatprep.subr.mxu0 0.0
    %7169 = vmatpush2.msra.mxu0 0.0
    %7170 = vmatprep.subr.mxu0 0.0
    %7171 = vmatpush2.msra.mxu0 0.0
    %7172 = vmatprep.subr.mxu0 0.0
    %7173 = vmatpush2.msra.mxu0 0.0
    %7174 = vmatprep.subr.mxu0 0.0
    %7175 = vmatpush2.msra.mxu0 0.0
    %7176 = vmatprep.subr.mxu0 0.0
    %7177 = vmatpush2.msra.mxu0 0.0
    %7178 = vmatprep.subr.mxu0 0.0
    %7179 = vmatpush2.msra.mxu0 0.0
    %7180 = vmatprep.subr.mxu0 0.0
    %7181 = vmatpush2.msra.mxu0 0.0
    %7182 = vmatprep.subr.mxu0 0.0
    %7183 = vmatpush2.msra.mxu0 0.0
    %7184 = vmatprep.subr.mxu0 0.0
    %7185 = vmatpush2.msra.mxu0 0.0
    %7186 = vmatprep.subr.mxu0 0.0
    %7187 = vmatpush2.msra.mxu0 0.0
    %7188 = vmatprep.subr.mxu0 0.0
    %7189 = vmatpush2.msra.mxu0 0.0
    %7190 = vmatprep.subr.mxu0 0.0
    %7191 = vmatpush2.msra.mxu0 0.0
    %7192 = vmatprep.subr.mxu0 0.0
    %7193 = vmatpush2.msra.mxu0 0.0
    %7194 = vmatprep.subr.mxu0 0.0
    %7195 = vmatpush2.msra.mxu0 0.0
    %7196 = vmatprep.mubr.f32.mxu0 0.0
    %7197 = vmatmul.mubr.f32.gmra.mxu0 %v6819
    %v7198 = vpop.f32.mrf.mxu0
    %v7199 = vadd.f32 0.0, %v7198
    %v7200 = vpop.f32.mrf.mxu0
    %v7201 = vadd.f32 0.0, %v7200
    %7202 = vdwg.mxu0
    %7203 = vmatprep.subr.mxu0 %v399
    %7204 = vmatpush1.msra.mxu0 %v398
    %7205 = vmatprep.subr.mxu0 %v395
    %7206 = vmatpush1.msra.mxu0 %v394
    %7207 = vmatprep.subr.mxu0 %v391
    %7208 = vmatpush1.msra.mxu0 %v390
    %7209 = vmatprep.subr.mxu0 %v387
    %7210 = vmatpush1.msra.mxu0 %v386
    %7211 = vmatprep.subr.mxu0 %v383
    %7212 = vmatpush1.msra.mxu0 %v382
    %7213 = vmatprep.subr.mxu0 %v379
    %7214 = vmatpush1.msra.mxu0 %v378
    %7215 = vmatprep.subr.mxu0 %v375
    %7216 = vmatpush1.msra.mxu0 %v374
    %7217 = vmatprep.subr.mxu0 %v371
    %7218 = vmatpush1.msra.mxu0 %v370
    %7219 = vmatprep.subr.mxu0 %v367
    %7220 = vmatpush1.msra.mxu0 %v366
    %7221 = vmatprep.subr.mxu0 %v363
    %7222 = vmatpush1.msra.mxu0 %v362
    %7223 = vmatprep.subr.mxu0 %v359
    %7224 = vmatpush1.msra.mxu0 %v358
    %7225 = vmatprep.subr.mxu0 %v355
    %7226 = vmatpush1.msra.mxu0 %v354
    %7227 = vmatprep.subr.mxu0 %v351
    %7228 = vmatpush1.msra.mxu0 %v350
    %7229 = vmatprep.subr.mxu0 %v347
    %7230 = vmatpush1.msra.mxu0 %v346
    %7231 = vmatprep.subr.mxu0 %v343
    %7232 = vmatpush1.msra.mxu0 %v342
    %7233 = vmatprep.subr.mxu0 %v339
    %7234 = vmatpush1.msra.mxu0 %v338
    %7235 = vmatprep.subr.mxu0 0.0
    %7236 = vmatpush2.msra.mxu0 0.0
    %7237 = vmatprep.subr.mxu0 0.0
    %7238 = vmatpush2.msra.mxu0 0.0
    %7239 = vmatprep.subr.mxu0 0.0
    %7240 = vmatpush2.msra.mxu0 0.0
    %7241 = vmatprep.subr.mxu0 0.0
    %7242 = vmatpush2.msra.mxu0 0.0
    %7243 = vmatprep.subr.mxu0 0.0
    %7244 = vmatpush2.msra.mxu0 0.0
    %7245 = vmatprep.subr.mxu0 0.0
    %7246 = vmatpush2.msra.mxu0 0.0
    %7247 = vmatprep.subr.mxu0 0.0
    %7248 = vmatpush2.msra.mxu0 0.0
    %7249 = vmatprep.subr.mxu0 0.0
    %7250 = vmatpush2.msra.mxu0 0.0
    %7251 = vmatprep.subr.mxu0 0.0
    %7252 = vmatpush2.msra.mxu0 0.0
    %7253 = vmatprep.subr.mxu0 0.0
    %7254 = vmatpush2.msra.mxu0 0.0
    %7255 = vmatprep.subr.mxu0 0.0
    %7256 = vmatpush2.msra.mxu0 0.0
    %7257 = vmatprep.subr.mxu0 0.0
    %7258 = vmatpush2.msra.mxu0 0.0
    %7259 = vmatprep.subr.mxu0 0.0
    %7260 = vmatpush2.msra.mxu0 0.0
    %7261 = vmatprep.subr.mxu0 0.0
    %7262 = vmatpush2.msra.mxu0 0.0
    %7263 = vmatprep.subr.mxu0 0.0
    %7264 = vmatpush2.msra.mxu0 0.0
    %7265 = vmatprep.subr.mxu0 0.0
    %7266 = vmatpush2.msra.mxu0 0.0
    %7267 = vmatprep.mubr.f32.mxu0 0.0
    %7268 = vmatmul.mubr.f32.gmra.mxu0 %v6819
    %v7269 = vpop.f32.mrf.mxu0
    %v7270 = vadd.f32 0.0, %v7269
    %v7271 = vpop.f32.mrf.mxu0
    %v7272 = vadd.f32 0.0, %v7271
    %7273 = vdwg.mxu0
    %7274 = vmatprep.subr.mxu0 %v205
    %7275 = vmatpush1.msra.mxu0 %v204
    %7276 = vmatprep.subr.mxu0 %v201
    %7277 = vmatpush1.msra.mxu0 %v200
    %7278 = vmatprep.subr.mxu0 %v197
    %7279 = vmatpush1.msra.mxu0 %v196
    %7280 = vmatprep.subr.mxu0 %v193
    %7281 = vmatpush1.msra.mxu0 %v192
    %7282 = vmatprep.subr.mxu0 %v189
    %7283 = vmatpush1.msra.mxu0 %v188
    %7284 = vmatprep.subr.mxu0 %v185
    %7285 = vmatpush1.msra.mxu0 %v184
    %7286 = vmatprep.subr.mxu0 %v181
    %7287 = vmatpush1.msra.mxu0 %v180
    %7288 = vmatprep.subr.mxu0 %v177
    %7289 = vmatpush1.msra.mxu0 %v176
    %7290 = vmatprep.subr.mxu0 %v173
    %7291 = vmatpush1.msra.mxu0 %v172
    %7292 = vmatprep.subr.mxu0 %v169
    %7293 = vmatpush1.msra.mxu0 %v168
    %7294 = vmatprep.subr.mxu0 %v165
    %7295 = vmatpush1.msra.mxu0 %v164
    %7296 = vmatprep.subr.mxu0 %v161
    %7297 = vmatpush1.msra.mxu0 %v160
    %7298 = vmatprep.subr.mxu0 %v157
    %7299 = vmatpush1.msra.mxu0 %v156
    %7300 = vmatprep.subr.mxu0 %v153
    %7301 = vmatpush1.msra.mxu0 %v152
    %7302 = vmatprep.subr.mxu0 %v149
    %7303 = vmatpush1.msra.mxu0 %v148
    %7304 = vmatprep.subr.mxu0 %v145
    %7305 = vmatpush1.msra.mxu0 %v144
    %7306 = vmatprep.subr.mxu0 0.0
    %7307 = vmatpush2.msra.mxu0 0.0
    %7308 = vmatprep.subr.mxu0 0.0
    %7309 = vmatpush2.msra.mxu0 0.0
    %7310 = vmatprep.subr.mxu0 0.0
    %7311 = vmatpush2.msra.mxu0 0.0
    %7312 = vmatprep.subr.mxu0 0.0
    %7313 = vmatpush2.msra.mxu0 0.0
    %7314 = vmatprep.subr.mxu0 0.0
    %7315 = vmatpush2.msra.mxu0 0.0
    %7316 = vmatprep.subr.mxu0 0.0
    %7317 = vmatpush2.msra.mxu0 0.0
    %7318 = vmatprep.subr.mxu0 0.0
    %7319 = vmatpush2.msra.mxu0 0.0
    %7320 = vmatprep.subr.mxu0 0.0
    %7321 = vmatpush2.msra.mxu0 0.0
    %7322 = vmatprep.subr.mxu0 0.0
    %7323 = vmatpush2.msra.mxu0 0.0
    %7324 = vmatprep.subr.mxu0 0.0
    %7325 = vmatpush2.msra.mxu0 0.0
    %7326 = vmatprep.subr.mxu0 0.0
    %7327 = vmatpush2.msra.mxu0 0.0
    %7328 = vmatprep.subr.mxu0 0.0
    %7329 = vmatpush2.msra.mxu0 0.0
    %7330 = vmatprep.subr.mxu0 0.0
    %7331 = vmatpush2.msra.mxu0 0.0
    %7332 = vmatprep.subr.mxu0 0.0
    %7333 = vmatpush2.msra.mxu0 0.0
    %7334 = vmatprep.subr.mxu0 0.0
    %7335 = vmatpush2.msra.mxu0 0.0
    %7336 = vmatprep.subr.mxu0 0.0
    %7337 = vmatpush2.msra.mxu0 0.0
    %7338 = vmatprep.mubr.f32.mxu0 0.0
    %7339 = vmatmul.mubr.f32.gmra.mxu0 %v6507
    %v7340 = vpop.f32.mrf.mxu0
    %v7341 = vadd.f32 %v7199, %v7340
    %v7342 = vpop.f32.mrf.mxu0
    %v7343 = vadd.f32 %v7201, %v7342
    %7344 = vdwg.mxu0
    %7345 = vmatprep.subr.mxu0 %v207
    %7346 = vmatpush1.msra.mxu0 %v206
    %7347 = vmatprep.subr.mxu0 %v203
    %7348 = vmatpush1.msra.mxu0 %v202
    %7349 = vmatprep.subr.mxu0 %v199
    %7350 = vmatpush1.msra.mxu0 %v198
    %7351 = vmatprep.subr.mxu0 %v195
    %7352 = vmatpush1.msra.mxu0 %v194
    %7353 = vmatprep.subr.mxu0 %v191
    %7354 = vmatpush1.msra.mxu0 %v190
    %7355 = vmatprep.subr.mxu0 %v187
    %7356 = vmatpush1.msra.mxu0 %v186
    %7357 = vmatprep.subr.mxu0 %v183
    %7358 = vmatpush1.msra.mxu0 %v182
    %7359 = vmatprep.subr.mxu0 %v179
    %7360 = vmatpush1.msra.mxu0 %v178
    %7361 = vmatprep.subr.mxu0 %v175
    %7362 = vmatpush1.msra.mxu0 %v174
    %7363 = vmatprep.subr.mxu0 %v171
    %7364 = vmatpush1.msra.mxu0 %v170
    %7365 = vmatprep.subr.mxu0 %v167
    %7366 = vmatpush1.msra.mxu0 %v166
    %7367 = vmatprep.subr.mxu0 %v163
    %7368 = vmatpush1.msra.mxu0 %v162
    %7369 = vmatprep.subr.mxu0 %v159
    %7370 = vmatpush1.msra.mxu0 %v158
    %7371 = vmatprep.subr.mxu0 %v155
    %7372 = vmatpush1.msra.mxu0 %v154
    %7373 = vmatprep.subr.mxu0 %v151
    %7374 = vmatpush1.msra.mxu0 %v150
    %7375 = vmatprep.subr.mxu0 %v147
    %7376 = vmatpush1.msra.mxu0 %v146
    %7377 = vmatprep.subr.mxu0 0.0
    %7378 = vmatpush2.msra.mxu0 0.0
    %7379 = vmatprep.subr.mxu0 0.0
    %7380 = vmatpush2.msra.mxu0 0.0
    %7381 = vmatprep.subr.mxu0 0.0
    %7382 = vmatpush2.msra.mxu0 0.0
    %7383 = vmatprep.subr.mxu0 0.0
    %7384 = vmatpush2.msra.mxu0 0.0
    %7385 = vmatprep.subr.mxu0 0.0
    %7386 = vmatpush2.msra.mxu0 0.0
    %7387 = vmatprep.subr.mxu0 0.0
    %7388 = vmatpush2.msra.mxu0 0.0
    %7389 = vmatprep.subr.mxu0 0.0
    %7390 = vmatpush2.msra.mxu0 0.0
    %7391 = vmatprep.subr.mxu0 0.0
    %7392 = vmatpush2.msra.mxu0 0.0
    %7393 = vmatprep.subr.mxu0 0.0
    %7394 = vmatpush2.msra.mxu0 0.0
    %7395 = vmatprep.subr.mxu0 0.0
    %7396 = vmatpush2.msra.mxu0 0.0
    %7397 = vmatprep.subr.mxu0 0.0
    %7398 = vmatpush2.msra.mxu0 0.0
    %7399 = vmatprep.subr.mxu0 0.0
    %7400 = vmatpush2.msra.mxu0 0.0
    %7401 = vmatprep.subr.mxu0 0.0
    %7402 = vmatpush2.msra.mxu0 0.0
    %7403 = vmatprep.subr.mxu0 0.0
    %7404 = vmatpush2.msra.mxu0 0.0
    %7405 = vmatprep.subr.mxu0 0.0
    %7406 = vmatpush2.msra.mxu0 0.0
    %7407 = vmatprep.subr.mxu0 0.0
    %7408 = vmatpush2.msra.mxu0 0.0
    %7409 = vmatprep.mubr.f32.mxu0 0.0
    %7410 = vmatmul.mubr.f32.gmra.mxu0 %v6507
    %v7411 = vpop.f32.mrf.mxu0
    %v7412 = vadd.f32 %v7270, %v7411
    %v7413 = vpop.f32.mrf.mxu0
    %v7414 = vadd.f32 %v7272, %v7413
    %7415 = vdwg.mxu0
    %v7416 = vadd.f32 %v7341, %v2302
    %v7417 = vadd.f32 %v7343, %v2306
    %v7418 = vadd.f32 %v7412, %v2310
    %v7419 = vadd.f32 %v7414, %v2314
    %v7420 = vxor.u32 %v7416, 2147483648
    %v7421 = vmul.f32 %v7420, 1.442695
    %v7422 = vpow.pop %v7421
    %v7423 = vadd.f32 %v7422, 1.0
    %v7424 = vrcp.pop %v7423
    %v7425 = vmul.f32 1.0, %v7424
    %v7426 = vxor.u32 %v7417, 2147483648
    %v7427 = vmul.f32 %v7426, 1.442695
    %v7428 = vpow.pop %v7427
    %v7429 = vadd.f32 %v7428, 1.0
    %v7430 = vrcp.pop %v7429
    %v7431 = vmul.f32 1.0, %v7430
    %v7432 = vtanh.pop %v7418
    %v7433 = vxor.u32 %v7419, 2147483648
    %v7434 = vmul.f32 %v7433, 1.442695
    %v7435 = vpow.pop %v7434
    %v7436 = vadd.f32 %v7435, 1.0
    %v7437 = vrcp.pop %v7436
    %v7438 = vmul.f32 1.0, %v7437
    %v7439 = vmul.f32 %v7431, %v6817
    %v7440 = vmul.f32 %v7425, %v7432
    %v7441 = vadd.f32 %v7439, %v7440
    %v7442 = vtanh.pop %v7441
    %v7443 = vmul.f32 %v7438, %v7442
    %7444 = vmatprep.subr.mxu0 %v461
    %7445 = vmatpush1.msra.mxu0 %v460
    %7446 = vmatprep.subr.mxu0 %v457
    %7447 = vmatpush1.msra.mxu0 %v456
    %7448 = vmatprep.subr.mxu0 %v453
    %7449 = vmatpush1.msra.mxu0 %v452
    %7450 = vmatprep.subr.mxu0 %v449
    %7451 = vmatpush1.msra.mxu0 %v448
    %7452 = vmatprep.subr.mxu0 %v445
    %7453 = vmatpush1.msra.mxu0 %v444
    %7454 = vmatprep.subr.mxu0 %v441
    %7455 = vmatpush1.msra.mxu0 %v440
    %7456 = vmatprep.subr.mxu0 %v437
    %7457 = vmatpush1.msra.mxu0 %v436
    %7458 = vmatprep.subr.mxu0 %v433
    %7459 = vmatpush1.msra.mxu0 %v432
    %7460 = vmatprep.subr.mxu0 %v429
    %7461 = vmatpush1.msra.mxu0 %v428
    %7462 = vmatprep.subr.mxu0 %v425
    %7463 = vmatpush1.msra.mxu0 %v424
    %7464 = vmatprep.subr.mxu0 %v421
    %7465 = vmatpush1.msra.mxu0 %v420
    %7466 = vmatprep.subr.mxu0 %v417
    %7467 = vmatpush1.msra.mxu0 %v416
    %7468 = vmatprep.subr.mxu0 %v413
    %7469 = vmatpush1.msra.mxu0 %v412
    %7470 = vmatprep.subr.mxu0 %v409
    %7471 = vmatpush1.msra.mxu0 %v408
    %7472 = vmatprep.subr.mxu0 %v405
    %7473 = vmatpush1.msra.mxu0 %v404
    %7474 = vmatprep.subr.mxu0 %v401
    %7475 = vmatpush1.msra.mxu0 %v400
    %7476 = vmatprep.subr.mxu0 0.0
    %7477 = vmatpush2.msra.mxu0 0.0
    %7478 = vmatprep.subr.mxu0 0.0
    %7479 = vmatpush2.msra.mxu0 0.0
    %7480 = vmatprep.subr.mxu0 0.0
    %7481 = vmatpush2.msra.mxu0 0.0
    %7482 = vmatprep.subr.mxu0 0.0
    %7483 = vmatpush2.msra.mxu0 0.0
    %7484 = vmatprep.subr.mxu0 0.0
    %7485 = vmatpush2.msra.mxu0 0.0
    %7486 = vmatprep.subr.mxu0 0.0
    %7487 = vmatpush2.msra.mxu0 0.0
    %7488 = vmatprep.subr.mxu0 0.0
    %7489 = vmatpush2.msra.mxu0 0.0
    %7490 = vmatprep.subr.mxu0 0.0
    %7491 = vmatpush2.msra.mxu0 0.0
    %7492 = vmatprep.subr.mxu0 0.0
    %7493 = vmatpush2.msra.mxu0 0.0
    %7494 = vmatprep.subr.mxu0 0.0
    %7495 = vmatpush2.msra.mxu0 0.0
    %7496 = vmatprep.subr.mxu0 0.0
    %7497 = vmatpush2.msra.mxu0 0.0
    %7498 = vmatprep.subr.mxu0 0.0
    %7499 = vmatpush2.msra.mxu0 0.0
    %7500 = vmatprep.subr.mxu0 0.0
    %7501 = vmatpush2.msra.mxu0 0.0
    %7502 = vmatprep.subr.mxu0 0.0
    %7503 = vmatpush2.msra.mxu0 0.0
    %7504 = vmatprep.subr.mxu0 0.0
    %7505 = vmatpush2.msra.mxu0 0.0
    %7506 = vmatprep.subr.mxu0 0.0
    %7507 = vmatpush2.msra.mxu0 0.0
    %7508 = vmatprep.mubr.f32.mxu0 0.0
    %7509 = vmatmul.mubr.f32.gmra.mxu0 %v7131
    %v7510 = vpop.f32.mrf.mxu0
    %v7511 = vadd.f32 0.0, %v7510
    %v7512 = vpop.f32.mrf.mxu0
    %v7513 = vadd.f32 0.0, %v7512
    %7514 = vdwg.mxu0
    %7515 = vmatprep.subr.mxu0 %v463
    %7516 = vmatpush1.msra.mxu0 %v462
    %7517 = vmatprep.subr.mxu0 %v459
    %7518 = vmatpush1.msra.mxu0 %v458
    %7519 = vmatprep.subr.mxu0 %v455
    %7520 = vmatpush1.msra.mxu0 %v454
    %7521 = vmatprep.subr.mxu0 %v451
    %7522 = vmatpush1.msra.mxu0 %v450
    %7523 = vmatprep.subr.mxu0 %v447
    %7524 = vmatpush1.msra.mxu0 %v446
    %7525 = vmatprep.subr.mxu0 %v443
    %7526 = vmatpush1.msra.mxu0 %v442
    %7527 = vmatprep.subr.mxu0 %v439
    %7528 = vmatpush1.msra.mxu0 %v438
    %7529 = vmatprep.subr.mxu0 %v435
    %7530 = vmatpush1.msra.mxu0 %v434
    %7531 = vmatprep.subr.mxu0 %v431
    %7532 = vmatpush1.msra.mxu0 %v430
    %7533 = vmatprep.subr.mxu0 %v427
    %7534 = vmatpush1.msra.mxu0 %v426
    %7535 = vmatprep.subr.mxu0 %v423
    %7536 = vmatpush1.msra.mxu0 %v422
    %7537 = vmatprep.subr.mxu0 %v419
    %7538 = vmatpush1.msra.mxu0 %v418
    %7539 = vmatprep.subr.mxu0 %v415
    %7540 = vmatpush1.msra.mxu0 %v414
    %7541 = vmatprep.subr.mxu0 %v411
    %7542 = vmatpush1.msra.mxu0 %v410
    %7543 = vmatprep.subr.mxu0 %v407
    %7544 = vmatpush1.msra.mxu0 %v406
    %7545 = vmatprep.subr.mxu0 %v403
    %7546 = vmatpush1.msra.mxu0 %v402
    %7547 = vmatprep.subr.mxu0 0.0
    %7548 = vmatpush2.msra.mxu0 0.0
    %7549 = vmatprep.subr.mxu0 0.0
    %7550 = vmatpush2.msra.mxu0 0.0
    %7551 = vmatprep.subr.mxu0 0.0
    %7552 = vmatpush2.msra.mxu0 0.0
    %7553 = vmatprep.subr.mxu0 0.0
    %7554 = vmatpush2.msra.mxu0 0.0
    %7555 = vmatprep.subr.mxu0 0.0
    %7556 = vmatpush2.msra.mxu0 0.0
    %7557 = vmatprep.subr.mxu0 0.0
    %7558 = vmatpush2.msra.mxu0 0.0
    %7559 = vmatprep.subr.mxu0 0.0
    %7560 = vmatpush2.msra.mxu0 0.0
    %7561 = vmatprep.subr.mxu0 0.0
    %7562 = vmatpush2.msra.mxu0 0.0
    %7563 = vmatprep.subr.mxu0 0.0
    %7564 = vmatpush2.msra.mxu0 0.0
    %7565 = vmatprep.subr.mxu0 0.0
    %7566 = vmatpush2.msra.mxu0 0.0
    %7567 = vmatprep.subr.mxu0 0.0
    %7568 = vmatpush2.msra.mxu0 0.0
    %7569 = vmatprep.subr.mxu0 0.0
    %7570 = vmatpush2.msra.mxu0 0.0
    %7571 = vmatprep.subr.mxu0 0.0
    %7572 = vmatpush2.msra.mxu0 0.0
    %7573 = vmatprep.subr.mxu0 0.0
    %7574 = vmatpush2.msra.mxu0 0.0
    %7575 = vmatprep.subr.mxu0 0.0
    %7576 = vmatpush2.msra.mxu0 0.0
    %7577 = vmatprep.subr.mxu0 0.0
    %7578 = vmatpush2.msra.mxu0 0.0
    %7579 = vmatprep.mubr.f32.mxu0 0.0
    %7580 = vmatmul.mubr.f32.gmra.mxu0 %v7131
    %v7581 = vpop.f32.mrf.mxu0
    %v7582 = vadd.f32 0.0, %v7581
    %v7583 = vpop.f32.mrf.mxu0
    %v7584 = vadd.f32 0.0, %v7583
    %7585 = vdwg.mxu0
    %7586 = vmatprep.subr.mxu0 %v269
    %7587 = vmatpush1.msra.mxu0 %v268
    %7588 = vmatprep.subr.mxu0 %v265
    %7589 = vmatpush1.msra.mxu0 %v264
    %7590 = vmatprep.subr.mxu0 %v261
    %7591 = vmatpush1.msra.mxu0 %v260
    %7592 = vmatprep.subr.mxu0 %v257
    %7593 = vmatpush1.msra.mxu0 %v256
    %7594 = vmatprep.subr.mxu0 %v253
    %7595 = vmatpush1.msra.mxu0 %v252
    %7596 = vmatprep.subr.mxu0 %v249
    %7597 = vmatpush1.msra.mxu0 %v248
    %7598 = vmatprep.subr.mxu0 %v245
    %7599 = vmatpush1.msra.mxu0 %v244
    %7600 = vmatprep.subr.mxu0 %v241
    %7601 = vmatpush1.msra.mxu0 %v240
    %7602 = vmatprep.subr.mxu0 %v237
    %7603 = vmatpush1.msra.mxu0 %v236
    %7604 = vmatprep.subr.mxu0 %v233
    %7605 = vmatpush1.msra.mxu0 %v232
    %7606 = vmatprep.subr.mxu0 %v229
    %7607 = vmatpush1.msra.mxu0 %v228
    %7608 = vmatprep.subr.mxu0 %v225
    %7609 = vmatpush1.msra.mxu0 %v224
    %7610 = vmatprep.subr.mxu0 %v221
    %7611 = vmatpush1.msra.mxu0 %v220
    %7612 = vmatprep.subr.mxu0 %v217
    %7613 = vmatpush1.msra.mxu0 %v216
    %7614 = vmatprep.subr.mxu0 %v213
    %7615 = vmatpush1.msra.mxu0 %v212
    %7616 = vmatprep.subr.mxu0 %v209
    %7617 = vmatpush1.msra.mxu0 %v208
    %7618 = vmatprep.subr.mxu0 0.0
    %7619 = vmatpush2.msra.mxu0 0.0
    %7620 = vmatprep.subr.mxu0 0.0
    %7621 = vmatpush2.msra.mxu0 0.0
    %7622 = vmatprep.subr.mxu0 0.0
    %7623 = vmatpush2.msra.mxu0 0.0
    %7624 = vmatprep.subr.mxu0 0.0
    %7625 = vmatpush2.msra.mxu0 0.0
    %7626 = vmatprep.subr.mxu0 0.0
    %7627 = vmatpush2.msra.mxu0 0.0
    %7628 = vmatprep.subr.mxu0 0.0
    %7629 = vmatpush2.msra.mxu0 0.0
    %7630 = vmatprep.subr.mxu0 0.0
    %7631 = vmatpush2.msra.mxu0 0.0
    %7632 = vmatprep.subr.mxu0 0.0
    %7633 = vmatpush2.msra.mxu0 0.0
    %7634 = vmatprep.subr.mxu0 0.0
    %7635 = vmatpush2.msra.mxu0 0.0
    %7636 = vmatprep.subr.mxu0 0.0
    %7637 = vmatpush2.msra.mxu0 0.0
    %7638 = vmatprep.subr.mxu0 0.0
    %7639 = vmatpush2.msra.mxu0 0.0
    %7640 = vmatprep.subr.mxu0 0.0
    %7641 = vmatpush2.msra.mxu0 0.0
    %7642 = vmatprep.subr.mxu0 0.0
    %7643 = vmatpush2.msra.mxu0 0.0
    %7644 = vmatprep.subr.mxu0 0.0
    %7645 = vmatpush2.msra.mxu0 0.0
    %7646 = vmatprep.subr.mxu0 0.0
    %7647 = vmatpush2.msra.mxu0 0.0
    %7648 = vmatprep.subr.mxu0 0.0
    %7649 = vmatpush2.msra.mxu0 0.0
    %7650 = vmatprep.mubr.f32.mxu0 0.0
    %7651 = vmatmul.mubr.f32.gmra.mxu0 %v6819
    %v7652 = vpop.f32.mrf.mxu0
    %v7653 = vadd.f32 %v7511, %v7652
    %v7654 = vpop.f32.mrf.mxu0
    %v7655 = vadd.f32 %v7513, %v7654
    %7656 = vdwg.mxu0
    %7657 = vmatprep.subr.mxu0 %v271
    %7658 = vmatpush1.msra.mxu0 %v270
    %7659 = vmatprep.subr.mxu0 %v267
    %7660 = vmatpush1.msra.mxu0 %v266
    %7661 = vmatprep.subr.mxu0 %v263
    %7662 = vmatpush1.msra.mxu0 %v262
    %7663 = vmatprep.subr.mxu0 %v259
    %7664 = vmatpush1.msra.mxu0 %v258
    %7665 = vmatprep.subr.mxu0 %v255
    %7666 = vmatpush1.msra.mxu0 %v254
    %7667 = vmatprep.subr.mxu0 %v251
    %7668 = vmatpush1.msra.mxu0 %v250
    %7669 = vmatprep.subr.mxu0 %v247
    %7670 = vmatpush1.msra.mxu0 %v246
    %7671 = vmatprep.subr.mxu0 %v243
    %7672 = vmatpush1.msra.mxu0 %v242
    %7673 = vmatprep.subr.mxu0 %v239
    %7674 = vmatpush1.msra.mxu0 %v238
    %7675 = vmatprep.subr.mxu0 %v235
    %7676 = vmatpush1.msra.mxu0 %v234
    %7677 = vmatprep.subr.mxu0 %v231
    %7678 = vmatpush1.msra.mxu0 %v230
    %7679 = vmatprep.subr.mxu0 %v227
    %7680 = vmatpush1.msra.mxu0 %v226
    %7681 = vmatprep.subr.mxu0 %v223
    %7682 = vmatpush1.msra.mxu0 %v222
    %7683 = vmatprep.subr.mxu0 %v219
    %7684 = vmatpush1.msra.mxu0 %v218
    %7685 = vmatprep.subr.mxu0 %v215
    %7686 = vmatpush1.msra.mxu0 %v214
    %7687 = vmatprep.subr.mxu0 %v211
    %7688 = vmatpush1.msra.mxu0 %v210
    %7689 = vmatprep.subr.mxu0 0.0
    %7690 = vmatpush2.msra.mxu0 0.0
    %7691 = vmatprep.subr.mxu0 0.0
    %7692 = vmatpush2.msra.mxu0 0.0
    %7693 = vmatprep.subr.mxu0 0.0
    %7694 = vmatpush2.msra.mxu0 0.0
    %7695 = vmatprep.subr.mxu0 0.0
    %7696 = vmatpush2.msra.mxu0 0.0
    %7697 = vmatprep.subr.mxu0 0.0
    %7698 = vmatpush2.msra.mxu0 0.0
    %7699 = vmatprep.subr.mxu0 0.0
    %7700 = vmatpush2.msra.mxu0 0.0
    %7701 = vmatprep.subr.mxu0 0.0
    %7702 = vmatpush2.msra.mxu0 0.0
    %7703 = vmatprep.subr.mxu0 0.0
    %7704 = vmatpush2.msra.mxu0 0.0
    %7705 = vmatprep.subr.mxu0 0.0
    %7706 = vmatpush2.msra.mxu0 0.0
    %7707 = vmatprep.subr.mxu0 0.0
    %7708 = vmatpush2.msra.mxu0 0.0
    %7709 = vmatprep.subr.mxu0 0.0
    %7710 = vmatpush2.msra.mxu0 0.0
    %7711 = vmatprep.subr.mxu0 0.0
    %7712 = vmatpush2.msra.mxu0 0.0
    %7713 = vmatprep.subr.mxu0 0.0
    %7714 = vmatpush2.msra.mxu0 0.0
    %7715 = vmatprep.subr.mxu0 0.0
    %7716 = vmatpush2.msra.mxu0 0.0
    %7717 = vmatprep.subr.mxu0 0.0
    %7718 = vmatpush2.msra.mxu0 0.0
    %7719 = vmatprep.subr.mxu0 0.0
    %7720 = vmatpush2.msra.mxu0 0.0
    %7721 = vmatprep.mubr.f32.mxu0 0.0
    %7722 = vmatmul.mubr.f32.gmra.mxu0 %v6819
    %v7723 = vpop.f32.mrf.mxu0
    %v7724 = vadd.f32 %v7582, %v7723
    %v7725 = vpop.f32.mrf.mxu0
    %v7726 = vadd.f32 %v7584, %v7725
    %7727 = vdwg.mxu0
    %v7728 = vadd.f32 %v7653, %v3117
    %v7729 = vadd.f32 %v7655, %v3121
    %v7730 = vadd.f32 %v7724, %v3125
    %v7731 = vadd.f32 %v7726, %v3129
    %v7732 = vxor.u32 %v7728, 2147483648
    %v7733 = vmul.f32 %v7732, 1.442695
    %v7734 = vpow.pop %v7733
    %v7735 = vadd.f32 %v7734, 1.0
    %v7736 = vrcp.pop %v7735
    %v7737 = vmul.f32 1.0, %v7736
    %v7738 = vxor.u32 %v7729, 2147483648
    %v7739 = vmul.f32 %v7738, 1.442695
    %v7740 = vpow.pop %v7739
    %v7741 = vadd.f32 %v7740, 1.0
    %v7742 = vrcp.pop %v7741
    %v7743 = vmul.f32 1.0, %v7742
    %v7744 = vtanh.pop %v7730
    %v7745 = vxor.u32 %v7731, 2147483648
    %v7746 = vmul.f32 %v7745, 1.442695
    %v7747 = vpow.pop %v7746
    %v7748 = vadd.f32 %v7747, 1.0
    %v7749 = vrcp.pop %v7748
    %v7750 = vmul.f32 1.0, %v7749
    %v7751 = vmul.f32 %v7743, %v7129
    %v7752 = vmul.f32 %v7737, %v7744
    %v7753 = vadd.f32 %v7751, %v7752
    %v7754 = vtanh.pop %v7753
    %v7755 = vmul.f32 %v7750, %v7754
    %7756 = vmatprep.subr.mxu0 %v461
    %7757 = vmatpush1.msra.mxu0 %v460
    %7758 = vmatprep.subr.mxu0 %v457
    %7759 = vmatpush1.msra.mxu0 %v456
    %7760 = vmatprep.subr.mxu0 %v453
    %7761 = vmatpush1.msra.mxu0 %v452
    %7762 = vmatprep.subr.mxu0 %v449
    %7763 = vmatpush1.msra.mxu0 %v448
    %7764 = vmatprep.subr.mxu0 %v445
    %7765 = vmatpush1.msra.mxu0 %v444
    %7766 = vmatprep.subr.mxu0 %v441
    %7767 = vmatpush1.msra.mxu0 %v440
    %7768 = vmatprep.subr.mxu0 %v437
    %7769 = vmatpush1.msra.mxu0 %v436
    %7770 = vmatprep.subr.mxu0 %v433
    %7771 = vmatpush1.msra.mxu0 %v432
    %7772 = vmatprep.subr.mxu0 %v429
    %7773 = vmatpush1.msra.mxu0 %v428
    %7774 = vmatprep.subr.mxu0 %v425
    %7775 = vmatpush1.msra.mxu0 %v424
    %7776 = vmatprep.subr.mxu0 %v421
    %7777 = vmatpush1.msra.mxu0 %v420
    %7778 = vmatprep.subr.mxu0 %v417
    %7779 = vmatpush1.msra.mxu0 %v416
    %7780 = vmatprep.subr.mxu0 %v413
    %7781 = vmatpush1.msra.mxu0 %v412
    %7782 = vmatprep.subr.mxu0 %v409
    %7783 = vmatpush1.msra.mxu0 %v408
    %7784 = vmatprep.subr.mxu0 %v405
    %7785 = vmatpush1.msra.mxu0 %v404
    %7786 = vmatprep.subr.mxu0 %v401
    %7787 = vmatpush1.msra.mxu0 %v400
    %7788 = vmatprep.subr.mxu0 0.0
    %7789 = vmatpush2.msra.mxu0 0.0
    %7790 = vmatprep.subr.mxu0 0.0
    %7791 = vmatpush2.msra.mxu0 0.0
    %7792 = vmatprep.subr.mxu0 0.0
    %7793 = vmatpush2.msra.mxu0 0.0
    %7794 = vmatprep.subr.mxu0 0.0
    %7795 = vmatpush2.msra.mxu0 0.0
    %7796 = vmatprep.subr.mxu0 0.0
    %7797 = vmatpush2.msra.mxu0 0.0
    %7798 = vmatprep.subr.mxu0 0.0
    %7799 = vmatpush2.msra.mxu0 0.0
    %7800 = vmatprep.subr.mxu0 0.0
    %7801 = vmatpush2.msra.mxu0 0.0
    %7802 = vmatprep.subr.mxu0 0.0
    %7803 = vmatpush2.msra.mxu0 0.0
    %7804 = vmatprep.subr.mxu0 0.0
    %7805 = vmatpush2.msra.mxu0 0.0
    %7806 = vmatprep.subr.mxu0 0.0
    %7807 = vmatpush2.msra.mxu0 0.0
    %7808 = vmatprep.subr.mxu0 0.0
    %7809 = vmatpush2.msra.mxu0 0.0
    %7810 = vmatprep.subr.mxu0 0.0
    %7811 = vmatpush2.msra.mxu0 0.0
    %7812 = vmatprep.subr.mxu0 0.0
    %7813 = vmatpush2.msra.mxu0 0.0
    %7814 = vmatprep.subr.mxu0 0.0
    %7815 = vmatpush2.msra.mxu0 0.0
    %7816 = vmatprep.subr.mxu0 0.0
    %7817 = vmatpush2.msra.mxu0 0.0
    %7818 = vmatprep.subr.mxu0 0.0
    %7819 = vmatpush2.msra.mxu0 0.0
    %7820 = vmatprep.mubr.f32.mxu0 0.0
    %7821 = vmatmul.mubr.f32.gmra.mxu0 %v7755
    %v7822 = vpop.f32.mrf.mxu0
    %v7823 = vadd.f32 0.0, %v7822
    %v7824 = vpop.f32.mrf.mxu0
    %v7825 = vadd.f32 0.0, %v7824
    %7826 = vdwg.mxu0
    %7827 = vmatprep.subr.mxu0 %v463
    %7828 = vmatpush1.msra.mxu0 %v462
    %7829 = vmatprep.subr.mxu0 %v459
    %7830 = vmatpush1.msra.mxu0 %v458
    %7831 = vmatprep.subr.mxu0 %v455
    %7832 = vmatpush1.msra.mxu0 %v454
    %7833 = vmatprep.subr.mxu0 %v451
    %7834 = vmatpush1.msra.mxu0 %v450
    %7835 = vmatprep.subr.mxu0 %v447
    %7836 = vmatpush1.msra.mxu0 %v446
    %7837 = vmatprep.subr.mxu0 %v443
    %7838 = vmatpush1.msra.mxu0 %v442
    %7839 = vmatprep.subr.mxu0 %v439
    %7840 = vmatpush1.msra.mxu0 %v438
    %7841 = vmatprep.subr.mxu0 %v435
    %7842 = vmatpush1.msra.mxu0 %v434
    %7843 = vmatprep.subr.mxu0 %v431
    %7844 = vmatpush1.msra.mxu0 %v430
    %7845 = vmatprep.subr.mxu0 %v427
    %7846 = vmatpush1.msra.mxu0 %v426
    %7847 = vmatprep.subr.mxu0 %v423
    %7848 = vmatpush1.msra.mxu0 %v422
    %7849 = vmatprep.subr.mxu0 %v419
    %7850 = vmatpush1.msra.mxu0 %v418
    %7851 = vmatprep.subr.mxu0 %v415
    %7852 = vmatpush1.msra.mxu0 %v414
    %7853 = vmatprep.subr.mxu0 %v411
    %7854 = vmatpush1.msra.mxu0 %v410
    %7855 = vmatprep.subr.mxu0 %v407
    %7856 = vmatpush1.msra.mxu0 %v406
    %7857 = vmatprep.subr.mxu0 %v403
    %7858 = vmatpush1.msra.mxu0 %v402
    %7859 = vmatprep.subr.mxu0 0.0
    %7860 = vmatpush2.msra.mxu0 0.0
    %7861 = vmatprep.subr.mxu0 0.0
    %7862 = vmatpush2.msra.mxu0 0.0
    %7863 = vmatprep.subr.mxu0 0.0
    %7864 = vmatpush2.msra.mxu0 0.0
    %7865 = vmatprep.subr.mxu0 0.0
    %7866 = vmatpush2.msra.mxu0 0.0
    %7867 = vmatprep.subr.mxu0 0.0
    %7868 = vmatpush2.msra.mxu0 0.0
    %7869 = vmatprep.subr.mxu0 0.0
    %7870 = vmatpush2.msra.mxu0 0.0
    %7871 = vmatprep.subr.mxu0 0.0
    %7872 = vmatpush2.msra.mxu0 0.0
    %7873 = vmatprep.subr.mxu0 0.0
    %7874 = vmatpush2.msra.mxu0 0.0
    %7875 = vmatprep.subr.mxu0 0.0
    %7876 = vmatpush2.msra.mxu0 0.0
    %7877 = vmatprep.subr.mxu0 0.0
    %7878 = vmatpush2.msra.mxu0 0.0
    %7879 = vmatprep.subr.mxu0 0.0
    %7880 = vmatpush2.msra.mxu0 0.0
    %7881 = vmatprep.subr.mxu0 0.0
    %7882 = vmatpush2.msra.mxu0 0.0
    %7883 = vmatprep.subr.mxu0 0.0
    %7884 = vmatpush2.msra.mxu0 0.0
    %7885 = vmatprep.subr.mxu0 0.0
    %7886 = vmatpush2.msra.mxu0 0.0
    %7887 = vmatprep.subr.mxu0 0.0
    %7888 = vmatpush2.msra.mxu0 0.0
    %7889 = vmatprep.subr.mxu0 0.0
    %7890 = vmatpush2.msra.mxu0 0.0
    %7891 = vmatprep.mubr.f32.mxu0 0.0
    %7892 = vmatmul.mubr.f32.gmra.mxu0 %v7755
    %v7893 = vpop.f32.mrf.mxu0
    %v7894 = vadd.f32 0.0, %v7893
    %v7895 = vpop.f32.mrf.mxu0
    %v7896 = vadd.f32 0.0, %v7895
    %7897 = vdwg.mxu0
    %7898 = vmatprep.subr.mxu0 %v269
    %7899 = vmatpush1.msra.mxu0 %v268
    %7900 = vmatprep.subr.mxu0 %v265
    %7901 = vmatpush1.msra.mxu0 %v264
    %7902 = vmatprep.subr.mxu0 %v261
    %7903 = vmatpush1.msra.mxu0 %v260
    %7904 = vmatprep.subr.mxu0 %v257
    %7905 = vmatpush1.msra.mxu0 %v256
    %7906 = vmatprep.subr.mxu0 %v253
    %7907 = vmatpush1.msra.mxu0 %v252
    %7908 = vmatprep.subr.mxu0 %v249
    %7909 = vmatpush1.msra.mxu0 %v248
    %7910 = vmatprep.subr.mxu0 %v245
    %7911 = vmatpush1.msra.mxu0 %v244
    %7912 = vmatprep.subr.mxu0 %v241
    %7913 = vmatpush1.msra.mxu0 %v240
    %7914 = vmatprep.subr.mxu0 %v237
    %7915 = vmatpush1.msra.mxu0 %v236
    %7916 = vmatprep.subr.mxu0 %v233
    %7917 = vmatpush1.msra.mxu0 %v232
    %7918 = vmatprep.subr.mxu0 %v229
    %7919 = vmatpush1.msra.mxu0 %v228
    %7920 = vmatprep.subr.mxu0 %v225
    %7921 = vmatpush1.msra.mxu0 %v224
    %7922 = vmatprep.subr.mxu0 %v221
    %7923 = vmatpush1.msra.mxu0 %v220
    %7924 = vmatprep.subr.mxu0 %v217
    %7925 = vmatpush1.msra.mxu0 %v216
    %7926 = vmatprep.subr.mxu0 %v213
    %7927 = vmatpush1.msra.mxu0 %v212
    %7928 = vmatprep.subr.mxu0 %v209
    %7929 = vmatpush1.msra.mxu0 %v208
    %7930 = vmatprep.subr.mxu0 0.0
    %7931 = vmatpush2.msra.mxu0 0.0
    %7932 = vmatprep.subr.mxu0 0.0
    %7933 = vmatpush2.msra.mxu0 0.0
    %7934 = vmatprep.subr.mxu0 0.0
    %7935 = vmatpush2.msra.mxu0 0.0
    %7936 = vmatprep.subr.mxu0 0.0
    %7937 = vmatpush2.msra.mxu0 0.0
    %7938 = vmatprep.subr.mxu0 0.0
    %7939 = vmatpush2.msra.mxu0 0.0
    %7940 = vmatprep.subr.mxu0 0.0
    %7941 = vmatpush2.msra.mxu0 0.0
    %7942 = vmatprep.subr.mxu0 0.0
    %7943 = vmatpush2.msra.mxu0 0.0
    %7944 = vmatprep.subr.mxu0 0.0
    %7945 = vmatpush2.msra.mxu0 0.0
    %7946 = vmatprep.subr.mxu0 0.0
    %7947 = vmatpush2.msra.mxu0 0.0
    %7948 = vmatprep.subr.mxu0 0.0
    %7949 = vmatpush2.msra.mxu0 0.0
    %7950 = vmatprep.subr.mxu0 0.0
    %7951 = vmatpush2.msra.mxu0 0.0
    %7952 = vmatprep.subr.mxu0 0.0
    %7953 = vmatpush2.msra.mxu0 0.0
    %7954 = vmatprep.subr.mxu0 0.0
    %7955 = vmatpush2.msra.mxu0 0.0
    %7956 = vmatprep.subr.mxu0 0.0
    %7957 = vmatpush2.msra.mxu0 0.0
    %7958 = vmatprep.subr.mxu0 0.0
    %7959 = vmatpush2.msra.mxu0 0.0
    %7960 = vmatprep.subr.mxu0 0.0
    %7961 = vmatpush2.msra.mxu0 0.0
    %7962 = vmatprep.mubr.f32.mxu0 0.0
    %7963 = vmatmul.mubr.f32.gmra.mxu0 %v7443
    %v7964 = vpop.f32.mrf.mxu0
    %v7965 = vadd.f32 %v7823, %v7964
    %v7966 = vpop.f32.mrf.mxu0
    %v7967 = vadd.f32 %v7825, %v7966
    %7968 = vdwg.mxu0
    %7969 = vmatprep.subr.mxu0 %v271
    %7970 = vmatpush1.msra.mxu0 %v270
    %7971 = vmatprep.subr.mxu0 %v267
    %7972 = vmatpush1.msra.mxu0 %v266
    %7973 = vmatprep.subr.mxu0 %v263
    %7974 = vmatpush1.msra.mxu0 %v262
    %7975 = vmatprep.subr.mxu0 %v259
    %7976 = vmatpush1.msra.mxu0 %v258
    %7977 = vmatprep.subr.mxu0 %v255
    %7978 = vmatpush1.msra.mxu0 %v254
    %7979 = vmatprep.subr.mxu0 %v251
    %7980 = vmatpush1.msra.mxu0 %v250
    %7981 = vmatprep.subr.mxu0 %v247
    %7982 = vmatpush1.msra.mxu0 %v246
    %7983 = vmatprep.subr.mxu0 %v243
    %7984 = vmatpush1.msra.mxu0 %v242
    %7985 = vmatprep.subr.mxu0 %v239
    %7986 = vmatpush1.msra.mxu0 %v238
    %7987 = vmatprep.subr.mxu0 %v235
    %7988 = vmatpush1.msra.mxu0 %v234
    %7989 = vmatprep.subr.mxu0 %v231
    %7990 = vmatpush1.msra.mxu0 %v230
    %7991 = vmatprep.subr.mxu0 %v227
    %7992 = vmatpush1.msra.mxu0 %v226
    %7993 = vmatprep.subr.mxu0 %v223
    %7994 = vmatpush1.msra.mxu0 %v222
    %7995 = vmatprep.subr.mxu0 %v219
    %7996 = vmatpush1.msra.mxu0 %v218
    %7997 = vmatprep.subr.mxu0 %v215
    %7998 = vmatpush1.msra.mxu0 %v214
    %7999 = vmatprep.subr.mxu0 %v211
    %8000 = vmatpush1.msra.mxu0 %v210
    %8001 = vmatprep.subr.mxu0 0.0
    %8002 = vmatpush2.msra.mxu0 0.0
    %8003 = vmatprep.subr.mxu0 0.0
    %8004 = vmatpush2.msra.mxu0 0.0
    %8005 = vmatprep.subr.mxu0 0.0
    %8006 = vmatpush2.msra.mxu0 0.0
    %8007 = vmatprep.subr.mxu0 0.0
    %8008 = vmatpush2.msra.mxu0 0.0
    %8009 = vmatprep.subr.mxu0 0.0
    %8010 = vmatpush2.msra.mxu0 0.0
    %8011 = vmatprep.subr.mxu0 0.0
    %8012 = vmatpush2.msra.mxu0 0.0
    %8013 = vmatprep.subr.mxu0 0.0
    %8014 = vmatpush2.msra.mxu0 0.0
    %8015 = vmatprep.subr.mxu0 0.0
    %8016 = vmatpush2.msra.mxu0 0.0
    %8017 = vmatprep.subr.mxu0 0.0
    %8018 = vmatpush2.msra.mxu0 0.0
    %8019 = vmatprep.subr.mxu0 0.0
    %8020 = vmatpush2.msra.mxu0 0.0
    %8021 = vmatprep.subr.mxu0 0.0
    %8022 = vmatpush2.msra.mxu0 0.0
    %8023 = vmatprep.subr.mxu0 0.0
    %8024 = vmatpush2.msra.mxu0 0.0
    %8025 = vmatprep.subr.mxu0 0.0
    %8026 = vmatpush2.msra.mxu0 0.0
    %8027 = vmatprep.subr.mxu0 0.0
    %8028 = vmatpush2.msra.mxu0 0.0
    %8029 = vmatprep.subr.mxu0 0.0
    %8030 = vmatpush2.msra.mxu0 0.0
    %8031 = vmatprep.subr.mxu0 0.0
    %8032 = vmatpush2.msra.mxu0 0.0
    %8033 = vmatprep.mubr.f32.mxu0 0.0
    %8034 = vmatmul.mubr.f32.gmra.mxu0 %v7443
    %v8035 = vpop.f32.mrf.mxu0
    %v8036 = vadd.f32 %v7894, %v8035
    %v8037 = vpop.f32.mrf.mxu0
    %v8038 = vadd.f32 %v7896, %v8037
    %8039 = vdwg.mxu0
    %v8040 = vadd.f32 %v7965, %v3117
    %v8041 = vadd.f32 %v7967, %v3121
    %v8042 = vadd.f32 %v8036, %v3125
    %v8043 = vadd.f32 %v8038, %v3129
    %v8044 = vxor.u32 %v8040, 2147483648
    %v8045 = vmul.f32 %v8044, 1.442695
    %v8046 = vpow.pop %v8045
    %v8047 = vadd.f32 %v8046, 1.0
    %v8048 = vrcp.pop %v8047
    %v8049 = vmul.f32 1.0, %v8048
    %v8050 = vxor.u32 %v8041, 2147483648
    %v8051 = vmul.f32 %v8050, 1.442695
    %v8052 = vpow.pop %v8051
    %v8053 = vadd.f32 %v8052, 1.0
    %v8054 = vrcp.pop %v8053
    %v8055 = vmul.f32 1.0, %v8054
    %v8056 = vtanh.pop %v8042
    %v8057 = vxor.u32 %v8043, 2147483648
    %v8058 = vmul.f32 %v8057, 1.442695
    %v8059 = vpow.pop %v8058
    %v8060 = vadd.f32 %v8059, 1.0
    %v8061 = vrcp.pop %v8060
    %v8062 = vmul.f32 1.0, %v8061
    %v8063 = vmul.f32 %v8055, %v7753
    %v8064 = vmul.f32 %v8049, %v8056
    %v8065 = vadd.f32 %v8063, %v8064
    %v8066 = vtanh.pop %v8065
    %v8067 = vmul.f32 %v8062, %v8066
    %v8069 = vlaneseq
    %v8070 = vshrl.u32 %v8069, 7
    %v8071 = vsub.s32 0, %v8070
    %v8072 = vrot.slane %v483, %v8071
    %8074 = vmatprep.subr.mxu0 0.0
    %8075 = vmatpush1.msra.mxu0 %v482
    %8076 = vmatprep.subr.mxu0 0.0
    %8077 = vmatpush1.msra.mxu0 %v481
    %8078 = vmatprep.subr.mxu0 0.0
    %8079 = vmatpush1.msra.mxu0 %v480
    %8080 = vmatprep.subr.mxu0 0.0
    %8081 = vmatpush1.msra.mxu0 %v479
    %8082 = vmatprep.subr.mxu0 0.0
    %8083 = vmatpush1.msra.mxu0 %v478
    %8084 = vmatprep.subr.mxu0 0.0
    %8085 = vmatpush1.msra.mxu0 %v477
    %8086 = vmatprep.subr.mxu0 0.0
    %8087 = vmatpush1.msra.mxu0 %v476
    %8088 = vmatprep.subr.mxu0 0.0
    %8089 = vmatpush1.msra.mxu0 %v475
    %8090 = vmatprep.subr.mxu0 0.0
    %8091 = vmatpush1.msra.mxu0 %v474
    %8092 = vmatprep.subr.mxu0 0.0
    %8093 = vmatpush1.msra.mxu0 %v473
    %8094 = vmatprep.subr.mxu0 0.0
    %8095 = vmatpush1.msra.mxu0 %v472
    %8096 = vmatprep.subr.mxu0 0.0
    %8097 = vmatpush1.msra.mxu0 %v471
    %8098 = vmatprep.subr.mxu0 0.0
    %8099 = vmatpush1.msra.mxu0 %v470
    %8100 = vmatprep.subr.mxu0 0.0
    %8101 = vmatpush1.msra.mxu0 %v469
    %8102 = vmatprep.subr.mxu0 0.0
    %8103 = vmatpush1.msra.mxu0 %v468
    %8104 = vmatprep.subr.mxu0 0.0
    %8105 = vmatpush1.msra.mxu0 %v467
    %8106 = vmatprep.subr.mxu0 0.0
    %8107 = vmatpush2.msra.mxu0 0.0
    %8108 = vmatprep.subr.mxu0 0.0
    %8109 = vmatpush2.msra.mxu0 0.0
    %8110 = vmatprep.subr.mxu0 0.0
    %8111 = vmatpush2.msra.mxu0 0.0
    %8112 = vmatprep.subr.mxu0 0.0
    %8113 = vmatpush2.msra.mxu0 0.0
    %8114 = vmatprep.subr.mxu0 0.0
    %8115 = vmatpush2.msra.mxu0 0.0
    %8116 = vmatprep.subr.mxu0 0.0
    %8117 = vmatpush2.msra.mxu0 0.0
    %8118 = vmatprep.subr.mxu0 0.0
    %8119 = vmatpush2.msra.mxu0 0.0
    %8120 = vmatprep.subr.mxu0 0.0
    %8121 = vmatpush2.msra.mxu0 0.0
    %8122 = vmatprep.subr.mxu0 0.0
    %8123 = vmatpush2.msra.mxu0 0.0
    %8124 = vmatprep.subr.mxu0 0.0
    %8125 = vmatpush2.msra.mxu0 0.0
    %8126 = vmatprep.subr.mxu0 0.0
    %8127 = vmatpush2.msra.mxu0 0.0
    %8128 = vmatprep.subr.mxu0 0.0
    %8129 = vmatpush2.msra.mxu0 0.0
    %8130 = vmatprep.subr.mxu0 0.0
    %8131 = vmatpush2.msra.mxu0 0.0
    %8132 = vmatprep.subr.mxu0 0.0
    %8133 = vmatpush2.msra.mxu0 0.0
    %8134 = vmatprep.subr.mxu0 0.0
    %8135 = vmatpush2.msra.mxu0 0.0
    %8136 = vmatprep.subr.mxu0 0.0
    %8137 = vmatpush2.msra.mxu0 0.0
    %8138 = vmatprep.mubr.f32.mxu0 0.0
    %8139 = vmatmul.mubr.f32.gmra.mxu0 %v8067
    %v8140 = vpop.f32.mrf.mxu0
    %v8141 = vadd.f32 %v8072, %v8140
    %v8142 = vpop.f32.mrf.mxu0
    %8143 = vdwg.mxu0
    %vm8144 = vcmask 25600
    %8145 = vst.msk [vmem:[#allocation13] sm:$0x3] %vm8144, %v8141
    // Predicated region
    $region74: #{tpu_custom_call.1} parent=1 // pred_check
      _
    $region75: #{tpu_custom_call.1} parent=1 // pred_check_branch
      %8147 = sbr.rel (0) target = $region77
    $region76: #{tpu_custom_call.1} parent=1 // pred_region
      %s8149 = ssub.s32 32, 32
      %8150 = vsyncadd [#allocation4], %s8149
      %s8152 = sshll.u32 [#allocation13], 4
      %s8153 = int_to_ptr.vmem [resolvable:$true] %s8152
      %8155 = dma.vmem_to_hbm [thread:$0]  %s8153, 32, %s12, [#allocation4]
    $region77: #{tpu_custom_call.1} parent=1 // pred_fallthru
      _
    // Predicated region
    $region78: #{tpu_custom_call.1} parent=1 // pred_check
      _
    $region79: #{tpu_custom_call.1} parent=1 // pred_check_branch
      %8157 = sbr.rel (0) target = $region81
    $region80: #{tpu_custom_call.1} parent=1 // pred_region
      %8158 = dma.done [#allocation4], 32
    $region81: #{tpu_custom_call.1} parent=1 // pred_fallthru
      _
    %8159 = vsyncpa [#allocation3], 1
    %8160 = vsyncpa [#allocation6], 1
    %8161 = vsyncpa [#allocation9], 1
    %8162 = vsyncpa [#allocation12], 1
    %8163 = vsyncpa [#allocation4], 1

</llo_original>
